<compile_context>
chip_gen: v6e
topology: v6e:2x2x1
jax: 0.10.0
libtpu: 0.0.40
codegen_flags: <defaults>
</compile_context>

<pallas_src>
import jax
import jax.numpy as jnp
from jax.experimental import pallas as pl
from jax.experimental.pallas import tpu as pltpu


# ----------------------------------------------------------------------------
# helpers
# ----------------------------------------------------------------------------
def _full_spec(shape):
    # whole array as a single block (grid has a single point)
    n = len(shape)
    return pl.BlockSpec(shape, lambda i, n=n: (0,) * n)


def _lstm_cell(gates, c, H):
    """Gate layout [i | f | o | g]: one contiguous sigmoid + one tanh call.

    (Differs from PyTorch's [i|f|g|o]; permute weight/bias columns if loading
    real checkpoints.)
    """
    sig = jax.nn.sigmoid(gates[:, 0:3 * H])
    g = jnp.tanh(gates[:, 3 * H:4 * H])
    c_new = sig[:, H:2 * H] * c + sig[:, 0:H] * g
    h_new = sig[:, 2 * H:3 * H] * jnp.tanh(c_new)
    return h_new, c_new


# ----------------------------------------------------------------------------
# Fused encoder + decoder kernel.
#   xp : (B, T,  8H) pre-projected encoder gate activations (fwd | bwd)
#   yp : (B, Td, 4D) pre-projected decoder gate activations (D = 2H)
#   whh_* : bf16 recurrent weights, wout_* : bf16 padded output projections
#   bout  : f32 padded output bias (pad = -1e30)
#   out   : (B, Td, Vp) f32 log-probs
#   enc   : (B, T, D) f32 VMEM scratch (encoder memory, never leaves VMEM)
# ----------------------------------------------------------------------------
def mathen_kernel(xp_ref, yp_ref, whh_f_ref, whh_b_ref, whh_d_ref,
                  wout_h_ref, wout_c_ref, bout_ref, out_ref, enc_ref):
    B, T, _ = xp_ref.shape
    Td = yp_ref.shape[1]
    H = whh_f_ref.shape[0]
    D = whh_d_ref.shape[0]
    Vp = wout_h_ref.shape[1]
    S = T
    bf16 = jnp.bfloat16
    f32 = jnp.float32

    # hoisted loads (weights already bf16 from one-time prep; bias stays f32)
    whh_f = whh_f_ref[...]
    whh_b = whh_b_ref[...]
    whh_d = whh_d_ref[...]
    wout_h = wout_h_ref[...]
    wout_c = wout_c_ref[...]
    bout = jnp.broadcast_to(bout_ref[...], (B, Vp))      # hoisted broadcast

    # ------------------ encoder: bidirectional LSTM, interleaved ------------
    zeros = jnp.zeros((B, H), f32)
    hf, cf, hb, cb = zeros, zeros, zeros, zeros
    # fully unrolled with static indices (statically addressed sublane stores)
    for t in range(T):
        tr = T - 1 - t
        gates_f = xp_ref[:, t, 0:4 * H] + jnp.dot(
            hf.astype(bf16), whh_f, preferred_element_type=f32)
        gates_b = xp_ref[:, tr, 4 * H:8 * H] + jnp.dot(
            hb.astype(bf16), whh_b, preferred_element_type=f32)
        hf, cf = _lstm_cell(gates_f, cf, H)
        hb, cb = _lstm_cell(gates_b, cb, H)
        # fused _cat_directions: fwd lanes [0:H], bwd lanes [H:2H]
        enc_ref[:, t, 0:H] = hf
        enc_ref[:, tr, H:2 * H] = hb

    # concatenated final states seed the decoder (never leave the kernel)
    h = jnp.concatenate([hf, hb], axis=-1)               # (B, D)
    c = jnp.concatenate([cf, cb], axis=-1)               # (B, D)

    enc_f32 = enc_ref[...]                                # (B, S, D) f32
    if S > 16:
        # MXU path for long sequences: hoist bf16 copies (one transpose total)
        enc_bf = enc_f32.astype(bf16)                     # (B, S, D)
        enc_t_bf = jnp.transpose(enc_bf, (0, 2, 1))       # (B, D, S)

    # ------------------ decoder: LSTM + attention + log_softmax -------------
    for t in range(Td):
        gates = yp_ref[:, t, :] + jnp.dot(
            h.astype(bf16), whh_d, preferred_element_type=f32)
        h, c = _lstm_cell(gates, c, D)

        if S <= 16:
            # VPU/XLU attention: no tiny-matmul MXU round trips on the chain
            scores = jnp.sum(h[:, None, :] * enc_f32, axis=-1)        # (B, S)
            m = jnp.max(scores, axis=-1, keepdims=True)
            e = jnp.exp(scores - m)
            attn = e * pl.reciprocal(jnp.sum(e, axis=-1, keepdims=True),
                                     approx=True)                     # (B, S)
            ctx = jnp.sum(attn[:, :, None] * enc_f32, axis=1)         # (B, D)
        else:
            hq = h.astype(bf16)[:, None, :]                           # (B,1,D)
            scores = jnp.einsum('bqd,bds->bqs', hq, enc_t_bf,
                                preferred_element_type=f32)           # (B,1,S)
            m = jnp.max(scores, axis=-1, keepdims=True)
            e = jnp.exp(scores - m)
            attn = e * pl.reciprocal(jnp.sum(e, axis=-1, keepdims=True),
                                     approx=True)
            ctx = jnp.einsum('bqs,bsd->bqd', attn.astype(bf16), enc_bf,
                             preferred_element_type=f32)[:, 0, :]     # (B, D)

        # output projection on [h ; ctx] (split weights avoid a concat)
        logits = (jnp.dot(h.astype(bf16), wout_h, preferred_element_type=f32)
                  + jnp.dot(ctx.astype(bf16), wout_c, preferred_element_type=f32)
                  + bout)                                             # (B, Vp)
        lm = jnp.max(logits, axis=-1, keepdims=True)
        lse = lm + jnp.log(jnp.sum(jnp.exp(logits - lm), axis=-1, keepdims=True))
        out_ref[:, t, :] = logits - lse


# ----------------------------------------------------------------------------
# Forward wrapper: two gathers feed the fused kernel; output sliced to V.
# ----------------------------------------------------------------------------
def mathen_forward(src_tokens, tgt_tokens, kp, *, vocab_tgt):
    # projection was folded into the tables offline -> gathers only
    xp = jnp.take(kp["emb_src_proj"], src_tokens, axis=0)   # (B, T,  8H)
    yp = jnp.take(kp["emb_tgt_proj"], tgt_tokens, axis=0)   # (B, Td, 4D)
    B, T, g8 = xp.shape
    Td = yp.shape[1]
    H = g8 // 8
    D = 2 * H
    Vp = kp["wout_h"].shape[1]

    out_shape = jax.ShapeDtypeStruct((B, Td, Vp), jnp.float32)
    ins = (xp, yp, kp["whh_f"], kp["whh_b"], kp["whh_d"],
           kp["wout_h"], kp["wout_c"], kp["b_out"])
    out = pl.pallas_call(
        mathen_kernel,
        out_shape=out_shape,
        grid=(1,),
        in_specs=[_full_spec(a.shape) for a in ins],
        out_specs=_full_spec(out_shape.shape),
        scratch_shapes=[pltpu.VMEM((B, T, D), jnp.float32)],
        compiler_params=pltpu.CompilerParams(
            dimension_semantics=("arbitrary",)),
    )(*ins)
    return out[..., :vocab_tgt]                 # strip lane padding of vocab


# ----------------------------------------------------------------------------
# deterministic parameter init (raw, "PyTorch-like" parameters)
# ----------------------------------------------------------------------------
def make_params(key, vocab_src, vocab_tgt, E, H):
    D = 2 * H
    ks = jax.random.split(key, 16)
    s = 0.1
    f32 = jnp.float32

    def n(k, shape):
        return s * jax.random.normal(k, shape, f32)

    return {
        "emb_src": n(ks[0], (vocab_src, E)),
        "emb_tgt": n(ks[1], (vocab_tgt, E)),
        # encoder forward / backward LSTM (gate layout [i|f|o|g])
        "wih_f": n(ks[2], (E, 4 * H)),
        "whh_f": n(ks[3], (H, 4 * H)),
        "b_f":   n(ks[4], (1, 4 * H)),
        "wih_b": n(ks[5], (E, 4 * H)),
        "whh_b": n(ks[6], (H, 4 * H)),
        "b_b":   n(ks[7], (1, 4 * H)),
        # decoder LSTM (hidden = 2H from _cat_directions)
        "wih_d": n(ks[8], (E, 4 * D)),
        "whh_d": n(ks[9], (D, 4 * D)),
        "b_d":   n(ks[10], (1, 4 * D)),
        # output projection on [h ; ctx] -> vocab
        "wout_h": n(ks[11], (D, vocab_tgt)),
        "wout_c": n(ks[12], (D, vocab_tgt)),
        "b_out":  n(ks[13], (1, vocab_tgt)),
    }


# ----------------------------------------------------------------------------
# one-time parameter prep: fold input projections into embedding tables,
# pre-pad / pre-cast weights to kernel-ready form (no per-call XLA massaging).
# ----------------------------------------------------------------------------
def prep_params(p):
    f32 = jnp.float32
    bf16 = jnp.bfloat16
    V = p["wout_h"].shape[1]
    Vp = ((V + 127) // 128) * 128
    pad = Vp - V

    # x @ W_ih + b is linear over embedding rows -> bake into the tables once
    wih_enc = jnp.concatenate([p["wih_f"], p["wih_b"]], axis=1)     # (E, 8H)
    b_enc = jnp.concatenate([p["b_f"], p["b_b"]], axis=1)           # (1, 8H)
    emb_src_proj = p["emb_src"] @ wih_enc + b_enc                   # (Vsrc, 8H)
    emb_tgt_proj = p["emb_tgt"] @ p["wih_d"] + p["b_d"]             # (Vtgt, 4D)

    return {
        "emb_src_proj": emb_src_proj.astype(f32),
        "emb_tgt_proj": emb_tgt_proj.astype(f32),
        "whh_f": p["whh_f"].astype(bf16),
        "whh_b": p["whh_b"].astype(bf16),
        "whh_d": p["whh_d"].astype(bf16),
        "wout_h": jnp.pad(p["wout_h"], ((0, 0), (0, pad))).astype(bf16),
        "wout_c": jnp.pad(p["wout_c"], ((0, 0), (0, pad))).astype(bf16),
        # pad bias stays f32 so -1e30 never meets a low-precision cast
        "b_out": jnp.pad(p["b_out"], ((0, 0), (0, pad)),
                         constant_values=-1e30).astype(f32),
    }


if __name__ == "__main__":
    B, T_src, T_dec = 2, 8, 8
    vocab_src, vocab_tgt = 80, 100
    E, H = 64, 128                 # decoder hidden = 2H = 256 (lane aligned)

    key = jax.random.PRNGKey(0)
    k_param, k_src, k_tgt = jax.random.split(key, 3)
    params = make_params(k_param, vocab_src, vocab_tgt, E, H)
    kp = prep_params(params)       # one-time prep, outside the per-call path

    src = jax.random.randint(k_src, (B, T_src), 0, vocab_src, dtype=jnp.int32)
    tgt = jax.random.randint(k_tgt, (B, T_dec), 0, vocab_tgt, dtype=jnp.int32)

    fwd = jax.jit(mathen_forward, static_argnames=("vocab_tgt",))
    log_probs = fwd(src, tgt, kp, vocab_tgt=vocab_tgt)        # (B, T_dec, V)
    jax.block_until_ready(log_probs)

    assert log_probs.shape == (B, T_dec, vocab_tgt)
    assert bool(jnp.all(jnp.isfinite(log_probs)))
    # log_softmax rows should sum to ~1 in probability space
    prob_sum = jnp.sum(jnp.exp(log_probs), axis=-1)
    assert bool(jnp.all(jnp.abs(prob_sum - 1.0) < 1e-3))
    print("KERNEL_OK")
</pallas_src>

<mosaic_0001>
module attributes {stable_mosaic.version = 11 : i64} {
  func.func @mathen_kernel(%arg0: i32, %arg1: memref<2x8x1024xf32, #tpu.memory_space<vmem>>, %arg2: memref<2x8x1024xf32, #tpu.memory_space<vmem>>, %arg3: memref<128x512xbf16, #tpu.memory_space<vmem>>, %arg4: memref<128x512xbf16, #tpu.memory_space<vmem>>, %arg5: memref<256x1024xbf16, #tpu.memory_space<vmem>>, %arg6: memref<256x128xbf16, #tpu.memory_space<vmem>>, %arg7: memref<256x128xbf16, #tpu.memory_space<vmem>>, %arg8: memref<1x128xf32, #tpu.memory_space<vmem>>, %arg9: memref<2x8x128xf32, #tpu.memory_space<vmem>>, %arg10: memref<2x8x256xf32, #tpu.memory_space<vmem>>) attributes {dimension_semantics = [#tpu.dimension_semantics<arbitrary>], iteration_bounds = array<i64: 1>, scalar_prefetch = 0 : i64, scratch_operands = 1 : i64, tpu.core_type = #tpu.core_type<tc>, window_params = [{pipeline_mode = #tpu.pipeline_mode<synchronous>, transform_indices = @transform_0, window_bounds = array<i64: 2, 8, 1024>}, {pipeline_mode = #tpu.pipeline_mode<synchronous>, transform_indices = @transform_1, window_bounds = array<i64: 2, 8, 1024>}, {pipeline_mode = #tpu.pipeline_mode<synchronous>, transform_indices = @transform_2, window_bounds = array<i64: 128, 512>}, {pipeline_mode = #tpu.pipeline_mode<synchronous>, transform_indices = @transform_3, window_bounds = array<i64: 128, 512>}, {pipeline_mode = #tpu.pipeline_mode<synchronous>, transform_indices = @transform_4, window_bounds = array<i64: 256, 1024>}, {pipeline_mode = #tpu.pipeline_mode<synchronous>, transform_indices = @transform_5, window_bounds = array<i64: 256, 128>}, {pipeline_mode = #tpu.pipeline_mode<synchronous>, transform_indices = @transform_6, window_bounds = array<i64: 256, 128>}, {pipeline_mode = #tpu.pipeline_mode<synchronous>, transform_indices = @transform_7, window_bounds = array<i64: 1, 128>}, {pipeline_mode = #tpu.pipeline_mode<synchronous>, transform_indices = @transform_8, window_bounds = array<i64: 2, 8, 128>}]} {
    %c0 = arith.constant 0 : index
    %c0_0 = arith.constant 0 : index
    %0 = vector.load %arg3[%c0, %c0_0] : memref<128x512xbf16, #tpu.memory_space<vmem>>, vector<128x512xbf16>
    %c0_1 = arith.constant 0 : index
    %c0_2 = arith.constant 0 : index
    %1 = vector.load %arg4[%c0_1, %c0_2] : memref<128x512xbf16, #tpu.memory_space<vmem>>, vector<128x512xbf16>
    %c0_3 = arith.constant 0 : index
    %c0_4 = arith.constant 0 : index
    %2 = vector.load %arg5[%c0_3, %c0_4] : memref<256x1024xbf16, #tpu.memory_space<vmem>>, vector<256x1024xbf16>
    %c0_5 = arith.constant 0 : index
    %c0_6 = arith.constant 0 : index
    %3 = vector.load %arg6[%c0_5, %c0_6] : memref<256x128xbf16, #tpu.memory_space<vmem>>, vector<256x128xbf16>
    %c0_7 = arith.constant 0 : index
    %c0_8 = arith.constant 0 : index
    %4 = vector.load %arg7[%c0_7, %c0_8] : memref<256x128xbf16, #tpu.memory_space<vmem>>, vector<256x128xbf16>
    %c0_9 = arith.constant 0 : index
    %c0_10 = arith.constant 0 : index
    %5 = vector.load %arg8[%c0_9, %c0_10] : memref<1x128xf32, #tpu.memory_space<vmem>>, vector<1x128xf32>
    %6 = vector.shape_cast %5 : vector<1x128xf32> to vector<1x128xf32>
    %7 = vector.broadcast %6 : vector<1x128xf32> to vector<2x128xf32>
    %cst = arith.constant 0.000000e+00 : f32
    %8 = vector.broadcast %cst : f32 to vector<2x128xf32>
    %c0_11 = arith.constant 0 : index
    %c0_12 = arith.constant 0 : index
    %c0_13 = arith.constant 0 : index
    %9 = vector.load %arg1[%c0_11, %c0_12, %c0_13] : memref<2x8x1024xf32, #tpu.memory_space<vmem>>, vector<2x1x512xf32>
    %10 = vector.shape_cast %9 : vector<2x1x512xf32> to vector<2x512xf32>
    %11 = arith.truncf %8 : vector<2x128xf32> to vector<2x128xbf16>
    %cst_14 = arith.constant dense<0.000000e+00> : vector<2x512xf32>
    %12 = tpu.matmul %11, %0, %cst_14 {dimension_numbers = #tpu.dot_dimension_numbers<[1], [0], [0], [1], [0, 0, 1, 1], [], []>} : vector<2x128xbf16>, vector<128x512xbf16>, vector<2x512xf32> -> vector<2x512xf32>
    %13 = arith.addf %10, %12 : vector<2x512xf32>
    %c0_15 = arith.constant 0 : index
    %c7 = arith.constant 7 : index
    %c512 = arith.constant 512 : index
    %14 = vector.load %arg1[%c0_15, %c7, %c512] : memref<2x8x1024xf32, #tpu.memory_space<vmem>>, vector<2x1x512xf32>
    %15 = vector.shape_cast %14 : vector<2x1x512xf32> to vector<2x512xf32>
    %16 = arith.truncf %8 : vector<2x128xf32> to vector<2x128xbf16>
    %cst_16 = arith.constant dense<0.000000e+00> : vector<2x512xf32>
    %17 = tpu.matmul %16, %1, %cst_16 {dimension_numbers = #tpu.dot_dimension_numbers<[1], [0], [0], [1], [0, 0, 1, 1], [], []>} : vector<2x128xbf16>, vector<128x512xbf16>, vector<2x512xf32> -> vector<2x512xf32>
    %18 = arith.addf %15, %17 : vector<2x512xf32>
    %19 = vector.extract_strided_slice %13 {offsets = [0, 0], sizes = [2, 384], strides = [1, 1]} : vector<2x512xf32> to vector<2x384xf32>
    %20 = arith.negf %19 : vector<2x384xf32>
    %21 = math.exp %20 : vector<2x384xf32>
    %cst_17 = arith.constant 1.000000e+00 : f32
    %22 = vector.broadcast %cst_17 : f32 to vector<2x384xf32>
    %23 = arith.addf %22, %21 : vector<2x384xf32>
    %24 = arith.divf %22, %23 : vector<2x384xf32>
    %25 = vector.extract_strided_slice %13 {offsets = [0, 384], sizes = [2, 128], strides = [1, 1]} : vector<2x512xf32> to vector<2x128xf32>
    %26 = math.tanh %25 : vector<2x128xf32>
    %27 = vector.extract_strided_slice %24 {offsets = [0, 128], sizes = [2, 128], strides = [1, 1]} : vector<2x384xf32> to vector<2x128xf32>
    %28 = arith.mulf %27, %8 : vector<2x128xf32>
    %29 = vector.extract_strided_slice %24 {offsets = [0, 0], sizes = [2, 128], strides = [1, 1]} : vector<2x384xf32> to vector<2x128xf32>
    %30 = arith.mulf %29, %26 : vector<2x128xf32>
    %31 = arith.addf %28, %30 : vector<2x128xf32>
    %32 = vector.extract_strided_slice %24 {offsets = [0, 256], sizes = [2, 128], strides = [1, 1]} : vector<2x384xf32> to vector<2x128xf32>
    %33 = math.tanh %31 : vector<2x128xf32>
    %34 = arith.mulf %32, %33 : vector<2x128xf32>
    %35 = vector.extract_strided_slice %18 {offsets = [0, 0], sizes = [2, 384], strides = [1, 1]} : vector<2x512xf32> to vector<2x384xf32>
    %36 = arith.negf %35 : vector<2x384xf32>
    %37 = math.exp %36 : vector<2x384xf32>
    %cst_18 = arith.constant 1.000000e+00 : f32
    %38 = vector.broadcast %cst_18 : f32 to vector<2x384xf32>
    %39 = arith.addf %38, %37 : vector<2x384xf32>
    %40 = arith.divf %38, %39 : vector<2x384xf32>
    %41 = vector.extract_strided_slice %18 {offsets = [0, 384], sizes = [2, 128], strides = [1, 1]} : vector<2x512xf32> to vector<2x128xf32>
    %42 = math.tanh %41 : vector<2x128xf32>
    %43 = vector.extract_strided_slice %40 {offsets = [0, 128], sizes = [2, 128], strides = [1, 1]} : vector<2x384xf32> to vector<2x128xf32>
    %44 = arith.mulf %43, %8 : vector<2x128xf32>
    %45 = vector.extract_strided_slice %40 {offsets = [0, 0], sizes = [2, 128], strides = [1, 1]} : vector<2x384xf32> to vector<2x128xf32>
    %46 = arith.mulf %45, %42 : vector<2x128xf32>
    %47 = arith.addf %44, %46 : vector<2x128xf32>
    %48 = vector.extract_strided_slice %40 {offsets = [0, 256], sizes = [2, 128], strides = [1, 1]} : vector<2x384xf32> to vector<2x128xf32>
    %49 = math.tanh %47 : vector<2x128xf32>
    %50 = arith.mulf %48, %49 : vector<2x128xf32>
    %c0_19 = arith.constant 0 : index
    %c0_20 = arith.constant 0 : index
    %c0_21 = arith.constant 0 : index
    %51 = vector.load %arg10[%c0_19, %c0_20, %c0_21] : memref<2x8x256xf32, #tpu.memory_space<vmem>>, vector<2x1x128xf32>
    %52 = vector.shape_cast %51 : vector<2x1x128xf32> to vector<2x128xf32>
    %53 = vector.shape_cast %34 : vector<2x128xf32> to vector<2x1x128xf32>
    tpu.vector_store %arg10[%c0_19, %c0_20, %c0_21], %53 {strides = array<i32>} : memref<2x8x256xf32, #tpu.memory_space<vmem>>, vector<2x1x128xf32>,
    %c0_22 = arith.constant 0 : index
    %c7_23 = arith.constant 7 : index
    %c128 = arith.constant 128 : index
    %54 = vector.load %arg10[%c0_22, %c7_23, %c128] : memref<2x8x256xf32, #tpu.memory_space<vmem>>, vector<2x1x128xf32>
    %55 = vector.shape_cast %54 : vector<2x1x128xf32> to vector<2x128xf32>
    %56 = vector.shape_cast %50 : vector<2x128xf32> to vector<2x1x128xf32>
    tpu.vector_store %arg10[%c0_22, %c7_23, %c128], %56 {strides = array<i32>} : memref<2x8x256xf32, #tpu.memory_space<vmem>>, vector<2x1x128xf32>,
    %c0_24 = arith.constant 0 : index
    %c1 = arith.constant 1 : index
    %c0_25 = arith.constant 0 : index
    %57 = vector.load %arg1[%c0_24, %c1, %c0_25] : memref<2x8x1024xf32, #tpu.memory_space<vmem>>, vector<2x1x512xf32>
    %58 = vector.shape_cast %57 : vector<2x1x512xf32> to vector<2x512xf32>
    %59 = arith.truncf %34 : vector<2x128xf32> to vector<2x128xbf16>
    %cst_26 = arith.constant dense<0.000000e+00> : vector<2x512xf32>
    %60 = tpu.matmul %59, %0, %cst_26 {dimension_numbers = #tpu.dot_dimension_numbers<[1], [0], [0], [1], [0, 0, 1, 1], [], []>} : vector<2x128xbf16>, vector<128x512xbf16>, vector<2x512xf32> -> vector<2x512xf32>
    %61 = arith.addf %58, %60 : vector<2x512xf32>
    %c0_27 = arith.constant 0 : index
    %c6 = arith.constant 6 : index
    %c512_28 = arith.constant 512 : index
    %62 = vector.load %arg1[%c0_27, %c6, %c512_28] : memref<2x8x1024xf32, #tpu.memory_space<vmem>>, vector<2x1x512xf32>
    %63 = vector.shape_cast %62 : vector<2x1x512xf32> to vector<2x512xf32>
    %64 = arith.truncf %50 : vector<2x128xf32> to vector<2x128xbf16>
    %cst_29 = arith.constant dense<0.000000e+00> : vector<2x512xf32>
    %65 = tpu.matmul %64, %1, %cst_29 {dimension_numbers = #tpu.dot_dimension_numbers<[1], [0], [0], [1], [0, 0, 1, 1], [], []>} : vector<2x128xbf16>, vector<128x512xbf16>, vector<2x512xf32> -> vector<2x512xf32>
    %66 = arith.addf %63, %65 : vector<2x512xf32>
    %67 = vector.extract_strided_slice %61 {offsets = [0, 0], sizes = [2, 384], strides = [1, 1]} : vector<2x512xf32> to vector<2x384xf32>
    %68 = arith.negf %67 : vector<2x384xf32>
    %69 = math.exp %68 : vector<2x384xf32>
    %cst_30 = arith.constant 1.000000e+00 : f32
    %70 = vector.broadcast %cst_30 : f32 to vector<2x384xf32>
    %71 = arith.addf %70, %69 : vector<2x384xf32>
    %72 = arith.divf %70, %71 : vector<2x384xf32>
    %73 = vector.extract_strided_slice %61 {offsets = [0, 384], sizes = [2, 128], strides = [1, 1]} : vector<2x512xf32> to vector<2x128xf32>
    %74 = math.tanh %73 : vector<2x128xf32>
    %75 = vector.extract_strided_slice %72 {offsets = [0, 128], sizes = [2, 128], strides = [1, 1]} : vector<2x384xf32> to vector<2x128xf32>
    %76 = arith.mulf %75, %31 : vector<2x128xf32>
    %77 = vector.extract_strided_slice %72 {offsets = [0, 0], sizes = [2, 128], strides = [1, 1]} : vector<2x384xf32> to vector<2x128xf32>
    %78 = arith.mulf %77, %74 : vector<2x128xf32>
    %79 = arith.addf %76, %78 : vector<2x128xf32>
    %80 = vector.extract_strided_slice %72 {offsets = [0, 256], sizes = [2, 128], strides = [1, 1]} : vector<2x384xf32> to vector<2x128xf32>
    %81 = math.tanh %79 : vector<2x128xf32>
    %82 = arith.mulf %80, %81 : vector<2x128xf32>
    %83 = vector.extract_strided_slice %66 {offsets = [0, 0], sizes = [2, 384], strides = [1, 1]} : vector<2x512xf32> to vector<2x384xf32>
    %84 = arith.negf %83 : vector<2x384xf32>
    %85 = math.exp %84 : vector<2x384xf32>
    %cst_31 = arith.constant 1.000000e+00 : f32
    %86 = vector.broadcast %cst_31 : f32 to vector<2x384xf32>
    %87 = arith.addf %86, %85 : vector<2x384xf32>
    %88 = arith.divf %86, %87 : vector<2x384xf32>
    %89 = vector.extract_strided_slice %66 {offsets = [0, 384], sizes = [2, 128], strides = [1, 1]} : vector<2x512xf32> to vector<2x128xf32>
    %90 = math.tanh %89 : vector<2x128xf32>
    %91 = vector.extract_strided_slice %88 {offsets = [0, 128], sizes = [2, 128], strides = [1, 1]} : vector<2x384xf32> to vector<2x128xf32>
    %92 = arith.mulf %91, %47 : vector<2x128xf32>
    %93 = vector.extract_strided_slice %88 {offsets = [0, 0], sizes = [2, 128], strides = [1, 1]} : vector<2x384xf32> to vector<2x128xf32>
    %94 = arith.mulf %93, %90 : vector<2x128xf32>
    %95 = arith.addf %92, %94 : vector<2x128xf32>
    %96 = vector.extract_strided_slice %88 {offsets = [0, 256], sizes = [2, 128], strides = [1, 1]} : vector<2x384xf32> to vector<2x128xf32>
    %97 = math.tanh %95 : vector<2x128xf32>
    %98 = arith.mulf %96, %97 : vector<2x128xf32>
    %c0_32 = arith.constant 0 : index
    %c1_33 = arith.constant 1 : index
    %c0_34 = arith.constant 0 : index
    %99 = vector.load %arg10[%c0_32, %c1_33, %c0_34] : memref<2x8x256xf32, #tpu.memory_space<vmem>>, vector<2x1x128xf32>
    %100 = vector.shape_cast %99 : vector<2x1x128xf32> to vector<2x128xf32>
    %101 = vector.shape_cast %82 : vector<2x128xf32> to vector<2x1x128xf32>
    tpu.vector_store %arg10[%c0_32, %c1_33, %c0_34], %101 {strides = array<i32>} : memref<2x8x256xf32, #tpu.memory_space<vmem>>, vector<2x1x128xf32>,
    %c0_35 = arith.constant 0 : index
    %c6_36 = arith.constant 6 : index
    %c128_37 = arith.constant 128 : index
    %102 = vector.load %arg10[%c0_35, %c6_36, %c128_37] : memref<2x8x256xf32, #tpu.memory_space<vmem>>, vector<2x1x128xf32>
    %103 = vector.shape_cast %102 : vector<2x1x128xf32> to vector<2x128xf32>
    %104 = vector.shape_cast %98 : vector<2x128xf32> to vector<2x1x128xf32>
    tpu.vector_store %arg10[%c0_35, %c6_36, %c128_37], %104 {strides = array<i32>} : memref<2x8x256xf32, #tpu.memory_space<vmem>>, vector<2x1x128xf32>,
    %c0_38 = arith.constant 0 : index
    %c2 = arith.constant 2 : index
    %c0_39 = arith.constant 0 : index
    %105 = vector.load %arg1[%c0_38, %c2, %c0_39] : memref<2x8x1024xf32, #tpu.memory_space<vmem>>, vector<2x1x512xf32>
    %106 = vector.shape_cast %105 : vector<2x1x512xf32> to vector<2x512xf32>
    %107 = arith.truncf %82 : vector<2x128xf32> to vector<2x128xbf16>
    %cst_40 = arith.constant dense<0.000000e+00> : vector<2x512xf32>
    %108 = tpu.matmul %107, %0, %cst_40 {dimension_numbers = #tpu.dot_dimension_numbers<[1], [0], [0], [1], [0, 0, 1, 1], [], []>} : vector<2x128xbf16>, vector<128x512xbf16>, vector<2x512xf32> -> vector<2x512xf32>
    %109 = arith.addf %106, %108 : vector<2x512xf32>
    %c0_41 = arith.constant 0 : index
    %c5 = arith.constant 5 : index
    %c512_42 = arith.constant 512 : index
    %110 = vector.load %arg1[%c0_41, %c5, %c512_42] : memref<2x8x1024xf32, #tpu.memory_space<vmem>>, vector<2x1x512xf32>
    %111 = vector.shape_cast %110 : vector<2x1x512xf32> to vector<2x512xf32>
    %112 = arith.truncf %98 : vector<2x128xf32> to vector<2x128xbf16>
    %cst_43 = arith.constant dense<0.000000e+00> : vector<2x512xf32>
    %113 = tpu.matmul %112, %1, %cst_43 {dimension_numbers = #tpu.dot_dimension_numbers<[1], [0], [0], [1], [0, 0, 1, 1], [], []>} : vector<2x128xbf16>, vector<128x512xbf16>, vector<2x512xf32> -> vector<2x512xf32>
    %114 = arith.addf %111, %113 : vector<2x512xf32>
    %115 = vector.extract_strided_slice %109 {offsets = [0, 0], sizes = [2, 384], strides = [1, 1]} : vector<2x512xf32> to vector<2x384xf32>
    %116 = arith.negf %115 : vector<2x384xf32>
    %117 = math.exp %116 : vector<2x384xf32>
    %cst_44 = arith.constant 1.000000e+00 : f32
    %118 = vector.broadcast %cst_44 : f32 to vector<2x384xf32>
    %119 = arith.addf %118, %117 : vector<2x384xf32>
    %120 = arith.divf %118, %119 : vector<2x384xf32>
    %121 = vector.extract_strided_slice %109 {offsets = [0, 384], sizes = [2, 128], strides = [1, 1]} : vector<2x512xf32> to vector<2x128xf32>
    %122 = math.tanh %121 : vector<2x128xf32>
    %123 = vector.extract_strided_slice %120 {offsets = [0, 128], sizes = [2, 128], strides = [1, 1]} : vector<2x384xf32> to vector<2x128xf32>
    %124 = arith.mulf %123, %79 : vector<2x128xf32>
    %125 = vector.extract_strided_slice %120 {offsets = [0, 0], sizes = [2, 128], strides = [1, 1]} : vector<2x384xf32> to vector<2x128xf32>
    %126 = arith.mulf %125, %122 : vector<2x128xf32>
    %127 = arith.addf %124, %126 : vector<2x128xf32>
    %128 = vector.extract_strided_slice %120 {offsets = [0, 256], sizes = [2, 128], strides = [1, 1]} : vector<2x384xf32> to vector<2x128xf32>
    %129 = math.tanh %127 : vector<2x128xf32>
    %130 = arith.mulf %128, %129 : vector<2x128xf32>
    %131 = vector.extract_strided_slice %114 {offsets = [0, 0], sizes = [2, 384], strides = [1, 1]} : vector<2x512xf32> to vector<2x384xf32>
    %132 = arith.negf %131 : vector<2x384xf32>
    %133 = math.exp %132 : vector<2x384xf32>
    %cst_45 = arith.constant 1.000000e+00 : f32
    %134 = vector.broadcast %cst_45 : f32 to vector<2x384xf32>
    %135 = arith.addf %134, %133 : vector<2x384xf32>
    %136 = arith.divf %134, %135 : vector<2x384xf32>
    %137 = vector.extract_strided_slice %114 {offsets = [0, 384], sizes = [2, 128], strides = [1, 1]} : vector<2x512xf32> to vector<2x128xf32>
    %138 = math.tanh %137 : vector<2x128xf32>
    %139 = vector.extract_strided_slice %136 {offsets = [0, 128], sizes = [2, 128], strides = [1, 1]} : vector<2x384xf32> to vector<2x128xf32>
    %140 = arith.mulf %139, %95 : vector<2x128xf32>
    %141 = vector.extract_strided_slice %136 {offsets = [0, 0], sizes = [2, 128], strides = [1, 1]} : vector<2x384xf32> to vector<2x128xf32>
    %142 = arith.mulf %141, %138 : vector<2x128xf32>
    %143 = arith.addf %140, %142 : vector<2x128xf32>
    %144 = vector.extract_strided_slice %136 {offsets = [0, 256], sizes = [2, 128], strides = [1, 1]} : vector<2x384xf32> to vector<2x128xf32>
    %145 = math.tanh %143 : vector<2x128xf32>
    %146 = arith.mulf %144, %145 : vector<2x128xf32>
    %c0_46 = arith.constant 0 : index
    %c2_47 = arith.constant 2 : index
    %c0_48 = arith.constant 0 : index
    %147 = vector.load %arg10[%c0_46, %c2_47, %c0_48] : memref<2x8x256xf32, #tpu.memory_space<vmem>>, vector<2x1x128xf32>
    %148 = vector.shape_cast %147 : vector<2x1x128xf32> to vector<2x128xf32>
    %149 = vector.shape_cast %130 : vector<2x128xf32> to vector<2x1x128xf32>
    tpu.vector_store %arg10[%c0_46, %c2_47, %c0_48], %149 {strides = array<i32>} : memref<2x8x256xf32, #tpu.memory_space<vmem>>, vector<2x1x128xf32>,
    %c0_49 = arith.constant 0 : index
    %c5_50 = arith.constant 5 : index
    %c128_51 = arith.constant 128 : index
    %150 = vector.load %arg10[%c0_49, %c5_50, %c128_51] : memref<2x8x256xf32, #tpu.memory_space<vmem>>, vector<2x1x128xf32>
    %151 = vector.shape_cast %150 : vector<2x1x128xf32> to vector<2x128xf32>
    %152 = vector.shape_cast %146 : vector<2x128xf32> to vector<2x1x128xf32>
    tpu.vector_store %arg10[%c0_49, %c5_50, %c128_51], %152 {strides = array<i32>} : memref<2x8x256xf32, #tpu.memory_space<vmem>>, vector<2x1x128xf32>,
    %c0_52 = arith.constant 0 : index
    %c3 = arith.constant 3 : index
    %c0_53 = arith.constant 0 : index
    %153 = vector.load %arg1[%c0_52, %c3, %c0_53] : memref<2x8x1024xf32, #tpu.memory_space<vmem>>, vector<2x1x512xf32>
    %154 = vector.shape_cast %153 : vector<2x1x512xf32> to vector<2x512xf32>
    %155 = arith.truncf %130 : vector<2x128xf32> to vector<2x128xbf16>
    %cst_54 = arith.constant dense<0.000000e+00> : vector<2x512xf32>
    %156 = tpu.matmul %155, %0, %cst_54 {dimension_numbers = #tpu.dot_dimension_numbers<[1], [0], [0], [1], [0, 0, 1, 1], [], []>} : vector<2x128xbf16>, vector<128x512xbf16>, vector<2x512xf32> -> vector<2x512xf32>
    %157 = arith.addf %154, %156 : vector<2x512xf32>
    %c0_55 = arith.constant 0 : index
    %c4 = arith.constant 4 : index
    %c512_56 = arith.constant 512 : index
    %158 = vector.load %arg1[%c0_55, %c4, %c512_56] : memref<2x8x1024xf32, #tpu.memory_space<vmem>>, vector<2x1x512xf32>
    %159 = vector.shape_cast %158 : vector<2x1x512xf32> to vector<2x512xf32>
    %160 = arith.truncf %146 : vector<2x128xf32> to vector<2x128xbf16>
    %cst_57 = arith.constant dense<0.000000e+00> : vector<2x512xf32>
    %161 = tpu.matmul %160, %1, %cst_57 {dimension_numbers = #tpu.dot_dimension_numbers<[1], [0], [0], [1], [0, 0, 1, 1], [], []>} : vector<2x128xbf16>, vector<128x512xbf16>, vector<2x512xf32> -> vector<2x512xf32>
    %162 = arith.addf %159, %161 : vector<2x512xf32>
    %163 = vector.extract_strided_slice %157 {offsets = [0, 0], sizes = [2, 384], strides = [1, 1]} : vector<2x512xf32> to vector<2x384xf32>
    %164 = arith.negf %163 : vector<2x384xf32>
    %165 = math.exp %164 : vector<2x384xf32>
    %cst_58 = arith.constant 1.000000e+00 : f32
    %166 = vector.broadcast %cst_58 : f32 to vector<2x384xf32>
    %167 = arith.addf %166, %165 : vector<2x384xf32>
    %168 = arith.divf %166, %167 : vector<2x384xf32>
    %169 = vector.extract_strided_slice %157 {offsets = [0, 384], sizes = [2, 128], strides = [1, 1]} : vector<2x512xf32> to vector<2x128xf32>
    %170 = math.tanh %169 : vector<2x128xf32>
    %171 = vector.extract_strided_slice %168 {offsets = [0, 128], sizes = [2, 128], strides = [1, 1]} : vector<2x384xf32> to vector<2x128xf32>
    %172 = arith.mulf %171, %127 : vector<2x128xf32>
    %173 = vector.extract_strided_slice %168 {offsets = [0, 0], sizes = [2, 128], strides = [1, 1]} : vector<2x384xf32> to vector<2x128xf32>
    %174 = arith.mulf %173, %170 : vector<2x128xf32>
    %175 = arith.addf %172, %174 : vector<2x128xf32>
    %176 = vector.extract_strided_slice %168 {offsets = [0, 256], sizes = [2, 128], strides = [1, 1]} : vector<2x384xf32> to vector<2x128xf32>
    %177 = math.tanh %175 : vector<2x128xf32>
    %178 = arith.mulf %176, %177 : vector<2x128xf32>
    %179 = vector.extract_strided_slice %162 {offsets = [0, 0], sizes = [2, 384], strides = [1, 1]} : vector<2x512xf32> to vector<2x384xf32>
    %180 = arith.negf %179 : vector<2x384xf32>
    %181 = math.exp %180 : vector<2x384xf32>
    %cst_59 = arith.constant 1.000000e+00 : f32
    %182 = vector.broadcast %cst_59 : f32 to vector<2x384xf32>
    %183 = arith.addf %182, %181 : vector<2x384xf32>
    %184 = arith.divf %182, %183 : vector<2x384xf32>
    %185 = vector.extract_strided_slice %162 {offsets = [0, 384], sizes = [2, 128], strides = [1, 1]} : vector<2x512xf32> to vector<2x128xf32>
    %186 = math.tanh %185 : vector<2x128xf32>
    %187 = vector.extract_strided_slice %184 {offsets = [0, 128], sizes = [2, 128], strides = [1, 1]} : vector<2x384xf32> to vector<2x128xf32>
    %188 = arith.mulf %187, %143 : vector<2x128xf32>
    %189 = vector.extract_strided_slice %184 {offsets = [0, 0], sizes = [2, 128], strides = [1, 1]} : vector<2x384xf32> to vector<2x128xf32>
    %190 = arith.mulf %189, %186 : vector<2x128xf32>
    %191 = arith.addf %188, %190 : vector<2x128xf32>
    %192 = vector.extract_strided_slice %184 {offsets = [0, 256], sizes = [2, 128], strides = [1, 1]} : vector<2x384xf32> to vector<2x128xf32>
    %193 = math.tanh %191 : vector<2x128xf32>
    %194 = arith.mulf %192, %193 : vector<2x128xf32>
    %c0_60 = arith.constant 0 : index
    %c3_61 = arith.constant 3 : index
    %c0_62 = arith.constant 0 : index
    %195 = vector.load %arg10[%c0_60, %c3_61, %c0_62] : memref<2x8x256xf32, #tpu.memory_space<vmem>>, vector<2x1x128xf32>
    %196 = vector.shape_cast %195 : vector<2x1x128xf32> to vector<2x128xf32>
    %197 = vector.shape_cast %178 : vector<2x128xf32> to vector<2x1x128xf32>
    tpu.vector_store %arg10[%c0_60, %c3_61, %c0_62], %197 {strides = array<i32>} : memref<2x8x256xf32, #tpu.memory_space<vmem>>, vector<2x1x128xf32>,
    %c0_63 = arith.constant 0 : index
    %c4_64 = arith.constant 4 : index
    %c128_65 = arith.constant 128 : index
    %198 = vector.load %arg10[%c0_63, %c4_64, %c128_65] : memref<2x8x256xf32, #tpu.memory_space<vmem>>, vector<2x1x128xf32>
    %199 = vector.shape_cast %198 : vector<2x1x128xf32> to vector<2x128xf32>
    %200 = vector.shape_cast %194 : vector<2x128xf32> to vector<2x1x128xf32>
    tpu.vector_store %arg10[%c0_63, %c4_64, %c128_65], %200 {strides = array<i32>} : memref<2x8x256xf32, #tpu.memory_space<vmem>>, vector<2x1x128xf32>,
    %c0_66 = arith.constant 0 : index
    %c4_67 = arith.constant 4 : index
    %c0_68 = arith.constant 0 : index
    %201 = vector.load %arg1[%c0_66, %c4_67, %c0_68] : memref<2x8x1024xf32, #tpu.memory_space<vmem>>, vector<2x1x512xf32>
    %202 = vector.shape_cast %201 : vector<2x1x512xf32> to vector<2x512xf32>
    %203 = arith.truncf %178 : vector<2x128xf32> to vector<2x128xbf16>
    %cst_69 = arith.constant dense<0.000000e+00> : vector<2x512xf32>
    %204 = tpu.matmul %203, %0, %cst_69 {dimension_numbers = #tpu.dot_dimension_numbers<[1], [0], [0], [1], [0, 0, 1, 1], [], []>} : vector<2x128xbf16>, vector<128x512xbf16>, vector<2x512xf32> -> vector<2x512xf32>
    %205 = arith.addf %202, %204 : vector<2x512xf32>
    %c0_70 = arith.constant 0 : index
    %c3_71 = arith.constant 3 : index
    %c512_72 = arith.constant 512 : index
    %206 = vector.load %arg1[%c0_70, %c3_71, %c512_72] : memref<2x8x1024xf32, #tpu.memory_space<vmem>>, vector<2x1x512xf32>
    %207 = vector.shape_cast %206 : vector<2x1x512xf32> to vector<2x512xf32>
    %208 = arith.truncf %194 : vector<2x128xf32> to vector<2x128xbf16>
    %cst_73 = arith.constant dense<0.000000e+00> : vector<2x512xf32>
    %209 = tpu.matmul %208, %1, %cst_73 {dimension_numbers = #tpu.dot_dimension_numbers<[1], [0], [0], [1], [0, 0, 1, 1], [], []>} : vector<2x128xbf16>, vector<128x512xbf16>, vector<2x512xf32> -> vector<2x512xf32>
    %210 = arith.addf %207, %209 : vector<2x512xf32>
    %211 = vector.extract_strided_slice %205 {offsets = [0, 0], sizes = [2, 384], strides = [1, 1]} : vector<2x512xf32> to vector<2x384xf32>
    %212 = arith.negf %211 : vector<2x384xf32>
    %213 = math.exp %212 : vector<2x384xf32>
    %cst_74 = arith.constant 1.000000e+00 : f32
    %214 = vector.broadcast %cst_74 : f32 to vector<2x384xf32>
    %215 = arith.addf %214, %213 : vector<2x384xf32>
    %216 = arith.divf %214, %215 : vector<2x384xf32>
    %217 = vector.extract_strided_slice %205 {offsets = [0, 384], sizes = [2, 128], strides = [1, 1]} : vector<2x512xf32> to vector<2x128xf32>
    %218 = math.tanh %217 : vector<2x128xf32>
    %219 = vector.extract_strided_slice %216 {offsets = [0, 128], sizes = [2, 128], strides = [1, 1]} : vector<2x384xf32> to vector<2x128xf32>
    %220 = arith.mulf %219, %175 : vector<2x128xf32>
    %221 = vector.extract_strided_slice %216 {offsets = [0, 0], sizes = [2, 128], strides = [1, 1]} : vector<2x384xf32> to vector<2x128xf32>
    %222 = arith.mulf %221, %218 : vector<2x128xf32>
    %223 = arith.addf %220, %222 : vector<2x128xf32>
    %224 = vector.extract_strided_slice %216 {offsets = [0, 256], sizes = [2, 128], strides = [1, 1]} : vector<2x384xf32> to vector<2x128xf32>
    %225 = math.tanh %223 : vector<2x128xf32>
    %226 = arith.mulf %224, %225 : vector<2x128xf32>
    %227 = vector.extract_strided_slice %210 {offsets = [0, 0], sizes = [2, 384], strides = [1, 1]} : vector<2x512xf32> to vector<2x384xf32>
    %228 = arith.negf %227 : vector<2x384xf32>
    %229 = math.exp %228 : vector<2x384xf32>
    %cst_75 = arith.constant 1.000000e+00 : f32
    %230 = vector.broadcast %cst_75 : f32 to vector<2x384xf32>
    %231 = arith.addf %230, %229 : vector<2x384xf32>
    %232 = arith.divf %230, %231 : vector<2x384xf32>
    %233 = vector.extract_strided_slice %210 {offsets = [0, 384], sizes = [2, 128], strides = [1, 1]} : vector<2x512xf32> to vector<2x128xf32>
    %234 = math.tanh %233 : vector<2x128xf32>
    %235 = vector.extract_strided_slice %232 {offsets = [0, 128], sizes = [2, 128], strides = [1, 1]} : vector<2x384xf32> to vector<2x128xf32>
    %236 = arith.mulf %235, %191 : vector<2x128xf32>
    %237 = vector.extract_strided_slice %232 {offsets = [0, 0], sizes = [2, 128], strides = [1, 1]} : vector<2x384xf32> to vector<2x128xf32>
    %238 = arith.mulf %237, %234 : vector<2x128xf32>
    %239 = arith.addf %236, %238 : vector<2x128xf32>
    %240 = vector.extract_strided_slice %232 {offsets = [0, 256], sizes = [2, 128], strides = [1, 1]} : vector<2x384xf32> to vector<2x128xf32>
    %241 = math.tanh %239 : vector<2x128xf32>
    %242 = arith.mulf %240, %241 : vector<2x128xf32>
    %c0_76 = arith.constant 0 : index
    %c4_77 = arith.constant 4 : index
    %c0_78 = arith.constant 0 : index
    %243 = vector.load %arg10[%c0_76, %c4_77, %c0_78] : memref<2x8x256xf32, #tpu.memory_space<vmem>>, vector<2x1x128xf32>
    %244 = vector.shape_cast %243 : vector<2x1x128xf32> to vector<2x128xf32>
    %245 = vector.shape_cast %226 : vector<2x128xf32> to vector<2x1x128xf32>
    tpu.vector_store %arg10[%c0_76, %c4_77, %c0_78], %245 {strides = array<i32>} : memref<2x8x256xf32, #tpu.memory_space<vmem>>, vector<2x1x128xf32>,
    %c0_79 = arith.constant 0 : index
    %c3_80 = arith.constant 3 : index
    %c128_81 = arith.constant 128 : index
    %246 = vector.load %arg10[%c0_79, %c3_80, %c128_81] : memref<2x8x256xf32, #tpu.memory_space<vmem>>, vector<2x1x128xf32>
    %247 = vector.shape_cast %246 : vector<2x1x128xf32> to vector<2x128xf32>
    %248 = vector.shape_cast %242 : vector<2x128xf32> to vector<2x1x128xf32>
    tpu.vector_store %arg10[%c0_79, %c3_80, %c128_81], %248 {strides = array<i32>} : memref<2x8x256xf32, #tpu.memory_space<vmem>>, vector<2x1x128xf32>,
    %c0_82 = arith.constant 0 : index
    %c5_83 = arith.constant 5 : index
    %c0_84 = arith.constant 0 : index
    %249 = vector.load %arg1[%c0_82, %c5_83, %c0_84] : memref<2x8x1024xf32, #tpu.memory_space<vmem>>, vector<2x1x512xf32>
    %250 = vector.shape_cast %249 : vector<2x1x512xf32> to vector<2x512xf32>
    %251 = arith.truncf %226 : vector<2x128xf32> to vector<2x128xbf16>
    %cst_85 = arith.constant dense<0.000000e+00> : vector<2x512xf32>
    %252 = tpu.matmul %251, %0, %cst_85 {dimension_numbers = #tpu.dot_dimension_numbers<[1], [0], [0], [1], [0, 0, 1, 1], [], []>} : vector<2x128xbf16>, vector<128x512xbf16>, vector<2x512xf32> -> vector<2x512xf32>
    %253 = arith.addf %250, %252 : vector<2x512xf32>
    %c0_86 = arith.constant 0 : index
    %c2_87 = arith.constant 2 : index
    %c512_88 = arith.constant 512 : index
    %254 = vector.load %arg1[%c0_86, %c2_87, %c512_88] : memref<2x8x1024xf32, #tpu.memory_space<vmem>>, vector<2x1x512xf32>
    %255 = vector.shape_cast %254 : vector<2x1x512xf32> to vector<2x512xf32>
    %256 = arith.truncf %242 : vector<2x128xf32> to vector<2x128xbf16>
    %cst_89 = arith.constant dense<0.000000e+00> : vector<2x512xf32>
    %257 = tpu.matmul %256, %1, %cst_89 {dimension_numbers = #tpu.dot_dimension_numbers<[1], [0], [0], [1], [0, 0, 1, 1], [], []>} : vector<2x128xbf16>, vector<128x512xbf16>, vector<2x512xf32> -> vector<2x512xf32>
    %258 = arith.addf %255, %257 : vector<2x512xf32>
    %259 = vector.extract_strided_slice %253 {offsets = [0, 0], sizes = [2, 384], strides = [1, 1]} : vector<2x512xf32> to vector<2x384xf32>
    %260 = arith.negf %259 : vector<2x384xf32>
    %261 = math.exp %260 : vector<2x384xf32>
    %cst_90 = arith.constant 1.000000e+00 : f32
    %262 = vector.broadcast %cst_90 : f32 to vector<2x384xf32>
    %263 = arith.addf %262, %261 : vector<2x384xf32>
    %264 = arith.divf %262, %263 : vector<2x384xf32>
    %265 = vector.extract_strided_slice %253 {offsets = [0, 384], sizes = [2, 128], strides = [1, 1]} : vector<2x512xf32> to vector<2x128xf32>
    %266 = math.tanh %265 : vector<2x128xf32>
    %267 = vector.extract_strided_slice %264 {offsets = [0, 128], sizes = [2, 128], strides = [1, 1]} : vector<2x384xf32> to vector<2x128xf32>
    %268 = arith.mulf %267, %223 : vector<2x128xf32>
    %269 = vector.extract_strided_slice %264 {offsets = [0, 0], sizes = [2, 128], strides = [1, 1]} : vector<2x384xf32> to vector<2x128xf32>
    %270 = arith.mulf %269, %266 : vector<2x128xf32>
    %271 = arith.addf %268, %270 : vector<2x128xf32>
    %272 = vector.extract_strided_slice %264 {offsets = [0, 256], sizes = [2, 128], strides = [1, 1]} : vector<2x384xf32> to vector<2x128xf32>
    %273 = math.tanh %271 : vector<2x128xf32>
    %274 = arith.mulf %272, %273 : vector<2x128xf32>
    %275 = vector.extract_strided_slice %258 {offsets = [0, 0], sizes = [2, 384], strides = [1, 1]} : vector<2x512xf32> to vector<2x384xf32>
    %276 = arith.negf %275 : vector<2x384xf32>
    %277 = math.exp %276 : vector<2x384xf32>
    %cst_91 = arith.constant 1.000000e+00 : f32
    %278 = vector.broadcast %cst_91 : f32 to vector<2x384xf32>
    %279 = arith.addf %278, %277 : vector<2x384xf32>
    %280 = arith.divf %278, %279 : vector<2x384xf32>
    %281 = vector.extract_strided_slice %258 {offsets = [0, 384], sizes = [2, 128], strides = [1, 1]} : vector<2x512xf32> to vector<2x128xf32>
    %282 = math.tanh %281 : vector<2x128xf32>
    %283 = vector.extract_strided_slice %280 {offsets = [0, 128], sizes = [2, 128], strides = [1, 1]} : vector<2x384xf32> to vector<2x128xf32>
    %284 = arith.mulf %283, %239 : vector<2x128xf32>
    %285 = vector.extract_strided_slice %280 {offsets = [0, 0], sizes = [2, 128], strides = [1, 1]} : vector<2x384xf32> to vector<2x128xf32>
    %286 = arith.mulf %285, %282 : vector<2x128xf32>
    %287 = arith.addf %284, %286 : vector<2x128xf32>
    %288 = vector.extract_strided_slice %280 {offsets = [0, 256], sizes = [2, 128], strides = [1, 1]} : vector<2x384xf32> to vector<2x128xf32>
    %289 = math.tanh %287 : vector<2x128xf32>
    %290 = arith.mulf %288, %289 : vector<2x128xf32>
    %c0_92 = arith.constant 0 : index
    %c5_93 = arith.constant 5 : index
    %c0_94 = arith.constant 0 : index
    %291 = vector.load %arg10[%c0_92, %c5_93, %c0_94] : memref<2x8x256xf32, #tpu.memory_space<vmem>>, vector<2x1x128xf32>
    %292 = vector.shape_cast %291 : vector<2x1x128xf32> to vector<2x128xf32>
    %293 = vector.shape_cast %274 : vector<2x128xf32> to vector<2x1x128xf32>
    tpu.vector_store %arg10[%c0_92, %c5_93, %c0_94], %293 {strides = array<i32>} : memref<2x8x256xf32, #tpu.memory_space<vmem>>, vector<2x1x128xf32>,
    %c0_95 = arith.constant 0 : index
    %c2_96 = arith.constant 2 : index
    %c128_97 = arith.constant 128 : index
    %294 = vector.load %arg10[%c0_95, %c2_96, %c128_97] : memref<2x8x256xf32, #tpu.memory_space<vmem>>, vector<2x1x128xf32>
    %295 = vector.shape_cast %294 : vector<2x1x128xf32> to vector<2x128xf32>
    %296 = vector.shape_cast %290 : vector<2x128xf32> to vector<2x1x128xf32>
    tpu.vector_store %arg10[%c0_95, %c2_96, %c128_97], %296 {strides = array<i32>} : memref<2x8x256xf32, #tpu.memory_space<vmem>>, vector<2x1x128xf32>,
    %c0_98 = arith.constant 0 : index
    %c6_99 = arith.constant 6 : index
    %c0_100 = arith.constant 0 : index
    %297 = vector.load %arg1[%c0_98, %c6_99, %c0_100] : memref<2x8x1024xf32, #tpu.memory_space<vmem>>, vector<2x1x512xf32>
    %298 = vector.shape_cast %297 : vector<2x1x512xf32> to vector<2x512xf32>
    %299 = arith.truncf %274 : vector<2x128xf32> to vector<2x128xbf16>
    %cst_101 = arith.constant dense<0.000000e+00> : vector<2x512xf32>
    %300 = tpu.matmul %299, %0, %cst_101 {dimension_numbers = #tpu.dot_dimension_numbers<[1], [0], [0], [1], [0, 0, 1, 1], [], []>} : vector<2x128xbf16>, vector<128x512xbf16>, vector<2x512xf32> -> vector<2x512xf32>
    %301 = arith.addf %298, %300 : vector<2x512xf32>
    %c0_102 = arith.constant 0 : index
    %c1_103 = arith.constant 1 : index
    %c512_104 = arith.constant 512 : index
    %302 = vector.load %arg1[%c0_102, %c1_103, %c512_104] : memref<2x8x1024xf32, #tpu.memory_space<vmem>>, vector<2x1x512xf32>
    %303 = vector.shape_cast %302 : vector<2x1x512xf32> to vector<2x512xf32>
    %304 = arith.truncf %290 : vector<2x128xf32> to vector<2x128xbf16>
    %cst_105 = arith.constant dense<0.000000e+00> : vector<2x512xf32>
    %305 = tpu.matmul %304, %1, %cst_105 {dimension_numbers = #tpu.dot_dimension_numbers<[1], [0], [0], [1], [0, 0, 1, 1], [], []>} : vector<2x128xbf16>, vector<128x512xbf16>, vector<2x512xf32> -> vector<2x512xf32>
    %306 = arith.addf %303, %305 : vector<2x512xf32>
    %307 = vector.extract_strided_slice %301 {offsets = [0, 0], sizes = [2, 384], strides = [1, 1]} : vector<2x512xf32> to vector<2x384xf32>
    %308 = arith.negf %307 : vector<2x384xf32>
    %309 = math.exp %308 : vector<2x384xf32>
    %cst_106 = arith.constant 1.000000e+00 : f32
    %310 = vector.broadcast %cst_106 : f32 to vector<2x384xf32>
    %311 = arith.addf %310, %309 : vector<2x384xf32>
    %312 = arith.divf %310, %311 : vector<2x384xf32>
    %313 = vector.extract_strided_slice %301 {offsets = [0, 384], sizes = [2, 128], strides = [1, 1]} : vector<2x512xf32> to vector<2x128xf32>
    %314 = math.tanh %313 : vector<2x128xf32>
    %315 = vector.extract_strided_slice %312 {offsets = [0, 128], sizes = [2, 128], strides = [1, 1]} : vector<2x384xf32> to vector<2x128xf32>
    %316 = arith.mulf %315, %271 : vector<2x128xf32>
    %317 = vector.extract_strided_slice %312 {offsets = [0, 0], sizes = [2, 128], strides = [1, 1]} : vector<2x384xf32> to vector<2x128xf32>
    %318 = arith.mulf %317, %314 : vector<2x128xf32>
    %319 = arith.addf %316, %318 : vector<2x128xf32>
    %320 = vector.extract_strided_slice %312 {offsets = [0, 256], sizes = [2, 128], strides = [1, 1]} : vector<2x384xf32> to vector<2x128xf32>
    %321 = math.tanh %319 : vector<2x128xf32>
    %322 = arith.mulf %320, %321 : vector<2x128xf32>
    %323 = vector.extract_strided_slice %306 {offsets = [0, 0], sizes = [2, 384], strides = [1, 1]} : vector<2x512xf32> to vector<2x384xf32>
    %324 = arith.negf %323 : vector<2x384xf32>
    %325 = math.exp %324 : vector<2x384xf32>
    %cst_107 = arith.constant 1.000000e+00 : f32
    %326 = vector.broadcast %cst_107 : f32 to vector<2x384xf32>
    %327 = arith.addf %326, %325 : vector<2x384xf32>
    %328 = arith.divf %326, %327 : vector<2x384xf32>
    %329 = vector.extract_strided_slice %306 {offsets = [0, 384], sizes = [2, 128], strides = [1, 1]} : vector<2x512xf32> to vector<2x128xf32>
    %330 = math.tanh %329 : vector<2x128xf32>
    %331 = vector.extract_strided_slice %328 {offsets = [0, 128], sizes = [2, 128], strides = [1, 1]} : vector<2x384xf32> to vector<2x128xf32>
    %332 = arith.mulf %331, %287 : vector<2x128xf32>
    %333 = vector.extract_strided_slice %328 {offsets = [0, 0], sizes = [2, 128], strides = [1, 1]} : vector<2x384xf32> to vector<2x128xf32>
    %334 = arith.mulf %333, %330 : vector<2x128xf32>
    %335 = arith.addf %332, %334 : vector<2x128xf32>
    %336 = vector.extract_strided_slice %328 {offsets = [0, 256], sizes = [2, 128], strides = [1, 1]} : vector<2x384xf32> to vector<2x128xf32>
    %337 = math.tanh %335 : vector<2x128xf32>
    %338 = arith.mulf %336, %337 : vector<2x128xf32>
    %c0_108 = arith.constant 0 : index
    %c6_109 = arith.constant 6 : index
    %c0_110 = arith.constant 0 : index
    %339 = vector.load %arg10[%c0_108, %c6_109, %c0_110] : memref<2x8x256xf32, #tpu.memory_space<vmem>>, vector<2x1x128xf32>
    %340 = vector.shape_cast %339 : vector<2x1x128xf32> to vector<2x128xf32>
    %341 = vector.shape_cast %322 : vector<2x128xf32> to vector<2x1x128xf32>
    tpu.vector_store %arg10[%c0_108, %c6_109, %c0_110], %341 {strides = array<i32>} : memref<2x8x256xf32, #tpu.memory_space<vmem>>, vector<2x1x128xf32>,
    %c0_111 = arith.constant 0 : index
    %c1_112 = arith.constant 1 : index
    %c128_113 = arith.constant 128 : index
    %342 = vector.load %arg10[%c0_111, %c1_112, %c128_113] : memref<2x8x256xf32, #tpu.memory_space<vmem>>, vector<2x1x128xf32>
    %343 = vector.shape_cast %342 : vector<2x1x128xf32> to vector<2x128xf32>
    %344 = vector.shape_cast %338 : vector<2x128xf32> to vector<2x1x128xf32>
    tpu.vector_store %arg10[%c0_111, %c1_112, %c128_113], %344 {strides = array<i32>} : memref<2x8x256xf32, #tpu.memory_space<vmem>>, vector<2x1x128xf32>,
    %c0_114 = arith.constant 0 : index
    %c7_115 = arith.constant 7 : index
    %c0_116 = arith.constant 0 : index
    %345 = vector.load %arg1[%c0_114, %c7_115, %c0_116] : memref<2x8x1024xf32, #tpu.memory_space<vmem>>, vector<2x1x512xf32>
    %346 = vector.shape_cast %345 : vector<2x1x512xf32> to vector<2x512xf32>
    %347 = arith.truncf %322 : vector<2x128xf32> to vector<2x128xbf16>
    %cst_117 = arith.constant dense<0.000000e+00> : vector<2x512xf32>
    %348 = tpu.matmul %347, %0, %cst_117 {dimension_numbers = #tpu.dot_dimension_numbers<[1], [0], [0], [1], [0, 0, 1, 1], [], []>} : vector<2x128xbf16>, vector<128x512xbf16>, vector<2x512xf32> -> vector<2x512xf32>
    %349 = arith.addf %346, %348 : vector<2x512xf32>
    %c0_118 = arith.constant 0 : index
    %c0_119 = arith.constant 0 : index
    %c512_120 = arith.constant 512 : index
    %350 = vector.load %arg1[%c0_118, %c0_119, %c512_120] : memref<2x8x1024xf32, #tpu.memory_space<vmem>>, vector<2x1x512xf32>
    %351 = vector.shape_cast %350 : vector<2x1x512xf32> to vector<2x512xf32>
    %352 = arith.truncf %338 : vector<2x128xf32> to vector<2x128xbf16>
    %cst_121 = arith.constant dense<0.000000e+00> : vector<2x512xf32>
    %353 = tpu.matmul %352, %1, %cst_121 {dimension_numbers = #tpu.dot_dimension_numbers<[1], [0], [0], [1], [0, 0, 1, 1], [], []>} : vector<2x128xbf16>, vector<128x512xbf16>, vector<2x512xf32> -> vector<2x512xf32>
    %354 = arith.addf %351, %353 : vector<2x512xf32>
    %355 = vector.extract_strided_slice %349 {offsets = [0, 0], sizes = [2, 384], strides = [1, 1]} : vector<2x512xf32> to vector<2x384xf32>
    %356 = arith.negf %355 : vector<2x384xf32>
    %357 = math.exp %356 : vector<2x384xf32>
    %cst_122 = arith.constant 1.000000e+00 : f32
    %358 = vector.broadcast %cst_122 : f32 to vector<2x384xf32>
    %359 = arith.addf %358, %357 : vector<2x384xf32>
    %360 = arith.divf %358, %359 : vector<2x384xf32>
    %361 = vector.extract_strided_slice %349 {offsets = [0, 384], sizes = [2, 128], strides = [1, 1]} : vector<2x512xf32> to vector<2x128xf32>
    %362 = math.tanh %361 : vector<2x128xf32>
    %363 = vector.extract_strided_slice %360 {offsets = [0, 128], sizes = [2, 128], strides = [1, 1]} : vector<2x384xf32> to vector<2x128xf32>
    %364 = arith.mulf %363, %319 : vector<2x128xf32>
    %365 = vector.extract_strided_slice %360 {offsets = [0, 0], sizes = [2, 128], strides = [1, 1]} : vector<2x384xf32> to vector<2x128xf32>
    %366 = arith.mulf %365, %362 : vector<2x128xf32>
    %367 = arith.addf %364, %366 : vector<2x128xf32>
    %368 = vector.extract_strided_slice %360 {offsets = [0, 256], sizes = [2, 128], strides = [1, 1]} : vector<2x384xf32> to vector<2x128xf32>
    %369 = math.tanh %367 : vector<2x128xf32>
    %370 = arith.mulf %368, %369 : vector<2x128xf32>
    %371 = vector.extract_strided_slice %354 {offsets = [0, 0], sizes = [2, 384], strides = [1, 1]} : vector<2x512xf32> to vector<2x384xf32>
    %372 = arith.negf %371 : vector<2x384xf32>
    %373 = math.exp %372 : vector<2x384xf32>
    %cst_123 = arith.constant 1.000000e+00 : f32
    %374 = vector.broadcast %cst_123 : f32 to vector<2x384xf32>
    %375 = arith.addf %374, %373 : vector<2x384xf32>
    %376 = arith.divf %374, %375 : vector<2x384xf32>
    %377 = vector.extract_strided_slice %354 {offsets = [0, 384], sizes = [2, 128], strides = [1, 1]} : vector<2x512xf32> to vector<2x128xf32>
    %378 = math.tanh %377 : vector<2x128xf32>
    %379 = vector.extract_strided_slice %376 {offsets = [0, 128], sizes = [2, 128], strides = [1, 1]} : vector<2x384xf32> to vector<2x128xf32>
    %380 = arith.mulf %379, %335 : vector<2x128xf32>
    %381 = vector.extract_strided_slice %376 {offsets = [0, 0], sizes = [2, 128], strides = [1, 1]} : vector<2x384xf32> to vector<2x128xf32>
    %382 = arith.mulf %381, %378 : vector<2x128xf32>
    %383 = arith.addf %380, %382 : vector<2x128xf32>
    %384 = vector.extract_strided_slice %376 {offsets = [0, 256], sizes = [2, 128], strides = [1, 1]} : vector<2x384xf32> to vector<2x128xf32>
    %385 = math.tanh %383 : vector<2x128xf32>
    %386 = arith.mulf %384, %385 : vector<2x128xf32>
    %c0_124 = arith.constant 0 : index
    %c7_125 = arith.constant 7 : index
    %c0_126 = arith.constant 0 : index
    %387 = vector.load %arg10[%c0_124, %c7_125, %c0_126] : memref<2x8x256xf32, #tpu.memory_space<vmem>>, vector<2x1x128xf32>
    %388 = vector.shape_cast %387 : vector<2x1x128xf32> to vector<2x128xf32>
    %389 = vector.shape_cast %370 : vector<2x128xf32> to vector<2x1x128xf32>
    tpu.vector_store %arg10[%c0_124, %c7_125, %c0_126], %389 {strides = array<i32>} : memref<2x8x256xf32, #tpu.memory_space<vmem>>, vector<2x1x128xf32>,
    %c0_127 = arith.constant 0 : index
    %c0_128 = arith.constant 0 : index
    %c128_129 = arith.constant 128 : index
    %390 = vector.load %arg10[%c0_127, %c0_128, %c128_129] : memref<2x8x256xf32, #tpu.memory_space<vmem>>, vector<2x1x128xf32>
    %391 = vector.shape_cast %390 : vector<2x1x128xf32> to vector<2x128xf32>
    %392 = vector.shape_cast %386 : vector<2x128xf32> to vector<2x1x128xf32>
    tpu.vector_store %arg10[%c0_127, %c0_128, %c128_129], %392 {strides = array<i32>} : memref<2x8x256xf32, #tpu.memory_space<vmem>>, vector<2x1x128xf32>,
    %393 = tpu.concatenate %370, %386 in 1 : vector<2x128xf32>, vector<2x128xf32> -> vector<2x256xf32>
    %394 = tpu.concatenate %367, %383 in 1 : vector<2x128xf32>, vector<2x128xf32> -> vector<2x256xf32>
    %c0_130 = arith.constant 0 : index
    %c0_131 = arith.constant 0 : index
    %c0_132 = arith.constant 0 : index
    %395 = vector.load %arg10[%c0_130, %c0_131, %c0_132] : memref<2x8x256xf32, #tpu.memory_space<vmem>>, vector<2x8x256xf32>
    %c0_133 = arith.constant 0 : index
    %c0_134 = arith.constant 0 : index
    %c0_135 = arith.constant 0 : index
    %396 = vector.load %arg2[%c0_133, %c0_134, %c0_135] : memref<2x8x1024xf32, #tpu.memory_space<vmem>>, vector<2x1x1024xf32>
    %397 = vector.shape_cast %396 : vector<2x1x1024xf32> to vector<2x1024xf32>
    %398 = arith.truncf %393 : vector<2x256xf32> to vector<2x256xbf16>
    %cst_136 = arith.constant dense<0.000000e+00> : vector<2x1024xf32>
    %399 = tpu.matmul %398, %2, %cst_136 {dimension_numbers = #tpu.dot_dimension_numbers<[1], [0], [0], [1], [0, 0, 1, 1], [], []>} : vector<2x256xbf16>, vector<256x1024xbf16>, vector<2x1024xf32> -> vector<2x1024xf32>
    %400 = arith.addf %397, %399 : vector<2x1024xf32>
    %401 = vector.extract_strided_slice %400 {offsets = [0, 0], sizes = [2, 768], strides = [1, 1]} : vector<2x1024xf32> to vector<2x768xf32>
    %402 = arith.negf %401 : vector<2x768xf32>
    %403 = math.exp %402 : vector<2x768xf32>
    %cst_137 = arith.constant 1.000000e+00 : f32
    %404 = vector.broadcast %cst_137 : f32 to vector<2x768xf32>
    %405 = arith.addf %404, %403 : vector<2x768xf32>
    %406 = arith.divf %404, %405 : vector<2x768xf32>
    %407 = vector.extract_strided_slice %400 {offsets = [0, 768], sizes = [2, 256], strides = [1, 1]} : vector<2x1024xf32> to vector<2x256xf32>
    %408 = math.tanh %407 : vector<2x256xf32>
    %409 = vector.extract_strided_slice %406 {offsets = [0, 256], sizes = [2, 256], strides = [1, 1]} : vector<2x768xf32> to vector<2x256xf32>
    %410 = arith.mulf %409, %394 : vector<2x256xf32>
    %411 = vector.extract_strided_slice %406 {offsets = [0, 0], sizes = [2, 256], strides = [1, 1]} : vector<2x768xf32> to vector<2x256xf32>
    %412 = arith.mulf %411, %408 : vector<2x256xf32>
    %413 = arith.addf %410, %412 : vector<2x256xf32>
    %414 = vector.extract_strided_slice %406 {offsets = [0, 512], sizes = [2, 256], strides = [1, 1]} : vector<2x768xf32> to vector<2x256xf32>
    %415 = math.tanh %413 : vector<2x256xf32>
    %416 = arith.mulf %414, %415 : vector<2x256xf32>
    %417 = vector.shape_cast %416 : vector<2x256xf32> to vector<2x1x256xf32>
    %418 = vector.broadcast %417 : vector<2x1x256xf32> to vector<2x8x256xf32>
    %419 = arith.mulf %418, %395 : vector<2x8x256xf32>
    %cst_138 = arith.constant dense<0.000000e+00> : vector<2x8xf32>
    %420 = vector.multi_reduction <add>, %419, %cst_138 [2] : vector<2x8x256xf32> to vector<2x8xf32>
    %cst_139 = arith.constant dense<0xFF800000> : vector<2xf32>
    %421 = vector.multi_reduction <maximumf>, %420, %cst_139 [1] : vector<2x8xf32> to vector<2xf32>
    %422 = vector.shape_cast %421 : vector<2xf32> to vector<2x1xf32>
    %423 = vector.broadcast %422 : vector<2x1xf32> to vector<2x8xf32>
    %424 = arith.subf %420, %423 : vector<2x8xf32>
    %425 = math.exp %424 : vector<2x8xf32>
    %cst_140 = arith.constant dense<0.000000e+00> : vector<2xf32>
    %426 = vector.multi_reduction <add>, %425, %cst_140 [1] : vector<2x8xf32> to vector<2xf32>
    %427 = vector.shape_cast %426 : vector<2xf32> to vector<2x1xf32>
    %428 = tpu.reciprocal %427 {approx = true} : vector<2x1xf32> -> vector<2x1xf32>
    %429 = vector.broadcast %428 : vector<2x1xf32> to vector<2x8xf32>
    %430 = arith.mulf %425, %429 : vector<2x8xf32>
    %431 = vector.shape_cast %430 : vector<2x8xf32> to vector<2x8x1xf32>
    %432 = vector.broadcast %431 : vector<2x8x1xf32> to vector<2x8x256xf32>
    %433 = arith.mulf %432, %395 : vector<2x8x256xf32>
    %cst_141 = arith.constant dense<0.000000e+00> : vector<2x256xf32>
    %434 = vector.multi_reduction <add>, %433, %cst_141 [1] : vector<2x8x256xf32> to vector<2x256xf32>
    %435 = arith.truncf %416 : vector<2x256xf32> to vector<2x256xbf16>
    %cst_142 = arith.constant dense<0.000000e+00> : vector<2x128xf32>
    %436 = tpu.matmul %435, %3, %cst_142 {dimension_numbers = #tpu.dot_dimension_numbers<[1], [0], [0], [1], [0, 0, 1, 1], [], []>} : vector<2x256xbf16>, vector<256x128xbf16>, vector<2x128xf32> -> vector<2x128xf32>
    %437 = arith.truncf %434 : vector<2x256xf32> to vector<2x256xbf16>
    %cst_143 = arith.constant dense<0.000000e+00> : vector<2x128xf32>
    %438 = tpu.matmul %437, %4, %cst_143 {dimension_numbers = #tpu.dot_dimension_numbers<[1], [0], [0], [1], [0, 0, 1, 1], [], []>} : vector<2x256xbf16>, vector<256x128xbf16>, vector<2x128xf32> -> vector<2x128xf32>
    %439 = arith.addf %436, %438 : vector<2x128xf32>
    %440 = arith.addf %439, %7 : vector<2x128xf32>
    %cst_144 = arith.constant dense<0xFF800000> : vector<2xf32>
    %441 = vector.multi_reduction <maximumf>, %440, %cst_144 [1] : vector<2x128xf32> to vector<2xf32>
    %442 = vector.shape_cast %441 : vector<2xf32> to vector<2x1xf32>
    %443 = vector.broadcast %442 : vector<2x1xf32> to vector<2x128xf32>
    %444 = arith.subf %440, %443 : vector<2x128xf32>
    %445 = math.exp %444 : vector<2x128xf32>
    %cst_145 = arith.constant dense<0.000000e+00> : vector<2xf32>
    %446 = vector.multi_reduction <add>, %445, %cst_145 [1] : vector<2x128xf32> to vector<2xf32>
    %447 = vector.shape_cast %446 : vector<2xf32> to vector<2x1xf32>
    %448 = math.log %447 : vector<2x1xf32>
    %449 = arith.addf %442, %448 : vector<2x1xf32>
    %450 = vector.broadcast %449 : vector<2x1xf32> to vector<2x128xf32>
    %451 = arith.subf %440, %450 : vector<2x128xf32>
    %c0_146 = arith.constant 0 : index
    %c0_147 = arith.constant 0 : index
    %c0_148 = arith.constant 0 : index
    %452 = vector.load %arg9[%c0_146, %c0_147, %c0_148] : memref<2x8x128xf32, #tpu.memory_space<vmem>>, vector<2x1x128xf32>
    %453 = vector.shape_cast %452 : vector<2x1x128xf32> to vector<2x128xf32>
    %454 = vector.shape_cast %451 : vector<2x128xf32> to vector<2x1x128xf32>
    tpu.vector_store %arg9[%c0_146, %c0_147, %c0_148], %454 {strides = array<i32>} : memref<2x8x128xf32, #tpu.memory_space<vmem>>, vector<2x1x128xf32>,
    %c0_149 = arith.constant 0 : index
    %c1_150 = arith.constant 1 : index
    %c0_151 = arith.constant 0 : index
    %455 = vector.load %arg2[%c0_149, %c1_150, %c0_151] : memref<2x8x1024xf32, #tpu.memory_space<vmem>>, vector<2x1x1024xf32>
    %456 = vector.shape_cast %455 : vector<2x1x1024xf32> to vector<2x1024xf32>
    %457 = arith.truncf %416 : vector<2x256xf32> to vector<2x256xbf16>
    %cst_152 = arith.constant dense<0.000000e+00> : vector<2x1024xf32>
    %458 = tpu.matmul %457, %2, %cst_152 {dimension_numbers = #tpu.dot_dimension_numbers<[1], [0], [0], [1], [0, 0, 1, 1], [], []>} : vector<2x256xbf16>, vector<256x1024xbf16>, vector<2x1024xf32> -> vector<2x1024xf32>
    %459 = arith.addf %456, %458 : vector<2x1024xf32>
    %460 = vector.extract_strided_slice %459 {offsets = [0, 0], sizes = [2, 768], strides = [1, 1]} : vector<2x1024xf32> to vector<2x768xf32>
    %461 = arith.negf %460 : vector<2x768xf32>
    %462 = math.exp %461 : vector<2x768xf32>
    %cst_153 = arith.constant 1.000000e+00 : f32
    %463 = vector.broadcast %cst_153 : f32 to vector<2x768xf32>
    %464 = arith.addf %463, %462 : vector<2x768xf32>
    %465 = arith.divf %463, %464 : vector<2x768xf32>
    %466 = vector.extract_strided_slice %459 {offsets = [0, 768], sizes = [2, 256], strides = [1, 1]} : vector<2x1024xf32> to vector<2x256xf32>
    %467 = math.tanh %466 : vector<2x256xf32>
    %468 = vector.extract_strided_slice %465 {offsets = [0, 256], sizes = [2, 256], strides = [1, 1]} : vector<2x768xf32> to vector<2x256xf32>
    %469 = arith.mulf %468, %413 : vector<2x256xf32>
    %470 = vector.extract_strided_slice %465 {offsets = [0, 0], sizes = [2, 256], strides = [1, 1]} : vector<2x768xf32> to vector<2x256xf32>
    %471 = arith.mulf %470, %467 : vector<2x256xf32>
    %472 = arith.addf %469, %471 : vector<2x256xf32>
    %473 = vector.extract_strided_slice %465 {offsets = [0, 512], sizes = [2, 256], strides = [1, 1]} : vector<2x768xf32> to vector<2x256xf32>
    %474 = math.tanh %472 : vector<2x256xf32>
    %475 = arith.mulf %473, %474 : vector<2x256xf32>
    %476 = vector.shape_cast %475 : vector<2x256xf32> to vector<2x1x256xf32>
    %477 = vector.broadcast %476 : vector<2x1x256xf32> to vector<2x8x256xf32>
    %478 = arith.mulf %477, %395 : vector<2x8x256xf32>
    %cst_154 = arith.constant dense<0.000000e+00> : vector<2x8xf32>
    %479 = vector.multi_reduction <add>, %478, %cst_154 [2] : vector<2x8x256xf32> to vector<2x8xf32>
    %cst_155 = arith.constant dense<0xFF800000> : vector<2xf32>
    %480 = vector.multi_reduction <maximumf>, %479, %cst_155 [1] : vector<2x8xf32> to vector<2xf32>
    %481 = vector.shape_cast %480 : vector<2xf32> to vector<2x1xf32>
    %482 = vector.broadcast %481 : vector<2x1xf32> to vector<2x8xf32>
    %483 = arith.subf %479, %482 : vector<2x8xf32>
    %484 = math.exp %483 : vector<2x8xf32>
    %cst_156 = arith.constant dense<0.000000e+00> : vector<2xf32>
    %485 = vector.multi_reduction <add>, %484, %cst_156 [1] : vector<2x8xf32> to vector<2xf32>
    %486 = vector.shape_cast %485 : vector<2xf32> to vector<2x1xf32>
    %487 = tpu.reciprocal %486 {approx = true} : vector<2x1xf32> -> vector<2x1xf32>
    %488 = vector.broadcast %487 : vector<2x1xf32> to vector<2x8xf32>
    %489 = arith.mulf %484, %488 : vector<2x8xf32>
    %490 = vector.shape_cast %489 : vector<2x8xf32> to vector<2x8x1xf32>
    %491 = vector.broadcast %490 : vector<2x8x1xf32> to vector<2x8x256xf32>
    %492 = arith.mulf %491, %395 : vector<2x8x256xf32>
    %cst_157 = arith.constant dense<0.000000e+00> : vector<2x256xf32>
    %493 = vector.multi_reduction <add>, %492, %cst_157 [1] : vector<2x8x256xf32> to vector<2x256xf32>
    %494 = arith.truncf %475 : vector<2x256xf32> to vector<2x256xbf16>
    %cst_158 = arith.constant dense<0.000000e+00> : vector<2x128xf32>
    %495 = tpu.matmul %494, %3, %cst_158 {dimension_numbers = #tpu.dot_dimension_numbers<[1], [0], [0], [1], [0, 0, 1, 1], [], []>} : vector<2x256xbf16>, vector<256x128xbf16>, vector<2x128xf32> -> vector<2x128xf32>
    %496 = arith.truncf %493 : vector<2x256xf32> to vector<2x256xbf16>
    %cst_159 = arith.constant dense<0.000000e+00> : vector<2x128xf32>
    %497 = tpu.matmul %496, %4, %cst_159 {dimension_numbers = #tpu.dot_dimension_numbers<[1], [0], [0], [1], [0, 0, 1, 1], [], []>} : vector<2x256xbf16>, vector<256x128xbf16>, vector<2x128xf32> -> vector<2x128xf32>
    %498 = arith.addf %495, %497 : vector<2x128xf32>
    %499 = arith.addf %498, %7 : vector<2x128xf32>
    %cst_160 = arith.constant dense<0xFF800000> : vector<2xf32>
    %500 = vector.multi_reduction <maximumf>, %499, %cst_160 [1] : vector<2x128xf32> to vector<2xf32>
    %501 = vector.shape_cast %500 : vector<2xf32> to vector<2x1xf32>
    %502 = vector.broadcast %501 : vector<2x1xf32> to vector<2x128xf32>
    %503 = arith.subf %499, %502 : vector<2x128xf32>
    %504 = math.exp %503 : vector<2x128xf32>
    %cst_161 = arith.constant dense<0.000000e+00> : vector<2xf32>
    %505 = vector.multi_reduction <add>, %504, %cst_161 [1] : vector<2x128xf32> to vector<2xf32>
    %506 = vector.shape_cast %505 : vector<2xf32> to vector<2x1xf32>
    %507 = math.log %506 : vector<2x1xf32>
    %508 = arith.addf %501, %507 : vector<2x1xf32>
    %509 = vector.broadcast %508 : vector<2x1xf32> to vector<2x128xf32>
    %510 = arith.subf %499, %509 : vector<2x128xf32>
    %c0_162 = arith.constant 0 : index
    %c1_163 = arith.constant 1 : index
    %c0_164 = arith.constant 0 : index
    %511 = vector.load %arg9[%c0_162, %c1_163, %c0_164] : memref<2x8x128xf32, #tpu.memory_space<vmem>>, vector<2x1x128xf32>
    %512 = vector.shape_cast %511 : vector<2x1x128xf32> to vector<2x128xf32>
    %513 = vector.shape_cast %510 : vector<2x128xf32> to vector<2x1x128xf32>
    tpu.vector_store %arg9[%c0_162, %c1_163, %c0_164], %513 {strides = array<i32>} : memref<2x8x128xf32, #tpu.memory_space<vmem>>, vector<2x1x128xf32>,
    %c0_165 = arith.constant 0 : index
    %c2_166 = arith.constant 2 : index
    %c0_167 = arith.constant 0 : index
    %514 = vector.load %arg2[%c0_165, %c2_166, %c0_167] : memref<2x8x1024xf32, #tpu.memory_space<vmem>>, vector<2x1x1024xf32>
    %515 = vector.shape_cast %514 : vector<2x1x1024xf32> to vector<2x1024xf32>
    %516 = arith.truncf %475 : vector<2x256xf32> to vector<2x256xbf16>
    %cst_168 = arith.constant dense<0.000000e+00> : vector<2x1024xf32>
    %517 = tpu.matmul %516, %2, %cst_168 {dimension_numbers = #tpu.dot_dimension_numbers<[1], [0], [0], [1], [0, 0, 1, 1], [], []>} : vector<2x256xbf16>, vector<256x1024xbf16>, vector<2x1024xf32> -> vector<2x1024xf32>
    %518 = arith.addf %515, %517 : vector<2x1024xf32>
    %519 = vector.extract_strided_slice %518 {offsets = [0, 0], sizes = [2, 768], strides = [1, 1]} : vector<2x1024xf32> to vector<2x768xf32>
    %520 = arith.negf %519 : vector<2x768xf32>
    %521 = math.exp %520 : vector<2x768xf32>
    %cst_169 = arith.constant 1.000000e+00 : f32
    %522 = vector.broadcast %cst_169 : f32 to vector<2x768xf32>
    %523 = arith.addf %522, %521 : vector<2x768xf32>
    %524 = arith.divf %522, %523 : vector<2x768xf32>
    %525 = vector.extract_strided_slice %518 {offsets = [0, 768], sizes = [2, 256], strides = [1, 1]} : vector<2x1024xf32> to vector<2x256xf32>
    %526 = math.tanh %525 : vector<2x256xf32>
    %527 = vector.extract_strided_slice %524 {offsets = [0, 256], sizes = [2, 256], strides = [1, 1]} : vector<2x768xf32> to vector<2x256xf32>
    %528 = arith.mulf %527, %472 : vector<2x256xf32>
    %529 = vector.extract_strided_slice %524 {offsets = [0, 0], sizes = [2, 256], strides = [1, 1]} : vector<2x768xf32> to vector<2x256xf32>
    %530 = arith.mulf %529, %526 : vector<2x256xf32>
    %531 = arith.addf %528, %530 : vector<2x256xf32>
    %532 = vector.extract_strided_slice %524 {offsets = [0, 512], sizes = [2, 256], strides = [1, 1]} : vector<2x768xf32> to vector<2x256xf32>
    %533 = math.tanh %531 : vector<2x256xf32>
    %534 = arith.mulf %532, %533 : vector<2x256xf32>
    %535 = vector.shape_cast %534 : vector<2x256xf32> to vector<2x1x256xf32>
    %536 = vector.broadcast %535 : vector<2x1x256xf32> to vector<2x8x256xf32>
    %537 = arith.mulf %536, %395 : vector<2x8x256xf32>
    %cst_170 = arith.constant dense<0.000000e+00> : vector<2x8xf32>
    %538 = vector.multi_reduction <add>, %537, %cst_170 [2] : vector<2x8x256xf32> to vector<2x8xf32>
    %cst_171 = arith.constant dense<0xFF800000> : vector<2xf32>
    %539 = vector.multi_reduction <maximumf>, %538, %cst_171 [1] : vector<2x8xf32> to vector<2xf32>
    %540 = vector.shape_cast %539 : vector<2xf32> to vector<2x1xf32>
    %541 = vector.broadcast %540 : vector<2x1xf32> to vector<2x8xf32>
    %542 = arith.subf %538, %541 : vector<2x8xf32>
    %543 = math.exp %542 : vector<2x8xf32>
    %cst_172 = arith.constant dense<0.000000e+00> : vector<2xf32>
    %544 = vector.multi_reduction <add>, %543, %cst_172 [1] : vector<2x8xf32> to vector<2xf32>
    %545 = vector.shape_cast %544 : vector<2xf32> to vector<2x1xf32>
    %546 = tpu.reciprocal %545 {approx = true} : vector<2x1xf32> -> vector<2x1xf32>
    %547 = vector.broadcast %546 : vector<2x1xf32> to vector<2x8xf32>
    %548 = arith.mulf %543, %547 : vector<2x8xf32>
    %549 = vector.shape_cast %548 : vector<2x8xf32> to vector<2x8x1xf32>
    %550 = vector.broadcast %549 : vector<2x8x1xf32> to vector<2x8x256xf32>
    %551 = arith.mulf %550, %395 : vector<2x8x256xf32>
    %cst_173 = arith.constant dense<0.000000e+00> : vector<2x256xf32>
    %552 = vector.multi_reduction <add>, %551, %cst_173 [1] : vector<2x8x256xf32> to vector<2x256xf32>
    %553 = arith.truncf %534 : vector<2x256xf32> to vector<2x256xbf16>
    %cst_174 = arith.constant dense<0.000000e+00> : vector<2x128xf32>
    %554 = tpu.matmul %553, %3, %cst_174 {dimension_numbers = #tpu.dot_dimension_numbers<[1], [0], [0], [1], [0, 0, 1, 1], [], []>} : vector<2x256xbf16>, vector<256x128xbf16>, vector<2x128xf32> -> vector<2x128xf32>
    %555 = arith.truncf %552 : vector<2x256xf32> to vector<2x256xbf16>
    %cst_175 = arith.constant dense<0.000000e+00> : vector<2x128xf32>
    %556 = tpu.matmul %555, %4, %cst_175 {dimension_numbers = #tpu.dot_dimension_numbers<[1], [0], [0], [1], [0, 0, 1, 1], [], []>} : vector<2x256xbf16>, vector<256x128xbf16>, vector<2x128xf32> -> vector<2x128xf32>
    %557 = arith.addf %554, %556 : vector<2x128xf32>
    %558 = arith.addf %557, %7 : vector<2x128xf32>
    %cst_176 = arith.constant dense<0xFF800000> : vector<2xf32>
    %559 = vector.multi_reduction <maximumf>, %558, %cst_176 [1] : vector<2x128xf32> to vector<2xf32>
    %560 = vector.shape_cast %559 : vector<2xf32> to vector<2x1xf32>
    %561 = vector.broadcast %560 : vector<2x1xf32> to vector<2x128xf32>
    %562 = arith.subf %558, %561 : vector<2x128xf32>
    %563 = math.exp %562 : vector<2x128xf32>
    %cst_177 = arith.constant dense<0.000000e+00> : vector<2xf32>
    %564 = vector.multi_reduction <add>, %563, %cst_177 [1] : vector<2x128xf32> to vector<2xf32>
    %565 = vector.shape_cast %564 : vector<2xf32> to vector<2x1xf32>
    %566 = math.log %565 : vector<2x1xf32>
    %567 = arith.addf %560, %566 : vector<2x1xf32>
    %568 = vector.broadcast %567 : vector<2x1xf32> to vector<2x128xf32>
    %569 = arith.subf %558, %568 : vector<2x128xf32>
    %c0_178 = arith.constant 0 : index
    %c2_179 = arith.constant 2 : index
    %c0_180 = arith.constant 0 : index
    %570 = vector.load %arg9[%c0_178, %c2_179, %c0_180] : memref<2x8x128xf32, #tpu.memory_space<vmem>>, vector<2x1x128xf32>
    %571 = vector.shape_cast %570 : vector<2x1x128xf32> to vector<2x128xf32>
    %572 = vector.shape_cast %569 : vector<2x128xf32> to vector<2x1x128xf32>
    tpu.vector_store %arg9[%c0_178, %c2_179, %c0_180], %572 {strides = array<i32>} : memref<2x8x128xf32, #tpu.memory_space<vmem>>, vector<2x1x128xf32>,
    %c0_181 = arith.constant 0 : index
    %c3_182 = arith.constant 3 : index
    %c0_183 = arith.constant 0 : index
    %573 = vector.load %arg2[%c0_181, %c3_182, %c0_183] : memref<2x8x1024xf32, #tpu.memory_space<vmem>>, vector<2x1x1024xf32>
    %574 = vector.shape_cast %573 : vector<2x1x1024xf32> to vector<2x1024xf32>
    %575 = arith.truncf %534 : vector<2x256xf32> to vector<2x256xbf16>
    %cst_184 = arith.constant dense<0.000000e+00> : vector<2x1024xf32>
    %576 = tpu.matmul %575, %2, %cst_184 {dimension_numbers = #tpu.dot_dimension_numbers<[1], [0], [0], [1], [0, 0, 1, 1], [], []>} : vector<2x256xbf16>, vector<256x1024xbf16>, vector<2x1024xf32> -> vector<2x1024xf32>
    %577 = arith.addf %574, %576 : vector<2x1024xf32>
    %578 = vector.extract_strided_slice %577 {offsets = [0, 0], sizes = [2, 768], strides = [1, 1]} : vector<2x1024xf32> to vector<2x768xf32>
    %579 = arith.negf %578 : vector<2x768xf32>
    %580 = math.exp %579 : vector<2x768xf32>
    %cst_185 = arith.constant 1.000000e+00 : f32
    %581 = vector.broadcast %cst_185 : f32 to vector<2x768xf32>
    %582 = arith.addf %581, %580 : vector<2x768xf32>
    %583 = arith.divf %581, %582 : vector<2x768xf32>
    %584 = vector.extract_strided_slice %577 {offsets = [0, 768], sizes = [2, 256], strides = [1, 1]} : vector<2x1024xf32> to vector<2x256xf32>
    %585 = math.tanh %584 : vector<2x256xf32>
    %586 = vector.extract_strided_slice %583 {offsets = [0, 256], sizes = [2, 256], strides = [1, 1]} : vector<2x768xf32> to vector<2x256xf32>
    %587 = arith.mulf %586, %531 : vector<2x256xf32>
    %588 = vector.extract_strided_slice %583 {offsets = [0, 0], sizes = [2, 256], strides = [1, 1]} : vector<2x768xf32> to vector<2x256xf32>
    %589 = arith.mulf %588, %585 : vector<2x256xf32>
    %590 = arith.addf %587, %589 : vector<2x256xf32>
    %591 = vector.extract_strided_slice %583 {offsets = [0, 512], sizes = [2, 256], strides = [1, 1]} : vector<2x768xf32> to vector<2x256xf32>
    %592 = math.tanh %590 : vector<2x256xf32>
    %593 = arith.mulf %591, %592 : vector<2x256xf32>
    %594 = vector.shape_cast %593 : vector<2x256xf32> to vector<2x1x256xf32>
    %595 = vector.broadcast %594 : vector<2x1x256xf32> to vector<2x8x256xf32>
    %596 = arith.mulf %595, %395 : vector<2x8x256xf32>
    %cst_186 = arith.constant dense<0.000000e+00> : vector<2x8xf32>
    %597 = vector.multi_reduction <add>, %596, %cst_186 [2] : vector<2x8x256xf32> to vector<2x8xf32>
    %cst_187 = arith.constant dense<0xFF800000> : vector<2xf32>
    %598 = vector.multi_reduction <maximumf>, %597, %cst_187 [1] : vector<2x8xf32> to vector<2xf32>
    %599 = vector.shape_cast %598 : vector<2xf32> to vector<2x1xf32>
    %600 = vector.broadcast %599 : vector<2x1xf32> to vector<2x8xf32>
    %601 = arith.subf %597, %600 : vector<2x8xf32>
    %602 = math.exp %601 : vector<2x8xf32>
    %cst_188 = arith.constant dense<0.000000e+00> : vector<2xf32>
    %603 = vector.multi_reduction <add>, %602, %cst_188 [1] : vector<2x8xf32> to vector<2xf32>
    %604 = vector.shape_cast %603 : vector<2xf32> to vector<2x1xf32>
    %605 = tpu.reciprocal %604 {approx = true} : vector<2x1xf32> -> vector<2x1xf32>
    %606 = vector.broadcast %605 : vector<2x1xf32> to vector<2x8xf32>
    %607 = arith.mulf %602, %606 : vector<2x8xf32>
    %608 = vector.shape_cast %607 : vector<2x8xf32> to vector<2x8x1xf32>
    %609 = vector.broadcast %608 : vector<2x8x1xf32> to vector<2x8x256xf32>
    %610 = arith.mulf %609, %395 : vector<2x8x256xf32>
    %cst_189 = arith.constant dense<0.000000e+00> : vector<2x256xf32>
    %611 = vector.multi_reduction <add>, %610, %cst_189 [1] : vector<2x8x256xf32> to vector<2x256xf32>
    %612 = arith.truncf %593 : vector<2x256xf32> to vector<2x256xbf16>
    %cst_190 = arith.constant dense<0.000000e+00> : vector<2x128xf32>
    %613 = tpu.matmul %612, %3, %cst_190 {dimension_numbers = #tpu.dot_dimension_numbers<[1], [0], [0], [1], [0, 0, 1, 1], [], []>} : vector<2x256xbf16>, vector<256x128xbf16>, vector<2x128xf32> -> vector<2x128xf32>
    %614 = arith.truncf %611 : vector<2x256xf32> to vector<2x256xbf16>
    %cst_191 = arith.constant dense<0.000000e+00> : vector<2x128xf32>
    %615 = tpu.matmul %614, %4, %cst_191 {dimension_numbers = #tpu.dot_dimension_numbers<[1], [0], [0], [1], [0, 0, 1, 1], [], []>} : vector<2x256xbf16>, vector<256x128xbf16>, vector<2x128xf32> -> vector<2x128xf32>
    %616 = arith.addf %613, %615 : vector<2x128xf32>
    %617 = arith.addf %616, %7 : vector<2x128xf32>
    %cst_192 = arith.constant dense<0xFF800000> : vector<2xf32>
    %618 = vector.multi_reduction <maximumf>, %617, %cst_192 [1] : vector<2x128xf32> to vector<2xf32>
    %619 = vector.shape_cast %618 : vector<2xf32> to vector<2x1xf32>
    %620 = vector.broadcast %619 : vector<2x1xf32> to vector<2x128xf32>
    %621 = arith.subf %617, %620 : vector<2x128xf32>
    %622 = math.exp %621 : vector<2x128xf32>
    %cst_193 = arith.constant dense<0.000000e+00> : vector<2xf32>
    %623 = vector.multi_reduction <add>, %622, %cst_193 [1] : vector<2x128xf32> to vector<2xf32>
    %624 = vector.shape_cast %623 : vector<2xf32> to vector<2x1xf32>
    %625 = math.log %624 : vector<2x1xf32>
    %626 = arith.addf %619, %625 : vector<2x1xf32>
    %627 = vector.broadcast %626 : vector<2x1xf32> to vector<2x128xf32>
    %628 = arith.subf %617, %627 : vector<2x128xf32>
    %c0_194 = arith.constant 0 : index
    %c3_195 = arith.constant 3 : index
    %c0_196 = arith.constant 0 : index
    %629 = vector.load %arg9[%c0_194, %c3_195, %c0_196] : memref<2x8x128xf32, #tpu.memory_space<vmem>>, vector<2x1x128xf32>
    %630 = vector.shape_cast %629 : vector<2x1x128xf32> to vector<2x128xf32>
    %631 = vector.shape_cast %628 : vector<2x128xf32> to vector<2x1x128xf32>
    tpu.vector_store %arg9[%c0_194, %c3_195, %c0_196], %631 {strides = array<i32>} : memref<2x8x128xf32, #tpu.memory_space<vmem>>, vector<2x1x128xf32>,
    %c0_197 = arith.constant 0 : index
    %c4_198 = arith.constant 4 : index
    %c0_199 = arith.constant 0 : index
    %632 = vector.load %arg2[%c0_197, %c4_198, %c0_199] : memref<2x8x1024xf32, #tpu.memory_space<vmem>>, vector<2x1x1024xf32>
    %633 = vector.shape_cast %632 : vector<2x1x1024xf32> to vector<2x1024xf32>
    %634 = arith.truncf %593 : vector<2x256xf32> to vector<2x256xbf16>
    %cst_200 = arith.constant dense<0.000000e+00> : vector<2x1024xf32>
    %635 = tpu.matmul %634, %2, %cst_200 {dimension_numbers = #tpu.dot_dimension_numbers<[1], [0], [0], [1], [0, 0, 1, 1], [], []>} : vector<2x256xbf16>, vector<256x1024xbf16>, vector<2x1024xf32> -> vector<2x1024xf32>
    %636 = arith.addf %633, %635 : vector<2x1024xf32>
    %637 = vector.extract_strided_slice %636 {offsets = [0, 0], sizes = [2, 768], strides = [1, 1]} : vector<2x1024xf32> to vector<2x768xf32>
    %638 = arith.negf %637 : vector<2x768xf32>
    %639 = math.exp %638 : vector<2x768xf32>
    %cst_201 = arith.constant 1.000000e+00 : f32
    %640 = vector.broadcast %cst_201 : f32 to vector<2x768xf32>
    %641 = arith.addf %640, %639 : vector<2x768xf32>
    %642 = arith.divf %640, %641 : vector<2x768xf32>
    %643 = vector.extract_strided_slice %636 {offsets = [0, 768], sizes = [2, 256], strides = [1, 1]} : vector<2x1024xf32> to vector<2x256xf32>
    %644 = math.tanh %643 : vector<2x256xf32>
    %645 = vector.extract_strided_slice %642 {offsets = [0, 256], sizes = [2, 256], strides = [1, 1]} : vector<2x768xf32> to vector<2x256xf32>
    %646 = arith.mulf %645, %590 : vector<2x256xf32>
    %647 = vector.extract_strided_slice %642 {offsets = [0, 0], sizes = [2, 256], strides = [1, 1]} : vector<2x768xf32> to vector<2x256xf32>
    %648 = arith.mulf %647, %644 : vector<2x256xf32>
    %649 = arith.addf %646, %648 : vector<2x256xf32>
    %650 = vector.extract_strided_slice %642 {offsets = [0, 512], sizes = [2, 256], strides = [1, 1]} : vector<2x768xf32> to vector<2x256xf32>
    %651 = math.tanh %649 : vector<2x256xf32>
    %652 = arith.mulf %650, %651 : vector<2x256xf32>
    %653 = vector.shape_cast %652 : vector<2x256xf32> to vector<2x1x256xf32>
    %654 = vector.broadcast %653 : vector<2x1x256xf32> to vector<2x8x256xf32>
    %655 = arith.mulf %654, %395 : vector<2x8x256xf32>
    %cst_202 = arith.constant dense<0.000000e+00> : vector<2x8xf32>
    %656 = vector.multi_reduction <add>, %655, %cst_202 [2] : vector<2x8x256xf32> to vector<2x8xf32>
    %cst_203 = arith.constant dense<0xFF800000> : vector<2xf32>
    %657 = vector.multi_reduction <maximumf>, %656, %cst_203 [1] : vector<2x8xf32> to vector<2xf32>
    %658 = vector.shape_cast %657 : vector<2xf32> to vector<2x1xf32>
    %659 = vector.broadcast %658 : vector<2x1xf32> to vector<2x8xf32>
    %660 = arith.subf %656, %659 : vector<2x8xf32>
    %661 = math.exp %660 : vector<2x8xf32>
    %cst_204 = arith.constant dense<0.000000e+00> : vector<2xf32>
    %662 = vector.multi_reduction <add>, %661, %cst_204 [1] : vector<2x8xf32> to vector<2xf32>
    %663 = vector.shape_cast %662 : vector<2xf32> to vector<2x1xf32>
    %664 = tpu.reciprocal %663 {approx = true} : vector<2x1xf32> -> vector<2x1xf32>
    %665 = vector.broadcast %664 : vector<2x1xf32> to vector<2x8xf32>
    %666 = arith.mulf %661, %665 : vector<2x8xf32>
    %667 = vector.shape_cast %666 : vector<2x8xf32> to vector<2x8x1xf32>
    %668 = vector.broadcast %667 : vector<2x8x1xf32> to vector<2x8x256xf32>
    %669 = arith.mulf %668, %395 : vector<2x8x256xf32>
    %cst_205 = arith.constant dense<0.000000e+00> : vector<2x256xf32>
    %670 = vector.multi_reduction <add>, %669, %cst_205 [1] : vector<2x8x256xf32> to vector<2x256xf32>
    %671 = arith.truncf %652 : vector<2x256xf32> to vector<2x256xbf16>
    %cst_206 = arith.constant dense<0.000000e+00> : vector<2x128xf32>
    %672 = tpu.matmul %671, %3, %cst_206 {dimension_numbers = #tpu.dot_dimension_numbers<[1], [0], [0], [1], [0, 0, 1, 1], [], []>} : vector<2x256xbf16>, vector<256x128xbf16>, vector<2x128xf32> -> vector<2x128xf32>
    %673 = arith.truncf %670 : vector<2x256xf32> to vector<2x256xbf16>
    %cst_207 = arith.constant dense<0.000000e+00> : vector<2x128xf32>
    %674 = tpu.matmul %673, %4, %cst_207 {dimension_numbers = #tpu.dot_dimension_numbers<[1], [0], [0], [1], [0, 0, 1, 1], [], []>} : vector<2x256xbf16>, vector<256x128xbf16>, vector<2x128xf32> -> vector<2x128xf32>
    %675 = arith.addf %672, %674 : vector<2x128xf32>
    %676 = arith.addf %675, %7 : vector<2x128xf32>
    %cst_208 = arith.constant dense<0xFF800000> : vector<2xf32>
    %677 = vector.multi_reduction <maximumf>, %676, %cst_208 [1] : vector<2x128xf32> to vector<2xf32>
    %678 = vector.shape_cast %677 : vector<2xf32> to vector<2x1xf32>
    %679 = vector.broadcast %678 : vector<2x1xf32> to vector<2x128xf32>
    %680 = arith.subf %676, %679 : vector<2x128xf32>
    %681 = math.exp %680 : vector<2x128xf32>
    %cst_209 = arith.constant dense<0.000000e+00> : vector<2xf32>
    %682 = vector.multi_reduction <add>, %681, %cst_209 [1] : vector<2x128xf32> to vector<2xf32>
    %683 = vector.shape_cast %682 : vector<2xf32> to vector<2x1xf32>
    %684 = math.log %683 : vector<2x1xf32>
    %685 = arith.addf %678, %684 : vector<2x1xf32>
    %686 = vector.broadcast %685 : vector<2x1xf32> to vector<2x128xf32>
    %687 = arith.subf %676, %686 : vector<2x128xf32>
    %c0_210 = arith.constant 0 : index
    %c4_211 = arith.constant 4 : index
    %c0_212 = arith.constant 0 : index
    %688 = vector.load %arg9[%c0_210, %c4_211, %c0_212] : memref<2x8x128xf32, #tpu.memory_space<vmem>>, vector<2x1x128xf32>
    %689 = vector.shape_cast %688 : vector<2x1x128xf32> to vector<2x128xf32>
    %690 = vector.shape_cast %687 : vector<2x128xf32> to vector<2x1x128xf32>
    tpu.vector_store %arg9[%c0_210, %c4_211, %c0_212], %690 {strides = array<i32>} : memref<2x8x128xf32, #tpu.memory_space<vmem>>, vector<2x1x128xf32>,
    %c0_213 = arith.constant 0 : index
    %c5_214 = arith.constant 5 : index
    %c0_215 = arith.constant 0 : index
    %691 = vector.load %arg2[%c0_213, %c5_214, %c0_215] : memref<2x8x1024xf32, #tpu.memory_space<vmem>>, vector<2x1x1024xf32>
    %692 = vector.shape_cast %691 : vector<2x1x1024xf32> to vector<2x1024xf32>
    %693 = arith.truncf %652 : vector<2x256xf32> to vector<2x256xbf16>
    %cst_216 = arith.constant dense<0.000000e+00> : vector<2x1024xf32>
    %694 = tpu.matmul %693, %2, %cst_216 {dimension_numbers = #tpu.dot_dimension_numbers<[1], [0], [0], [1], [0, 0, 1, 1], [], []>} : vector<2x256xbf16>, vector<256x1024xbf16>, vector<2x1024xf32> -> vector<2x1024xf32>
    %695 = arith.addf %692, %694 : vector<2x1024xf32>
    %696 = vector.extract_strided_slice %695 {offsets = [0, 0], sizes = [2, 768], strides = [1, 1]} : vector<2x1024xf32> to vector<2x768xf32>
    %697 = arith.negf %696 : vector<2x768xf32>
    %698 = math.exp %697 : vector<2x768xf32>
    %cst_217 = arith.constant 1.000000e+00 : f32
    %699 = vector.broadcast %cst_217 : f32 to vector<2x768xf32>
    %700 = arith.addf %699, %698 : vector<2x768xf32>
    %701 = arith.divf %699, %700 : vector<2x768xf32>
    %702 = vector.extract_strided_slice %695 {offsets = [0, 768], sizes = [2, 256], strides = [1, 1]} : vector<2x1024xf32> to vector<2x256xf32>
    %703 = math.tanh %702 : vector<2x256xf32>
    %704 = vector.extract_strided_slice %701 {offsets = [0, 256], sizes = [2, 256], strides = [1, 1]} : vector<2x768xf32> to vector<2x256xf32>
    %705 = arith.mulf %704, %649 : vector<2x256xf32>
    %706 = vector.extract_strided_slice %701 {offsets = [0, 0], sizes = [2, 256], strides = [1, 1]} : vector<2x768xf32> to vector<2x256xf32>
    %707 = arith.mulf %706, %703 : vector<2x256xf32>
    %708 = arith.addf %705, %707 : vector<2x256xf32>
    %709 = vector.extract_strided_slice %701 {offsets = [0, 512], sizes = [2, 256], strides = [1, 1]} : vector<2x768xf32> to vector<2x256xf32>
    %710 = math.tanh %708 : vector<2x256xf32>
    %711 = arith.mulf %709, %710 : vector<2x256xf32>
    %712 = vector.shape_cast %711 : vector<2x256xf32> to vector<2x1x256xf32>
    %713 = vector.broadcast %712 : vector<2x1x256xf32> to vector<2x8x256xf32>
    %714 = arith.mulf %713, %395 : vector<2x8x256xf32>
    %cst_218 = arith.constant dense<0.000000e+00> : vector<2x8xf32>
    %715 = vector.multi_reduction <add>, %714, %cst_218 [2] : vector<2x8x256xf32> to vector<2x8xf32>
    %cst_219 = arith.constant dense<0xFF800000> : vector<2xf32>
    %716 = vector.multi_reduction <maximumf>, %715, %cst_219 [1] : vector<2x8xf32> to vector<2xf32>
    %717 = vector.shape_cast %716 : vector<2xf32> to vector<2x1xf32>
    %718 = vector.broadcast %717 : vector<2x1xf32> to vector<2x8xf32>
    %719 = arith.subf %715, %718 : vector<2x8xf32>
    %720 = math.exp %719 : vector<2x8xf32>
    %cst_220 = arith.constant dense<0.000000e+00> : vector<2xf32>
    %721 = vector.multi_reduction <add>, %720, %cst_220 [1] : vector<2x8xf32> to vector<2xf32>
    %722 = vector.shape_cast %721 : vector<2xf32> to vector<2x1xf32>
    %723 = tpu.reciprocal %722 {approx = true} : vector<2x1xf32> -> vector<2x1xf32>
    %724 = vector.broadcast %723 : vector<2x1xf32> to vector<2x8xf32>
    %725 = arith.mulf %720, %724 : vector<2x8xf32>
    %726 = vector.shape_cast %725 : vector<2x8xf32> to vector<2x8x1xf32>
    %727 = vector.broadcast %726 : vector<2x8x1xf32> to vector<2x8x256xf32>
    %728 = arith.mulf %727, %395 : vector<2x8x256xf32>
    %cst_221 = arith.constant dense<0.000000e+00> : vector<2x256xf32>
    %729 = vector.multi_reduction <add>, %728, %cst_221 [1] : vector<2x8x256xf32> to vector<2x256xf32>
    %730 = arith.truncf %711 : vector<2x256xf32> to vector<2x256xbf16>
    %cst_222 = arith.constant dense<0.000000e+00> : vector<2x128xf32>
    %731 = tpu.matmul %730, %3, %cst_222 {dimension_numbers = #tpu.dot_dimension_numbers<[1], [0], [0], [1], [0, 0, 1, 1], [], []>} : vector<2x256xbf16>, vector<256x128xbf16>, vector<2x128xf32> -> vector<2x128xf32>
    %732 = arith.truncf %729 : vector<2x256xf32> to vector<2x256xbf16>
    %cst_223 = arith.constant dense<0.000000e+00> : vector<2x128xf32>
    %733 = tpu.matmul %732, %4, %cst_223 {dimension_numbers = #tpu.dot_dimension_numbers<[1], [0], [0], [1], [0, 0, 1, 1], [], []>} : vector<2x256xbf16>, vector<256x128xbf16>, vector<2x128xf32> -> vector<2x128xf32>
    %734 = arith.addf %731, %733 : vector<2x128xf32>
    %735 = arith.addf %734, %7 : vector<2x128xf32>
    %cst_224 = arith.constant dense<0xFF800000> : vector<2xf32>
    %736 = vector.multi_reduction <maximumf>, %735, %cst_224 [1] : vector<2x128xf32> to vector<2xf32>
    %737 = vector.shape_cast %736 : vector<2xf32> to vector<2x1xf32>
    %738 = vector.broadcast %737 : vector<2x1xf32> to vector<2x128xf32>
    %739 = arith.subf %735, %738 : vector<2x128xf32>
    %740 = math.exp %739 : vector<2x128xf32>
    %cst_225 = arith.constant dense<0.000000e+00> : vector<2xf32>
    %741 = vector.multi_reduction <add>, %740, %cst_225 [1] : vector<2x128xf32> to vector<2xf32>
    %742 = vector.shape_cast %741 : vector<2xf32> to vector<2x1xf32>
    %743 = math.log %742 : vector<2x1xf32>
    %744 = arith.addf %737, %743 : vector<2x1xf32>
    %745 = vector.broadcast %744 : vector<2x1xf32> to vector<2x128xf32>
    %746 = arith.subf %735, %745 : vector<2x128xf32>
    %c0_226 = arith.constant 0 : index
    %c5_227 = arith.constant 5 : index
    %c0_228 = arith.constant 0 : index
    %747 = vector.load %arg9[%c0_226, %c5_227, %c0_228] : memref<2x8x128xf32, #tpu.memory_space<vmem>>, vector<2x1x128xf32>
    %748 = vector.shape_cast %747 : vector<2x1x128xf32> to vector<2x128xf32>
    %749 = vector.shape_cast %746 : vector<2x128xf32> to vector<2x1x128xf32>
    tpu.vector_store %arg9[%c0_226, %c5_227, %c0_228], %749 {strides = array<i32>} : memref<2x8x128xf32, #tpu.memory_space<vmem>>, vector<2x1x128xf32>,
    %c0_229 = arith.constant 0 : index
    %c6_230 = arith.constant 6 : index
    %c0_231 = arith.constant 0 : index
    %750 = vector.load %arg2[%c0_229, %c6_230, %c0_231] : memref<2x8x1024xf32, #tpu.memory_space<vmem>>, vector<2x1x1024xf32>
    %751 = vector.shape_cast %750 : vector<2x1x1024xf32> to vector<2x1024xf32>
    %752 = arith.truncf %711 : vector<2x256xf32> to vector<2x256xbf16>
    %cst_232 = arith.constant dense<0.000000e+00> : vector<2x1024xf32>
    %753 = tpu.matmul %752, %2, %cst_232 {dimension_numbers = #tpu.dot_dimension_numbers<[1], [0], [0], [1], [0, 0, 1, 1], [], []>} : vector<2x256xbf16>, vector<256x1024xbf16>, vector<2x1024xf32> -> vector<2x1024xf32>
    %754 = arith.addf %751, %753 : vector<2x1024xf32>
    %755 = vector.extract_strided_slice %754 {offsets = [0, 0], sizes = [2, 768], strides = [1, 1]} : vector<2x1024xf32> to vector<2x768xf32>
    %756 = arith.negf %755 : vector<2x768xf32>
    %757 = math.exp %756 : vector<2x768xf32>
    %cst_233 = arith.constant 1.000000e+00 : f32
    %758 = vector.broadcast %cst_233 : f32 to vector<2x768xf32>
    %759 = arith.addf %758, %757 : vector<2x768xf32>
    %760 = arith.divf %758, %759 : vector<2x768xf32>
    %761 = vector.extract_strided_slice %754 {offsets = [0, 768], sizes = [2, 256], strides = [1, 1]} : vector<2x1024xf32> to vector<2x256xf32>
    %762 = math.tanh %761 : vector<2x256xf32>
    %763 = vector.extract_strided_slice %760 {offsets = [0, 256], sizes = [2, 256], strides = [1, 1]} : vector<2x768xf32> to vector<2x256xf32>
    %764 = arith.mulf %763, %708 : vector<2x256xf32>
    %765 = vector.extract_strided_slice %760 {offsets = [0, 0], sizes = [2, 256], strides = [1, 1]} : vector<2x768xf32> to vector<2x256xf32>
    %766 = arith.mulf %765, %762 : vector<2x256xf32>
    %767 = arith.addf %764, %766 : vector<2x256xf32>
    %768 = vector.extract_strided_slice %760 {offsets = [0, 512], sizes = [2, 256], strides = [1, 1]} : vector<2x768xf32> to vector<2x256xf32>
    %769 = math.tanh %767 : vector<2x256xf32>
    %770 = arith.mulf %768, %769 : vector<2x256xf32>
    %771 = vector.shape_cast %770 : vector<2x256xf32> to vector<2x1x256xf32>
    %772 = vector.broadcast %771 : vector<2x1x256xf32> to vector<2x8x256xf32>
    %773 = arith.mulf %772, %395 : vector<2x8x256xf32>
    %cst_234 = arith.constant dense<0.000000e+00> : vector<2x8xf32>
    %774 = vector.multi_reduction <add>, %773, %cst_234 [2] : vector<2x8x256xf32> to vector<2x8xf32>
    %cst_235 = arith.constant dense<0xFF800000> : vector<2xf32>
    %775 = vector.multi_reduction <maximumf>, %774, %cst_235 [1] : vector<2x8xf32> to vector<2xf32>
    %776 = vector.shape_cast %775 : vector<2xf32> to vector<2x1xf32>
    %777 = vector.broadcast %776 : vector<2x1xf32> to vector<2x8xf32>
    %778 = arith.subf %774, %777 : vector<2x8xf32>
    %779 = math.exp %778 : vector<2x8xf32>
    %cst_236 = arith.constant dense<0.000000e+00> : vector<2xf32>
    %780 = vector.multi_reduction <add>, %779, %cst_236 [1] : vector<2x8xf32> to vector<2xf32>
    %781 = vector.shape_cast %780 : vector<2xf32> to vector<2x1xf32>
    %782 = tpu.reciprocal %781 {approx = true} : vector<2x1xf32> -> vector<2x1xf32>
    %783 = vector.broadcast %782 : vector<2x1xf32> to vector<2x8xf32>
    %784 = arith.mulf %779, %783 : vector<2x8xf32>
    %785 = vector.shape_cast %784 : vector<2x8xf32> to vector<2x8x1xf32>
    %786 = vector.broadcast %785 : vector<2x8x1xf32> to vector<2x8x256xf32>
    %787 = arith.mulf %786, %395 : vector<2x8x256xf32>
    %cst_237 = arith.constant dense<0.000000e+00> : vector<2x256xf32>
    %788 = vector.multi_reduction <add>, %787, %cst_237 [1] : vector<2x8x256xf32> to vector<2x256xf32>
    %789 = arith.truncf %770 : vector<2x256xf32> to vector<2x256xbf16>
    %cst_238 = arith.constant dense<0.000000e+00> : vector<2x128xf32>
    %790 = tpu.matmul %789, %3, %cst_238 {dimension_numbers = #tpu.dot_dimension_numbers<[1], [0], [0], [1], [0, 0, 1, 1], [], []>} : vector<2x256xbf16>, vector<256x128xbf16>, vector<2x128xf32> -> vector<2x128xf32>
    %791 = arith.truncf %788 : vector<2x256xf32> to vector<2x256xbf16>
    %cst_239 = arith.constant dense<0.000000e+00> : vector<2x128xf32>
    %792 = tpu.matmul %791, %4, %cst_239 {dimension_numbers = #tpu.dot_dimension_numbers<[1], [0], [0], [1], [0, 0, 1, 1], [], []>} : vector<2x256xbf16>, vector<256x128xbf16>, vector<2x128xf32> -> vector<2x128xf32>
    %793 = arith.addf %790, %792 : vector<2x128xf32>
    %794 = arith.addf %793, %7 : vector<2x128xf32>
    %cst_240 = arith.constant dense<0xFF800000> : vector<2xf32>
    %795 = vector.multi_reduction <maximumf>, %794, %cst_240 [1] : vector<2x128xf32> to vector<2xf32>
    %796 = vector.shape_cast %795 : vector<2xf32> to vector<2x1xf32>
    %797 = vector.broadcast %796 : vector<2x1xf32> to vector<2x128xf32>
    %798 = arith.subf %794, %797 : vector<2x128xf32>
    %799 = math.exp %798 : vector<2x128xf32>
    %cst_241 = arith.constant dense<0.000000e+00> : vector<2xf32>
    %800 = vector.multi_reduction <add>, %799, %cst_241 [1] : vector<2x128xf32> to vector<2xf32>
    %801 = vector.shape_cast %800 : vector<2xf32> to vector<2x1xf32>
    %802 = math.log %801 : vector<2x1xf32>
    %803 = arith.addf %796, %802 : vector<2x1xf32>
    %804 = vector.broadcast %803 : vector<2x1xf32> to vector<2x128xf32>
    %805 = arith.subf %794, %804 : vector<2x128xf32>
    %c0_242 = arith.constant 0 : index
    %c6_243 = arith.constant 6 : index
    %c0_244 = arith.constant 0 : index
    %806 = vector.load %arg9[%c0_242, %c6_243, %c0_244] : memref<2x8x128xf32, #tpu.memory_space<vmem>>, vector<2x1x128xf32>
    %807 = vector.shape_cast %806 : vector<2x1x128xf32> to vector<2x128xf32>
    %808 = vector.shape_cast %805 : vector<2x128xf32> to vector<2x1x128xf32>
    tpu.vector_store %arg9[%c0_242, %c6_243, %c0_244], %808 {strides = array<i32>} : memref<2x8x128xf32, #tpu.memory_space<vmem>>, vector<2x1x128xf32>,
    %c0_245 = arith.constant 0 : index
    %c7_246 = arith.constant 7 : index
    %c0_247 = arith.constant 0 : index
    %809 = vector.load %arg2[%c0_245, %c7_246, %c0_247] : memref<2x8x1024xf32, #tpu.memory_space<vmem>>, vector<2x1x1024xf32>
    %810 = vector.shape_cast %809 : vector<2x1x1024xf32> to vector<2x1024xf32>
    %811 = arith.truncf %770 : vector<2x256xf32> to vector<2x256xbf16>
    %cst_248 = arith.constant dense<0.000000e+00> : vector<2x1024xf32>
    %812 = tpu.matmul %811, %2, %cst_248 {dimension_numbers = #tpu.dot_dimension_numbers<[1], [0], [0], [1], [0, 0, 1, 1], [], []>} : vector<2x256xbf16>, vector<256x1024xbf16>, vector<2x1024xf32> -> vector<2x1024xf32>
    %813 = arith.addf %810, %812 : vector<2x1024xf32>
    %814 = vector.extract_strided_slice %813 {offsets = [0, 0], sizes = [2, 768], strides = [1, 1]} : vector<2x1024xf32> to vector<2x768xf32>
    %815 = arith.negf %814 : vector<2x768xf32>
    %816 = math.exp %815 : vector<2x768xf32>
    %cst_249 = arith.constant 1.000000e+00 : f32
    %817 = vector.broadcast %cst_249 : f32 to vector<2x768xf32>
    %818 = arith.addf %817, %816 : vector<2x768xf32>
    %819 = arith.divf %817, %818 : vector<2x768xf32>
    %820 = vector.extract_strided_slice %813 {offsets = [0, 768], sizes = [2, 256], strides = [1, 1]} : vector<2x1024xf32> to vector<2x256xf32>
    %821 = math.tanh %820 : vector<2x256xf32>
    %822 = vector.extract_strided_slice %819 {offsets = [0, 256], sizes = [2, 256], strides = [1, 1]} : vector<2x768xf32> to vector<2x256xf32>
    %823 = arith.mulf %822, %767 : vector<2x256xf32>
    %824 = vector.extract_strided_slice %819 {offsets = [0, 0], sizes = [2, 256], strides = [1, 1]} : vector<2x768xf32> to vector<2x256xf32>
    %825 = arith.mulf %824, %821 : vector<2x256xf32>
    %826 = arith.addf %823, %825 : vector<2x256xf32>
    %827 = vector.extract_strided_slice %819 {offsets = [0, 512], sizes = [2, 256], strides = [1, 1]} : vector<2x768xf32> to vector<2x256xf32>
    %828 = math.tanh %826 : vector<2x256xf32>
    %829 = arith.mulf %827, %828 : vector<2x256xf32>
    %830 = vector.shape_cast %829 : vector<2x256xf32> to vector<2x1x256xf32>
    %831 = vector.broadcast %830 : vector<2x1x256xf32> to vector<2x8x256xf32>
    %832 = arith.mulf %831, %395 : vector<2x8x256xf32>
    %cst_250 = arith.constant dense<0.000000e+00> : vector<2x8xf32>
    %833 = vector.multi_reduction <add>, %832, %cst_250 [2] : vector<2x8x256xf32> to vector<2x8xf32>
    %cst_251 = arith.constant dense<0xFF800000> : vector<2xf32>
    %834 = vector.multi_reduction <maximumf>, %833, %cst_251 [1] : vector<2x8xf32> to vector<2xf32>
    %835 = vector.shape_cast %834 : vector<2xf32> to vector<2x1xf32>
    %836 = vector.broadcast %835 : vector<2x1xf32> to vector<2x8xf32>
    %837 = arith.subf %833, %836 : vector<2x8xf32>
    %838 = math.exp %837 : vector<2x8xf32>
    %cst_252 = arith.constant dense<0.000000e+00> : vector<2xf32>
    %839 = vector.multi_reduction <add>, %838, %cst_252 [1] : vector<2x8xf32> to vector<2xf32>
    %840 = vector.shape_cast %839 : vector<2xf32> to vector<2x1xf32>
    %841 = tpu.reciprocal %840 {approx = true} : vector<2x1xf32> -> vector<2x1xf32>
    %842 = vector.broadcast %841 : vector<2x1xf32> to vector<2x8xf32>
    %843 = arith.mulf %838, %842 : vector<2x8xf32>
    %844 = vector.shape_cast %843 : vector<2x8xf32> to vector<2x8x1xf32>
    %845 = vector.broadcast %844 : vector<2x8x1xf32> to vector<2x8x256xf32>
    %846 = arith.mulf %845, %395 : vector<2x8x256xf32>
    %cst_253 = arith.constant dense<0.000000e+00> : vector<2x256xf32>
    %847 = vector.multi_reduction <add>, %846, %cst_253 [1] : vector<2x8x256xf32> to vector<2x256xf32>
    %848 = arith.truncf %829 : vector<2x256xf32> to vector<2x256xbf16>
    %cst_254 = arith.constant dense<0.000000e+00> : vector<2x128xf32>
    %849 = tpu.matmul %848, %3, %cst_254 {dimension_numbers = #tpu.dot_dimension_numbers<[1], [0], [0], [1], [0, 0, 1, 1], [], []>} : vector<2x256xbf16>, vector<256x128xbf16>, vector<2x128xf32> -> vector<2x128xf32>
    %850 = arith.truncf %847 : vector<2x256xf32> to vector<2x256xbf16>
    %cst_255 = arith.constant dense<0.000000e+00> : vector<2x128xf32>
    %851 = tpu.matmul %850, %4, %cst_255 {dimension_numbers = #tpu.dot_dimension_numbers<[1], [0], [0], [1], [0, 0, 1, 1], [], []>} : vector<2x256xbf16>, vector<256x128xbf16>, vector<2x128xf32> -> vector<2x128xf32>
    %852 = arith.addf %849, %851 : vector<2x128xf32>
    %853 = arith.addf %852, %7 : vector<2x128xf32>
    %cst_256 = arith.constant dense<0xFF800000> : vector<2xf32>
    %854 = vector.multi_reduction <maximumf>, %853, %cst_256 [1] : vector<2x128xf32> to vector<2xf32>
    %855 = vector.shape_cast %854 : vector<2xf32> to vector<2x1xf32>
    %856 = vector.broadcast %855 : vector<2x1xf32> to vector<2x128xf32>
    %857 = arith.subf %853, %856 : vector<2x128xf32>
    %858 = math.exp %857 : vector<2x128xf32>
    %cst_257 = arith.constant dense<0.000000e+00> : vector<2xf32>
    %859 = vector.multi_reduction <add>, %858, %cst_257 [1] : vector<2x128xf32> to vector<2xf32>
    %860 = vector.shape_cast %859 : vector<2xf32> to vector<2x1xf32>
    %861 = math.log %860 : vector<2x1xf32>
    %862 = arith.addf %855, %861 : vector<2x1xf32>
    %863 = vector.broadcast %862 : vector<2x1xf32> to vector<2x128xf32>
    %864 = arith.subf %853, %863 : vector<2x128xf32>
    %c0_258 = arith.constant 0 : index
    %c7_259 = arith.constant 7 : index
    %c0_260 = arith.constant 0 : index
    %865 = vector.load %arg9[%c0_258, %c7_259, %c0_260] : memref<2x8x128xf32, #tpu.memory_space<vmem>>, vector<2x1x128xf32>
    %866 = vector.shape_cast %865 : vector<2x1x128xf32> to vector<2x128xf32>
    %867 = vector.shape_cast %864 : vector<2x128xf32> to vector<2x1x128xf32>
    tpu.vector_store %arg9[%c0_258, %c7_259, %c0_260], %867 {strides = array<i32>} : memref<2x8x128xf32, #tpu.memory_space<vmem>>, vector<2x1x128xf32>,
    return
  }
  func.func @transform_0(%arg0: i32) -> (i32, i32, i32) {
    %c0_i32 = arith.constant 0 : i32
    %c0_i32_0 = arith.constant 0 : i32
    %c0_i32_1 = arith.constant 0 : i32
    %c0_i32_2 = arith.constant 0 : i32
    return %c0_i32, %c0_i32_0, %c0_i32_1 : i32, i32, i32
  }
  func.func @transform_1(%arg0: i32) -> (i32, i32, i32) {
    %c0_i32 = arith.constant 0 : i32
    %c0_i32_0 = arith.constant 0 : i32
    %c0_i32_1 = arith.constant 0 : i32
    %c0_i32_2 = arith.constant 0 : i32
    return %c0_i32, %c0_i32_0, %c0_i32_1 : i32, i32, i32
  }
  func.func @transform_2(%arg0: i32) -> (i32, i32) {
    %c0_i32 = arith.constant 0 : i32
    %c0_i32_0 = arith.constant 0 : i32
    %c0_i32_1 = arith.constant 0 : i32
    return %c0_i32, %c0_i32_0 : i32, i32
  }
  func.func @transform_3(%arg0: i32) -> (i32, i32) {
    %c0_i32 = arith.constant 0 : i32
    %c0_i32_0 = arith.constant 0 : i32
    %c0_i32_1 = arith.constant 0 : i32
    return %c0_i32, %c0_i32_0 : i32, i32
  }
  func.func @transform_4(%arg0: i32) -> (i32, i32) {
    %c0_i32 = arith.constant 0 : i32
    %c0_i32_0 = arith.constant 0 : i32
    %c0_i32_1 = arith.constant 0 : i32
    return %c0_i32, %c0_i32_0 : i32, i32
  }
  func.func @transform_5(%arg0: i32) -> (i32, i32) {
    %c0_i32 = arith.constant 0 : i32
    %c0_i32_0 = arith.constant 0 : i32
    %c0_i32_1 = arith.constant 0 : i32
    return %c0_i32, %c0_i32_0 : i32, i32
  }
  func.func @transform_6(%arg0: i32) -> (i32, i32) {
    %c0_i32 = arith.constant 0 : i32
    %c0_i32_0 = arith.constant 0 : i32
    %c0_i32_1 = arith.constant 0 : i32
    return %c0_i32, %c0_i32_0 : i32, i32
  }
  func.func @transform_7(%arg0: i32) -> (i32, i32) {
    %c0_i32 = arith.constant 0 : i32
    %c0_i32_0 = arith.constant 0 : i32
    %c0_i32_1 = arith.constant 0 : i32
    return %c0_i32, %c0_i32_0 : i32, i32
  }
  func.func @transform_8(%arg0: i32) -> (i32, i32, i32) {
    %c0_i32 = arith.constant 0 : i32
    %c0_i32_0 = arith.constant 0 : i32
    %c0_i32_1 = arith.constant 0 : i32
    %c0_i32_2 = arith.constant 0 : i32
    return %c0_i32, %c0_i32_0, %c0_i32_1 : i32, i32, i32
  }
}

</mosaic_0001>

<llo_original>
// kernel: mathen_forward.1
$region0: #{mathen_forward.1}
  #allocation0 [shape = 'u32[]', space=smem, size = 0x4, offset = 0x4, fixed_abs, tag = 'smem constant byte address 0x4 - core index']
  #allocation1 [shape = 'u32[144,128]{1,0:T(1,128)}', space=vmem, size = 0x12000, scoped, tag = 'internal scratch']
  #allocation2 [shape = 'f32[2,8,256]{2,1,0:T(8,128)}', space=vmem, size = 0x4000, scoped, tag = 'scratch operand']
  %s0 = inlined_call_operand.vmem [shape: f32[2,8,1024], index: 0, kind: input, shape index: {}]
  %s1 = inlined_call_operand.vmem [shape: f32[2,8,1024], index: 1, kind: input, shape index: {}]
  %s2 = inlined_call_operand.vmem [shape: bf16[128,512], index: 2, kind: input, shape index: {}]
  %s3 = inlined_call_operand.vmem [shape: bf16[128,512], index: 3, kind: input, shape index: {}]
  %s4 = inlined_call_operand.vmem [shape: bf16[256,1024], index: 4, kind: input, shape index: {}]
  %s5 = inlined_call_operand.vmem [shape: bf16[256,128], index: 5, kind: input, shape index: {}]
  %s6 = inlined_call_operand.vmem [shape: bf16[256,128], index: 6, kind: input, shape index: {}]
  %s7 = inlined_call_operand.vmem [shape: f32[1,128], index: 7, kind: input, shape index: {}]
  %s8 = inlined_call_operand.hbm [shape: f32[2,8,128], index: 8, kind: output, shape index: {}]
  %s9 = sld [smem:[#allocation0]]
  $region42: #{mathen_forward.1} parent=0
    _
  %s11 = ssub.s32 1, %s9
  %s12 = scalar_select 0, %s11, %s9
  $region1: #{mathen_forward.1} parent=0
    #allocation3 [shape = 'u8[8192]{0}', space=vmem, size = 0x2000, scoped, tag = 'output window, operand 0, single buffered']
    #allocation4 [shape = 's32[1]{0}', space=sflag, size = 0x4, scoped, tag = 'scoped memory for mathen_forward.1']
    %13 = vsyncpa [#allocation4], 0
    // Predicated region
    $region2: #{mathen_forward.1} parent=1 // pred_check
      _
    $region3: #{mathen_forward.1} parent=1 // pred_check_branch
      %15 = sbr.rel (0) target = $region5
    $region4: #{mathen_forward.1} parent=1 // pred_region
      _
    $region5: #{mathen_forward.1} parent=1 // pred_fallthru
      _
    // Predicated region
    $region6: #{mathen_forward.1} parent=1 // pred_check
      _
    $region7: #{mathen_forward.1} parent=1 // pred_check_branch
      %17 = sbr.rel (0) target = $region9
    $region8: #{mathen_forward.1} parent=1 // pred_region
      _
    $region9: #{mathen_forward.1} parent=1 // pred_fallthru
      _
    // Predicated region
    $region10: #{mathen_forward.1} parent=1 // pred_check
      _
    $region11: #{mathen_forward.1} parent=1 // pred_check_branch
      %19 = sbr.rel (0) target = $region13
    $region12: #{mathen_forward.1} parent=1 // pred_region
      _
    $region13: #{mathen_forward.1} parent=1 // pred_fallthru
      _
    // Predicated region
    $region14: #{mathen_forward.1} parent=1 // pred_check
      _
    $region15: #{mathen_forward.1} parent=1 // pred_check_branch
      %21 = sbr.rel (0) target = $region17
    $region16: #{mathen_forward.1} parent=1 // pred_region
      _
    $region17: #{mathen_forward.1} parent=1 // pred_fallthru
      _
    // Predicated region
    $region18: #{mathen_forward.1} parent=1 // pred_check
      _
    $region19: #{mathen_forward.1} parent=1 // pred_check_branch
      %23 = sbr.rel (0) target = $region21
    $region20: #{mathen_forward.1} parent=1 // pred_region
      _
    $region21: #{mathen_forward.1} parent=1 // pred_fallthru
      _
    // Predicated region
    $region22: #{mathen_forward.1} parent=1 // pred_check
      _
    $region23: #{mathen_forward.1} parent=1 // pred_check_branch
      %25 = sbr.rel (0) target = $region25
    $region24: #{mathen_forward.1} parent=1 // pred_region
      _
    $region25: #{mathen_forward.1} parent=1 // pred_fallthru
      _
    // Predicated region
    $region26: #{mathen_forward.1} parent=1 // pred_check
      _
    $region27: #{mathen_forward.1} parent=1 // pred_check_branch
      %27 = sbr.rel (0) target = $region29
    $region28: #{mathen_forward.1} parent=1 // pred_region
      _
    $region29: #{mathen_forward.1} parent=1 // pred_fallthru
      _
    // Predicated region
    $region30: #{mathen_forward.1} parent=1 // pred_check
      _
    $region31: #{mathen_forward.1} parent=1 // pred_check_branch
      %29 = sbr.rel (0) target = $region33
    $region32: #{mathen_forward.1} parent=1 // pred_region
      _
    $region33: #{mathen_forward.1} parent=1 // pred_fallthru
      _
    %v31 = vld [vmem:[%s2] sm:$0xff]
    %v32 = vld [vmem:[%s2 + $0x8] sm:$0xff]
    %v33 = vld [vmem:[%s2 + $0x10] sm:$0xff]
    %v34 = vld [vmem:[%s2 + $0x18] sm:$0xff]
    %v35 = vld [vmem:[%s2 + $0x20] sm:$0xff]
    %v36 = vld [vmem:[%s2 + $0x28] sm:$0xff]
    %v37 = vld [vmem:[%s2 + $0x30] sm:$0xff]
    %v38 = vld [vmem:[%s2 + $0x38] sm:$0xff]
    %v39 = vld [vmem:[%s2 + $0x40] sm:$0xff]
    %v40 = vld [vmem:[%s2 + $0x48] sm:$0xff]
    %v41 = vld [vmem:[%s2 + $0x50] sm:$0xff]
    %v42 = vld [vmem:[%s2 + $0x58] sm:$0xff]
    %v43 = vld [vmem:[%s2 + $0x60] sm:$0xff]
    %v44 = vld [vmem:[%s2 + $0x68] sm:$0xff]
    %v45 = vld [vmem:[%s2 + $0x70] sm:$0xff]
    %v46 = vld [vmem:[%s2 + $0x78] sm:$0xff]
    %v47 = vld [vmem:[%s2 + $0x80] sm:$0xff]
    %v48 = vld [vmem:[%s2 + $0x88] sm:$0xff]
    %v49 = vld [vmem:[%s2 + $0x90] sm:$0xff]
    %v50 = vld [vmem:[%s2 + $0x98] sm:$0xff]
    %v51 = vld [vmem:[%s2 + $0xa0] sm:$0xff]
    %v52 = vld [vmem:[%s2 + $0xa8] sm:$0xff]
    %v53 = vld [vmem:[%s2 + $0xb0] sm:$0xff]
    %v54 = vld [vmem:[%s2 + $0xb8] sm:$0xff]
    %v55 = vld [vmem:[%s2 + $0xc0] sm:$0xff]
    %v56 = vld [vmem:[%s2 + $0xc8] sm:$0xff]
    %v57 = vld [vmem:[%s2 + $0xd0] sm:$0xff]
    %v58 = vld [vmem:[%s2 + $0xd8] sm:$0xff]
    %v59 = vld [vmem:[%s2 + $0xe0] sm:$0xff]
    %v60 = vld [vmem:[%s2 + $0xe8] sm:$0xff]
    %v61 = vld [vmem:[%s2 + $0xf0] sm:$0xff]
    %v62 = vld [vmem:[%s2 + $0xf8] sm:$0xff]
    %v63 = vld [vmem:[%s3] sm:$0xff]
    %v64 = vld [vmem:[%s3 + $0x8] sm:$0xff]
    %v65 = vld [vmem:[%s3 + $0x10] sm:$0xff]
    %v66 = vld [vmem:[%s3 + $0x18] sm:$0xff]
    %v67 = vld [vmem:[%s3 + $0x20] sm:$0xff]
    %v68 = vld [vmem:[%s3 + $0x28] sm:$0xff]
    %v69 = vld [vmem:[%s3 + $0x30] sm:$0xff]
    %v70 = vld [vmem:[%s3 + $0x38] sm:$0xff]
    %v71 = vld [vmem:[%s3 + $0x40] sm:$0xff]
    %v72 = vld [vmem:[%s3 + $0x48] sm:$0xff]
    %v73 = vld [vmem:[%s3 + $0x50] sm:$0xff]
    %v74 = vld [vmem:[%s3 + $0x58] sm:$0xff]
    %v75 = vld [vmem:[%s3 + $0x60] sm:$0xff]
    %v76 = vld [vmem:[%s3 + $0x68] sm:$0xff]
    %v77 = vld [vmem:[%s3 + $0x70] sm:$0xff]
    %v78 = vld [vmem:[%s3 + $0x78] sm:$0xff]
    %v79 = vld [vmem:[%s3 + $0x80] sm:$0xff]
    %v80 = vld [vmem:[%s3 + $0x88] sm:$0xff]
    %v81 = vld [vmem:[%s3 + $0x90] sm:$0xff]
    %v82 = vld [vmem:[%s3 + $0x98] sm:$0xff]
    %v83 = vld [vmem:[%s3 + $0xa0] sm:$0xff]
    %v84 = vld [vmem:[%s3 + $0xa8] sm:$0xff]
    %v85 = vld [vmem:[%s3 + $0xb0] sm:$0xff]
    %v86 = vld [vmem:[%s3 + $0xb8] sm:$0xff]
    %v87 = vld [vmem:[%s3 + $0xc0] sm:$0xff]
    %v88 = vld [vmem:[%s3 + $0xc8] sm:$0xff]
    %v89 = vld [vmem:[%s3 + $0xd0] sm:$0xff]
    %v90 = vld [vmem:[%s3 + $0xd8] sm:$0xff]
    %v91 = vld [vmem:[%s3 + $0xe0] sm:$0xff]
    %v92 = vld [vmem:[%s3 + $0xe8] sm:$0xff]
    %v93 = vld [vmem:[%s3 + $0xf0] sm:$0xff]
    %v94 = vld [vmem:[%s3 + $0xf8] sm:$0xff]
    %v95 = vld [vmem:[%s4] sm:$0xff]
    %v96 = vld [vmem:[%s4 + $0x8] sm:$0xff]
    %v97 = vld [vmem:[%s4 + $0x10] sm:$0xff]
    %v98 = vld [vmem:[%s4 + $0x18] sm:$0xff]
    %v99 = vld [vmem:[%s4 + $0x20] sm:$0xff]
    %v100 = vld [vmem:[%s4 + $0x28] sm:$0xff]
    %v101 = vld [vmem:[%s4 + $0x30] sm:$0xff]
    %v102 = vld [vmem:[%s4 + $0x38] sm:$0xff]
    %v103 = vld [vmem:[%s4 + $0x40] sm:$0xff]
    %v104 = vld [vmem:[%s4 + $0x48] sm:$0xff]
    %v105 = vld [vmem:[%s4 + $0x50] sm:$0xff]
    %v106 = vld [vmem:[%s4 + $0x58] sm:$0xff]
    %v107 = vld [vmem:[%s4 + $0x60] sm:$0xff]
    %v108 = vld [vmem:[%s4 + $0x68] sm:$0xff]
    %v109 = vld [vmem:[%s4 + $0x70] sm:$0xff]
    %v110 = vld [vmem:[%s4 + $0x78] sm:$0xff]
    %v111 = vld [vmem:[%s4 + $0x80] sm:$0xff]
    %v112 = vld [vmem:[%s4 + $0x88] sm:$0xff]
    %v113 = vld [vmem:[%s4 + $0x90] sm:$0xff]
    %v114 = vld [vmem:[%s4 + $0x98] sm:$0xff]
    %v115 = vld [vmem:[%s4 + $0xa0] sm:$0xff]
    %v116 = vld [vmem:[%s4 + $0xa8] sm:$0xff]
    %v117 = vld [vmem:[%s4 + $0xb0] sm:$0xff]
    %v118 = vld [vmem:[%s4 + $0xb8] sm:$0xff]
    %v119 = vld [vmem:[%s4 + $0xc0] sm:$0xff]
    %v120 = vld [vmem:[%s4 + $0xc8] sm:$0xff]
    %v121 = vld [vmem:[%s4 + $0xd0] sm:$0xff]
    %v122 = vld [vmem:[%s4 + $0xd8] sm:$0xff]
    %v123 = vld [vmem:[%s4 + $0xe0] sm:$0xff]
    %v124 = vld [vmem:[%s4 + $0xe8] sm:$0xff]
    %v125 = vld [vmem:[%s4 + $0xf0] sm:$0xff]
    %v126 = vld [vmem:[%s4 + $0xf8] sm:$0xff]
    %v127 = vld [vmem:[%s4 + $0x100] sm:$0xff]
    %v128 = vld [vmem:[%s4 + $0x108] sm:$0xff]
    %v129 = vld [vmem:[%s4 + $0x110] sm:$0xff]
    %v130 = vld [vmem:[%s4 + $0x118] sm:$0xff]
    %v131 = vld [vmem:[%s4 + $0x120] sm:$0xff]
    %v132 = vld [vmem:[%s4 + $0x128] sm:$0xff]
    %v133 = vld [vmem:[%s4 + $0x130] sm:$0xff]
    %v134 = vld [vmem:[%s4 + $0x138] sm:$0xff]
    %v135 = vld [vmem:[%s4 + $0x140] sm:$0xff]
    %v136 = vld [vmem:[%s4 + $0x148] sm:$0xff]
    %v137 = vld [vmem:[%s4 + $0x150] sm:$0xff]
    %v138 = vld [vmem:[%s4 + $0x158] sm:$0xff]
    %v139 = vld [vmem:[%s4 + $0x160] sm:$0xff]
    %v140 = vld [vmem:[%s4 + $0x168] sm:$0xff]
    %v141 = vld [vmem:[%s4 + $0x170] sm:$0xff]
    %v142 = vld [vmem:[%s4 + $0x178] sm:$0xff]
    %v143 = vld [vmem:[%s4 + $0x180] sm:$0xff]
    %v144 = vld [vmem:[%s4 + $0x188] sm:$0xff]
    %v145 = vld [vmem:[%s4 + $0x190] sm:$0xff]
    %v146 = vld [vmem:[%s4 + $0x198] sm:$0xff]
    %v147 = vld [vmem:[%s4 + $0x1a0] sm:$0xff]
    %v148 = vld [vmem:[%s4 + $0x1a8] sm:$0xff]
    %v149 = vld [vmem:[%s4 + $0x1b0] sm:$0xff]
    %v150 = vld [vmem:[%s4 + $0x1b8] sm:$0xff]
    %v151 = vld [vmem:[%s4 + $0x1c0] sm:$0xff]
    %v152 = vld [vmem:[%s4 + $0x1c8] sm:$0xff]
    %v153 = vld [vmem:[%s4 + $0x1d0] sm:$0xff]
    %v154 = vld [vmem:[%s4 + $0x1d8] sm:$0xff]
    %v155 = vld [vmem:[%s4 + $0x1e0] sm:$0xff]
    %v156 = vld [vmem:[%s4 + $0x1e8] sm:$0xff]
    %v157 = vld [vmem:[%s4 + $0x1f0] sm:$0xff]
    %v158 = vld [vmem:[%s4 + $0x1f8] sm:$0xff]
    %v159 = vld [vmem:[%s4 + $0x200] sm:$0xff]
    %v160 = vld [vmem:[%s4 + $0x208] sm:$0xff]
    %v161 = vld [vmem:[%s4 + $0x210] sm:$0xff]
    %v162 = vld [vmem:[%s4 + $0x218] sm:$0xff]
    %v163 = vld [vmem:[%s4 + $0x220] sm:$0xff]
    %v164 = vld [vmem:[%s4 + $0x228] sm:$0xff]
    %v165 = vld [vmem:[%s4 + $0x230] sm:$0xff]
    %v166 = vld [vmem:[%s4 + $0x238] sm:$0xff]
    %v167 = vld [vmem:[%s4 + $0x240] sm:$0xff]
    %v168 = vld [vmem:[%s4 + $0x248] sm:$0xff]
    %v169 = vld [vmem:[%s4 + $0x250] sm:$0xff]
    %v170 = vld [vmem:[%s4 + $0x258] sm:$0xff]
    %v171 = vld [vmem:[%s4 + $0x260] sm:$0xff]
    %v172 = vld [vmem:[%s4 + $0x268] sm:$0xff]
    %v173 = vld [vmem:[%s4 + $0x270] sm:$0xff]
    %v174 = vld [vmem:[%s4 + $0x278] sm:$0xff]
    %v175 = vld [vmem:[%s4 + $0x280] sm:$0xff]
    %v176 = vld [vmem:[%s4 + $0x288] sm:$0xff]
    %v177 = vld [vmem:[%s4 + $0x290] sm:$0xff]
    %v178 = vld [vmem:[%s4 + $0x298] sm:$0xff]
    %v179 = vld [vmem:[%s4 + $0x2a0] sm:$0xff]
    %v180 = vld [vmem:[%s4 + $0x2a8] sm:$0xff]
    %v181 = vld [vmem:[%s4 + $0x2b0] sm:$0xff]
    %v182 = vld [vmem:[%s4 + $0x2b8] sm:$0xff]
    %v183 = vld [vmem:[%s4 + $0x2c0] sm:$0xff]
    %v184 = vld [vmem:[%s4 + $0x2c8] sm:$0xff]
    %v185 = vld [vmem:[%s4 + $0x2d0] sm:$0xff]
    %v186 = vld [vmem:[%s4 + $0x2d8] sm:$0xff]
    %v187 = vld [vmem:[%s4 + $0x2e0] sm:$0xff]
    %v188 = vld [vmem:[%s4 + $0x2e8] sm:$0xff]
    %v189 = vld [vmem:[%s4 + $0x2f0] sm:$0xff]
    %v190 = vld [vmem:[%s4 + $0x2f8] sm:$0xff]
    %v191 = vld [vmem:[%s4 + $0x300] sm:$0xff]
    %v192 = vld [vmem:[%s4 + $0x308] sm:$0xff]
    %v193 = vld [vmem:[%s4 + $0x310] sm:$0xff]
    %v194 = vld [vmem:[%s4 + $0x318] sm:$0xff]
    %v195 = vld [vmem:[%s4 + $0x320] sm:$0xff]
    %v196 = vld [vmem:[%s4 + $0x328] sm:$0xff]
    %v197 = vld [vmem:[%s4 + $0x330] sm:$0xff]
    %v198 = vld [vmem:[%s4 + $0x338] sm:$0xff]
    %v199 = vld [vmem:[%s4 + $0x340] sm:$0xff]
    %v200 = vld [vmem:[%s4 + $0x348] sm:$0xff]
    %v201 = vld [vmem:[%s4 + $0x350] sm:$0xff]
    %v202 = vld [vmem:[%s4 + $0x358] sm:$0xff]
    %v203 = vld [vmem:[%s4 + $0x360] sm:$0xff]
    %v204 = vld [vmem:[%s4 + $0x368] sm:$0xff]
    %v205 = vld [vmem:[%s4 + $0x370] sm:$0xff]
    %v206 = vld [vmem:[%s4 + $0x378] sm:$0xff]
    %v207 = vld [vmem:[%s4 + $0x380] sm:$0xff]
    %v208 = vld [vmem:[%s4 + $0x388] sm:$0xff]
    %v209 = vld [vmem:[%s4 + $0x390] sm:$0xff]
    %v210 = vld [vmem:[%s4 + $0x398] sm:$0xff]
    %v211 = vld [vmem:[%s4 + $0x3a0] sm:$0xff]
    %v212 = vld [vmem:[%s4 + $0x3a8] sm:$0xff]
    %v213 = vld [vmem:[%s4 + $0x3b0] sm:$0xff]
    %v214 = vld [vmem:[%s4 + $0x3b8] sm:$0xff]
    %v215 = vld [vmem:[%s4 + $0x3c0] sm:$0xff]
    %v216 = vld [vmem:[%s4 + $0x3c8] sm:$0xff]
    %v217 = vld [vmem:[%s4 + $0x3d0] sm:$0xff]
    %v218 = vld [vmem:[%s4 + $0x3d8] sm:$0xff]
    %v219 = vld [vmem:[%s4 + $0x3e0] sm:$0xff]
    %v220 = vld [vmem:[%s4 + $0x3e8] sm:$0xff]
    %v221 = vld [vmem:[%s4 + $0x3f0] sm:$0xff]
    %v222 = vld [vmem:[%s4 + $0x3f8] sm:$0xff]
    %v223 = vld [vmem:[%s5] sm:$0xf]
    %v224 = vld [vmem:[%s5 + $0x4] sm:$0xf]
    %v225 = vld [vmem:[%s5 + $0x8] sm:$0xf]
    %v226 = vld [vmem:[%s5 + $0xc] sm:$0xf]
    %v227 = vld [vmem:[%s5 + $0x10] sm:$0xf]
    %v228 = vld [vmem:[%s5 + $0x14] sm:$0xf]
    %v229 = vld [vmem:[%s5 + $0x18] sm:$0xf]
    %v230 = vld [vmem:[%s5 + $0x1c] sm:$0xf]
    %v231 = vld [vmem:[%s5 + $0x20] sm:$0xf]
    %v232 = vld [vmem:[%s5 + $0x24] sm:$0xf]
    %v233 = vld [vmem:[%s5 + $0x28] sm:$0xf]
    %v234 = vld [vmem:[%s5 + $0x2c] sm:$0xf]
    %v235 = vld [vmem:[%s5 + $0x30] sm:$0xf]
    %v236 = vld [vmem:[%s5 + $0x34] sm:$0xf]
    %v237 = vld [vmem:[%s5 + $0x38] sm:$0xf]
    %v238 = vld [vmem:[%s5 + $0x3c] sm:$0xf]
    %v239 = vld [vmem:[%s5 + $0x40] sm:$0xf]
    %v240 = vld [vmem:[%s5 + $0x44] sm:$0xf]
    %v241 = vld [vmem:[%s5 + $0x48] sm:$0xf]
    %v242 = vld [vmem:[%s5 + $0x4c] sm:$0xf]
    %v243 = vld [vmem:[%s5 + $0x50] sm:$0xf]
    %v244 = vld [vmem:[%s5 + $0x54] sm:$0xf]
    %v245 = vld [vmem:[%s5 + $0x58] sm:$0xf]
    %v246 = vld [vmem:[%s5 + $0x5c] sm:$0xf]
    %v247 = vld [vmem:[%s5 + $0x60] sm:$0xf]
    %v248 = vld [vmem:[%s5 + $0x64] sm:$0xf]
    %v249 = vld [vmem:[%s5 + $0x68] sm:$0xf]
    %v250 = vld [vmem:[%s5 + $0x6c] sm:$0xf]
    %v251 = vld [vmem:[%s5 + $0x70] sm:$0xf]
    %v252 = vld [vmem:[%s5 + $0x74] sm:$0xf]
    %v253 = vld [vmem:[%s5 + $0x78] sm:$0xf]
    %v254 = vld [vmem:[%s5 + $0x7c] sm:$0xf]
    %v255 = vld [vmem:[%s6] sm:$0xf]
    %v256 = vld [vmem:[%s6 + $0x4] sm:$0xf]
    %v257 = vld [vmem:[%s6 + $0x8] sm:$0xf]
    %v258 = vld [vmem:[%s6 + $0xc] sm:$0xf]
    %v259 = vld [vmem:[%s6 + $0x10] sm:$0xf]
    %v260 = vld [vmem:[%s6 + $0x14] sm:$0xf]
    %v261 = vld [vmem:[%s6 + $0x18] sm:$0xf]
    %v262 = vld [vmem:[%s6 + $0x1c] sm:$0xf]
    %v263 = vld [vmem:[%s6 + $0x20] sm:$0xf]
    %v264 = vld [vmem:[%s6 + $0x24] sm:$0xf]
    %v265 = vld [vmem:[%s6 + $0x28] sm:$0xf]
    %v266 = vld [vmem:[%s6 + $0x2c] sm:$0xf]
    %v267 = vld [vmem:[%s6 + $0x30] sm:$0xf]
    %v268 = vld [vmem:[%s6 + $0x34] sm:$0xf]
    %v269 = vld [vmem:[%s6 + $0x38] sm:$0xf]
    %v270 = vld [vmem:[%s6 + $0x3c] sm:$0xf]
    %v271 = vld [vmem:[%s6 + $0x40] sm:$0xf]
    %v272 = vld [vmem:[%s6 + $0x44] sm:$0xf]
    %v273 = vld [vmem:[%s6 + $0x48] sm:$0xf]
    %v274 = vld [vmem:[%s6 + $0x4c] sm:$0xf]
    %v275 = vld [vmem:[%s6 + $0x50] sm:$0xf]
    %v276 = vld [vmem:[%s6 + $0x54] sm:$0xf]
    %v277 = vld [vmem:[%s6 + $0x58] sm:$0xf]
    %v278 = vld [vmem:[%s6 + $0x5c] sm:$0xf]
    %v279 = vld [vmem:[%s6 + $0x60] sm:$0xf]
    %v280 = vld [vmem:[%s6 + $0x64] sm:$0xf]
    %v281 = vld [vmem:[%s6 + $0x68] sm:$0xf]
    %v282 = vld [vmem:[%s6 + $0x6c] sm:$0xf]
    %v283 = vld [vmem:[%s6 + $0x70] sm:$0xf]
    %v284 = vld [vmem:[%s6 + $0x74] sm:$0xf]
    %v285 = vld [vmem:[%s6 + $0x78] sm:$0xf]
    %v286 = vld [vmem:[%s6 + $0x7c] sm:$0xf]
    %v287 = vld [vmem:[%s7] sm:$0x1]
    %v289 = vlaneseq
    %v290 = vshrl.u32 %v289, 7
    %v291 = vsub.s32 0, %v290
    %v292 = vrot.slane %v287, %v291
    %v294 = vld [vmem:[%s0] ss:$8 sm:$0xf]
    %s295 = scalar_lea.vmem %s0, 64
    %v296 = vld [vmem:[%s295] ss:$8 sm:$0xf]
    %v329 = vunpack.c.l.b16 %v31
    %v330 = vunpack.c.h.b16 %v31
    %v331 = vunpack.c.l.b16 %v32
    %v332 = vunpack.c.h.b16 %v32
    %v333 = vunpack.c.l.b16 %v33
    %v334 = vunpack.c.h.b16 %v33
    %v335 = vunpack.c.l.b16 %v34
    %v336 = vunpack.c.h.b16 %v34
    %v337 = vunpack.c.l.b16 %v35
    %v338 = vunpack.c.h.b16 %v35
    %v339 = vunpack.c.l.b16 %v36
    %v340 = vunpack.c.h.b16 %v36
    %v341 = vunpack.c.l.b16 %v37
    %v342 = vunpack.c.h.b16 %v37
    %v343 = vunpack.c.l.b16 %v38
    %v344 = vunpack.c.h.b16 %v38
    %v345 = vunpack.c.l.b16 %v39
    %v346 = vunpack.c.h.b16 %v39
    %v347 = vunpack.c.l.b16 %v40
    %v348 = vunpack.c.h.b16 %v40
    %v349 = vunpack.c.l.b16 %v41
    %v350 = vunpack.c.h.b16 %v41
    %v351 = vunpack.c.l.b16 %v42
    %v352 = vunpack.c.h.b16 %v42
    %v353 = vunpack.c.l.b16 %v43
    %v354 = vunpack.c.h.b16 %v43
    %v355 = vunpack.c.l.b16 %v44
    %v356 = vunpack.c.h.b16 %v44
    %v357 = vunpack.c.l.b16 %v45
    %v358 = vunpack.c.h.b16 %v45
    %v359 = vunpack.c.l.b16 %v46
    %v360 = vunpack.c.h.b16 %v46
    %v361 = vunpack.c.l.b16 %v47
    %v362 = vunpack.c.h.b16 %v47
    %v363 = vunpack.c.l.b16 %v48
    %v364 = vunpack.c.h.b16 %v48
    %v365 = vunpack.c.l.b16 %v49
    %v366 = vunpack.c.h.b16 %v49
    %v367 = vunpack.c.l.b16 %v50
    %v368 = vunpack.c.h.b16 %v50
    %v369 = vunpack.c.l.b16 %v51
    %v370 = vunpack.c.h.b16 %v51
    %v371 = vunpack.c.l.b16 %v52
    %v372 = vunpack.c.h.b16 %v52
    %v373 = vunpack.c.l.b16 %v53
    %v374 = vunpack.c.h.b16 %v53
    %v375 = vunpack.c.l.b16 %v54
    %v376 = vunpack.c.h.b16 %v54
    %v377 = vunpack.c.l.b16 %v55
    %v378 = vunpack.c.h.b16 %v55
    %v379 = vunpack.c.l.b16 %v56
    %v380 = vunpack.c.h.b16 %v56
    %v381 = vunpack.c.l.b16 %v57
    %v382 = vunpack.c.h.b16 %v57
    %v383 = vunpack.c.l.b16 %v58
    %v384 = vunpack.c.h.b16 %v58
    %v385 = vunpack.c.l.b16 %v59
    %v386 = vunpack.c.h.b16 %v59
    %v387 = vunpack.c.l.b16 %v60
    %v388 = vunpack.c.h.b16 %v60
    %v389 = vunpack.c.l.b16 %v61
    %v390 = vunpack.c.h.b16 %v61
    %v391 = vunpack.c.l.b16 %v62
    %v392 = vunpack.c.h.b16 %v62
    %v393 = vpack.c.b16 %v333, %v329
    %v394 = vpack.c.b16 %v334, %v330
    %v395 = vpack.c.b16 %v335, %v331
    %v396 = vpack.c.b16 %v336, %v332
    %v397 = vpack.c.b16 %v341, %v337
    %v398 = vpack.c.b16 %v342, %v338
    %v399 = vpack.c.b16 %v343, %v339
    %v400 = vpack.c.b16 %v344, %v340
    %v401 = vpack.c.b16 %v349, %v345
    %v402 = vpack.c.b16 %v350, %v346
    %v403 = vpack.c.b16 %v351, %v347
    %v404 = vpack.c.b16 %v352, %v348
    %v405 = vpack.c.b16 %v357, %v353
    %v406 = vpack.c.b16 %v358, %v354
    %v407 = vpack.c.b16 %v359, %v355
    %v408 = vpack.c.b16 %v360, %v356
    %v409 = vpack.c.b16 %v365, %v361
    %v410 = vpack.c.b16 %v366, %v362
    %v411 = vpack.c.b16 %v367, %v363
    %v412 = vpack.c.b16 %v368, %v364
    %v413 = vpack.c.b16 %v373, %v369
    %v414 = vpack.c.b16 %v374, %v370
    %v415 = vpack.c.b16 %v375, %v371
    %v416 = vpack.c.b16 %v376, %v372
    %v417 = vpack.c.b16 %v381, %v377
    %v418 = vpack.c.b16 %v382, %v378
    %v419 = vpack.c.b16 %v383, %v379
    %v420 = vpack.c.b16 %v384, %v380
    %v421 = vpack.c.b16 %v389, %v385
    %v422 = vpack.c.b16 %v390, %v386
    %v423 = vpack.c.b16 %v391, %v387
    %v424 = vpack.c.b16 %v392, %v388
    %457 = vmatprep.subr.bf16.mxu0 %v422
    %458 = vmatpush1.bf16.msra.mxu0 %v421
    %459 = vmatprep.subr.bf16.mxu0 %v418
    %460 = vmatpush1.bf16.msra.mxu0 %v417
    %461 = vmatprep.subr.bf16.mxu0 %v414
    %462 = vmatpush1.bf16.msra.mxu0 %v413
    %463 = vmatprep.subr.bf16.mxu0 %v410
    %464 = vmatpush1.bf16.msra.mxu0 %v409
    %465 = vmatprep.subr.bf16.mxu0 %v406
    %466 = vmatpush1.bf16.msra.mxu0 %v405
    %467 = vmatprep.subr.bf16.mxu0 %v402
    %468 = vmatpush1.bf16.msra.mxu0 %v401
    %469 = vmatprep.subr.bf16.mxu0 %v398
    %470 = vmatpush1.bf16.msra.mxu0 %v397
    %471 = vmatprep.subr.bf16.mxu0 %v394
    %472 = vmatpush1.bf16.msra.mxu0 %v393
    %473 = vmatprep.subr.bf16.mxu0 0
    %474 = vmatpush2.bf16.msra.mxu0 0
    %475 = vmatprep.subr.bf16.mxu0 0
    %476 = vmatpush2.bf16.msra.mxu0 0
    %477 = vmatprep.subr.bf16.mxu0 0
    %478 = vmatpush2.bf16.msra.mxu0 0
    %479 = vmatprep.subr.bf16.mxu0 0
    %480 = vmatpush2.bf16.msra.mxu0 0
    %481 = vmatprep.subr.bf16.mxu0 0
    %482 = vmatpush2.bf16.msra.mxu0 0
    %483 = vmatprep.subr.bf16.mxu0 0
    %484 = vmatpush2.bf16.msra.mxu0 0
    %485 = vmatprep.subr.bf16.mxu0 0
    %486 = vmatpush2.bf16.msra.mxu0 0
    %487 = vmatprep.subr.bf16.mxu0 0
    %488 = vmatpush2.bf16.msra.mxu0 0
    %489 = vmatprep.mubr.bf16.mxu0 0
    %490 = vmatmul.mubr.bf16.gmra.mxu0 0
    %v491 = vpop.f32.mrf.mxu0
    %v492 = vadd.f32 0.0, %v491
    %v493 = vpop.f32.mrf.mxu0
    %v494 = vadd.f32 0.0, %v493
    %v495 = vpop.f32.mrf.mxu0
    %v496 = vpop.f32.mrf.mxu0
    %497 = vdwg.mxu0
    %498 = vmatprep.subr.bf16.mxu0 %v424
    %499 = vmatpush1.bf16.msra.mxu0 %v423
    %500 = vmatprep.subr.bf16.mxu0 %v420
    %501 = vmatpush1.bf16.msra.mxu0 %v419
    %502 = vmatprep.subr.bf16.mxu0 %v416
    %503 = vmatpush1.bf16.msra.mxu0 %v415
    %504 = vmatprep.subr.bf16.mxu0 %v412
    %505 = vmatpush1.bf16.msra.mxu0 %v411
    %506 = vmatprep.subr.bf16.mxu0 %v408
    %507 = vmatpush1.bf16.msra.mxu0 %v407
    %508 = vmatprep.subr.bf16.mxu0 %v404
    %509 = vmatpush1.bf16.msra.mxu0 %v403
    %510 = vmatprep.subr.bf16.mxu0 %v400
    %511 = vmatpush1.bf16.msra.mxu0 %v399
    %512 = vmatprep.subr.bf16.mxu0 %v396
    %513 = vmatpush1.bf16.msra.mxu0 %v395
    %514 = vmatprep.subr.bf16.mxu0 0
    %515 = vmatpush2.bf16.msra.mxu0 0
    %516 = vmatprep.subr.bf16.mxu0 0
    %517 = vmatpush2.bf16.msra.mxu0 0
    %518 = vmatprep.subr.bf16.mxu0 0
    %519 = vmatpush2.bf16.msra.mxu0 0
    %520 = vmatprep.subr.bf16.mxu0 0
    %521 = vmatpush2.bf16.msra.mxu0 0
    %522 = vmatprep.subr.bf16.mxu0 0
    %523 = vmatpush2.bf16.msra.mxu0 0
    %524 = vmatprep.subr.bf16.mxu0 0
    %525 = vmatpush2.bf16.msra.mxu0 0
    %526 = vmatprep.subr.bf16.mxu0 0
    %527 = vmatpush2.bf16.msra.mxu0 0
    %528 = vmatprep.subr.bf16.mxu0 0
    %529 = vmatpush2.bf16.msra.mxu0 0
    %530 = vmatprep.mubr.bf16.mxu0 0
    %531 = vmatmul.mubr.bf16.gmra.mxu0 0
    %v532 = vpop.f32.mrf.mxu0
    %v533 = vadd.f32 0.0, %v532
    %v534 = vpop.f32.mrf.mxu0
    %v535 = vadd.f32 0.0, %v534
    %v536 = vpop.f32.mrf.mxu0
    %v537 = vpop.f32.mrf.mxu0
    %538 = vdwg.mxu0
    %v543 = vcombine.low %v492, %v494
    %v544 = vcombine.low %v533, %v535
    %v546 = vunpack.c.l.s4 1966171168
    %v547 = vunpack.c.0.s8 %v546
    %v548 = vlaneseq
    %v549 = vshrl.u32 %v548, 7
    %v550 = vsub.s32 %v547, %v549
    %v551 = vrot.slane %v543, %v550
    %v553 = vunpack.c.l.s4 1966171168
    %v554 = vunpack.c.0.s8 %v553
    %v555 = vlaneseq
    %v556 = vshrl.u32 %v555, 7
    %v557 = vsub.s32 %v554, %v556
    %v558 = vrot.slane %v544, %v557
    %v559 = vcombine.low %v551, %v558
    %v560 = vcombine.high %v551, %v558
    %v562 = vunpack.c.l.s4 1966171168
    %v563 = vunpack.c.0.s8 %v562
    %v564 = vlaneseq
    %v565 = vshrl.u32 %v564, 7
    %v566 = vsub.s32 %v563, %v565
    %v567 = vrot.slane %v559, %v566
    %v569 = vunpack.c.l.s4 1966171168
    %v570 = vunpack.c.0.s8 %v569
    %v571 = vlaneseq
    %v572 = vshrl.u32 %v571, 7
    %v573 = vsub.s32 %v570, %v572
    %v574 = vrot.slane %v560, %v573
    %v577 = vadd.f32 %v294, %v567
    %v578 = vadd.f32 %v296, %v574
    %s579 = scalar_lea.vmem %s0, 39
    %v580 = vld [vmem:[%s579] ss:$8 sm:$0xf]
    %s581 = scalar_lea.vmem %s0, 103
    %v582 = vld [vmem:[%s581] ss:$8 sm:$0xf]
    %v615 = vunpack.c.l.b16 %v63
    %v616 = vunpack.c.h.b16 %v63
    %v617 = vunpack.c.l.b16 %v64
    %v618 = vunpack.c.h.b16 %v64
    %v619 = vunpack.c.l.b16 %v65
    %v620 = vunpack.c.h.b16 %v65
    %v621 = vunpack.c.l.b16 %v66
    %v622 = vunpack.c.h.b16 %v66
    %v623 = vunpack.c.l.b16 %v67
    %v624 = vunpack.c.h.b16 %v67
    %v625 = vunpack.c.l.b16 %v68
    %v626 = vunpack.c.h.b16 %v68
    %v627 = vunpack.c.l.b16 %v69
    %v628 = vunpack.c.h.b16 %v69
    %v629 = vunpack.c.l.b16 %v70
    %v630 = vunpack.c.h.b16 %v70
    %v631 = vunpack.c.l.b16 %v71
    %v632 = vunpack.c.h.b16 %v71
    %v633 = vunpack.c.l.b16 %v72
    %v634 = vunpack.c.h.b16 %v72
    %v635 = vunpack.c.l.b16 %v73
    %v636 = vunpack.c.h.b16 %v73
    %v637 = vunpack.c.l.b16 %v74
    %v638 = vunpack.c.h.b16 %v74
    %v639 = vunpack.c.l.b16 %v75
    %v640 = vunpack.c.h.b16 %v75
    %v641 = vunpack.c.l.b16 %v76
    %v642 = vunpack.c.h.b16 %v76
    %v643 = vunpack.c.l.b16 %v77
    %v644 = vunpack.c.h.b16 %v77
    %v645 = vunpack.c.l.b16 %v78
    %v646 = vunpack.c.h.b16 %v78
    %v647 = vunpack.c.l.b16 %v79
    %v648 = vunpack.c.h.b16 %v79
    %v649 = vunpack.c.l.b16 %v80
    %v650 = vunpack.c.h.b16 %v80
    %v651 = vunpack.c.l.b16 %v81
    %v652 = vunpack.c.h.b16 %v81
    %v653 = vunpack.c.l.b16 %v82
    %v654 = vunpack.c.h.b16 %v82
    %v655 = vunpack.c.l.b16 %v83
    %v656 = vunpack.c.h.b16 %v83
    %v657 = vunpack.c.l.b16 %v84
    %v658 = vunpack.c.h.b16 %v84
    %v659 = vunpack.c.l.b16 %v85
    %v660 = vunpack.c.h.b16 %v85
    %v661 = vunpack.c.l.b16 %v86
    %v662 = vunpack.c.h.b16 %v86
    %v663 = vunpack.c.l.b16 %v87
    %v664 = vunpack.c.h.b16 %v87
    %v665 = vunpack.c.l.b16 %v88
    %v666 = vunpack.c.h.b16 %v88
    %v667 = vunpack.c.l.b16 %v89
    %v668 = vunpack.c.h.b16 %v89
    %v669 = vunpack.c.l.b16 %v90
    %v670 = vunpack.c.h.b16 %v90
    %v671 = vunpack.c.l.b16 %v91
    %v672 = vunpack.c.h.b16 %v91
    %v673 = vunpack.c.l.b16 %v92
    %v674 = vunpack.c.h.b16 %v92
    %v675 = vunpack.c.l.b16 %v93
    %v676 = vunpack.c.h.b16 %v93
    %v677 = vunpack.c.l.b16 %v94
    %v678 = vunpack.c.h.b16 %v94
    %v679 = vpack.c.b16 %v619, %v615
    %v680 = vpack.c.b16 %v620, %v616
    %v681 = vpack.c.b16 %v621, %v617
    %v682 = vpack.c.b16 %v622, %v618
    %v683 = vpack.c.b16 %v627, %v623
    %v684 = vpack.c.b16 %v628, %v624
    %v685 = vpack.c.b16 %v629, %v625
    %v686 = vpack.c.b16 %v630, %v626
    %v687 = vpack.c.b16 %v635, %v631
    %v688 = vpack.c.b16 %v636, %v632
    %v689 = vpack.c.b16 %v637, %v633
    %v690 = vpack.c.b16 %v638, %v634
    %v691 = vpack.c.b16 %v643, %v639
    %v692 = vpack.c.b16 %v644, %v640
    %v693 = vpack.c.b16 %v645, %v641
    %v694 = vpack.c.b16 %v646, %v642
    %v695 = vpack.c.b16 %v651, %v647
    %v696 = vpack.c.b16 %v652, %v648
    %v697 = vpack.c.b16 %v653, %v649
    %v698 = vpack.c.b16 %v654, %v650
    %v699 = vpack.c.b16 %v659, %v655
    %v700 = vpack.c.b16 %v660, %v656
    %v701 = vpack.c.b16 %v661, %v657
    %v702 = vpack.c.b16 %v662, %v658
    %v703 = vpack.c.b16 %v667, %v663
    %v704 = vpack.c.b16 %v668, %v664
    %v705 = vpack.c.b16 %v669, %v665
    %v706 = vpack.c.b16 %v670, %v666
    %v707 = vpack.c.b16 %v675, %v671
    %v708 = vpack.c.b16 %v676, %v672
    %v709 = vpack.c.b16 %v677, %v673
    %v710 = vpack.c.b16 %v678, %v674
    %743 = vmatprep.subr.bf16.mxu0 %v708
    %744 = vmatpush1.bf16.msra.mxu0 %v707
    %745 = vmatprep.subr.bf16.mxu0 %v704
    %746 = vmatpush1.bf16.msra.mxu0 %v703
    %747 = vmatprep.subr.bf16.mxu0 %v700
    %748 = vmatpush1.bf16.msra.mxu0 %v699
    %749 = vmatprep.subr.bf16.mxu0 %v696
    %750 = vmatpush1.bf16.msra.mxu0 %v695
    %751 = vmatprep.subr.bf16.mxu0 %v692
    %752 = vmatpush1.bf16.msra.mxu0 %v691
    %753 = vmatprep.subr.bf16.mxu0 %v688
    %754 = vmatpush1.bf16.msra.mxu0 %v687
    %755 = vmatprep.subr.bf16.mxu0 %v684
    %756 = vmatpush1.bf16.msra.mxu0 %v683
    %757 = vmatprep.subr.bf16.mxu0 %v680
    %758 = vmatpush1.bf16.msra.mxu0 %v679
    %759 = vmatprep.subr.bf16.mxu0 0
    %760 = vmatpush2.bf16.msra.mxu0 0
    %761 = vmatprep.subr.bf16.mxu0 0
    %762 = vmatpush2.bf16.msra.mxu0 0
    %763 = vmatprep.subr.bf16.mxu0 0
    %764 = vmatpush2.bf16.msra.mxu0 0
    %765 = vmatprep.subr.bf16.mxu0 0
    %766 = vmatpush2.bf16.msra.mxu0 0
    %767 = vmatprep.subr.bf16.mxu0 0
    %768 = vmatpush2.bf16.msra.mxu0 0
    %769 = vmatprep.subr.bf16.mxu0 0
    %770 = vmatpush2.bf16.msra.mxu0 0
    %771 = vmatprep.subr.bf16.mxu0 0
    %772 = vmatpush2.bf16.msra.mxu0 0
    %773 = vmatprep.subr.bf16.mxu0 0
    %774 = vmatpush2.bf16.msra.mxu0 0
    %775 = vmatprep.mubr.bf16.mxu0 0
    %776 = vmatmul.mubr.bf16.gmra.mxu0 0
    %v777 = vpop.f32.mrf.mxu0
    %v778 = vadd.f32 0.0, %v777
    %v779 = vpop.f32.mrf.mxu0
    %v780 = vadd.f32 0.0, %v779
    %v781 = vpop.f32.mrf.mxu0
    %v782 = vpop.f32.mrf.mxu0
    %783 = vdwg.mxu0
    %784 = vmatprep.subr.bf16.mxu0 %v710
    %785 = vmatpush1.bf16.msra.mxu0 %v709
    %786 = vmatprep.subr.bf16.mxu0 %v706
    %787 = vmatpush1.bf16.msra.mxu0 %v705
    %788 = vmatprep.subr.bf16.mxu0 %v702
    %789 = vmatpush1.bf16.msra.mxu0 %v701
    %790 = vmatprep.subr.bf16.mxu0 %v698
    %791 = vmatpush1.bf16.msra.mxu0 %v697
    %792 = vmatprep.subr.bf16.mxu0 %v694
    %793 = vmatpush1.bf16.msra.mxu0 %v693
    %794 = vmatprep.subr.bf16.mxu0 %v690
    %795 = vmatpush1.bf16.msra.mxu0 %v689
    %796 = vmatprep.subr.bf16.mxu0 %v686
    %797 = vmatpush1.bf16.msra.mxu0 %v685
    %798 = vmatprep.subr.bf16.mxu0 %v682
    %799 = vmatpush1.bf16.msra.mxu0 %v681
    %800 = vmatprep.subr.bf16.mxu0 0
    %801 = vmatpush2.bf16.msra.mxu0 0
    %802 = vmatprep.subr.bf16.mxu0 0
    %803 = vmatpush2.bf16.msra.mxu0 0
    %804 = vmatprep.subr.bf16.mxu0 0
    %805 = vmatpush2.bf16.msra.mxu0 0
    %806 = vmatprep.subr.bf16.mxu0 0
    %807 = vmatpush2.bf16.msra.mxu0 0
    %808 = vmatprep.subr.bf16.mxu0 0
    %809 = vmatpush2.bf16.msra.mxu0 0
    %810 = vmatprep.subr.bf16.mxu0 0
    %811 = vmatpush2.bf16.msra.mxu0 0
    %812 = vmatprep.subr.bf16.mxu0 0
    %813 = vmatpush2.bf16.msra.mxu0 0
    %814 = vmatprep.subr.bf16.mxu0 0
    %815 = vmatpush2.bf16.msra.mxu0 0
    %816 = vmatprep.mubr.bf16.mxu0 0
    %817 = vmatmul.mubr.bf16.gmra.mxu0 0
    %v818 = vpop.f32.mrf.mxu0
    %v819 = vadd.f32 0.0, %v818
    %v820 = vpop.f32.mrf.mxu0
    %v821 = vadd.f32 0.0, %v820
    %v822 = vpop.f32.mrf.mxu0
    %v823 = vpop.f32.mrf.mxu0
    %824 = vdwg.mxu0
    %v829 = vcombine.low %v778, %v780
    %v830 = vcombine.low %v819, %v821
    %v832 = vunpack.c.l.s4 1966171168
    %v833 = vunpack.c.0.s8 %v832
    %v834 = vlaneseq
    %v835 = vshrl.u32 %v834, 7
    %v836 = vsub.s32 %v833, %v835
    %v837 = vrot.slane %v829, %v836
    %v839 = vunpack.c.l.s4 1966171168
    %v840 = vunpack.c.0.s8 %v839
    %v841 = vlaneseq
    %v842 = vshrl.u32 %v841, 7
    %v843 = vsub.s32 %v840, %v842
    %v844 = vrot.slane %v830, %v843
    %v845 = vcombine.low %v837, %v844
    %v846 = vcombine.high %v837, %v844
    %v848 = vunpack.c.l.s4 1966171168
    %v849 = vunpack.c.0.s8 %v848
    %v850 = vlaneseq
    %v851 = vshrl.u32 %v850, 7
    %v852 = vsub.s32 %v849, %v851
    %v853 = vrot.slane %v845, %v852
    %v855 = vunpack.c.l.s4 1966171168
    %v856 = vunpack.c.0.s8 %v855
    %v857 = vlaneseq
    %v858 = vshrl.u32 %v857, 7
    %v859 = vsub.s32 %v856, %v858
    %v860 = vrot.slane %v846, %v859
    %v863 = vadd.f32 %v580, %v853
    %v864 = vadd.f32 %v582, %v860
    %v865 = vxor.u32 %v577, 2147483648
    %v866 = vxor.u32 %v578, 2147483648
    %v867 = vmul.f32 %v865, 1.442695
    %v868 = vpow.pop %v867
    %v869 = vmul.f32 %v866, 1.442695
    %v870 = vpow.pop %v869
    %v871 = vadd.f32 %v868, 1.0
    %v872 = vadd.f32 %v870, 1.0
    %v873 = vrcp.pop %v871
    %v874 = vmul.f32 1.0, %v873
    %v875 = vrcp.pop %v872
    %v876 = vmul.f32 1.0, %v875
    %v879 = vrot.slane %v577, 3
    %v880 = vrot.slane %v578, 3
    %v883 = vtanh.pop %v879
    %v884 = vtanh.pop %v880
    %v887 = vrot.slane %v874, 1
    %v888 = vrot.slane %v876, 1
    %v891 = vmul.f32 %v887, 0.0
    %v892 = vmul.f32 %v888, 0.0
    %v893 = vmul.f32 %v874, %v883
    %v894 = vmul.f32 %v876, %v884
    %v895 = vadd.f32 %v891, %v893
    %v896 = vadd.f32 %v892, %v894
    %v897 = vtanh.pop %v895
    %v898 = vtanh.pop %v896
    %v899 = vrot.slane %v874, 2
    %v900 = vrot.slane %v876, 2
    %v903 = vmul.f32 %v899, %v897
    %v904 = vmul.f32 %v900, %v898
    %v905 = vxor.u32 %v863, 2147483648
    %v906 = vxor.u32 %v864, 2147483648
    %v907 = vmul.f32 %v905, 1.442695
    %v908 = vpow.pop %v907
    %v909 = vmul.f32 %v906, 1.442695
    %v910 = vpow.pop %v909
    %v911 = vadd.f32 %v908, 1.0
    %v912 = vadd.f32 %v910, 1.0
    %v913 = vrcp.pop %v911
    %v914 = vmul.f32 1.0, %v913
    %v915 = vrcp.pop %v912
    %v916 = vmul.f32 1.0, %v915
    %v919 = vrot.slane %v863, 3
    %v920 = vrot.slane %v864, 3
    %v923 = vtanh.pop %v919
    %v924 = vtanh.pop %v920
    %v927 = vrot.slane %v914, 1
    %v928 = vrot.slane %v916, 1
    %v931 = vmul.f32 %v927, 0.0
    %v932 = vmul.f32 %v928, 0.0
    %v933 = vmul.f32 %v914, %v923
    %v934 = vmul.f32 %v916, %v924
    %v935 = vadd.f32 %v931, %v933
    %v936 = vadd.f32 %v932, %v934
    %v937 = vtanh.pop %v935
    %v938 = vtanh.pop %v936
    %v939 = vrot.slane %v914, 2
    %v940 = vrot.slane %v916, 2
    %v943 = vmul.f32 %v939, %v937
    %v944 = vmul.f32 %v940, %v938
    %945 = vst [vmem:[#allocation2] sm:$0x1] %v903
    %946 = vst [vmem:[#allocation2 + $0x10] sm:$0x1] %v904
    %947 = vst [vmem:[#allocation2 + $0xf] sm:$0x1] %v943
    %948 = vst [vmem:[#allocation2 + $0x1f] sm:$0x1] %v944
    %s949 = scalar_lea.vmem %s0, 1
    %v950 = vld [vmem:[%s949] ss:$8 sm:$0xf]
    %s951 = scalar_lea.vmem %s0, 65
    %v952 = vld [vmem:[%s951] ss:$8 sm:$0xf]
    %v953 = vpack.c.bf16 %v903, %v903
    %v954 = vpack.c.bf16 %v904, %v904
    %v957 = vunpack.c.l.b16 %v953
    %v958 = vunpack.c.l.b16 %v954
    %v959 = vrot.slane %v958, 7
    %vm960 = vcmask 1041409
    %v961 = vsel %vm960, %v959, %v957
    %v962 = vpack.c.b16 %v961, %v961
    %964 = vmatprep.subr.bf16.mxu0 %v422
    %965 = vmatpush1.bf16.msra.mxu0 %v421
    %966 = vmatprep.subr.bf16.mxu0 %v418
    %967 = vmatpush1.bf16.msra.mxu0 %v417
    %968 = vmatprep.subr.bf16.mxu0 %v414
    %969 = vmatpush1.bf16.msra.mxu0 %v413
    %970 = vmatprep.subr.bf16.mxu0 %v410
    %971 = vmatpush1.bf16.msra.mxu0 %v409
    %972 = vmatprep.subr.bf16.mxu0 %v406
    %973 = vmatpush1.bf16.msra.mxu0 %v405
    %974 = vmatprep.subr.bf16.mxu0 %v402
    %975 = vmatpush1.bf16.msra.mxu0 %v401
    %976 = vmatprep.subr.bf16.mxu0 %v398
    %977 = vmatpush1.bf16.msra.mxu0 %v397
    %978 = vmatprep.subr.bf16.mxu0 %v394
    %979 = vmatpush1.bf16.msra.mxu0 %v393
    %980 = vmatprep.subr.bf16.mxu0 0
    %981 = vmatpush2.bf16.msra.mxu0 0
    %982 = vmatprep.subr.bf16.mxu0 0
    %983 = vmatpush2.bf16.msra.mxu0 0
    %984 = vmatprep.subr.bf16.mxu0 0
    %985 = vmatpush2.bf16.msra.mxu0 0
    %986 = vmatprep.subr.bf16.mxu0 0
    %987 = vmatpush2.bf16.msra.mxu0 0
    %988 = vmatprep.subr.bf16.mxu0 0
    %989 = vmatpush2.bf16.msra.mxu0 0
    %990 = vmatprep.subr.bf16.mxu0 0
    %991 = vmatpush2.bf16.msra.mxu0 0
    %992 = vmatprep.subr.bf16.mxu0 0
    %993 = vmatpush2.bf16.msra.mxu0 0
    %994 = vmatprep.subr.bf16.mxu0 0
    %995 = vmatpush2.bf16.msra.mxu0 0
    %996 = vmatprep.mubr.bf16.mxu0 0
    %997 = vmatmul.mubr.bf16.gmra.mxu0 %v962
    %v998 = vpop.f32.mrf.mxu0
    %v999 = vadd.f32 0.0, %v998
    %v1000 = vpop.f32.mrf.mxu0
    %v1001 = vadd.f32 0.0, %v1000
    %v1002 = vpop.f32.mrf.mxu0
    %v1003 = vpop.f32.mrf.mxu0
    %1004 = vdwg.mxu0
    %1005 = vmatprep.subr.bf16.mxu0 %v424
    %1006 = vmatpush1.bf16.msra.mxu0 %v423
    %1007 = vmatprep.subr.bf16.mxu0 %v420
    %1008 = vmatpush1.bf16.msra.mxu0 %v419
    %1009 = vmatprep.subr.bf16.mxu0 %v416
    %1010 = vmatpush1.bf16.msra.mxu0 %v415
    %1011 = vmatprep.subr.bf16.mxu0 %v412
    %1012 = vmatpush1.bf16.msra.mxu0 %v411
    %1013 = vmatprep.subr.bf16.mxu0 %v408
    %1014 = vmatpush1.bf16.msra.mxu0 %v407
    %1015 = vmatprep.subr.bf16.mxu0 %v404
    %1016 = vmatpush1.bf16.msra.mxu0 %v403
    %1017 = vmatprep.subr.bf16.mxu0 %v400
    %1018 = vmatpush1.bf16.msra.mxu0 %v399
    %1019 = vmatprep.subr.bf16.mxu0 %v396
    %1020 = vmatpush1.bf16.msra.mxu0 %v395
    %1021 = vmatprep.subr.bf16.mxu0 0
    %1022 = vmatpush2.bf16.msra.mxu0 0
    %1023 = vmatprep.subr.bf16.mxu0 0
    %1024 = vmatpush2.bf16.msra.mxu0 0
    %1025 = vmatprep.subr.bf16.mxu0 0
    %1026 = vmatpush2.bf16.msra.mxu0 0
    %1027 = vmatprep.subr.bf16.mxu0 0
    %1028 = vmatpush2.bf16.msra.mxu0 0
    %1029 = vmatprep.subr.bf16.mxu0 0
    %1030 = vmatpush2.bf16.msra.mxu0 0
    %1031 = vmatprep.subr.bf16.mxu0 0
    %1032 = vmatpush2.bf16.msra.mxu0 0
    %1033 = vmatprep.subr.bf16.mxu0 0
    %1034 = vmatpush2.bf16.msra.mxu0 0
    %1035 = vmatprep.subr.bf16.mxu0 0
    %1036 = vmatpush2.bf16.msra.mxu0 0
    %1037 = vmatprep.mubr.bf16.mxu0 0
    %1038 = vmatmul.mubr.bf16.gmra.mxu0 %v962
    %v1039 = vpop.f32.mrf.mxu0
    %v1040 = vadd.f32 0.0, %v1039
    %v1041 = vpop.f32.mrf.mxu0
    %v1042 = vadd.f32 0.0, %v1041
    %v1043 = vpop.f32.mrf.mxu0
    %v1044 = vpop.f32.mrf.mxu0
    %1045 = vdwg.mxu0
    %v1050 = vcombine.low %v999, %v1001
    %v1051 = vcombine.low %v1040, %v1042
    %v1053 = vunpack.c.l.s4 1966171168
    %v1054 = vunpack.c.0.s8 %v1053
    %v1055 = vlaneseq
    %v1056 = vshrl.u32 %v1055, 7
    %v1057 = vsub.s32 %v1054, %v1056
    %v1058 = vrot.slane %v1050, %v1057
    %v1060 = vunpack.c.l.s4 1966171168
    %v1061 = vunpack.c.0.s8 %v1060
    %v1062 = vlaneseq
    %v1063 = vshrl.u32 %v1062, 7
    %v1064 = vsub.s32 %v1061, %v1063
    %v1065 = vrot.slane %v1051, %v1064
    %v1066 = vcombine.low %v1058, %v1065
    %v1067 = vcombine.high %v1058, %v1065
    %v1069 = vunpack.c.l.s4 1966171168
    %v1070 = vunpack.c.0.s8 %v1069
    %v1071 = vlaneseq
    %v1072 = vshrl.u32 %v1071, 7
    %v1073 = vsub.s32 %v1070, %v1072
    %v1074 = vrot.slane %v1066, %v1073
    %v1076 = vunpack.c.l.s4 1966171168
    %v1077 = vunpack.c.0.s8 %v1076
    %v1078 = vlaneseq
    %v1079 = vshrl.u32 %v1078, 7
    %v1080 = vsub.s32 %v1077, %v1079
    %v1081 = vrot.slane %v1067, %v1080
    %v1084 = vadd.f32 %v950, %v1074
    %v1085 = vadd.f32 %v952, %v1081
    %s1086 = scalar_lea.vmem %s0, 38
    %v1087 = vld [vmem:[%s1086] ss:$8 sm:$0xf]
    %s1088 = scalar_lea.vmem %s0, 102
    %v1089 = vld [vmem:[%s1088] ss:$8 sm:$0xf]
    %v1090 = vpack.c.bf16 %v943, %v943
    %v1091 = vpack.c.bf16 %v944, %v944
    %v1094 = vunpack.c.l.b16 %v1090
    %v1095 = vunpack.c.l.b16 %v1091
    %v1096 = vrot.slane %v1095, 7
    %v1097 = vsel %vm960, %v1096, %v1094
    %v1098 = vpack.c.b16 %v1097, %v1097
    %1100 = vmatprep.subr.bf16.mxu0 %v708
    %1101 = vmatpush1.bf16.msra.mxu0 %v707
    %1102 = vmatprep.subr.bf16.mxu0 %v704
    %1103 = vmatpush1.bf16.msra.mxu0 %v703
    %1104 = vmatprep.subr.bf16.mxu0 %v700
    %1105 = vmatpush1.bf16.msra.mxu0 %v699
    %1106 = vmatprep.subr.bf16.mxu0 %v696
    %1107 = vmatpush1.bf16.msra.mxu0 %v695
    %1108 = vmatprep.subr.bf16.mxu0 %v692
    %1109 = vmatpush1.bf16.msra.mxu0 %v691
    %1110 = vmatprep.subr.bf16.mxu0 %v688
    %1111 = vmatpush1.bf16.msra.mxu0 %v687
    %1112 = vmatprep.subr.bf16.mxu0 %v684
    %1113 = vmatpush1.bf16.msra.mxu0 %v683
    %1114 = vmatprep.subr.bf16.mxu0 %v680
    %1115 = vmatpush1.bf16.msra.mxu0 %v679
    %1116 = vmatprep.subr.bf16.mxu0 0
    %1117 = vmatpush2.bf16.msra.mxu0 0
    %1118 = vmatprep.subr.bf16.mxu0 0
    %1119 = vmatpush2.bf16.msra.mxu0 0
    %1120 = vmatprep.subr.bf16.mxu0 0
    %1121 = vmatpush2.bf16.msra.mxu0 0
    %1122 = vmatprep.subr.bf16.mxu0 0
    %1123 = vmatpush2.bf16.msra.mxu0 0
    %1124 = vmatprep.subr.bf16.mxu0 0
    %1125 = vmatpush2.bf16.msra.mxu0 0
    %1126 = vmatprep.subr.bf16.mxu0 0
    %1127 = vmatpush2.bf16.msra.mxu0 0
    %1128 = vmatprep.subr.bf16.mxu0 0
    %1129 = vmatpush2.bf16.msra.mxu0 0
    %1130 = vmatprep.subr.bf16.mxu0 0
    %1131 = vmatpush2.bf16.msra.mxu0 0
    %1132 = vmatprep.mubr.bf16.mxu0 0
    %1133 = vmatmul.mubr.bf16.gmra.mxu0 %v1098
    %v1134 = vpop.f32.mrf.mxu0
    %v1135 = vadd.f32 0.0, %v1134
    %v1136 = vpop.f32.mrf.mxu0
    %v1137 = vadd.f32 0.0, %v1136
    %v1138 = vpop.f32.mrf.mxu0
    %v1139 = vpop.f32.mrf.mxu0
    %1140 = vdwg.mxu0
    %1141 = vmatprep.subr.bf16.mxu0 %v710
    %1142 = vmatpush1.bf16.msra.mxu0 %v709
    %1143 = vmatprep.subr.bf16.mxu0 %v706
    %1144 = vmatpush1.bf16.msra.mxu0 %v705
    %1145 = vmatprep.subr.bf16.mxu0 %v702
    %1146 = vmatpush1.bf16.msra.mxu0 %v701
    %1147 = vmatprep.subr.bf16.mxu0 %v698
    %1148 = vmatpush1.bf16.msra.mxu0 %v697
    %1149 = vmatprep.subr.bf16.mxu0 %v694
    %1150 = vmatpush1.bf16.msra.mxu0 %v693
    %1151 = vmatprep.subr.bf16.mxu0 %v690
    %1152 = vmatpush1.bf16.msra.mxu0 %v689
    %1153 = vmatprep.subr.bf16.mxu0 %v686
    %1154 = vmatpush1.bf16.msra.mxu0 %v685
    %1155 = vmatprep.subr.bf16.mxu0 %v682
    %1156 = vmatpush1.bf16.msra.mxu0 %v681
    %1157 = vmatprep.subr.bf16.mxu0 0
    %1158 = vmatpush2.bf16.msra.mxu0 0
    %1159 = vmatprep.subr.bf16.mxu0 0
    %1160 = vmatpush2.bf16.msra.mxu0 0
    %1161 = vmatprep.subr.bf16.mxu0 0
    %1162 = vmatpush2.bf16.msra.mxu0 0
    %1163 = vmatprep.subr.bf16.mxu0 0
    %1164 = vmatpush2.bf16.msra.mxu0 0
    %1165 = vmatprep.subr.bf16.mxu0 0
    %1166 = vmatpush2.bf16.msra.mxu0 0
    %1167 = vmatprep.subr.bf16.mxu0 0
    %1168 = vmatpush2.bf16.msra.mxu0 0
    %1169 = vmatprep.subr.bf16.mxu0 0
    %1170 = vmatpush2.bf16.msra.mxu0 0
    %1171 = vmatprep.subr.bf16.mxu0 0
    %1172 = vmatpush2.bf16.msra.mxu0 0
    %1173 = vmatprep.mubr.bf16.mxu0 0
    %1174 = vmatmul.mubr.bf16.gmra.mxu0 %v1098
    %v1175 = vpop.f32.mrf.mxu0
    %v1176 = vadd.f32 0.0, %v1175
    %v1177 = vpop.f32.mrf.mxu0
    %v1178 = vadd.f32 0.0, %v1177
    %v1179 = vpop.f32.mrf.mxu0
    %v1180 = vpop.f32.mrf.mxu0
    %1181 = vdwg.mxu0
    %v1186 = vcombine.low %v1135, %v1137
    %v1187 = vcombine.low %v1176, %v1178
    %v1189 = vunpack.c.l.s4 1966171168
    %v1190 = vunpack.c.0.s8 %v1189
    %v1191 = vlaneseq
    %v1192 = vshrl.u32 %v1191, 7
    %v1193 = vsub.s32 %v1190, %v1192
    %v1194 = vrot.slane %v1186, %v1193
    %v1196 = vunpack.c.l.s4 1966171168
    %v1197 = vunpack.c.0.s8 %v1196
    %v1198 = vlaneseq
    %v1199 = vshrl.u32 %v1198, 7
    %v1200 = vsub.s32 %v1197, %v1199
    %v1201 = vrot.slane %v1187, %v1200
    %v1202 = vcombine.low %v1194, %v1201
    %v1203 = vcombine.high %v1194, %v1201
    %v1205 = vunpack.c.l.s4 1966171168
    %v1206 = vunpack.c.0.s8 %v1205
    %v1207 = vlaneseq
    %v1208 = vshrl.u32 %v1207, 7
    %v1209 = vsub.s32 %v1206, %v1208
    %v1210 = vrot.slane %v1202, %v1209
    %v1212 = vunpack.c.l.s4 1966171168
    %v1213 = vunpack.c.0.s8 %v1212
    %v1214 = vlaneseq
    %v1215 = vshrl.u32 %v1214, 7
    %v1216 = vsub.s32 %v1213, %v1215
    %v1217 = vrot.slane %v1203, %v1216
    %v1220 = vadd.f32 %v1087, %v1210
    %v1221 = vadd.f32 %v1089, %v1217
    %v1222 = vxor.u32 %v1084, 2147483648
    %v1223 = vxor.u32 %v1085, 2147483648
    %v1224 = vmul.f32 %v1222, 1.442695
    %v1225 = vpow.pop %v1224
    %v1226 = vmul.f32 %v1223, 1.442695
    %v1227 = vpow.pop %v1226
    %v1228 = vadd.f32 %v1225, 1.0
    %v1229 = vadd.f32 %v1227, 1.0
    %v1230 = vrcp.pop %v1228
    %v1231 = vmul.f32 1.0, %v1230
    %v1232 = vrcp.pop %v1229
    %v1233 = vmul.f32 1.0, %v1232
    %v1236 = vrot.slane %v1084, 3
    %v1237 = vrot.slane %v1085, 3
    %v1240 = vtanh.pop %v1236
    %v1241 = vtanh.pop %v1237
    %v1244 = vrot.slane %v1231, 1
    %v1245 = vrot.slane %v1233, 1
    %v1248 = vmul.f32 %v1244, %v895
    %v1249 = vmul.f32 %v1245, %v896
    %v1250 = vmul.f32 %v1231, %v1240
    %v1251 = vmul.f32 %v1233, %v1241
    %v1252 = vadd.f32 %v1248, %v1250
    %v1253 = vadd.f32 %v1249, %v1251
    %v1254 = vtanh.pop %v1252
    %v1255 = vtanh.pop %v1253
    %v1256 = vrot.slane %v1231, 2
    %v1257 = vrot.slane %v1233, 2
    %v1260 = vmul.f32 %v1256, %v1254
    %v1261 = vmul.f32 %v1257, %v1255
    %v1262 = vxor.u32 %v1220, 2147483648
    %v1263 = vxor.u32 %v1221, 2147483648
    %v1264 = vmul.f32 %v1262, 1.442695
    %v1265 = vpow.pop %v1264
    %v1266 = vmul.f32 %v1263, 1.442695
    %v1267 = vpow.pop %v1266
    %v1268 = vadd.f32 %v1265, 1.0
    %v1269 = vadd.f32 %v1267, 1.0
    %v1270 = vrcp.pop %v1268
    %v1271 = vmul.f32 1.0, %v1270
    %v1272 = vrcp.pop %v1269
    %v1273 = vmul.f32 1.0, %v1272
    %v1276 = vrot.slane %v1220, 3
    %v1277 = vrot.slane %v1221, 3
    %v1280 = vtanh.pop %v1276
    %v1281 = vtanh.pop %v1277
    %v1284 = vrot.slane %v1271, 1
    %v1285 = vrot.slane %v1273, 1
    %v1288 = vmul.f32 %v1284, %v935
    %v1289 = vmul.f32 %v1285, %v936
    %v1290 = vmul.f32 %v1271, %v1280
    %v1291 = vmul.f32 %v1273, %v1281
    %v1292 = vadd.f32 %v1288, %v1290
    %v1293 = vadd.f32 %v1289, %v1291
    %v1294 = vtanh.pop %v1292
    %v1295 = vtanh.pop %v1293
    %v1296 = vrot.slane %v1271, 2
    %v1297 = vrot.slane %v1273, 2
    %v1300 = vmul.f32 %v1296, %v1294
    %v1301 = vmul.f32 %v1297, %v1295
    %1302 = vst [vmem:[#allocation2 + $0x1] sm:$0x1] %v1260
    %1303 = vst [vmem:[#allocation2 + $0x11] sm:$0x1] %v1261
    %1304 = vst [vmem:[#allocation2 + $0xe] sm:$0x1] %v1300
    %1305 = vst [vmem:[#allocation2 + $0x1e] sm:$0x1] %v1301
    %s1306 = scalar_lea.vmem %s0, 2
    %v1307 = vld [vmem:[%s1306] ss:$8 sm:$0xf]
    %s1308 = scalar_lea.vmem %s0, 66
    %v1309 = vld [vmem:[%s1308] ss:$8 sm:$0xf]
    %v1310 = vpack.c.bf16 %v1260, %v1260
    %v1311 = vpack.c.bf16 %v1261, %v1261
    %v1314 = vunpack.c.l.b16 %v1310
    %v1315 = vunpack.c.l.b16 %v1311
    %v1316 = vrot.slane %v1315, 7
    %v1317 = vsel %vm960, %v1316, %v1314
    %v1318 = vpack.c.b16 %v1317, %v1317
    %1320 = vmatprep.subr.bf16.mxu0 %v422
    %1321 = vmatpush1.bf16.msra.mxu0 %v421
    %1322 = vmatprep.subr.bf16.mxu0 %v418
    %1323 = vmatpush1.bf16.msra.mxu0 %v417
    %1324 = vmatprep.subr.bf16.mxu0 %v414
    %1325 = vmatpush1.bf16.msra.mxu0 %v413
    %1326 = vmatprep.subr.bf16.mxu0 %v410
    %1327 = vmatpush1.bf16.msra.mxu0 %v409
    %1328 = vmatprep.subr.bf16.mxu0 %v406
    %1329 = vmatpush1.bf16.msra.mxu0 %v405
    %1330 = vmatprep.subr.bf16.mxu0 %v402
    %1331 = vmatpush1.bf16.msra.mxu0 %v401
    %1332 = vmatprep.subr.bf16.mxu0 %v398
    %1333 = vmatpush1.bf16.msra.mxu0 %v397
    %1334 = vmatprep.subr.bf16.mxu0 %v394
    %1335 = vmatpush1.bf16.msra.mxu0 %v393
    %1336 = vmatprep.subr.bf16.mxu0 0
    %1337 = vmatpush2.bf16.msra.mxu0 0
    %1338 = vmatprep.subr.bf16.mxu0 0
    %1339 = vmatpush2.bf16.msra.mxu0 0
    %1340 = vmatprep.subr.bf16.mxu0 0
    %1341 = vmatpush2.bf16.msra.mxu0 0
    %1342 = vmatprep.subr.bf16.mxu0 0
    %1343 = vmatpush2.bf16.msra.mxu0 0
    %1344 = vmatprep.subr.bf16.mxu0 0
    %1345 = vmatpush2.bf16.msra.mxu0 0
    %1346 = vmatprep.subr.bf16.mxu0 0
    %1347 = vmatpush2.bf16.msra.mxu0 0
    %1348 = vmatprep.subr.bf16.mxu0 0
    %1349 = vmatpush2.bf16.msra.mxu0 0
    %1350 = vmatprep.subr.bf16.mxu0 0
    %1351 = vmatpush2.bf16.msra.mxu0 0
    %1352 = vmatprep.mubr.bf16.mxu0 0
    %1353 = vmatmul.mubr.bf16.gmra.mxu0 %v1318
    %v1354 = vpop.f32.mrf.mxu0
    %v1355 = vadd.f32 0.0, %v1354
    %v1356 = vpop.f32.mrf.mxu0
    %v1357 = vadd.f32 0.0, %v1356
    %v1358 = vpop.f32.mrf.mxu0
    %v1359 = vpop.f32.mrf.mxu0
    %1360 = vdwg.mxu0
    %1361 = vmatprep.subr.bf16.mxu0 %v424
    %1362 = vmatpush1.bf16.msra.mxu0 %v423
    %1363 = vmatprep.subr.bf16.mxu0 %v420
    %1364 = vmatpush1.bf16.msra.mxu0 %v419
    %1365 = vmatprep.subr.bf16.mxu0 %v416
    %1366 = vmatpush1.bf16.msra.mxu0 %v415
    %1367 = vmatprep.subr.bf16.mxu0 %v412
    %1368 = vmatpush1.bf16.msra.mxu0 %v411
    %1369 = vmatprep.subr.bf16.mxu0 %v408
    %1370 = vmatpush1.bf16.msra.mxu0 %v407
    %1371 = vmatprep.subr.bf16.mxu0 %v404
    %1372 = vmatpush1.bf16.msra.mxu0 %v403
    %1373 = vmatprep.subr.bf16.mxu0 %v400
    %1374 = vmatpush1.bf16.msra.mxu0 %v399
    %1375 = vmatprep.subr.bf16.mxu0 %v396
    %1376 = vmatpush1.bf16.msra.mxu0 %v395
    %1377 = vmatprep.subr.bf16.mxu0 0
    %1378 = vmatpush2.bf16.msra.mxu0 0
    %1379 = vmatprep.subr.bf16.mxu0 0
    %1380 = vmatpush2.bf16.msra.mxu0 0
    %1381 = vmatprep.subr.bf16.mxu0 0
    %1382 = vmatpush2.bf16.msra.mxu0 0
    %1383 = vmatprep.subr.bf16.mxu0 0
    %1384 = vmatpush2.bf16.msra.mxu0 0
    %1385 = vmatprep.subr.bf16.mxu0 0
    %1386 = vmatpush2.bf16.msra.mxu0 0
    %1387 = vmatprep.subr.bf16.mxu0 0
    %1388 = vmatpush2.bf16.msra.mxu0 0
    %1389 = vmatprep.subr.bf16.mxu0 0
    %1390 = vmatpush2.bf16.msra.mxu0 0
    %1391 = vmatprep.subr.bf16.mxu0 0
    %1392 = vmatpush2.bf16.msra.mxu0 0
    %1393 = vmatprep.mubr.bf16.mxu0 0
    %1394 = vmatmul.mubr.bf16.gmra.mxu0 %v1318
    %v1395 = vpop.f32.mrf.mxu0
    %v1396 = vadd.f32 0.0, %v1395
    %v1397 = vpop.f32.mrf.mxu0
    %v1398 = vadd.f32 0.0, %v1397
    %v1399 = vpop.f32.mrf.mxu0
    %v1400 = vpop.f32.mrf.mxu0
    %1401 = vdwg.mxu0
    %v1406 = vcombine.low %v1355, %v1357
    %v1407 = vcombine.low %v1396, %v1398
    %v1409 = vunpack.c.l.s4 1966171168
    %v1410 = vunpack.c.0.s8 %v1409
    %v1411 = vlaneseq
    %v1412 = vshrl.u32 %v1411, 7
    %v1413 = vsub.s32 %v1410, %v1412
    %v1414 = vrot.slane %v1406, %v1413
    %v1416 = vunpack.c.l.s4 1966171168
    %v1417 = vunpack.c.0.s8 %v1416
    %v1418 = vlaneseq
    %v1419 = vshrl.u32 %v1418, 7
    %v1420 = vsub.s32 %v1417, %v1419
    %v1421 = vrot.slane %v1407, %v1420
    %v1422 = vcombine.low %v1414, %v1421
    %v1423 = vcombine.high %v1414, %v1421
    %v1425 = vunpack.c.l.s4 1966171168
    %v1426 = vunpack.c.0.s8 %v1425
    %v1427 = vlaneseq
    %v1428 = vshrl.u32 %v1427, 7
    %v1429 = vsub.s32 %v1426, %v1428
    %v1430 = vrot.slane %v1422, %v1429
    %v1432 = vunpack.c.l.s4 1966171168
    %v1433 = vunpack.c.0.s8 %v1432
    %v1434 = vlaneseq
    %v1435 = vshrl.u32 %v1434, 7
    %v1436 = vsub.s32 %v1433, %v1435
    %v1437 = vrot.slane %v1423, %v1436
    %v1440 = vadd.f32 %v1307, %v1430
    %v1441 = vadd.f32 %v1309, %v1437
    %s1442 = scalar_lea.vmem %s0, 37
    %v1443 = vld [vmem:[%s1442] ss:$8 sm:$0xf]
    %s1444 = scalar_lea.vmem %s0, 101
    %v1445 = vld [vmem:[%s1444] ss:$8 sm:$0xf]
    %v1446 = vpack.c.bf16 %v1300, %v1300
    %v1447 = vpack.c.bf16 %v1301, %v1301
    %v1450 = vunpack.c.l.b16 %v1446
    %v1451 = vunpack.c.l.b16 %v1447
    %v1452 = vrot.slane %v1451, 7
    %v1453 = vsel %vm960, %v1452, %v1450
    %v1454 = vpack.c.b16 %v1453, %v1453
    %1456 = vmatprep.subr.bf16.mxu0 %v708
    %1457 = vmatpush1.bf16.msra.mxu0 %v707
    %1458 = vmatprep.subr.bf16.mxu0 %v704
    %1459 = vmatpush1.bf16.msra.mxu0 %v703
    %1460 = vmatprep.subr.bf16.mxu0 %v700
    %1461 = vmatpush1.bf16.msra.mxu0 %v699
    %1462 = vmatprep.subr.bf16.mxu0 %v696
    %1463 = vmatpush1.bf16.msra.mxu0 %v695
    %1464 = vmatprep.subr.bf16.mxu0 %v692
    %1465 = vmatpush1.bf16.msra.mxu0 %v691
    %1466 = vmatprep.subr.bf16.mxu0 %v688
    %1467 = vmatpush1.bf16.msra.mxu0 %v687
    %1468 = vmatprep.subr.bf16.mxu0 %v684
    %1469 = vmatpush1.bf16.msra.mxu0 %v683
    %1470 = vmatprep.subr.bf16.mxu0 %v680
    %1471 = vmatpush1.bf16.msra.mxu0 %v679
    %1472 = vmatprep.subr.bf16.mxu0 0
    %1473 = vmatpush2.bf16.msra.mxu0 0
    %1474 = vmatprep.subr.bf16.mxu0 0
    %1475 = vmatpush2.bf16.msra.mxu0 0
    %1476 = vmatprep.subr.bf16.mxu0 0
    %1477 = vmatpush2.bf16.msra.mxu0 0
    %1478 = vmatprep.subr.bf16.mxu0 0
    %1479 = vmatpush2.bf16.msra.mxu0 0
    %1480 = vmatprep.subr.bf16.mxu0 0
    %1481 = vmatpush2.bf16.msra.mxu0 0
    %1482 = vmatprep.subr.bf16.mxu0 0
    %1483 = vmatpush2.bf16.msra.mxu0 0
    %1484 = vmatprep.subr.bf16.mxu0 0
    %1485 = vmatpush2.bf16.msra.mxu0 0
    %1486 = vmatprep.subr.bf16.mxu0 0
    %1487 = vmatpush2.bf16.msra.mxu0 0
    %1488 = vmatprep.mubr.bf16.mxu0 0
    %1489 = vmatmul.mubr.bf16.gmra.mxu0 %v1454
    %v1490 = vpop.f32.mrf.mxu0
    %v1491 = vadd.f32 0.0, %v1490
    %v1492 = vpop.f32.mrf.mxu0
    %v1493 = vadd.f32 0.0, %v1492
    %v1494 = vpop.f32.mrf.mxu0
    %v1495 = vpop.f32.mrf.mxu0
    %1496 = vdwg.mxu0
    %1497 = vmatprep.subr.bf16.mxu0 %v710
    %1498 = vmatpush1.bf16.msra.mxu0 %v709
    %1499 = vmatprep.subr.bf16.mxu0 %v706
    %1500 = vmatpush1.bf16.msra.mxu0 %v705
    %1501 = vmatprep.subr.bf16.mxu0 %v702
    %1502 = vmatpush1.bf16.msra.mxu0 %v701
    %1503 = vmatprep.subr.bf16.mxu0 %v698
    %1504 = vmatpush1.bf16.msra.mxu0 %v697
    %1505 = vmatprep.subr.bf16.mxu0 %v694
    %1506 = vmatpush1.bf16.msra.mxu0 %v693
    %1507 = vmatprep.subr.bf16.mxu0 %v690
    %1508 = vmatpush1.bf16.msra.mxu0 %v689
    %1509 = vmatprep.subr.bf16.mxu0 %v686
    %1510 = vmatpush1.bf16.msra.mxu0 %v685
    %1511 = vmatprep.subr.bf16.mxu0 %v682
    %1512 = vmatpush1.bf16.msra.mxu0 %v681
    %1513 = vmatprep.subr.bf16.mxu0 0
    %1514 = vmatpush2.bf16.msra.mxu0 0
    %1515 = vmatprep.subr.bf16.mxu0 0
    %1516 = vmatpush2.bf16.msra.mxu0 0
    %1517 = vmatprep.subr.bf16.mxu0 0
    %1518 = vmatpush2.bf16.msra.mxu0 0
    %1519 = vmatprep.subr.bf16.mxu0 0
    %1520 = vmatpush2.bf16.msra.mxu0 0
    %1521 = vmatprep.subr.bf16.mxu0 0
    %1522 = vmatpush2.bf16.msra.mxu0 0
    %1523 = vmatprep.subr.bf16.mxu0 0
    %1524 = vmatpush2.bf16.msra.mxu0 0
    %1525 = vmatprep.subr.bf16.mxu0 0
    %1526 = vmatpush2.bf16.msra.mxu0 0
    %1527 = vmatprep.subr.bf16.mxu0 0
    %1528 = vmatpush2.bf16.msra.mxu0 0
    %1529 = vmatprep.mubr.bf16.mxu0 0
    %1530 = vmatmul.mubr.bf16.gmra.mxu0 %v1454
    %v1531 = vpop.f32.mrf.mxu0
    %v1532 = vadd.f32 0.0, %v1531
    %v1533 = vpop.f32.mrf.mxu0
    %v1534 = vadd.f32 0.0, %v1533
    %v1535 = vpop.f32.mrf.mxu0
    %v1536 = vpop.f32.mrf.mxu0
    %1537 = vdwg.mxu0
    %v1542 = vcombine.low %v1491, %v1493
    %v1543 = vcombine.low %v1532, %v1534
    %v1545 = vunpack.c.l.s4 1966171168
    %v1546 = vunpack.c.0.s8 %v1545
    %v1547 = vlaneseq
    %v1548 = vshrl.u32 %v1547, 7
    %v1549 = vsub.s32 %v1546, %v1548
    %v1550 = vrot.slane %v1542, %v1549
    %v1552 = vunpack.c.l.s4 1966171168
    %v1553 = vunpack.c.0.s8 %v1552
    %v1554 = vlaneseq
    %v1555 = vshrl.u32 %v1554, 7
    %v1556 = vsub.s32 %v1553, %v1555
    %v1557 = vrot.slane %v1543, %v1556
    %v1558 = vcombine.low %v1550, %v1557
    %v1559 = vcombine.high %v1550, %v1557
    %v1561 = vunpack.c.l.s4 1966171168
    %v1562 = vunpack.c.0.s8 %v1561
    %v1563 = vlaneseq
    %v1564 = vshrl.u32 %v1563, 7
    %v1565 = vsub.s32 %v1562, %v1564
    %v1566 = vrot.slane %v1558, %v1565
    %v1568 = vunpack.c.l.s4 1966171168
    %v1569 = vunpack.c.0.s8 %v1568
    %v1570 = vlaneseq
    %v1571 = vshrl.u32 %v1570, 7
    %v1572 = vsub.s32 %v1569, %v1571
    %v1573 = vrot.slane %v1559, %v1572
    %v1576 = vadd.f32 %v1443, %v1566
    %v1577 = vadd.f32 %v1445, %v1573
    %v1578 = vxor.u32 %v1440, 2147483648
    %v1579 = vxor.u32 %v1441, 2147483648
    %v1580 = vmul.f32 %v1578, 1.442695
    %v1581 = vpow.pop %v1580
    %v1582 = vmul.f32 %v1579, 1.442695
    %v1583 = vpow.pop %v1582
    %v1584 = vadd.f32 %v1581, 1.0
    %v1585 = vadd.f32 %v1583, 1.0
    %v1586 = vrcp.pop %v1584
    %v1587 = vmul.f32 1.0, %v1586
    %v1588 = vrcp.pop %v1585
    %v1589 = vmul.f32 1.0, %v1588
    %v1592 = vrot.slane %v1440, 3
    %v1593 = vrot.slane %v1441, 3
    %v1596 = vtanh.pop %v1592
    %v1597 = vtanh.pop %v1593
    %v1600 = vrot.slane %v1587, 1
    %v1601 = vrot.slane %v1589, 1
    %v1604 = vmul.f32 %v1600, %v1252
    %v1605 = vmul.f32 %v1601, %v1253
    %v1606 = vmul.f32 %v1587, %v1596
    %v1607 = vmul.f32 %v1589, %v1597
    %v1608 = vadd.f32 %v1604, %v1606
    %v1609 = vadd.f32 %v1605, %v1607
    %v1610 = vtanh.pop %v1608
    %v1611 = vtanh.pop %v1609
    %v1612 = vrot.slane %v1587, 2
    %v1613 = vrot.slane %v1589, 2
    %v1616 = vmul.f32 %v1612, %v1610
    %v1617 = vmul.f32 %v1613, %v1611
    %v1618 = vxor.u32 %v1576, 2147483648
    %v1619 = vxor.u32 %v1577, 2147483648
    %v1620 = vmul.f32 %v1618, 1.442695
    %v1621 = vpow.pop %v1620
    %v1622 = vmul.f32 %v1619, 1.442695
    %v1623 = vpow.pop %v1622
    %v1624 = vadd.f32 %v1621, 1.0
    %v1625 = vadd.f32 %v1623, 1.0
    %v1626 = vrcp.pop %v1624
    %v1627 = vmul.f32 1.0, %v1626
    %v1628 = vrcp.pop %v1625
    %v1629 = vmul.f32 1.0, %v1628
    %v1632 = vrot.slane %v1576, 3
    %v1633 = vrot.slane %v1577, 3
    %v1636 = vtanh.pop %v1632
    %v1637 = vtanh.pop %v1633
    %v1640 = vrot.slane %v1627, 1
    %v1641 = vrot.slane %v1629, 1
    %v1644 = vmul.f32 %v1640, %v1292
    %v1645 = vmul.f32 %v1641, %v1293
    %v1646 = vmul.f32 %v1627, %v1636
    %v1647 = vmul.f32 %v1629, %v1637
    %v1648 = vadd.f32 %v1644, %v1646
    %v1649 = vadd.f32 %v1645, %v1647
    %v1650 = vtanh.pop %v1648
    %v1651 = vtanh.pop %v1649
    %v1652 = vrot.slane %v1627, 2
    %v1653 = vrot.slane %v1629, 2
    %v1656 = vmul.f32 %v1652, %v1650
    %v1657 = vmul.f32 %v1653, %v1651
    %1658 = vst [vmem:[#allocation2 + $0x2] sm:$0x1] %v1616
    %1659 = vst [vmem:[#allocation2 + $0x12] sm:$0x1] %v1617
    %1660 = vst [vmem:[#allocation2 + $0xd] sm:$0x1] %v1656
    %1661 = vst [vmem:[#allocation2 + $0x1d] sm:$0x1] %v1657
    %s1662 = scalar_lea.vmem %s0, 3
    %v1663 = vld [vmem:[%s1662] ss:$8 sm:$0xf]
    %s1664 = scalar_lea.vmem %s0, 67
    %v1665 = vld [vmem:[%s1664] ss:$8 sm:$0xf]
    %v1666 = vpack.c.bf16 %v1616, %v1616
    %v1667 = vpack.c.bf16 %v1617, %v1617
    %v1670 = vunpack.c.l.b16 %v1666
    %v1671 = vunpack.c.l.b16 %v1667
    %v1672 = vrot.slane %v1671, 7
    %v1673 = vsel %vm960, %v1672, %v1670
    %v1674 = vpack.c.b16 %v1673, %v1673
    %1676 = vmatprep.subr.bf16.mxu0 %v422
    %1677 = vmatpush1.bf16.msra.mxu0 %v421
    %1678 = vmatprep.subr.bf16.mxu0 %v418
    %1679 = vmatpush1.bf16.msra.mxu0 %v417
    %1680 = vmatprep.subr.bf16.mxu0 %v414
    %1681 = vmatpush1.bf16.msra.mxu0 %v413
    %1682 = vmatprep.subr.bf16.mxu0 %v410
    %1683 = vmatpush1.bf16.msra.mxu0 %v409
    %1684 = vmatprep.subr.bf16.mxu0 %v406
    %1685 = vmatpush1.bf16.msra.mxu0 %v405
    %1686 = vmatprep.subr.bf16.mxu0 %v402
    %1687 = vmatpush1.bf16.msra.mxu0 %v401
    %1688 = vmatprep.subr.bf16.mxu0 %v398
    %1689 = vmatpush1.bf16.msra.mxu0 %v397
    %1690 = vmatprep.subr.bf16.mxu0 %v394
    %1691 = vmatpush1.bf16.msra.mxu0 %v393
    %1692 = vmatprep.subr.bf16.mxu0 0
    %1693 = vmatpush2.bf16.msra.mxu0 0
    %1694 = vmatprep.subr.bf16.mxu0 0
    %1695 = vmatpush2.bf16.msra.mxu0 0
    %1696 = vmatprep.subr.bf16.mxu0 0
    %1697 = vmatpush2.bf16.msra.mxu0 0
    %1698 = vmatprep.subr.bf16.mxu0 0
    %1699 = vmatpush2.bf16.msra.mxu0 0
    %1700 = vmatprep.subr.bf16.mxu0 0
    %1701 = vmatpush2.bf16.msra.mxu0 0
    %1702 = vmatprep.subr.bf16.mxu0 0
    %1703 = vmatpush2.bf16.msra.mxu0 0
    %1704 = vmatprep.subr.bf16.mxu0 0
    %1705 = vmatpush2.bf16.msra.mxu0 0
    %1706 = vmatprep.subr.bf16.mxu0 0
    %1707 = vmatpush2.bf16.msra.mxu0 0
    %1708 = vmatprep.mubr.bf16.mxu0 0
    %1709 = vmatmul.mubr.bf16.gmra.mxu0 %v1674
    %v1710 = vpop.f32.mrf.mxu0
    %v1711 = vadd.f32 0.0, %v1710
    %v1712 = vpop.f32.mrf.mxu0
    %v1713 = vadd.f32 0.0, %v1712
    %v1714 = vpop.f32.mrf.mxu0
    %v1715 = vpop.f32.mrf.mxu0
    %1716 = vdwg.mxu0
    %1717 = vmatprep.subr.bf16.mxu0 %v424
    %1718 = vmatpush1.bf16.msra.mxu0 %v423
    %1719 = vmatprep.subr.bf16.mxu0 %v420
    %1720 = vmatpush1.bf16.msra.mxu0 %v419
    %1721 = vmatprep.subr.bf16.mxu0 %v416
    %1722 = vmatpush1.bf16.msra.mxu0 %v415
    %1723 = vmatprep.subr.bf16.mxu0 %v412
    %1724 = vmatpush1.bf16.msra.mxu0 %v411
    %1725 = vmatprep.subr.bf16.mxu0 %v408
    %1726 = vmatpush1.bf16.msra.mxu0 %v407
    %1727 = vmatprep.subr.bf16.mxu0 %v404
    %1728 = vmatpush1.bf16.msra.mxu0 %v403
    %1729 = vmatprep.subr.bf16.mxu0 %v400
    %1730 = vmatpush1.bf16.msra.mxu0 %v399
    %1731 = vmatprep.subr.bf16.mxu0 %v396
    %1732 = vmatpush1.bf16.msra.mxu0 %v395
    %1733 = vmatprep.subr.bf16.mxu0 0
    %1734 = vmatpush2.bf16.msra.mxu0 0
    %1735 = vmatprep.subr.bf16.mxu0 0
    %1736 = vmatpush2.bf16.msra.mxu0 0
    %1737 = vmatprep.subr.bf16.mxu0 0
    %1738 = vmatpush2.bf16.msra.mxu0 0
    %1739 = vmatprep.subr.bf16.mxu0 0
    %1740 = vmatpush2.bf16.msra.mxu0 0
    %1741 = vmatprep.subr.bf16.mxu0 0
    %1742 = vmatpush2.bf16.msra.mxu0 0
    %1743 = vmatprep.subr.bf16.mxu0 0
    %1744 = vmatpush2.bf16.msra.mxu0 0
    %1745 = vmatprep.subr.bf16.mxu0 0
    %1746 = vmatpush2.bf16.msra.mxu0 0
    %1747 = vmatprep.subr.bf16.mxu0 0
    %1748 = vmatpush2.bf16.msra.mxu0 0
    %1749 = vmatprep.mubr.bf16.mxu0 0
    %1750 = vmatmul.mubr.bf16.gmra.mxu0 %v1674
    %v1751 = vpop.f32.mrf.mxu0
    %v1752 = vadd.f32 0.0, %v1751
    %v1753 = vpop.f32.mrf.mxu0
    %v1754 = vadd.f32 0.0, %v1753
    %v1755 = vpop.f32.mrf.mxu0
    %v1756 = vpop.f32.mrf.mxu0
    %1757 = vdwg.mxu0
    %v1762 = vcombine.low %v1711, %v1713
    %v1763 = vcombine.low %v1752, %v1754
    %v1765 = vunpack.c.l.s4 1966171168
    %v1766 = vunpack.c.0.s8 %v1765
    %v1767 = vlaneseq
    %v1768 = vshrl.u32 %v1767, 7
    %v1769 = vsub.s32 %v1766, %v1768
    %v1770 = vrot.slane %v1762, %v1769
    %v1772 = vunpack.c.l.s4 1966171168
    %v1773 = vunpack.c.0.s8 %v1772
    %v1774 = vlaneseq
    %v1775 = vshrl.u32 %v1774, 7
    %v1776 = vsub.s32 %v1773, %v1775
    %v1777 = vrot.slane %v1763, %v1776
    %v1778 = vcombine.low %v1770, %v1777
    %v1779 = vcombine.high %v1770, %v1777
    %v1781 = vunpack.c.l.s4 1966171168
    %v1782 = vunpack.c.0.s8 %v1781
    %v1783 = vlaneseq
    %v1784 = vshrl.u32 %v1783, 7
    %v1785 = vsub.s32 %v1782, %v1784
    %v1786 = vrot.slane %v1778, %v1785
    %v1788 = vunpack.c.l.s4 1966171168
    %v1789 = vunpack.c.0.s8 %v1788
    %v1790 = vlaneseq
    %v1791 = vshrl.u32 %v1790, 7
    %v1792 = vsub.s32 %v1789, %v1791
    %v1793 = vrot.slane %v1779, %v1792
    %v1796 = vadd.f32 %v1663, %v1786
    %v1797 = vadd.f32 %v1665, %v1793
    %s1798 = scalar_lea.vmem %s0, 36
    %v1799 = vld [vmem:[%s1798] ss:$8 sm:$0xf]
    %s1800 = scalar_lea.vmem %s0, 100
    %v1801 = vld [vmem:[%s1800] ss:$8 sm:$0xf]
    %v1802 = vpack.c.bf16 %v1656, %v1656
    %v1803 = vpack.c.bf16 %v1657, %v1657
    %v1806 = vunpack.c.l.b16 %v1802
    %v1807 = vunpack.c.l.b16 %v1803
    %v1808 = vrot.slane %v1807, 7
    %v1809 = vsel %vm960, %v1808, %v1806
    %v1810 = vpack.c.b16 %v1809, %v1809
    %1812 = vmatprep.subr.bf16.mxu0 %v708
    %1813 = vmatpush1.bf16.msra.mxu0 %v707
    %1814 = vmatprep.subr.bf16.mxu0 %v704
    %1815 = vmatpush1.bf16.msra.mxu0 %v703
    %1816 = vmatprep.subr.bf16.mxu0 %v700
    %1817 = vmatpush1.bf16.msra.mxu0 %v699
    %1818 = vmatprep.subr.bf16.mxu0 %v696
    %1819 = vmatpush1.bf16.msra.mxu0 %v695
    %1820 = vmatprep.subr.bf16.mxu0 %v692
    %1821 = vmatpush1.bf16.msra.mxu0 %v691
    %1822 = vmatprep.subr.bf16.mxu0 %v688
    %1823 = vmatpush1.bf16.msra.mxu0 %v687
    %1824 = vmatprep.subr.bf16.mxu0 %v684
    %1825 = vmatpush1.bf16.msra.mxu0 %v683
    %1826 = vmatprep.subr.bf16.mxu0 %v680
    %1827 = vmatpush1.bf16.msra.mxu0 %v679
    %1828 = vmatprep.subr.bf16.mxu0 0
    %1829 = vmatpush2.bf16.msra.mxu0 0
    %1830 = vmatprep.subr.bf16.mxu0 0
    %1831 = vmatpush2.bf16.msra.mxu0 0
    %1832 = vmatprep.subr.bf16.mxu0 0
    %1833 = vmatpush2.bf16.msra.mxu0 0
    %1834 = vmatprep.subr.bf16.mxu0 0
    %1835 = vmatpush2.bf16.msra.mxu0 0
    %1836 = vmatprep.subr.bf16.mxu0 0
    %1837 = vmatpush2.bf16.msra.mxu0 0
    %1838 = vmatprep.subr.bf16.mxu0 0
    %1839 = vmatpush2.bf16.msra.mxu0 0
    %1840 = vmatprep.subr.bf16.mxu0 0
    %1841 = vmatpush2.bf16.msra.mxu0 0
    %1842 = vmatprep.subr.bf16.mxu0 0
    %1843 = vmatpush2.bf16.msra.mxu0 0
    %1844 = vmatprep.mubr.bf16.mxu0 0
    %1845 = vmatmul.mubr.bf16.gmra.mxu0 %v1810
    %v1846 = vpop.f32.mrf.mxu0
    %v1847 = vadd.f32 0.0, %v1846
    %v1848 = vpop.f32.mrf.mxu0
    %v1849 = vadd.f32 0.0, %v1848
    %v1850 = vpop.f32.mrf.mxu0
    %v1851 = vpop.f32.mrf.mxu0
    %1852 = vdwg.mxu0
    %1853 = vmatprep.subr.bf16.mxu0 %v710
    %1854 = vmatpush1.bf16.msra.mxu0 %v709
    %1855 = vmatprep.subr.bf16.mxu0 %v706
    %1856 = vmatpush1.bf16.msra.mxu0 %v705
    %1857 = vmatprep.subr.bf16.mxu0 %v702
    %1858 = vmatpush1.bf16.msra.mxu0 %v701
    %1859 = vmatprep.subr.bf16.mxu0 %v698
    %1860 = vmatpush1.bf16.msra.mxu0 %v697
    %1861 = vmatprep.subr.bf16.mxu0 %v694
    %1862 = vmatpush1.bf16.msra.mxu0 %v693
    %1863 = vmatprep.subr.bf16.mxu0 %v690
    %1864 = vmatpush1.bf16.msra.mxu0 %v689
    %1865 = vmatprep.subr.bf16.mxu0 %v686
    %1866 = vmatpush1.bf16.msra.mxu0 %v685
    %1867 = vmatprep.subr.bf16.mxu0 %v682
    %1868 = vmatpush1.bf16.msra.mxu0 %v681
    %1869 = vmatprep.subr.bf16.mxu0 0
    %1870 = vmatpush2.bf16.msra.mxu0 0
    %1871 = vmatprep.subr.bf16.mxu0 0
    %1872 = vmatpush2.bf16.msra.mxu0 0
    %1873 = vmatprep.subr.bf16.mxu0 0
    %1874 = vmatpush2.bf16.msra.mxu0 0
    %1875 = vmatprep.subr.bf16.mxu0 0
    %1876 = vmatpush2.bf16.msra.mxu0 0
    %1877 = vmatprep.subr.bf16.mxu0 0
    %1878 = vmatpush2.bf16.msra.mxu0 0
    %1879 = vmatprep.subr.bf16.mxu0 0
    %1880 = vmatpush2.bf16.msra.mxu0 0
    %1881 = vmatprep.subr.bf16.mxu0 0
    %1882 = vmatpush2.bf16.msra.mxu0 0
    %1883 = vmatprep.subr.bf16.mxu0 0
    %1884 = vmatpush2.bf16.msra.mxu0 0
    %1885 = vmatprep.mubr.bf16.mxu0 0
    %1886 = vmatmul.mubr.bf16.gmra.mxu0 %v1810
    %v1887 = vpop.f32.mrf.mxu0
    %v1888 = vadd.f32 0.0, %v1887
    %v1889 = vpop.f32.mrf.mxu0
    %v1890 = vadd.f32 0.0, %v1889
    %v1891 = vpop.f32.mrf.mxu0
    %v1892 = vpop.f32.mrf.mxu0
    %1893 = vdwg.mxu0
    %v1898 = vcombine.low %v1847, %v1849
    %v1899 = vcombine.low %v1888, %v1890
    %v1901 = vunpack.c.l.s4 1966171168
    %v1902 = vunpack.c.0.s8 %v1901
    %v1903 = vlaneseq
    %v1904 = vshrl.u32 %v1903, 7
    %v1905 = vsub.s32 %v1902, %v1904
    %v1906 = vrot.slane %v1898, %v1905
    %v1908 = vunpack.c.l.s4 1966171168
    %v1909 = vunpack.c.0.s8 %v1908
    %v1910 = vlaneseq
    %v1911 = vshrl.u32 %v1910, 7
    %v1912 = vsub.s32 %v1909, %v1911
    %v1913 = vrot.slane %v1899, %v1912
    %v1914 = vcombine.low %v1906, %v1913
    %v1915 = vcombine.high %v1906, %v1913
    %v1917 = vunpack.c.l.s4 1966171168
    %v1918 = vunpack.c.0.s8 %v1917
    %v1919 = vlaneseq
    %v1920 = vshrl.u32 %v1919, 7
    %v1921 = vsub.s32 %v1918, %v1920
    %v1922 = vrot.slane %v1914, %v1921
    %v1924 = vunpack.c.l.s4 1966171168
    %v1925 = vunpack.c.0.s8 %v1924
    %v1926 = vlaneseq
    %v1927 = vshrl.u32 %v1926, 7
    %v1928 = vsub.s32 %v1925, %v1927
    %v1929 = vrot.slane %v1915, %v1928
    %v1932 = vadd.f32 %v1799, %v1922
    %v1933 = vadd.f32 %v1801, %v1929
    %v1934 = vxor.u32 %v1796, 2147483648
    %v1935 = vxor.u32 %v1797, 2147483648
    %v1936 = vmul.f32 %v1934, 1.442695
    %v1937 = vpow.pop %v1936
    %v1938 = vmul.f32 %v1935, 1.442695
    %v1939 = vpow.pop %v1938
    %v1940 = vadd.f32 %v1937, 1.0
    %v1941 = vadd.f32 %v1939, 1.0
    %v1942 = vrcp.pop %v1940
    %v1943 = vmul.f32 1.0, %v1942
    %v1944 = vrcp.pop %v1941
    %v1945 = vmul.f32 1.0, %v1944
    %v1948 = vrot.slane %v1796, 3
    %v1949 = vrot.slane %v1797, 3
    %v1952 = vtanh.pop %v1948
    %v1953 = vtanh.pop %v1949
    %v1956 = vrot.slane %v1943, 1
    %v1957 = vrot.slane %v1945, 1
    %v1960 = vmul.f32 %v1956, %v1608
    %v1961 = vmul.f32 %v1957, %v1609
    %v1962 = vmul.f32 %v1943, %v1952
    %v1963 = vmul.f32 %v1945, %v1953
    %v1964 = vadd.f32 %v1960, %v1962
    %v1965 = vadd.f32 %v1961, %v1963
    %v1966 = vtanh.pop %v1964
    %v1967 = vtanh.pop %v1965
    %v1968 = vrot.slane %v1943, 2
    %v1969 = vrot.slane %v1945, 2
    %v1972 = vmul.f32 %v1968, %v1966
    %v1973 = vmul.f32 %v1969, %v1967
    %v1974 = vxor.u32 %v1932, 2147483648
    %v1975 = vxor.u32 %v1933, 2147483648
    %v1976 = vmul.f32 %v1974, 1.442695
    %v1977 = vpow.pop %v1976
    %v1978 = vmul.f32 %v1975, 1.442695
    %v1979 = vpow.pop %v1978
    %v1980 = vadd.f32 %v1977, 1.0
    %v1981 = vadd.f32 %v1979, 1.0
    %v1982 = vrcp.pop %v1980
    %v1983 = vmul.f32 1.0, %v1982
    %v1984 = vrcp.pop %v1981
    %v1985 = vmul.f32 1.0, %v1984
    %v1988 = vrot.slane %v1932, 3
    %v1989 = vrot.slane %v1933, 3
    %v1992 = vtanh.pop %v1988
    %v1993 = vtanh.pop %v1989
    %v1996 = vrot.slane %v1983, 1
    %v1997 = vrot.slane %v1985, 1
    %v2000 = vmul.f32 %v1996, %v1648
    %v2001 = vmul.f32 %v1997, %v1649
    %v2002 = vmul.f32 %v1983, %v1992
    %v2003 = vmul.f32 %v1985, %v1993
    %v2004 = vadd.f32 %v2000, %v2002
    %v2005 = vadd.f32 %v2001, %v2003
    %v2006 = vtanh.pop %v2004
    %v2007 = vtanh.pop %v2005
    %v2008 = vrot.slane %v1983, 2
    %v2009 = vrot.slane %v1985, 2
    %v2012 = vmul.f32 %v2008, %v2006
    %v2013 = vmul.f32 %v2009, %v2007
    %2014 = vst [vmem:[#allocation2 + $0x3] sm:$0x1] %v1972
    %2015 = vst [vmem:[#allocation2 + $0x13] sm:$0x1] %v1973
    %2016 = vst [vmem:[#allocation2 + $0xc] sm:$0x1] %v2012
    %2017 = vst [vmem:[#allocation2 + $0x1c] sm:$0x1] %v2013
    %s2018 = scalar_lea.vmem %s0, 4
    %v2019 = vld [vmem:[%s2018] ss:$8 sm:$0xf]
    %s2020 = scalar_lea.vmem %s0, 68
    %v2021 = vld [vmem:[%s2020] ss:$8 sm:$0xf]
    %v2022 = vpack.c.bf16 %v1972, %v1972
    %v2023 = vpack.c.bf16 %v1973, %v1973
    %v2026 = vunpack.c.l.b16 %v2022
    %v2027 = vunpack.c.l.b16 %v2023
    %v2028 = vrot.slane %v2027, 7
    %v2029 = vsel %vm960, %v2028, %v2026
    %v2030 = vpack.c.b16 %v2029, %v2029
    %2032 = vmatprep.subr.bf16.mxu0 %v422
    %2033 = vmatpush1.bf16.msra.mxu0 %v421
    %2034 = vmatprep.subr.bf16.mxu0 %v418
    %2035 = vmatpush1.bf16.msra.mxu0 %v417
    %2036 = vmatprep.subr.bf16.mxu0 %v414
    %2037 = vmatpush1.bf16.msra.mxu0 %v413
    %2038 = vmatprep.subr.bf16.mxu0 %v410
    %2039 = vmatpush1.bf16.msra.mxu0 %v409
    %2040 = vmatprep.subr.bf16.mxu0 %v406
    %2041 = vmatpush1.bf16.msra.mxu0 %v405
    %2042 = vmatprep.subr.bf16.mxu0 %v402
    %2043 = vmatpush1.bf16.msra.mxu0 %v401
    %2044 = vmatprep.subr.bf16.mxu0 %v398
    %2045 = vmatpush1.bf16.msra.mxu0 %v397
    %2046 = vmatprep.subr.bf16.mxu0 %v394
    %2047 = vmatpush1.bf16.msra.mxu0 %v393
    %2048 = vmatprep.subr.bf16.mxu0 0
    %2049 = vmatpush2.bf16.msra.mxu0 0
    %2050 = vmatprep.subr.bf16.mxu0 0
    %2051 = vmatpush2.bf16.msra.mxu0 0
    %2052 = vmatprep.subr.bf16.mxu0 0
    %2053 = vmatpush2.bf16.msra.mxu0 0
    %2054 = vmatprep.subr.bf16.mxu0 0
    %2055 = vmatpush2.bf16.msra.mxu0 0
    %2056 = vmatprep.subr.bf16.mxu0 0
    %2057 = vmatpush2.bf16.msra.mxu0 0
    %2058 = vmatprep.subr.bf16.mxu0 0
    %2059 = vmatpush2.bf16.msra.mxu0 0
    %2060 = vmatprep.subr.bf16.mxu0 0
    %2061 = vmatpush2.bf16.msra.mxu0 0
    %2062 = vmatprep.subr.bf16.mxu0 0
    %2063 = vmatpush2.bf16.msra.mxu0 0
    %2064 = vmatprep.mubr.bf16.mxu0 0
    %2065 = vmatmul.mubr.bf16.gmra.mxu0 %v2030
    %v2066 = vpop.f32.mrf.mxu0
    %v2067 = vadd.f32 0.0, %v2066
    %v2068 = vpop.f32.mrf.mxu0
    %v2069 = vadd.f32 0.0, %v2068
    %v2070 = vpop.f32.mrf.mxu0
    %v2071 = vpop.f32.mrf.mxu0
    %2072 = vdwg.mxu0
    %2073 = vmatprep.subr.bf16.mxu0 %v424
    %2074 = vmatpush1.bf16.msra.mxu0 %v423
    %2075 = vmatprep.subr.bf16.mxu0 %v420
    %2076 = vmatpush1.bf16.msra.mxu0 %v419
    %2077 = vmatprep.subr.bf16.mxu0 %v416
    %2078 = vmatpush1.bf16.msra.mxu0 %v415
    %2079 = vmatprep.subr.bf16.mxu0 %v412
    %2080 = vmatpush1.bf16.msra.mxu0 %v411
    %2081 = vmatprep.subr.bf16.mxu0 %v408
    %2082 = vmatpush1.bf16.msra.mxu0 %v407
    %2083 = vmatprep.subr.bf16.mxu0 %v404
    %2084 = vmatpush1.bf16.msra.mxu0 %v403
    %2085 = vmatprep.subr.bf16.mxu0 %v400
    %2086 = vmatpush1.bf16.msra.mxu0 %v399
    %2087 = vmatprep.subr.bf16.mxu0 %v396
    %2088 = vmatpush1.bf16.msra.mxu0 %v395
    %2089 = vmatprep.subr.bf16.mxu0 0
    %2090 = vmatpush2.bf16.msra.mxu0 0
    %2091 = vmatprep.subr.bf16.mxu0 0
    %2092 = vmatpush2.bf16.msra.mxu0 0
    %2093 = vmatprep.subr.bf16.mxu0 0
    %2094 = vmatpush2.bf16.msra.mxu0 0
    %2095 = vmatprep.subr.bf16.mxu0 0
    %2096 = vmatpush2.bf16.msra.mxu0 0
    %2097 = vmatprep.subr.bf16.mxu0 0
    %2098 = vmatpush2.bf16.msra.mxu0 0
    %2099 = vmatprep.subr.bf16.mxu0 0
    %2100 = vmatpush2.bf16.msra.mxu0 0
    %2101 = vmatprep.subr.bf16.mxu0 0
    %2102 = vmatpush2.bf16.msra.mxu0 0
    %2103 = vmatprep.subr.bf16.mxu0 0
    %2104 = vmatpush2.bf16.msra.mxu0 0
    %2105 = vmatprep.mubr.bf16.mxu0 0
    %2106 = vmatmul.mubr.bf16.gmra.mxu0 %v2030
    %v2107 = vpop.f32.mrf.mxu0
    %v2108 = vadd.f32 0.0, %v2107
    %v2109 = vpop.f32.mrf.mxu0
    %v2110 = vadd.f32 0.0, %v2109
    %v2111 = vpop.f32.mrf.mxu0
    %v2112 = vpop.f32.mrf.mxu0
    %2113 = vdwg.mxu0
    %v2118 = vcombine.low %v2067, %v2069
    %v2119 = vcombine.low %v2108, %v2110
    %v2121 = vunpack.c.l.s4 1966171168
    %v2122 = vunpack.c.0.s8 %v2121
    %v2123 = vlaneseq
    %v2124 = vshrl.u32 %v2123, 7
    %v2125 = vsub.s32 %v2122, %v2124
    %v2126 = vrot.slane %v2118, %v2125
    %v2128 = vunpack.c.l.s4 1966171168
    %v2129 = vunpack.c.0.s8 %v2128
    %v2130 = vlaneseq
    %v2131 = vshrl.u32 %v2130, 7
    %v2132 = vsub.s32 %v2129, %v2131
    %v2133 = vrot.slane %v2119, %v2132
    %v2134 = vcombine.low %v2126, %v2133
    %v2135 = vcombine.high %v2126, %v2133
    %v2137 = vunpack.c.l.s4 1966171168
    %v2138 = vunpack.c.0.s8 %v2137
    %v2139 = vlaneseq
    %v2140 = vshrl.u32 %v2139, 7
    %v2141 = vsub.s32 %v2138, %v2140
    %v2142 = vrot.slane %v2134, %v2141
    %v2144 = vunpack.c.l.s4 1966171168
    %v2145 = vunpack.c.0.s8 %v2144
    %v2146 = vlaneseq
    %v2147 = vshrl.u32 %v2146, 7
    %v2148 = vsub.s32 %v2145, %v2147
    %v2149 = vrot.slane %v2135, %v2148
    %v2152 = vadd.f32 %v2019, %v2142
    %v2153 = vadd.f32 %v2021, %v2149
    %s2154 = scalar_lea.vmem %s0, 35
    %v2155 = vld [vmem:[%s2154] ss:$8 sm:$0xf]
    %s2156 = scalar_lea.vmem %s0, 99
    %v2157 = vld [vmem:[%s2156] ss:$8 sm:$0xf]
    %v2158 = vpack.c.bf16 %v2012, %v2012
    %v2159 = vpack.c.bf16 %v2013, %v2013
    %v2162 = vunpack.c.l.b16 %v2158
    %v2163 = vunpack.c.l.b16 %v2159
    %v2164 = vrot.slane %v2163, 7
    %v2165 = vsel %vm960, %v2164, %v2162
    %v2166 = vpack.c.b16 %v2165, %v2165
    %2168 = vmatprep.subr.bf16.mxu0 %v708
    %2169 = vmatpush1.bf16.msra.mxu0 %v707
    %2170 = vmatprep.subr.bf16.mxu0 %v704
    %2171 = vmatpush1.bf16.msra.mxu0 %v703
    %2172 = vmatprep.subr.bf16.mxu0 %v700
    %2173 = vmatpush1.bf16.msra.mxu0 %v699
    %2174 = vmatprep.subr.bf16.mxu0 %v696
    %2175 = vmatpush1.bf16.msra.mxu0 %v695
    %2176 = vmatprep.subr.bf16.mxu0 %v692
    %2177 = vmatpush1.bf16.msra.mxu0 %v691
    %2178 = vmatprep.subr.bf16.mxu0 %v688
    %2179 = vmatpush1.bf16.msra.mxu0 %v687
    %2180 = vmatprep.subr.bf16.mxu0 %v684
    %2181 = vmatpush1.bf16.msra.mxu0 %v683
    %2182 = vmatprep.subr.bf16.mxu0 %v680
    %2183 = vmatpush1.bf16.msra.mxu0 %v679
    %2184 = vmatprep.subr.bf16.mxu0 0
    %2185 = vmatpush2.bf16.msra.mxu0 0
    %2186 = vmatprep.subr.bf16.mxu0 0
    %2187 = vmatpush2.bf16.msra.mxu0 0
    %2188 = vmatprep.subr.bf16.mxu0 0
    %2189 = vmatpush2.bf16.msra.mxu0 0
    %2190 = vmatprep.subr.bf16.mxu0 0
    %2191 = vmatpush2.bf16.msra.mxu0 0
    %2192 = vmatprep.subr.bf16.mxu0 0
    %2193 = vmatpush2.bf16.msra.mxu0 0
    %2194 = vmatprep.subr.bf16.mxu0 0
    %2195 = vmatpush2.bf16.msra.mxu0 0
    %2196 = vmatprep.subr.bf16.mxu0 0
    %2197 = vmatpush2.bf16.msra.mxu0 0
    %2198 = vmatprep.subr.bf16.mxu0 0
    %2199 = vmatpush2.bf16.msra.mxu0 0
    %2200 = vmatprep.mubr.bf16.mxu0 0
    %2201 = vmatmul.mubr.bf16.gmra.mxu0 %v2166
    %v2202 = vpop.f32.mrf.mxu0
    %v2203 = vadd.f32 0.0, %v2202
    %v2204 = vpop.f32.mrf.mxu0
    %v2205 = vadd.f32 0.0, %v2204
    %v2206 = vpop.f32.mrf.mxu0
    %v2207 = vpop.f32.mrf.mxu0
    %2208 = vdwg.mxu0
    %2209 = vmatprep.subr.bf16.mxu0 %v710
    %2210 = vmatpush1.bf16.msra.mxu0 %v709
    %2211 = vmatprep.subr.bf16.mxu0 %v706
    %2212 = vmatpush1.bf16.msra.mxu0 %v705
    %2213 = vmatprep.subr.bf16.mxu0 %v702
    %2214 = vmatpush1.bf16.msra.mxu0 %v701
    %2215 = vmatprep.subr.bf16.mxu0 %v698
    %2216 = vmatpush1.bf16.msra.mxu0 %v697
    %2217 = vmatprep.subr.bf16.mxu0 %v694
    %2218 = vmatpush1.bf16.msra.mxu0 %v693
    %2219 = vmatprep.subr.bf16.mxu0 %v690
    %2220 = vmatpush1.bf16.msra.mxu0 %v689
    %2221 = vmatprep.subr.bf16.mxu0 %v686
    %2222 = vmatpush1.bf16.msra.mxu0 %v685
    %2223 = vmatprep.subr.bf16.mxu0 %v682
    %2224 = vmatpush1.bf16.msra.mxu0 %v681
    %2225 = vmatprep.subr.bf16.mxu0 0
    %2226 = vmatpush2.bf16.msra.mxu0 0
    %2227 = vmatprep.subr.bf16.mxu0 0
    %2228 = vmatpush2.bf16.msra.mxu0 0
    %2229 = vmatprep.subr.bf16.mxu0 0
    %2230 = vmatpush2.bf16.msra.mxu0 0
    %2231 = vmatprep.subr.bf16.mxu0 0
    %2232 = vmatpush2.bf16.msra.mxu0 0
    %2233 = vmatprep.subr.bf16.mxu0 0
    %2234 = vmatpush2.bf16.msra.mxu0 0
    %2235 = vmatprep.subr.bf16.mxu0 0
    %2236 = vmatpush2.bf16.msra.mxu0 0
    %2237 = vmatprep.subr.bf16.mxu0 0
    %2238 = vmatpush2.bf16.msra.mxu0 0
    %2239 = vmatprep.subr.bf16.mxu0 0
    %2240 = vmatpush2.bf16.msra.mxu0 0
    %2241 = vmatprep.mubr.bf16.mxu0 0
    %2242 = vmatmul.mubr.bf16.gmra.mxu0 %v2166
    %v2243 = vpop.f32.mrf.mxu0
    %v2244 = vadd.f32 0.0, %v2243
    %v2245 = vpop.f32.mrf.mxu0
    %v2246 = vadd.f32 0.0, %v2245
    %v2247 = vpop.f32.mrf.mxu0
    %v2248 = vpop.f32.mrf.mxu0
    %2249 = vdwg.mxu0
    %v2254 = vcombine.low %v2203, %v2205
    %v2255 = vcombine.low %v2244, %v2246
    %v2257 = vunpack.c.l.s4 1966171168
    %v2258 = vunpack.c.0.s8 %v2257
    %v2259 = vlaneseq
    %v2260 = vshrl.u32 %v2259, 7
    %v2261 = vsub.s32 %v2258, %v2260
    %v2262 = vrot.slane %v2254, %v2261
    %v2264 = vunpack.c.l.s4 1966171168
    %v2265 = vunpack.c.0.s8 %v2264
    %v2266 = vlaneseq
    %v2267 = vshrl.u32 %v2266, 7
    %v2268 = vsub.s32 %v2265, %v2267
    %v2269 = vrot.slane %v2255, %v2268
    %v2270 = vcombine.low %v2262, %v2269
    %v2271 = vcombine.high %v2262, %v2269
    %v2273 = vunpack.c.l.s4 1966171168
    %v2274 = vunpack.c.0.s8 %v2273
    %v2275 = vlaneseq
    %v2276 = vshrl.u32 %v2275, 7
    %v2277 = vsub.s32 %v2274, %v2276
    %v2278 = vrot.slane %v2270, %v2277
    %v2280 = vunpack.c.l.s4 1966171168
    %v2281 = vunpack.c.0.s8 %v2280
    %v2282 = vlaneseq
    %v2283 = vshrl.u32 %v2282, 7
    %v2284 = vsub.s32 %v2281, %v2283
    %v2285 = vrot.slane %v2271, %v2284
    %v2288 = vadd.f32 %v2155, %v2278
    %v2289 = vadd.f32 %v2157, %v2285
    %v2290 = vxor.u32 %v2152, 2147483648
    %v2291 = vxor.u32 %v2153, 2147483648
    %v2292 = vmul.f32 %v2290, 1.442695
    %v2293 = vpow.pop %v2292
    %v2294 = vmul.f32 %v2291, 1.442695
    %v2295 = vpow.pop %v2294
    %v2296 = vadd.f32 %v2293, 1.0
    %v2297 = vadd.f32 %v2295, 1.0
    %v2298 = vrcp.pop %v2296
    %v2299 = vmul.f32 1.0, %v2298
    %v2300 = vrcp.pop %v2297
    %v2301 = vmul.f32 1.0, %v2300
    %v2304 = vrot.slane %v2152, 3
    %v2305 = vrot.slane %v2153, 3
    %v2308 = vtanh.pop %v2304
    %v2309 = vtanh.pop %v2305
    %v2312 = vrot.slane %v2299, 1
    %v2313 = vrot.slane %v2301, 1
    %v2316 = vmul.f32 %v2312, %v1964
    %v2317 = vmul.f32 %v2313, %v1965
    %v2318 = vmul.f32 %v2299, %v2308
    %v2319 = vmul.f32 %v2301, %v2309
    %v2320 = vadd.f32 %v2316, %v2318
    %v2321 = vadd.f32 %v2317, %v2319
    %v2322 = vtanh.pop %v2320
    %v2323 = vtanh.pop %v2321
    %v2324 = vrot.slane %v2299, 2
    %v2325 = vrot.slane %v2301, 2
    %v2328 = vmul.f32 %v2324, %v2322
    %v2329 = vmul.f32 %v2325, %v2323
    %v2330 = vxor.u32 %v2288, 2147483648
    %v2331 = vxor.u32 %v2289, 2147483648
    %v2332 = vmul.f32 %v2330, 1.442695
    %v2333 = vpow.pop %v2332
    %v2334 = vmul.f32 %v2331, 1.442695
    %v2335 = vpow.pop %v2334
    %v2336 = vadd.f32 %v2333, 1.0
    %v2337 = vadd.f32 %v2335, 1.0
    %v2338 = vrcp.pop %v2336
    %v2339 = vmul.f32 1.0, %v2338
    %v2340 = vrcp.pop %v2337
    %v2341 = vmul.f32 1.0, %v2340
    %v2344 = vrot.slane %v2288, 3
    %v2345 = vrot.slane %v2289, 3
    %v2348 = vtanh.pop %v2344
    %v2349 = vtanh.pop %v2345
    %v2352 = vrot.slane %v2339, 1
    %v2353 = vrot.slane %v2341, 1
    %v2356 = vmul.f32 %v2352, %v2004
    %v2357 = vmul.f32 %v2353, %v2005
    %v2358 = vmul.f32 %v2339, %v2348
    %v2359 = vmul.f32 %v2341, %v2349
    %v2360 = vadd.f32 %v2356, %v2358
    %v2361 = vadd.f32 %v2357, %v2359
    %v2362 = vtanh.pop %v2360
    %v2363 = vtanh.pop %v2361
    %v2364 = vrot.slane %v2339, 2
    %v2365 = vrot.slane %v2341, 2
    %v2368 = vmul.f32 %v2364, %v2362
    %v2369 = vmul.f32 %v2365, %v2363
    %2370 = vst [vmem:[#allocation2 + $0x4] sm:$0x1] %v2328
    %2371 = vst [vmem:[#allocation2 + $0x14] sm:$0x1] %v2329
    %2372 = vst [vmem:[#allocation2 + $0xb] sm:$0x1] %v2368
    %2373 = vst [vmem:[#allocation2 + $0x1b] sm:$0x1] %v2369
    %s2374 = scalar_lea.vmem %s0, 5
    %v2375 = vld [vmem:[%s2374] ss:$8 sm:$0xf]
    %s2376 = scalar_lea.vmem %s0, 69
    %v2377 = vld [vmem:[%s2376] ss:$8 sm:$0xf]
    %v2378 = vpack.c.bf16 %v2328, %v2328
    %v2379 = vpack.c.bf16 %v2329, %v2329
    %v2382 = vunpack.c.l.b16 %v2378
    %v2383 = vunpack.c.l.b16 %v2379
    %v2384 = vrot.slane %v2383, 7
    %v2385 = vsel %vm960, %v2384, %v2382
    %v2386 = vpack.c.b16 %v2385, %v2385
    %2388 = vmatprep.subr.bf16.mxu0 %v422
    %2389 = vmatpush1.bf16.msra.mxu0 %v421
    %2390 = vmatprep.subr.bf16.mxu0 %v418
    %2391 = vmatpush1.bf16.msra.mxu0 %v417
    %2392 = vmatprep.subr.bf16.mxu0 %v414
    %2393 = vmatpush1.bf16.msra.mxu0 %v413
    %2394 = vmatprep.subr.bf16.mxu0 %v410
    %2395 = vmatpush1.bf16.msra.mxu0 %v409
    %2396 = vmatprep.subr.bf16.mxu0 %v406
    %2397 = vmatpush1.bf16.msra.mxu0 %v405
    %2398 = vmatprep.subr.bf16.mxu0 %v402
    %2399 = vmatpush1.bf16.msra.mxu0 %v401
    %2400 = vmatprep.subr.bf16.mxu0 %v398
    %2401 = vmatpush1.bf16.msra.mxu0 %v397
    %2402 = vmatprep.subr.bf16.mxu0 %v394
    %2403 = vmatpush1.bf16.msra.mxu0 %v393
    %2404 = vmatprep.subr.bf16.mxu0 0
    %2405 = vmatpush2.bf16.msra.mxu0 0
    %2406 = vmatprep.subr.bf16.mxu0 0
    %2407 = vmatpush2.bf16.msra.mxu0 0
    %2408 = vmatprep.subr.bf16.mxu0 0
    %2409 = vmatpush2.bf16.msra.mxu0 0
    %2410 = vmatprep.subr.bf16.mxu0 0
    %2411 = vmatpush2.bf16.msra.mxu0 0
    %2412 = vmatprep.subr.bf16.mxu0 0
    %2413 = vmatpush2.bf16.msra.mxu0 0
    %2414 = vmatprep.subr.bf16.mxu0 0
    %2415 = vmatpush2.bf16.msra.mxu0 0
    %2416 = vmatprep.subr.bf16.mxu0 0
    %2417 = vmatpush2.bf16.msra.mxu0 0
    %2418 = vmatprep.subr.bf16.mxu0 0
    %2419 = vmatpush2.bf16.msra.mxu0 0
    %2420 = vmatprep.mubr.bf16.mxu0 0
    %2421 = vmatmul.mubr.bf16.gmra.mxu0 %v2386
    %v2422 = vpop.f32.mrf.mxu0
    %v2423 = vadd.f32 0.0, %v2422
    %v2424 = vpop.f32.mrf.mxu0
    %v2425 = vadd.f32 0.0, %v2424
    %v2426 = vpop.f32.mrf.mxu0
    %v2427 = vpop.f32.mrf.mxu0
    %2428 = vdwg.mxu0
    %2429 = vmatprep.subr.bf16.mxu0 %v424
    %2430 = vmatpush1.bf16.msra.mxu0 %v423
    %2431 = vmatprep.subr.bf16.mxu0 %v420
    %2432 = vmatpush1.bf16.msra.mxu0 %v419
    %2433 = vmatprep.subr.bf16.mxu0 %v416
    %2434 = vmatpush1.bf16.msra.mxu0 %v415
    %2435 = vmatprep.subr.bf16.mxu0 %v412
    %2436 = vmatpush1.bf16.msra.mxu0 %v411
    %2437 = vmatprep.subr.bf16.mxu0 %v408
    %2438 = vmatpush1.bf16.msra.mxu0 %v407
    %2439 = vmatprep.subr.bf16.mxu0 %v404
    %2440 = vmatpush1.bf16.msra.mxu0 %v403
    %2441 = vmatprep.subr.bf16.mxu0 %v400
    %2442 = vmatpush1.bf16.msra.mxu0 %v399
    %2443 = vmatprep.subr.bf16.mxu0 %v396
    %2444 = vmatpush1.bf16.msra.mxu0 %v395
    %2445 = vmatprep.subr.bf16.mxu0 0
    %2446 = vmatpush2.bf16.msra.mxu0 0
    %2447 = vmatprep.subr.bf16.mxu0 0
    %2448 = vmatpush2.bf16.msra.mxu0 0
    %2449 = vmatprep.subr.bf16.mxu0 0
    %2450 = vmatpush2.bf16.msra.mxu0 0
    %2451 = vmatprep.subr.bf16.mxu0 0
    %2452 = vmatpush2.bf16.msra.mxu0 0
    %2453 = vmatprep.subr.bf16.mxu0 0
    %2454 = vmatpush2.bf16.msra.mxu0 0
    %2455 = vmatprep.subr.bf16.mxu0 0
    %2456 = vmatpush2.bf16.msra.mxu0 0
    %2457 = vmatprep.subr.bf16.mxu0 0
    %2458 = vmatpush2.bf16.msra.mxu0 0
    %2459 = vmatprep.subr.bf16.mxu0 0
    %2460 = vmatpush2.bf16.msra.mxu0 0
    %2461 = vmatprep.mubr.bf16.mxu0 0
    %2462 = vmatmul.mubr.bf16.gmra.mxu0 %v2386
    %v2463 = vpop.f32.mrf.mxu0
    %v2464 = vadd.f32 0.0, %v2463
    %v2465 = vpop.f32.mrf.mxu0
    %v2466 = vadd.f32 0.0, %v2465
    %v2467 = vpop.f32.mrf.mxu0
    %v2468 = vpop.f32.mrf.mxu0
    %2469 = vdwg.mxu0
    %v2474 = vcombine.low %v2423, %v2425
    %v2475 = vcombine.low %v2464, %v2466
    %v2477 = vunpack.c.l.s4 1966171168
    %v2478 = vunpack.c.0.s8 %v2477
    %v2479 = vlaneseq
    %v2480 = vshrl.u32 %v2479, 7
    %v2481 = vsub.s32 %v2478, %v2480
    %v2482 = vrot.slane %v2474, %v2481
    %v2484 = vunpack.c.l.s4 1966171168
    %v2485 = vunpack.c.0.s8 %v2484
    %v2486 = vlaneseq
    %v2487 = vshrl.u32 %v2486, 7
    %v2488 = vsub.s32 %v2485, %v2487
    %v2489 = vrot.slane %v2475, %v2488
    %v2490 = vcombine.low %v2482, %v2489
    %v2491 = vcombine.high %v2482, %v2489
    %v2493 = vunpack.c.l.s4 1966171168
    %v2494 = vunpack.c.0.s8 %v2493
    %v2495 = vlaneseq
    %v2496 = vshrl.u32 %v2495, 7
    %v2497 = vsub.s32 %v2494, %v2496
    %v2498 = vrot.slane %v2490, %v2497
    %v2500 = vunpack.c.l.s4 1966171168
    %v2501 = vunpack.c.0.s8 %v2500
    %v2502 = vlaneseq
    %v2503 = vshrl.u32 %v2502, 7
    %v2504 = vsub.s32 %v2501, %v2503
    %v2505 = vrot.slane %v2491, %v2504
    %v2508 = vadd.f32 %v2375, %v2498
    %v2509 = vadd.f32 %v2377, %v2505
    %s2510 = scalar_lea.vmem %s0, 34
    %v2511 = vld [vmem:[%s2510] ss:$8 sm:$0xf]
    %s2512 = scalar_lea.vmem %s0, 98
    %v2513 = vld [vmem:[%s2512] ss:$8 sm:$0xf]
    %v2514 = vpack.c.bf16 %v2368, %v2368
    %v2515 = vpack.c.bf16 %v2369, %v2369
    %v2518 = vunpack.c.l.b16 %v2514
    %v2519 = vunpack.c.l.b16 %v2515
    %v2520 = vrot.slane %v2519, 7
    %v2521 = vsel %vm960, %v2520, %v2518
    %v2522 = vpack.c.b16 %v2521, %v2521
    %2524 = vmatprep.subr.bf16.mxu0 %v708
    %2525 = vmatpush1.bf16.msra.mxu0 %v707
    %2526 = vmatprep.subr.bf16.mxu0 %v704
    %2527 = vmatpush1.bf16.msra.mxu0 %v703
    %2528 = vmatprep.subr.bf16.mxu0 %v700
    %2529 = vmatpush1.bf16.msra.mxu0 %v699
    %2530 = vmatprep.subr.bf16.mxu0 %v696
    %2531 = vmatpush1.bf16.msra.mxu0 %v695
    %2532 = vmatprep.subr.bf16.mxu0 %v692
    %2533 = vmatpush1.bf16.msra.mxu0 %v691
    %2534 = vmatprep.subr.bf16.mxu0 %v688
    %2535 = vmatpush1.bf16.msra.mxu0 %v687
    %2536 = vmatprep.subr.bf16.mxu0 %v684
    %2537 = vmatpush1.bf16.msra.mxu0 %v683
    %2538 = vmatprep.subr.bf16.mxu0 %v680
    %2539 = vmatpush1.bf16.msra.mxu0 %v679
    %2540 = vmatprep.subr.bf16.mxu0 0
    %2541 = vmatpush2.bf16.msra.mxu0 0
    %2542 = vmatprep.subr.bf16.mxu0 0
    %2543 = vmatpush2.bf16.msra.mxu0 0
    %2544 = vmatprep.subr.bf16.mxu0 0
    %2545 = vmatpush2.bf16.msra.mxu0 0
    %2546 = vmatprep.subr.bf16.mxu0 0
    %2547 = vmatpush2.bf16.msra.mxu0 0
    %2548 = vmatprep.subr.bf16.mxu0 0
    %2549 = vmatpush2.bf16.msra.mxu0 0
    %2550 = vmatprep.subr.bf16.mxu0 0
    %2551 = vmatpush2.bf16.msra.mxu0 0
    %2552 = vmatprep.subr.bf16.mxu0 0
    %2553 = vmatpush2.bf16.msra.mxu0 0
    %2554 = vmatprep.subr.bf16.mxu0 0
    %2555 = vmatpush2.bf16.msra.mxu0 0
    %2556 = vmatprep.mubr.bf16.mxu0 0
    %2557 = vmatmul.mubr.bf16.gmra.mxu0 %v2522
    %v2558 = vpop.f32.mrf.mxu0
    %v2559 = vadd.f32 0.0, %v2558
    %v2560 = vpop.f32.mrf.mxu0
    %v2561 = vadd.f32 0.0, %v2560
    %v2562 = vpop.f32.mrf.mxu0
    %v2563 = vpop.f32.mrf.mxu0
    %2564 = vdwg.mxu0
    %2565 = vmatprep.subr.bf16.mxu0 %v710
    %2566 = vmatpush1.bf16.msra.mxu0 %v709
    %2567 = vmatprep.subr.bf16.mxu0 %v706
    %2568 = vmatpush1.bf16.msra.mxu0 %v705
    %2569 = vmatprep.subr.bf16.mxu0 %v702
    %2570 = vmatpush1.bf16.msra.mxu0 %v701
    %2571 = vmatprep.subr.bf16.mxu0 %v698
    %2572 = vmatpush1.bf16.msra.mxu0 %v697
    %2573 = vmatprep.subr.bf16.mxu0 %v694
    %2574 = vmatpush1.bf16.msra.mxu0 %v693
    %2575 = vmatprep.subr.bf16.mxu0 %v690
    %2576 = vmatpush1.bf16.msra.mxu0 %v689
    %2577 = vmatprep.subr.bf16.mxu0 %v686
    %2578 = vmatpush1.bf16.msra.mxu0 %v685
    %2579 = vmatprep.subr.bf16.mxu0 %v682
    %2580 = vmatpush1.bf16.msra.mxu0 %v681
    %2581 = vmatprep.subr.bf16.mxu0 0
    %2582 = vmatpush2.bf16.msra.mxu0 0
    %2583 = vmatprep.subr.bf16.mxu0 0
    %2584 = vmatpush2.bf16.msra.mxu0 0
    %2585 = vmatprep.subr.bf16.mxu0 0
    %2586 = vmatpush2.bf16.msra.mxu0 0
    %2587 = vmatprep.subr.bf16.mxu0 0
    %2588 = vmatpush2.bf16.msra.mxu0 0
    %2589 = vmatprep.subr.bf16.mxu0 0
    %2590 = vmatpush2.bf16.msra.mxu0 0
    %2591 = vmatprep.subr.bf16.mxu0 0
    %2592 = vmatpush2.bf16.msra.mxu0 0
    %2593 = vmatprep.subr.bf16.mxu0 0
    %2594 = vmatpush2.bf16.msra.mxu0 0
    %2595 = vmatprep.subr.bf16.mxu0 0
    %2596 = vmatpush2.bf16.msra.mxu0 0
    %2597 = vmatprep.mubr.bf16.mxu0 0
    %2598 = vmatmul.mubr.bf16.gmra.mxu0 %v2522
    %v2599 = vpop.f32.mrf.mxu0
    %v2600 = vadd.f32 0.0, %v2599
    %v2601 = vpop.f32.mrf.mxu0
    %v2602 = vadd.f32 0.0, %v2601
    %v2603 = vpop.f32.mrf.mxu0
    %v2604 = vpop.f32.mrf.mxu0
    %2605 = vdwg.mxu0
    %v2610 = vcombine.low %v2559, %v2561
    %v2611 = vcombine.low %v2600, %v2602
    %v2613 = vunpack.c.l.s4 1966171168
    %v2614 = vunpack.c.0.s8 %v2613
    %v2615 = vlaneseq
    %v2616 = vshrl.u32 %v2615, 7
    %v2617 = vsub.s32 %v2614, %v2616
    %v2618 = vrot.slane %v2610, %v2617
    %v2620 = vunpack.c.l.s4 1966171168
    %v2621 = vunpack.c.0.s8 %v2620
    %v2622 = vlaneseq
    %v2623 = vshrl.u32 %v2622, 7
    %v2624 = vsub.s32 %v2621, %v2623
    %v2625 = vrot.slane %v2611, %v2624
    %v2626 = vcombine.low %v2618, %v2625
    %v2627 = vcombine.high %v2618, %v2625
    %v2629 = vunpack.c.l.s4 1966171168
    %v2630 = vunpack.c.0.s8 %v2629
    %v2631 = vlaneseq
    %v2632 = vshrl.u32 %v2631, 7
    %v2633 = vsub.s32 %v2630, %v2632
    %v2634 = vrot.slane %v2626, %v2633
    %v2636 = vunpack.c.l.s4 1966171168
    %v2637 = vunpack.c.0.s8 %v2636
    %v2638 = vlaneseq
    %v2639 = vshrl.u32 %v2638, 7
    %v2640 = vsub.s32 %v2637, %v2639
    %v2641 = vrot.slane %v2627, %v2640
    %v2644 = vadd.f32 %v2511, %v2634
    %v2645 = vadd.f32 %v2513, %v2641
    %v2646 = vxor.u32 %v2508, 2147483648
    %v2647 = vxor.u32 %v2509, 2147483648
    %v2648 = vmul.f32 %v2646, 1.442695
    %v2649 = vpow.pop %v2648
    %v2650 = vmul.f32 %v2647, 1.442695
    %v2651 = vpow.pop %v2650
    %v2652 = vadd.f32 %v2649, 1.0
    %v2653 = vadd.f32 %v2651, 1.0
    %v2654 = vrcp.pop %v2652
    %v2655 = vmul.f32 1.0, %v2654
    %v2656 = vrcp.pop %v2653
    %v2657 = vmul.f32 1.0, %v2656
    %v2660 = vrot.slane %v2508, 3
    %v2661 = vrot.slane %v2509, 3
    %v2664 = vtanh.pop %v2660
    %v2665 = vtanh.pop %v2661
    %v2668 = vrot.slane %v2655, 1
    %v2669 = vrot.slane %v2657, 1
    %v2672 = vmul.f32 %v2668, %v2320
    %v2673 = vmul.f32 %v2669, %v2321
    %v2674 = vmul.f32 %v2655, %v2664
    %v2675 = vmul.f32 %v2657, %v2665
    %v2676 = vadd.f32 %v2672, %v2674
    %v2677 = vadd.f32 %v2673, %v2675
    %v2678 = vtanh.pop %v2676
    %v2679 = vtanh.pop %v2677
    %v2680 = vrot.slane %v2655, 2
    %v2681 = vrot.slane %v2657, 2
    %v2684 = vmul.f32 %v2680, %v2678
    %v2685 = vmul.f32 %v2681, %v2679
    %v2686 = vxor.u32 %v2644, 2147483648
    %v2687 = vxor.u32 %v2645, 2147483648
    %v2688 = vmul.f32 %v2686, 1.442695
    %v2689 = vpow.pop %v2688
    %v2690 = vmul.f32 %v2687, 1.442695
    %v2691 = vpow.pop %v2690
    %v2692 = vadd.f32 %v2689, 1.0
    %v2693 = vadd.f32 %v2691, 1.0
    %v2694 = vrcp.pop %v2692
    %v2695 = vmul.f32 1.0, %v2694
    %v2696 = vrcp.pop %v2693
    %v2697 = vmul.f32 1.0, %v2696
    %v2700 = vrot.slane %v2644, 3
    %v2701 = vrot.slane %v2645, 3
    %v2704 = vtanh.pop %v2700
    %v2705 = vtanh.pop %v2701
    %v2708 = vrot.slane %v2695, 1
    %v2709 = vrot.slane %v2697, 1
    %v2712 = vmul.f32 %v2708, %v2360
    %v2713 = vmul.f32 %v2709, %v2361
    %v2714 = vmul.f32 %v2695, %v2704
    %v2715 = vmul.f32 %v2697, %v2705
    %v2716 = vadd.f32 %v2712, %v2714
    %v2717 = vadd.f32 %v2713, %v2715
    %v2718 = vtanh.pop %v2716
    %v2719 = vtanh.pop %v2717
    %v2720 = vrot.slane %v2695, 2
    %v2721 = vrot.slane %v2697, 2
    %v2724 = vmul.f32 %v2720, %v2718
    %v2725 = vmul.f32 %v2721, %v2719
    %2726 = vst [vmem:[#allocation2 + $0x5] sm:$0x1] %v2684
    %2727 = vst [vmem:[#allocation2 + $0x15] sm:$0x1] %v2685
    %2728 = vst [vmem:[#allocation2 + $0xa] sm:$0x1] %v2724
    %2729 = vst [vmem:[#allocation2 + $0x1a] sm:$0x1] %v2725
    %s2730 = scalar_lea.vmem %s0, 6
    %v2731 = vld [vmem:[%s2730] ss:$8 sm:$0xf]
    %s2732 = scalar_lea.vmem %s0, 70
    %v2733 = vld [vmem:[%s2732] ss:$8 sm:$0xf]
    %v2734 = vpack.c.bf16 %v2684, %v2684
    %v2735 = vpack.c.bf16 %v2685, %v2685
    %v2738 = vunpack.c.l.b16 %v2734
    %v2739 = vunpack.c.l.b16 %v2735
    %v2740 = vrot.slane %v2739, 7
    %v2741 = vsel %vm960, %v2740, %v2738
    %v2742 = vpack.c.b16 %v2741, %v2741
    %2744 = vmatprep.subr.bf16.mxu0 %v422
    %2745 = vmatpush1.bf16.msra.mxu0 %v421
    %2746 = vmatprep.subr.bf16.mxu0 %v418
    %2747 = vmatpush1.bf16.msra.mxu0 %v417
    %2748 = vmatprep.subr.bf16.mxu0 %v414
    %2749 = vmatpush1.bf16.msra.mxu0 %v413
    %2750 = vmatprep.subr.bf16.mxu0 %v410
    %2751 = vmatpush1.bf16.msra.mxu0 %v409
    %2752 = vmatprep.subr.bf16.mxu0 %v406
    %2753 = vmatpush1.bf16.msra.mxu0 %v405
    %2754 = vmatprep.subr.bf16.mxu0 %v402
    %2755 = vmatpush1.bf16.msra.mxu0 %v401
    %2756 = vmatprep.subr.bf16.mxu0 %v398
    %2757 = vmatpush1.bf16.msra.mxu0 %v397
    %2758 = vmatprep.subr.bf16.mxu0 %v394
    %2759 = vmatpush1.bf16.msra.mxu0 %v393
    %2760 = vmatprep.subr.bf16.mxu0 0
    %2761 = vmatpush2.bf16.msra.mxu0 0
    %2762 = vmatprep.subr.bf16.mxu0 0
    %2763 = vmatpush2.bf16.msra.mxu0 0
    %2764 = vmatprep.subr.bf16.mxu0 0
    %2765 = vmatpush2.bf16.msra.mxu0 0
    %2766 = vmatprep.subr.bf16.mxu0 0
    %2767 = vmatpush2.bf16.msra.mxu0 0
    %2768 = vmatprep.subr.bf16.mxu0 0
    %2769 = vmatpush2.bf16.msra.mxu0 0
    %2770 = vmatprep.subr.bf16.mxu0 0
    %2771 = vmatpush2.bf16.msra.mxu0 0
    %2772 = vmatprep.subr.bf16.mxu0 0
    %2773 = vmatpush2.bf16.msra.mxu0 0
    %2774 = vmatprep.subr.bf16.mxu0 0
    %2775 = vmatpush2.bf16.msra.mxu0 0
    %2776 = vmatprep.mubr.bf16.mxu0 0
    %2777 = vmatmul.mubr.bf16.gmra.mxu0 %v2742
    %v2778 = vpop.f32.mrf.mxu0
    %v2779 = vadd.f32 0.0, %v2778
    %v2780 = vpop.f32.mrf.mxu0
    %v2781 = vadd.f32 0.0, %v2780
    %v2782 = vpop.f32.mrf.mxu0
    %v2783 = vpop.f32.mrf.mxu0
    %2784 = vdwg.mxu0
    %2785 = vmatprep.subr.bf16.mxu0 %v424
    %2786 = vmatpush1.bf16.msra.mxu0 %v423
    %2787 = vmatprep.subr.bf16.mxu0 %v420
    %2788 = vmatpush1.bf16.msra.mxu0 %v419
    %2789 = vmatprep.subr.bf16.mxu0 %v416
    %2790 = vmatpush1.bf16.msra.mxu0 %v415
    %2791 = vmatprep.subr.bf16.mxu0 %v412
    %2792 = vmatpush1.bf16.msra.mxu0 %v411
    %2793 = vmatprep.subr.bf16.mxu0 %v408
    %2794 = vmatpush1.bf16.msra.mxu0 %v407
    %2795 = vmatprep.subr.bf16.mxu0 %v404
    %2796 = vmatpush1.bf16.msra.mxu0 %v403
    %2797 = vmatprep.subr.bf16.mxu0 %v400
    %2798 = vmatpush1.bf16.msra.mxu0 %v399
    %2799 = vmatprep.subr.bf16.mxu0 %v396
    %2800 = vmatpush1.bf16.msra.mxu0 %v395
    %2801 = vmatprep.subr.bf16.mxu0 0
    %2802 = vmatpush2.bf16.msra.mxu0 0
    %2803 = vmatprep.subr.bf16.mxu0 0
    %2804 = vmatpush2.bf16.msra.mxu0 0
    %2805 = vmatprep.subr.bf16.mxu0 0
    %2806 = vmatpush2.bf16.msra.mxu0 0
    %2807 = vmatprep.subr.bf16.mxu0 0
    %2808 = vmatpush2.bf16.msra.mxu0 0
    %2809 = vmatprep.subr.bf16.mxu0 0
    %2810 = vmatpush2.bf16.msra.mxu0 0
    %2811 = vmatprep.subr.bf16.mxu0 0
    %2812 = vmatpush2.bf16.msra.mxu0 0
    %2813 = vmatprep.subr.bf16.mxu0 0
    %2814 = vmatpush2.bf16.msra.mxu0 0
    %2815 = vmatprep.subr.bf16.mxu0 0
    %2816 = vmatpush2.bf16.msra.mxu0 0
    %2817 = vmatprep.mubr.bf16.mxu0 0
    %2818 = vmatmul.mubr.bf16.gmra.mxu0 %v2742
    %v2819 = vpop.f32.mrf.mxu0
    %v2820 = vadd.f32 0.0, %v2819
    %v2821 = vpop.f32.mrf.mxu0
    %v2822 = vadd.f32 0.0, %v2821
    %v2823 = vpop.f32.mrf.mxu0
    %v2824 = vpop.f32.mrf.mxu0
    %2825 = vdwg.mxu0
    %v2830 = vcombine.low %v2779, %v2781
    %v2831 = vcombine.low %v2820, %v2822
    %v2833 = vunpack.c.l.s4 1966171168
    %v2834 = vunpack.c.0.s8 %v2833
    %v2835 = vlaneseq
    %v2836 = vshrl.u32 %v2835, 7
    %v2837 = vsub.s32 %v2834, %v2836
    %v2838 = vrot.slane %v2830, %v2837
    %v2840 = vunpack.c.l.s4 1966171168
    %v2841 = vunpack.c.0.s8 %v2840
    %v2842 = vlaneseq
    %v2843 = vshrl.u32 %v2842, 7
    %v2844 = vsub.s32 %v2841, %v2843
    %v2845 = vrot.slane %v2831, %v2844
    %v2846 = vcombine.low %v2838, %v2845
    %v2847 = vcombine.high %v2838, %v2845
    %v2849 = vunpack.c.l.s4 1966171168
    %v2850 = vunpack.c.0.s8 %v2849
    %v2851 = vlaneseq
    %v2852 = vshrl.u32 %v2851, 7
    %v2853 = vsub.s32 %v2850, %v2852
    %v2854 = vrot.slane %v2846, %v2853
    %v2856 = vunpack.c.l.s4 1966171168
    %v2857 = vunpack.c.0.s8 %v2856
    %v2858 = vlaneseq
    %v2859 = vshrl.u32 %v2858, 7
    %v2860 = vsub.s32 %v2857, %v2859
    %v2861 = vrot.slane %v2847, %v2860
    %v2864 = vadd.f32 %v2731, %v2854
    %v2865 = vadd.f32 %v2733, %v2861
    %s2866 = scalar_lea.vmem %s0, 33
    %v2867 = vld [vmem:[%s2866] ss:$8 sm:$0xf]
    %s2868 = scalar_lea.vmem %s0, 97
    %v2869 = vld [vmem:[%s2868] ss:$8 sm:$0xf]
    %v2870 = vpack.c.bf16 %v2724, %v2724
    %v2871 = vpack.c.bf16 %v2725, %v2725
    %v2874 = vunpack.c.l.b16 %v2870
    %v2875 = vunpack.c.l.b16 %v2871
    %v2876 = vrot.slane %v2875, 7
    %v2877 = vsel %vm960, %v2876, %v2874
    %v2878 = vpack.c.b16 %v2877, %v2877
    %2880 = vmatprep.subr.bf16.mxu0 %v708
    %2881 = vmatpush1.bf16.msra.mxu0 %v707
    %2882 = vmatprep.subr.bf16.mxu0 %v704
    %2883 = vmatpush1.bf16.msra.mxu0 %v703
    %2884 = vmatprep.subr.bf16.mxu0 %v700
    %2885 = vmatpush1.bf16.msra.mxu0 %v699
    %2886 = vmatprep.subr.bf16.mxu0 %v696
    %2887 = vmatpush1.bf16.msra.mxu0 %v695
    %2888 = vmatprep.subr.bf16.mxu0 %v692
    %2889 = vmatpush1.bf16.msra.mxu0 %v691
    %2890 = vmatprep.subr.bf16.mxu0 %v688
    %2891 = vmatpush1.bf16.msra.mxu0 %v687
    %2892 = vmatprep.subr.bf16.mxu0 %v684
    %2893 = vmatpush1.bf16.msra.mxu0 %v683
    %2894 = vmatprep.subr.bf16.mxu0 %v680
    %2895 = vmatpush1.bf16.msra.mxu0 %v679
    %2896 = vmatprep.subr.bf16.mxu0 0
    %2897 = vmatpush2.bf16.msra.mxu0 0
    %2898 = vmatprep.subr.bf16.mxu0 0
    %2899 = vmatpush2.bf16.msra.mxu0 0
    %2900 = vmatprep.subr.bf16.mxu0 0
    %2901 = vmatpush2.bf16.msra.mxu0 0
    %2902 = vmatprep.subr.bf16.mxu0 0
    %2903 = vmatpush2.bf16.msra.mxu0 0
    %2904 = vmatprep.subr.bf16.mxu0 0
    %2905 = vmatpush2.bf16.msra.mxu0 0
    %2906 = vmatprep.subr.bf16.mxu0 0
    %2907 = vmatpush2.bf16.msra.mxu0 0
    %2908 = vmatprep.subr.bf16.mxu0 0
    %2909 = vmatpush2.bf16.msra.mxu0 0
    %2910 = vmatprep.subr.bf16.mxu0 0
    %2911 = vmatpush2.bf16.msra.mxu0 0
    %2912 = vmatprep.mubr.bf16.mxu0 0
    %2913 = vmatmul.mubr.bf16.gmra.mxu0 %v2878
    %v2914 = vpop.f32.mrf.mxu0
    %v2915 = vadd.f32 0.0, %v2914
    %v2916 = vpop.f32.mrf.mxu0
    %v2917 = vadd.f32 0.0, %v2916
    %v2918 = vpop.f32.mrf.mxu0
    %v2919 = vpop.f32.mrf.mxu0
    %2920 = vdwg.mxu0
    %2921 = vmatprep.subr.bf16.mxu0 %v710
    %2922 = vmatpush1.bf16.msra.mxu0 %v709
    %2923 = vmatprep.subr.bf16.mxu0 %v706
    %2924 = vmatpush1.bf16.msra.mxu0 %v705
    %2925 = vmatprep.subr.bf16.mxu0 %v702
    %2926 = vmatpush1.bf16.msra.mxu0 %v701
    %2927 = vmatprep.subr.bf16.mxu0 %v698
    %2928 = vmatpush1.bf16.msra.mxu0 %v697
    %2929 = vmatprep.subr.bf16.mxu0 %v694
    %2930 = vmatpush1.bf16.msra.mxu0 %v693
    %2931 = vmatprep.subr.bf16.mxu0 %v690
    %2932 = vmatpush1.bf16.msra.mxu0 %v689
    %2933 = vmatprep.subr.bf16.mxu0 %v686
    %2934 = vmatpush1.bf16.msra.mxu0 %v685
    %2935 = vmatprep.subr.bf16.mxu0 %v682
    %2936 = vmatpush1.bf16.msra.mxu0 %v681
    %2937 = vmatprep.subr.bf16.mxu0 0
    %2938 = vmatpush2.bf16.msra.mxu0 0
    %2939 = vmatprep.subr.bf16.mxu0 0
    %2940 = vmatpush2.bf16.msra.mxu0 0
    %2941 = vmatprep.subr.bf16.mxu0 0
    %2942 = vmatpush2.bf16.msra.mxu0 0
    %2943 = vmatprep.subr.bf16.mxu0 0
    %2944 = vmatpush2.bf16.msra.mxu0 0
    %2945 = vmatprep.subr.bf16.mxu0 0
    %2946 = vmatpush2.bf16.msra.mxu0 0
    %2947 = vmatprep.subr.bf16.mxu0 0
    %2948 = vmatpush2.bf16.msra.mxu0 0
    %2949 = vmatprep.subr.bf16.mxu0 0
    %2950 = vmatpush2.bf16.msra.mxu0 0
    %2951 = vmatprep.subr.bf16.mxu0 0
    %2952 = vmatpush2.bf16.msra.mxu0 0
    %2953 = vmatprep.mubr.bf16.mxu0 0
    %2954 = vmatmul.mubr.bf16.gmra.mxu0 %v2878
    %v2955 = vpop.f32.mrf.mxu0
    %v2956 = vadd.f32 0.0, %v2955
    %v2957 = vpop.f32.mrf.mxu0
    %v2958 = vadd.f32 0.0, %v2957
    %v2959 = vpop.f32.mrf.mxu0
    %v2960 = vpop.f32.mrf.mxu0
    %2961 = vdwg.mxu0
    %v2966 = vcombine.low %v2915, %v2917
    %v2967 = vcombine.low %v2956, %v2958
    %v2969 = vunpack.c.l.s4 1966171168
    %v2970 = vunpack.c.0.s8 %v2969
    %v2971 = vlaneseq
    %v2972 = vshrl.u32 %v2971, 7
    %v2973 = vsub.s32 %v2970, %v2972
    %v2974 = vrot.slane %v2966, %v2973
    %v2976 = vunpack.c.l.s4 1966171168
    %v2977 = vunpack.c.0.s8 %v2976
    %v2978 = vlaneseq
    %v2979 = vshrl.u32 %v2978, 7
    %v2980 = vsub.s32 %v2977, %v2979
    %v2981 = vrot.slane %v2967, %v2980
    %v2982 = vcombine.low %v2974, %v2981
    %v2983 = vcombine.high %v2974, %v2981
    %v2985 = vunpack.c.l.s4 1966171168
    %v2986 = vunpack.c.0.s8 %v2985
    %v2987 = vlaneseq
    %v2988 = vshrl.u32 %v2987, 7
    %v2989 = vsub.s32 %v2986, %v2988
    %v2990 = vrot.slane %v2982, %v2989
    %v2992 = vunpack.c.l.s4 1966171168
    %v2993 = vunpack.c.0.s8 %v2992
    %v2994 = vlaneseq
    %v2995 = vshrl.u32 %v2994, 7
    %v2996 = vsub.s32 %v2993, %v2995
    %v2997 = vrot.slane %v2983, %v2996
    %v3000 = vadd.f32 %v2867, %v2990
    %v3001 = vadd.f32 %v2869, %v2997
    %v3002 = vxor.u32 %v2864, 2147483648
    %v3003 = vxor.u32 %v2865, 2147483648
    %v3004 = vmul.f32 %v3002, 1.442695
    %v3005 = vpow.pop %v3004
    %v3006 = vmul.f32 %v3003, 1.442695
    %v3007 = vpow.pop %v3006
    %v3008 = vadd.f32 %v3005, 1.0
    %v3009 = vadd.f32 %v3007, 1.0
    %v3010 = vrcp.pop %v3008
    %v3011 = vmul.f32 1.0, %v3010
    %v3012 = vrcp.pop %v3009
    %v3013 = vmul.f32 1.0, %v3012
    %v3016 = vrot.slane %v2864, 3
    %v3017 = vrot.slane %v2865, 3
    %v3020 = vtanh.pop %v3016
    %v3021 = vtanh.pop %v3017
    %v3024 = vrot.slane %v3011, 1
    %v3025 = vrot.slane %v3013, 1
    %v3028 = vmul.f32 %v3024, %v2676
    %v3029 = vmul.f32 %v3025, %v2677
    %v3030 = vmul.f32 %v3011, %v3020
    %v3031 = vmul.f32 %v3013, %v3021
    %v3032 = vadd.f32 %v3028, %v3030
    %v3033 = vadd.f32 %v3029, %v3031
    %v3034 = vtanh.pop %v3032
    %v3035 = vtanh.pop %v3033
    %v3036 = vrot.slane %v3011, 2
    %v3037 = vrot.slane %v3013, 2
    %v3040 = vmul.f32 %v3036, %v3034
    %v3041 = vmul.f32 %v3037, %v3035
    %v3042 = vxor.u32 %v3000, 2147483648
    %v3043 = vxor.u32 %v3001, 2147483648
    %v3044 = vmul.f32 %v3042, 1.442695
    %v3045 = vpow.pop %v3044
    %v3046 = vmul.f32 %v3043, 1.442695
    %v3047 = vpow.pop %v3046
    %v3048 = vadd.f32 %v3045, 1.0
    %v3049 = vadd.f32 %v3047, 1.0
    %v3050 = vrcp.pop %v3048
    %v3051 = vmul.f32 1.0, %v3050
    %v3052 = vrcp.pop %v3049
    %v3053 = vmul.f32 1.0, %v3052
    %v3056 = vrot.slane %v3000, 3
    %v3057 = vrot.slane %v3001, 3
    %v3060 = vtanh.pop %v3056
    %v3061 = vtanh.pop %v3057
    %v3064 = vrot.slane %v3051, 1
    %v3065 = vrot.slane %v3053, 1
    %v3068 = vmul.f32 %v3064, %v2716
    %v3069 = vmul.f32 %v3065, %v2717
    %v3070 = vmul.f32 %v3051, %v3060
    %v3071 = vmul.f32 %v3053, %v3061
    %v3072 = vadd.f32 %v3068, %v3070
    %v3073 = vadd.f32 %v3069, %v3071
    %v3074 = vtanh.pop %v3072
    %v3075 = vtanh.pop %v3073
    %v3076 = vrot.slane %v3051, 2
    %v3077 = vrot.slane %v3053, 2
    %v3080 = vmul.f32 %v3076, %v3074
    %v3081 = vmul.f32 %v3077, %v3075
    %3082 = vst [vmem:[#allocation2 + $0x6] sm:$0x1] %v3040
    %3083 = vst [vmem:[#allocation2 + $0x16] sm:$0x1] %v3041
    %3084 = vst [vmem:[#allocation2 + $0x9] sm:$0x1] %v3080
    %3085 = vst [vmem:[#allocation2 + $0x19] sm:$0x1] %v3081
    %s3086 = scalar_lea.vmem %s0, 7
    %v3087 = vld [vmem:[%s3086] ss:$8 sm:$0xf]
    %s3088 = scalar_lea.vmem %s0, 71
    %v3089 = vld [vmem:[%s3088] ss:$8 sm:$0xf]
    %v3090 = vpack.c.bf16 %v3040, %v3040
    %v3091 = vpack.c.bf16 %v3041, %v3041
    %v3094 = vunpack.c.l.b16 %v3090
    %v3095 = vunpack.c.l.b16 %v3091
    %v3096 = vrot.slane %v3095, 7
    %v3097 = vsel %vm960, %v3096, %v3094
    %v3098 = vpack.c.b16 %v3097, %v3097
    %3100 = vmatprep.subr.bf16.mxu0 %v422
    %3101 = vmatpush1.bf16.msra.mxu0 %v421
    %3102 = vmatprep.subr.bf16.mxu0 %v418
    %3103 = vmatpush1.bf16.msra.mxu0 %v417
    %3104 = vmatprep.subr.bf16.mxu0 %v414
    %3105 = vmatpush1.bf16.msra.mxu0 %v413
    %3106 = vmatprep.subr.bf16.mxu0 %v410
    %3107 = vmatpush1.bf16.msra.mxu0 %v409
    %3108 = vmatprep.subr.bf16.mxu0 %v406
    %3109 = vmatpush1.bf16.msra.mxu0 %v405
    %3110 = vmatprep.subr.bf16.mxu0 %v402
    %3111 = vmatpush1.bf16.msra.mxu0 %v401
    %3112 = vmatprep.subr.bf16.mxu0 %v398
    %3113 = vmatpush1.bf16.msra.mxu0 %v397
    %3114 = vmatprep.subr.bf16.mxu0 %v394
    %3115 = vmatpush1.bf16.msra.mxu0 %v393
    %3116 = vmatprep.subr.bf16.mxu0 0
    %3117 = vmatpush2.bf16.msra.mxu0 0
    %3118 = vmatprep.subr.bf16.mxu0 0
    %3119 = vmatpush2.bf16.msra.mxu0 0
    %3120 = vmatprep.subr.bf16.mxu0 0
    %3121 = vmatpush2.bf16.msra.mxu0 0
    %3122 = vmatprep.subr.bf16.mxu0 0
    %3123 = vmatpush2.bf16.msra.mxu0 0
    %3124 = vmatprep.subr.bf16.mxu0 0
    %3125 = vmatpush2.bf16.msra.mxu0 0
    %3126 = vmatprep.subr.bf16.mxu0 0
    %3127 = vmatpush2.bf16.msra.mxu0 0
    %3128 = vmatprep.subr.bf16.mxu0 0
    %3129 = vmatpush2.bf16.msra.mxu0 0
    %3130 = vmatprep.subr.bf16.mxu0 0
    %3131 = vmatpush2.bf16.msra.mxu0 0
    %3132 = vmatprep.mubr.bf16.mxu0 0
    %3133 = vmatmul.mubr.bf16.gmra.mxu0 %v3098
    %v3134 = vpop.f32.mrf.mxu0
    %v3135 = vadd.f32 0.0, %v3134
    %v3136 = vpop.f32.mrf.mxu0
    %v3137 = vadd.f32 0.0, %v3136
    %v3138 = vpop.f32.mrf.mxu0
    %v3139 = vpop.f32.mrf.mxu0
    %3140 = vdwg.mxu0
    %3141 = vmatprep.subr.bf16.mxu0 %v424
    %3142 = vmatpush1.bf16.msra.mxu0 %v423
    %3143 = vmatprep.subr.bf16.mxu0 %v420
    %3144 = vmatpush1.bf16.msra.mxu0 %v419
    %3145 = vmatprep.subr.bf16.mxu0 %v416
    %3146 = vmatpush1.bf16.msra.mxu0 %v415
    %3147 = vmatprep.subr.bf16.mxu0 %v412
    %3148 = vmatpush1.bf16.msra.mxu0 %v411
    %3149 = vmatprep.subr.bf16.mxu0 %v408
    %3150 = vmatpush1.bf16.msra.mxu0 %v407
    %3151 = vmatprep.subr.bf16.mxu0 %v404
    %3152 = vmatpush1.bf16.msra.mxu0 %v403
    %3153 = vmatprep.subr.bf16.mxu0 %v400
    %3154 = vmatpush1.bf16.msra.mxu0 %v399
    %3155 = vmatprep.subr.bf16.mxu0 %v396
    %3156 = vmatpush1.bf16.msra.mxu0 %v395
    %3157 = vmatprep.subr.bf16.mxu0 0
    %3158 = vmatpush2.bf16.msra.mxu0 0
    %3159 = vmatprep.subr.bf16.mxu0 0
    %3160 = vmatpush2.bf16.msra.mxu0 0
    %3161 = vmatprep.subr.bf16.mxu0 0
    %3162 = vmatpush2.bf16.msra.mxu0 0
    %3163 = vmatprep.subr.bf16.mxu0 0
    %3164 = vmatpush2.bf16.msra.mxu0 0
    %3165 = vmatprep.subr.bf16.mxu0 0
    %3166 = vmatpush2.bf16.msra.mxu0 0
    %3167 = vmatprep.subr.bf16.mxu0 0
    %3168 = vmatpush2.bf16.msra.mxu0 0
    %3169 = vmatprep.subr.bf16.mxu0 0
    %3170 = vmatpush2.bf16.msra.mxu0 0
    %3171 = vmatprep.subr.bf16.mxu0 0
    %3172 = vmatpush2.bf16.msra.mxu0 0
    %3173 = vmatprep.mubr.bf16.mxu0 0
    %3174 = vmatmul.mubr.bf16.gmra.mxu0 %v3098
    %v3175 = vpop.f32.mrf.mxu0
    %v3176 = vadd.f32 0.0, %v3175
    %v3177 = vpop.f32.mrf.mxu0
    %v3178 = vadd.f32 0.0, %v3177
    %v3179 = vpop.f32.mrf.mxu0
    %v3180 = vpop.f32.mrf.mxu0
    %3181 = vdwg.mxu0
    %v3186 = vcombine.low %v3135, %v3137
    %v3187 = vcombine.low %v3176, %v3178
    %v3189 = vunpack.c.l.s4 1966171168
    %v3190 = vunpack.c.0.s8 %v3189
    %v3191 = vlaneseq
    %v3192 = vshrl.u32 %v3191, 7
    %v3193 = vsub.s32 %v3190, %v3192
    %v3194 = vrot.slane %v3186, %v3193
    %v3196 = vunpack.c.l.s4 1966171168
    %v3197 = vunpack.c.0.s8 %v3196
    %v3198 = vlaneseq
    %v3199 = vshrl.u32 %v3198, 7
    %v3200 = vsub.s32 %v3197, %v3199
    %v3201 = vrot.slane %v3187, %v3200
    %v3202 = vcombine.low %v3194, %v3201
    %v3203 = vcombine.high %v3194, %v3201
    %v3205 = vunpack.c.l.s4 1966171168
    %v3206 = vunpack.c.0.s8 %v3205
    %v3207 = vlaneseq
    %v3208 = vshrl.u32 %v3207, 7
    %v3209 = vsub.s32 %v3206, %v3208
    %v3210 = vrot.slane %v3202, %v3209
    %v3212 = vunpack.c.l.s4 1966171168
    %v3213 = vunpack.c.0.s8 %v3212
    %v3214 = vlaneseq
    %v3215 = vshrl.u32 %v3214, 7
    %v3216 = vsub.s32 %v3213, %v3215
    %v3217 = vrot.slane %v3203, %v3216
    %v3220 = vadd.f32 %v3087, %v3210
    %v3221 = vadd.f32 %v3089, %v3217
    %s3222 = scalar_lea.vmem %s0, 32
    %v3223 = vld [vmem:[%s3222] ss:$8 sm:$0xf]
    %s3224 = scalar_lea.vmem %s0, 96
    %v3225 = vld [vmem:[%s3224] ss:$8 sm:$0xf]
    %v3226 = vpack.c.bf16 %v3080, %v3080
    %v3227 = vpack.c.bf16 %v3081, %v3081
    %v3230 = vunpack.c.l.b16 %v3226
    %v3231 = vunpack.c.l.b16 %v3227
    %v3232 = vrot.slane %v3231, 7
    %v3233 = vsel %vm960, %v3232, %v3230
    %v3234 = vpack.c.b16 %v3233, %v3233
    %3236 = vmatprep.subr.bf16.mxu0 %v708
    %3237 = vmatpush1.bf16.msra.mxu0 %v707
    %3238 = vmatprep.subr.bf16.mxu0 %v704
    %3239 = vmatpush1.bf16.msra.mxu0 %v703
    %3240 = vmatprep.subr.bf16.mxu0 %v700
    %3241 = vmatpush1.bf16.msra.mxu0 %v699
    %3242 = vmatprep.subr.bf16.mxu0 %v696
    %3243 = vmatpush1.bf16.msra.mxu0 %v695
    %3244 = vmatprep.subr.bf16.mxu0 %v692
    %3245 = vmatpush1.bf16.msra.mxu0 %v691
    %3246 = vmatprep.subr.bf16.mxu0 %v688
    %3247 = vmatpush1.bf16.msra.mxu0 %v687
    %3248 = vmatprep.subr.bf16.mxu0 %v684
    %3249 = vmatpush1.bf16.msra.mxu0 %v683
    %3250 = vmatprep.subr.bf16.mxu0 %v680
    %3251 = vmatpush1.bf16.msra.mxu0 %v679
    %3252 = vmatprep.subr.bf16.mxu0 0
    %3253 = vmatpush2.bf16.msra.mxu0 0
    %3254 = vmatprep.subr.bf16.mxu0 0
    %3255 = vmatpush2.bf16.msra.mxu0 0
    %3256 = vmatprep.subr.bf16.mxu0 0
    %3257 = vmatpush2.bf16.msra.mxu0 0
    %3258 = vmatprep.subr.bf16.mxu0 0
    %3259 = vmatpush2.bf16.msra.mxu0 0
    %3260 = vmatprep.subr.bf16.mxu0 0
    %3261 = vmatpush2.bf16.msra.mxu0 0
    %3262 = vmatprep.subr.bf16.mxu0 0
    %3263 = vmatpush2.bf16.msra.mxu0 0
    %3264 = vmatprep.subr.bf16.mxu0 0
    %3265 = vmatpush2.bf16.msra.mxu0 0
    %3266 = vmatprep.subr.bf16.mxu0 0
    %3267 = vmatpush2.bf16.msra.mxu0 0
    %3268 = vmatprep.mubr.bf16.mxu0 0
    %3269 = vmatmul.mubr.bf16.gmra.mxu0 %v3234
    %v3270 = vpop.f32.mrf.mxu0
    %v3271 = vadd.f32 0.0, %v3270
    %v3272 = vpop.f32.mrf.mxu0
    %v3273 = vadd.f32 0.0, %v3272
    %v3274 = vpop.f32.mrf.mxu0
    %v3275 = vpop.f32.mrf.mxu0
    %3276 = vdwg.mxu0
    %3277 = vmatprep.subr.bf16.mxu0 %v710
    %3278 = vmatpush1.bf16.msra.mxu0 %v709
    %3279 = vmatprep.subr.bf16.mxu0 %v706
    %3280 = vmatpush1.bf16.msra.mxu0 %v705
    %3281 = vmatprep.subr.bf16.mxu0 %v702
    %3282 = vmatpush1.bf16.msra.mxu0 %v701
    %3283 = vmatprep.subr.bf16.mxu0 %v698
    %3284 = vmatpush1.bf16.msra.mxu0 %v697
    %3285 = vmatprep.subr.bf16.mxu0 %v694
    %3286 = vmatpush1.bf16.msra.mxu0 %v693
    %3287 = vmatprep.subr.bf16.mxu0 %v690
    %3288 = vmatpush1.bf16.msra.mxu0 %v689
    %3289 = vmatprep.subr.bf16.mxu0 %v686
    %3290 = vmatpush1.bf16.msra.mxu0 %v685
    %3291 = vmatprep.subr.bf16.mxu0 %v682
    %3292 = vmatpush1.bf16.msra.mxu0 %v681
    %3293 = vmatprep.subr.bf16.mxu0 0
    %3294 = vmatpush2.bf16.msra.mxu0 0
    %3295 = vmatprep.subr.bf16.mxu0 0
    %3296 = vmatpush2.bf16.msra.mxu0 0
    %3297 = vmatprep.subr.bf16.mxu0 0
    %3298 = vmatpush2.bf16.msra.mxu0 0
    %3299 = vmatprep.subr.bf16.mxu0 0
    %3300 = vmatpush2.bf16.msra.mxu0 0
    %3301 = vmatprep.subr.bf16.mxu0 0
    %3302 = vmatpush2.bf16.msra.mxu0 0
    %3303 = vmatprep.subr.bf16.mxu0 0
    %3304 = vmatpush2.bf16.msra.mxu0 0
    %3305 = vmatprep.subr.bf16.mxu0 0
    %3306 = vmatpush2.bf16.msra.mxu0 0
    %3307 = vmatprep.subr.bf16.mxu0 0
    %3308 = vmatpush2.bf16.msra.mxu0 0
    %3309 = vmatprep.mubr.bf16.mxu0 0
    %3310 = vmatmul.mubr.bf16.gmra.mxu0 %v3234
    %v3311 = vpop.f32.mrf.mxu0
    %v3312 = vadd.f32 0.0, %v3311
    %v3313 = vpop.f32.mrf.mxu0
    %v3314 = vadd.f32 0.0, %v3313
    %v3315 = vpop.f32.mrf.mxu0
    %v3316 = vpop.f32.mrf.mxu0
    %3317 = vdwg.mxu0
    %v3322 = vcombine.low %v3271, %v3273
    %v3323 = vcombine.low %v3312, %v3314
    %v3325 = vunpack.c.l.s4 1966171168
    %v3326 = vunpack.c.0.s8 %v3325
    %v3327 = vlaneseq
    %v3328 = vshrl.u32 %v3327, 7
    %v3329 = vsub.s32 %v3326, %v3328
    %v3330 = vrot.slane %v3322, %v3329
    %v3332 = vunpack.c.l.s4 1966171168
    %v3333 = vunpack.c.0.s8 %v3332
    %v3334 = vlaneseq
    %v3335 = vshrl.u32 %v3334, 7
    %v3336 = vsub.s32 %v3333, %v3335
    %v3337 = vrot.slane %v3323, %v3336
    %v3338 = vcombine.low %v3330, %v3337
    %v3339 = vcombine.high %v3330, %v3337
    %v3341 = vunpack.c.l.s4 1966171168
    %v3342 = vunpack.c.0.s8 %v3341
    %v3343 = vlaneseq
    %v3344 = vshrl.u32 %v3343, 7
    %v3345 = vsub.s32 %v3342, %v3344
    %v3346 = vrot.slane %v3338, %v3345
    %v3348 = vunpack.c.l.s4 1966171168
    %v3349 = vunpack.c.0.s8 %v3348
    %v3350 = vlaneseq
    %v3351 = vshrl.u32 %v3350, 7
    %v3352 = vsub.s32 %v3349, %v3351
    %v3353 = vrot.slane %v3339, %v3352
    %v3356 = vadd.f32 %v3223, %v3346
    %v3357 = vadd.f32 %v3225, %v3353
    %v3358 = vxor.u32 %v3220, 2147483648
    %v3359 = vxor.u32 %v3221, 2147483648
    %v3360 = vmul.f32 %v3358, 1.442695
    %v3361 = vpow.pop %v3360
    %v3362 = vmul.f32 %v3359, 1.442695
    %v3363 = vpow.pop %v3362
    %v3364 = vadd.f32 %v3361, 1.0
    %v3365 = vadd.f32 %v3363, 1.0
    %v3366 = vrcp.pop %v3364
    %v3367 = vmul.f32 1.0, %v3366
    %v3368 = vrcp.pop %v3365
    %v3369 = vmul.f32 1.0, %v3368
    %v3372 = vrot.slane %v3220, 3
    %v3373 = vrot.slane %v3221, 3
    %v3376 = vtanh.pop %v3372
    %v3377 = vtanh.pop %v3373
    %v3380 = vrot.slane %v3367, 1
    %v3381 = vrot.slane %v3369, 1
    %v3384 = vmul.f32 %v3380, %v3032
    %v3385 = vmul.f32 %v3381, %v3033
    %v3386 = vmul.f32 %v3367, %v3376
    %v3387 = vmul.f32 %v3369, %v3377
    %v3388 = vadd.f32 %v3384, %v3386
    %v3389 = vadd.f32 %v3385, %v3387
    %v3390 = vtanh.pop %v3388
    %v3391 = vtanh.pop %v3389
    %v3392 = vrot.slane %v3367, 2
    %v3393 = vrot.slane %v3369, 2
    %v3396 = vmul.f32 %v3392, %v3390
    %v3397 = vmul.f32 %v3393, %v3391
    %v3398 = vxor.u32 %v3356, 2147483648
    %v3399 = vxor.u32 %v3357, 2147483648
    %v3400 = vmul.f32 %v3398, 1.442695
    %v3401 = vpow.pop %v3400
    %v3402 = vmul.f32 %v3399, 1.442695
    %v3403 = vpow.pop %v3402
    %v3404 = vadd.f32 %v3401, 1.0
    %v3405 = vadd.f32 %v3403, 1.0
    %v3406 = vrcp.pop %v3404
    %v3407 = vmul.f32 1.0, %v3406
    %v3408 = vrcp.pop %v3405
    %v3409 = vmul.f32 1.0, %v3408
    %v3412 = vrot.slane %v3356, 3
    %v3413 = vrot.slane %v3357, 3
    %v3416 = vtanh.pop %v3412
    %v3417 = vtanh.pop %v3413
    %v3420 = vrot.slane %v3407, 1
    %v3421 = vrot.slane %v3409, 1
    %v3424 = vmul.f32 %v3420, %v3072
    %v3425 = vmul.f32 %v3421, %v3073
    %v3426 = vmul.f32 %v3407, %v3416
    %v3427 = vmul.f32 %v3409, %v3417
    %v3428 = vadd.f32 %v3424, %v3426
    %v3429 = vadd.f32 %v3425, %v3427
    %v3430 = vtanh.pop %v3428
    %v3431 = vtanh.pop %v3429
    %v3432 = vrot.slane %v3407, 2
    %v3433 = vrot.slane %v3409, 2
    %v3436 = vmul.f32 %v3432, %v3430
    %v3437 = vmul.f32 %v3433, %v3431
    %3438 = vst [vmem:[#allocation2 + $0x7] sm:$0x1] %v3396
    %3439 = vst [vmem:[#allocation2 + $0x17] sm:$0x1] %v3397
    %3440 = vst [vmem:[#allocation2 + $0x8] sm:$0x1] %v3436
    %3441 = vst [vmem:[#allocation2 + $0x18] sm:$0x1] %v3437
    %v3444 = vcombine.low %v3396, %v3397
    %v3446 = vunpack.c.l.s4 1966171168
    %v3447 = vunpack.c.0.s8 %v3446
    %v3448 = vlaneseq
    %v3449 = vshrl.u32 %v3448, 7
    %v3450 = vsub.s32 %v3447, %v3449
    %v3451 = vrot.slane %v3444, %v3450
    %v3453 = vunpack.c.l.s4 1966171168
    %v3454 = vunpack.c.0.s8 %v3453
    %v3455 = vlaneseq
    %v3456 = vshrl.u32 %v3455, 7
    %v3457 = vsub.s32 %v3454, %v3456
    %v3458 = vrot.slane %v3451, %v3457
    %v3462 = vcombine.low %v3436, %v3437
    %v3464 = vunpack.c.l.s4 1966171168
    %v3465 = vunpack.c.0.s8 %v3464
    %v3466 = vlaneseq
    %v3467 = vshrl.u32 %v3466, 7
    %v3468 = vsub.s32 %v3465, %v3467
    %v3469 = vrot.slane %v3462, %v3468
    %v3471 = vunpack.c.l.s4 1966171168
    %v3472 = vunpack.c.0.s8 %v3471
    %v3473 = vlaneseq
    %v3474 = vshrl.u32 %v3473, 7
    %v3475 = vsub.s32 %v3472, %v3474
    %v3476 = vrot.slane %v3469, %v3475
    %v3480 = vcombine.low %v3388, %v3389
    %v3482 = vunpack.c.l.s4 1966171168
    %v3483 = vunpack.c.0.s8 %v3482
    %v3484 = vlaneseq
    %v3485 = vshrl.u32 %v3484, 7
    %v3486 = vsub.s32 %v3483, %v3485
    %v3487 = vrot.slane %v3480, %v3486
    %v3489 = vunpack.c.l.s4 1966171168
    %v3490 = vunpack.c.0.s8 %v3489
    %v3491 = vlaneseq
    %v3492 = vshrl.u32 %v3491, 7
    %v3493 = vsub.s32 %v3490, %v3492
    %v3494 = vrot.slane %v3487, %v3493
    %v3497 = vcombine.low %v3428, %v3429
    %v3499 = vunpack.c.l.s4 1966171168
    %v3500 = vunpack.c.0.s8 %v3499
    %v3501 = vlaneseq
    %v3502 = vshrl.u32 %v3501, 7
    %v3503 = vsub.s32 %v3500, %v3502
    %v3504 = vrot.slane %v3497, %v3503
    %v3506 = vunpack.c.l.s4 1966171168
    %v3507 = vunpack.c.0.s8 %v3506
    %v3508 = vlaneseq
    %v3509 = vshrl.u32 %v3508, 7
    %v3510 = vsub.s32 %v3507, %v3509
    %v3511 = vrot.slane %v3504, %v3510
    %v3512 = vld [vmem:[#allocation2] sm:$0xff]
    %v3513 = vld [vmem:[#allocation2 + $0x8] sm:$0xff]
    %v3514 = vld [vmem:[#allocation2 + $0x10] sm:$0xff]
    %v3515 = vld [vmem:[#allocation2 + $0x18] sm:$0xff]
    %v3516 = vld [vmem:[%s1] ss:$8 sm:$0xf]
    %v3517 = vld [vmem:[%s1] ss:$8 sm:$0xf0]
    %v3518 = vor.u32 %v3516, %v3517
    %s3519 = scalar_lea.vmem %s1, 64
    %v3520 = vld [vmem:[%s3519] ss:$8 sm:$0xf]
    %v3521 = vld [vmem:[%s3519] ss:$8 sm:$0xf0]
    %v3522 = vor.u32 %v3520, %v3521
    %v3523 = vpack.c.bf16 %v3458, %v3458
    %v3524 = vpack.c.bf16 %v3476, %v3476
    %v3653 = vunpack.c.l.b16 %v95
    %v3654 = vunpack.c.h.b16 %v95
    %v3655 = vunpack.c.l.b16 %v96
    %v3656 = vunpack.c.h.b16 %v96
    %v3657 = vunpack.c.l.b16 %v97
    %v3658 = vunpack.c.h.b16 %v97
    %v3659 = vunpack.c.l.b16 %v98
    %v3660 = vunpack.c.h.b16 %v98
    %v3661 = vunpack.c.l.b16 %v99
    %v3662 = vunpack.c.h.b16 %v99
    %v3663 = vunpack.c.l.b16 %v100
    %v3664 = vunpack.c.h.b16 %v100
    %v3665 = vunpack.c.l.b16 %v101
    %v3666 = vunpack.c.h.b16 %v101
    %v3667 = vunpack.c.l.b16 %v102
    %v3668 = vunpack.c.h.b16 %v102
    %v3669 = vunpack.c.l.b16 %v103
    %v3670 = vunpack.c.h.b16 %v103
    %v3671 = vunpack.c.l.b16 %v104
    %v3672 = vunpack.c.h.b16 %v104
    %v3673 = vunpack.c.l.b16 %v105
    %v3674 = vunpack.c.h.b16 %v105
    %v3675 = vunpack.c.l.b16 %v106
    %v3676 = vunpack.c.h.b16 %v106
    %v3677 = vunpack.c.l.b16 %v107
    %v3678 = vunpack.c.h.b16 %v107
    %v3679 = vunpack.c.l.b16 %v108
    %v3680 = vunpack.c.h.b16 %v108
    %v3681 = vunpack.c.l.b16 %v109
    %v3682 = vunpack.c.h.b16 %v109
    %v3683 = vunpack.c.l.b16 %v110
    %v3684 = vunpack.c.h.b16 %v110
    %v3685 = vunpack.c.l.b16 %v111
    %v3686 = vunpack.c.h.b16 %v111
    %v3687 = vunpack.c.l.b16 %v112
    %v3688 = vunpack.c.h.b16 %v112
    %v3689 = vunpack.c.l.b16 %v113
    %v3690 = vunpack.c.h.b16 %v113
    %v3691 = vunpack.c.l.b16 %v114
    %v3692 = vunpack.c.h.b16 %v114
    %v3693 = vunpack.c.l.b16 %v115
    %v3694 = vunpack.c.h.b16 %v115
    %v3695 = vunpack.c.l.b16 %v116
    %v3696 = vunpack.c.h.b16 %v116
    %v3697 = vunpack.c.l.b16 %v117
    %v3698 = vunpack.c.h.b16 %v117
    %v3699 = vunpack.c.l.b16 %v118
    %v3700 = vunpack.c.h.b16 %v118
    %v3701 = vunpack.c.l.b16 %v119
    %v3702 = vunpack.c.h.b16 %v119
    %v3703 = vunpack.c.l.b16 %v120
    %v3704 = vunpack.c.h.b16 %v120
    %v3705 = vunpack.c.l.b16 %v121
    %v3706 = vunpack.c.h.b16 %v121
    %v3707 = vunpack.c.l.b16 %v122
    %v3708 = vunpack.c.h.b16 %v122
    %v3709 = vunpack.c.l.b16 %v123
    %v3710 = vunpack.c.h.b16 %v123
    %v3711 = vunpack.c.l.b16 %v124
    %v3712 = vunpack.c.h.b16 %v124
    %v3713 = vunpack.c.l.b16 %v125
    %v3714 = vunpack.c.h.b16 %v125
    %v3715 = vunpack.c.l.b16 %v126
    %v3716 = vunpack.c.h.b16 %v126
    %v3717 = vunpack.c.l.b16 %v127
    %v3718 = vunpack.c.h.b16 %v127
    %v3719 = vunpack.c.l.b16 %v128
    %v3720 = vunpack.c.h.b16 %v128
    %v3721 = vunpack.c.l.b16 %v129
    %v3722 = vunpack.c.h.b16 %v129
    %v3723 = vunpack.c.l.b16 %v130
    %v3724 = vunpack.c.h.b16 %v130
    %v3725 = vunpack.c.l.b16 %v131
    %v3726 = vunpack.c.h.b16 %v131
    %v3727 = vunpack.c.l.b16 %v132
    %v3728 = vunpack.c.h.b16 %v132
    %v3729 = vunpack.c.l.b16 %v133
    %v3730 = vunpack.c.h.b16 %v133
    %v3731 = vunpack.c.l.b16 %v134
    %v3732 = vunpack.c.h.b16 %v134
    %v3733 = vunpack.c.l.b16 %v135
    %v3734 = vunpack.c.h.b16 %v135
    %v3735 = vunpack.c.l.b16 %v136
    %v3736 = vunpack.c.h.b16 %v136
    %v3737 = vunpack.c.l.b16 %v137
    %v3738 = vunpack.c.h.b16 %v137
    %v3739 = vunpack.c.l.b16 %v138
    %v3740 = vunpack.c.h.b16 %v138
    %v3741 = vunpack.c.l.b16 %v139
    %v3742 = vunpack.c.h.b16 %v139
    %v3743 = vunpack.c.l.b16 %v140
    %v3744 = vunpack.c.h.b16 %v140
    %v3745 = vunpack.c.l.b16 %v141
    %v3746 = vunpack.c.h.b16 %v141
    %v3747 = vunpack.c.l.b16 %v142
    %v3748 = vunpack.c.h.b16 %v142
    %v3749 = vunpack.c.l.b16 %v143
    %v3750 = vunpack.c.h.b16 %v143
    %v3751 = vunpack.c.l.b16 %v144
    %v3752 = vunpack.c.h.b16 %v144
    %v3753 = vunpack.c.l.b16 %v145
    %v3754 = vunpack.c.h.b16 %v145
    %v3755 = vunpack.c.l.b16 %v146
    %v3756 = vunpack.c.h.b16 %v146
    %v3757 = vunpack.c.l.b16 %v147
    %v3758 = vunpack.c.h.b16 %v147
    %v3759 = vunpack.c.l.b16 %v148
    %v3760 = vunpack.c.h.b16 %v148
    %v3761 = vunpack.c.l.b16 %v149
    %v3762 = vunpack.c.h.b16 %v149
    %v3763 = vunpack.c.l.b16 %v150
    %v3764 = vunpack.c.h.b16 %v150
    %v3765 = vunpack.c.l.b16 %v151
    %v3766 = vunpack.c.h.b16 %v151
    %v3767 = vunpack.c.l.b16 %v152
    %v3768 = vunpack.c.h.b16 %v152
    %v3769 = vunpack.c.l.b16 %v153
    %v3770 = vunpack.c.h.b16 %v153
    %v3771 = vunpack.c.l.b16 %v154
    %v3772 = vunpack.c.h.b16 %v154
    %v3773 = vunpack.c.l.b16 %v155
    %v3774 = vunpack.c.h.b16 %v155
    %v3775 = vunpack.c.l.b16 %v156
    %v3776 = vunpack.c.h.b16 %v156
    %v3777 = vunpack.c.l.b16 %v157
    %v3778 = vunpack.c.h.b16 %v157
    %v3779 = vunpack.c.l.b16 %v158
    %v3780 = vunpack.c.h.b16 %v158
    %v3781 = vunpack.c.l.b16 %v159
    %v3782 = vunpack.c.h.b16 %v159
    %v3783 = vunpack.c.l.b16 %v160
    %v3784 = vunpack.c.h.b16 %v160
    %v3785 = vunpack.c.l.b16 %v161
    %v3786 = vunpack.c.h.b16 %v161
    %v3787 = vunpack.c.l.b16 %v162
    %v3788 = vunpack.c.h.b16 %v162
    %v3789 = vunpack.c.l.b16 %v163
    %v3790 = vunpack.c.h.b16 %v163
    %v3791 = vunpack.c.l.b16 %v164
    %v3792 = vunpack.c.h.b16 %v164
    %v3793 = vunpack.c.l.b16 %v165
    %v3794 = vunpack.c.h.b16 %v165
    %v3795 = vunpack.c.l.b16 %v166
    %v3796 = vunpack.c.h.b16 %v166
    %v3797 = vunpack.c.l.b16 %v167
    %v3798 = vunpack.c.h.b16 %v167
    %v3799 = vunpack.c.l.b16 %v168
    %v3800 = vunpack.c.h.b16 %v168
    %v3801 = vunpack.c.l.b16 %v169
    %v3802 = vunpack.c.h.b16 %v169
    %v3803 = vunpack.c.l.b16 %v170
    %v3804 = vunpack.c.h.b16 %v170
    %v3805 = vunpack.c.l.b16 %v171
    %v3806 = vunpack.c.h.b16 %v171
    %v3807 = vunpack.c.l.b16 %v172
    %v3808 = vunpack.c.h.b16 %v172
    %v3809 = vunpack.c.l.b16 %v173
    %v3810 = vunpack.c.h.b16 %v173
    %v3811 = vunpack.c.l.b16 %v174
    %v3812 = vunpack.c.h.b16 %v174
    %v3813 = vunpack.c.l.b16 %v175
    %v3814 = vunpack.c.h.b16 %v175
    %v3815 = vunpack.c.l.b16 %v176
    %v3816 = vunpack.c.h.b16 %v176
    %v3817 = vunpack.c.l.b16 %v177
    %v3818 = vunpack.c.h.b16 %v177
    %v3819 = vunpack.c.l.b16 %v178
    %v3820 = vunpack.c.h.b16 %v178
    %v3821 = vunpack.c.l.b16 %v179
    %v3822 = vunpack.c.h.b16 %v179
    %v3823 = vunpack.c.l.b16 %v180
    %v3824 = vunpack.c.h.b16 %v180
    %v3825 = vunpack.c.l.b16 %v181
    %v3826 = vunpack.c.h.b16 %v181
    %v3827 = vunpack.c.l.b16 %v182
    %v3828 = vunpack.c.h.b16 %v182
    %v3829 = vunpack.c.l.b16 %v183
    %v3830 = vunpack.c.h.b16 %v183
    %v3831 = vunpack.c.l.b16 %v184
    %v3832 = vunpack.c.h.b16 %v184
    %v3833 = vunpack.c.l.b16 %v185
    %v3834 = vunpack.c.h.b16 %v185
    %v3835 = vunpack.c.l.b16 %v186
    %v3836 = vunpack.c.h.b16 %v186
    %v3837 = vunpack.c.l.b16 %v187
    %v3838 = vunpack.c.h.b16 %v187
    %v3839 = vunpack.c.l.b16 %v188
    %v3840 = vunpack.c.h.b16 %v188
    %v3841 = vunpack.c.l.b16 %v189
    %v3842 = vunpack.c.h.b16 %v189
    %v3843 = vunpack.c.l.b16 %v190
    %v3844 = vunpack.c.h.b16 %v190
    %v3845 = vunpack.c.l.b16 %v191
    %v3846 = vunpack.c.h.b16 %v191
    %v3847 = vunpack.c.l.b16 %v192
    %v3848 = vunpack.c.h.b16 %v192
    %v3849 = vunpack.c.l.b16 %v193
    %v3850 = vunpack.c.h.b16 %v193
    %v3851 = vunpack.c.l.b16 %v194
    %v3852 = vunpack.c.h.b16 %v194
    %v3853 = vunpack.c.l.b16 %v195
    %v3854 = vunpack.c.h.b16 %v195
    %v3855 = vunpack.c.l.b16 %v196
    %v3856 = vunpack.c.h.b16 %v196
    %v3857 = vunpack.c.l.b16 %v197
    %v3858 = vunpack.c.h.b16 %v197
    %v3859 = vunpack.c.l.b16 %v198
    %v3860 = vunpack.c.h.b16 %v198
    %v3861 = vunpack.c.l.b16 %v199
    %v3862 = vunpack.c.h.b16 %v199
    %v3863 = vunpack.c.l.b16 %v200
    %v3864 = vunpack.c.h.b16 %v200
    %v3865 = vunpack.c.l.b16 %v201
    %v3866 = vunpack.c.h.b16 %v201
    %v3867 = vunpack.c.l.b16 %v202
    %v3868 = vunpack.c.h.b16 %v202
    %v3869 = vunpack.c.l.b16 %v203
    %v3870 = vunpack.c.h.b16 %v203
    %v3871 = vunpack.c.l.b16 %v204
    %v3872 = vunpack.c.h.b16 %v204
    %v3873 = vunpack.c.l.b16 %v205
    %v3874 = vunpack.c.h.b16 %v205
    %v3875 = vunpack.c.l.b16 %v206
    %v3876 = vunpack.c.h.b16 %v206
    %v3877 = vunpack.c.l.b16 %v207
    %v3878 = vunpack.c.h.b16 %v207
    %v3879 = vunpack.c.l.b16 %v208
    %v3880 = vunpack.c.h.b16 %v208
    %v3881 = vunpack.c.l.b16 %v209
    %v3882 = vunpack.c.h.b16 %v209
    %v3883 = vunpack.c.l.b16 %v210
    %v3884 = vunpack.c.h.b16 %v210
    %v3885 = vunpack.c.l.b16 %v211
    %v3886 = vunpack.c.h.b16 %v211
    %v3887 = vunpack.c.l.b16 %v212
    %v3888 = vunpack.c.h.b16 %v212
    %v3889 = vunpack.c.l.b16 %v213
    %v3890 = vunpack.c.h.b16 %v213
    %v3891 = vunpack.c.l.b16 %v214
    %v3892 = vunpack.c.h.b16 %v214
    %v3893 = vunpack.c.l.b16 %v215
    %v3894 = vunpack.c.h.b16 %v215
    %v3895 = vunpack.c.l.b16 %v216
    %v3896 = vunpack.c.h.b16 %v216
    %v3897 = vunpack.c.l.b16 %v217
    %v3898 = vunpack.c.h.b16 %v217
    %v3899 = vunpack.c.l.b16 %v218
    %v3900 = vunpack.c.h.b16 %v218
    %v3901 = vunpack.c.l.b16 %v219
    %v3902 = vunpack.c.h.b16 %v219
    %v3903 = vunpack.c.l.b16 %v220
    %v3904 = vunpack.c.h.b16 %v220
    %v3905 = vunpack.c.l.b16 %v221
    %v3906 = vunpack.c.h.b16 %v221
    %v3907 = vunpack.c.l.b16 %v222
    %v3908 = vunpack.c.h.b16 %v222
    %v3909 = vpack.c.b16 %v3661, %v3653
    %v3910 = vpack.c.b16 %v3662, %v3654
    %v3911 = vpack.c.b16 %v3663, %v3655
    %v3912 = vpack.c.b16 %v3664, %v3656
    %v3913 = vpack.c.b16 %v3665, %v3657
    %v3914 = vpack.c.b16 %v3666, %v3658
    %v3915 = vpack.c.b16 %v3667, %v3659
    %v3916 = vpack.c.b16 %v3668, %v3660
    %v3917 = vpack.c.b16 %v3677, %v3669
    %v3918 = vpack.c.b16 %v3678, %v3670
    %v3919 = vpack.c.b16 %v3679, %v3671
    %v3920 = vpack.c.b16 %v3680, %v3672
    %v3921 = vpack.c.b16 %v3681, %v3673
    %v3922 = vpack.c.b16 %v3682, %v3674
    %v3923 = vpack.c.b16 %v3683, %v3675
    %v3924 = vpack.c.b16 %v3684, %v3676
    %v3925 = vpack.c.b16 %v3693, %v3685
    %v3926 = vpack.c.b16 %v3694, %v3686
    %v3927 = vpack.c.b16 %v3695, %v3687
    %v3928 = vpack.c.b16 %v3696, %v3688
    %v3929 = vpack.c.b16 %v3697, %v3689
    %v3930 = vpack.c.b16 %v3698, %v3690
    %v3931 = vpack.c.b16 %v3699, %v3691
    %v3932 = vpack.c.b16 %v3700, %v3692
    %v3933 = vpack.c.b16 %v3709, %v3701
    %v3934 = vpack.c.b16 %v3710, %v3702
    %v3935 = vpack.c.b16 %v3711, %v3703
    %v3936 = vpack.c.b16 %v3712, %v3704
    %v3937 = vpack.c.b16 %v3713, %v3705
    %v3938 = vpack.c.b16 %v3714, %v3706
    %v3939 = vpack.c.b16 %v3715, %v3707
    %v3940 = vpack.c.b16 %v3716, %v3708
    %v3941 = vpack.c.b16 %v3725, %v3717
    %v3942 = vpack.c.b16 %v3726, %v3718
    %v3943 = vpack.c.b16 %v3727, %v3719
    %v3944 = vpack.c.b16 %v3728, %v3720
    %v3945 = vpack.c.b16 %v3729, %v3721
    %v3946 = vpack.c.b16 %v3730, %v3722
    %v3947 = vpack.c.b16 %v3731, %v3723
    %v3948 = vpack.c.b16 %v3732, %v3724
    %v3949 = vpack.c.b16 %v3741, %v3733
    %v3950 = vpack.c.b16 %v3742, %v3734
    %v3951 = vpack.c.b16 %v3743, %v3735
    %v3952 = vpack.c.b16 %v3744, %v3736
    %v3953 = vpack.c.b16 %v3745, %v3737
    %v3954 = vpack.c.b16 %v3746, %v3738
    %v3955 = vpack.c.b16 %v3747, %v3739
    %v3956 = vpack.c.b16 %v3748, %v3740
    %v3957 = vpack.c.b16 %v3757, %v3749
    %v3958 = vpack.c.b16 %v3758, %v3750
    %v3959 = vpack.c.b16 %v3759, %v3751
    %v3960 = vpack.c.b16 %v3760, %v3752
    %v3961 = vpack.c.b16 %v3761, %v3753
    %v3962 = vpack.c.b16 %v3762, %v3754
    %v3963 = vpack.c.b16 %v3763, %v3755
    %v3964 = vpack.c.b16 %v3764, %v3756
    %v3965 = vpack.c.b16 %v3773, %v3765
    %v3966 = vpack.c.b16 %v3774, %v3766
    %v3967 = vpack.c.b16 %v3775, %v3767
    %v3968 = vpack.c.b16 %v3776, %v3768
    %v3969 = vpack.c.b16 %v3777, %v3769
    %v3970 = vpack.c.b16 %v3778, %v3770
    %v3971 = vpack.c.b16 %v3779, %v3771
    %v3972 = vpack.c.b16 %v3780, %v3772
    %v3973 = vpack.c.b16 %v3789, %v3781
    %v3974 = vpack.c.b16 %v3790, %v3782
    %v3975 = vpack.c.b16 %v3791, %v3783
    %v3976 = vpack.c.b16 %v3792, %v3784
    %v3977 = vpack.c.b16 %v3793, %v3785
    %v3978 = vpack.c.b16 %v3794, %v3786
    %v3979 = vpack.c.b16 %v3795, %v3787
    %v3980 = vpack.c.b16 %v3796, %v3788
    %v3981 = vpack.c.b16 %v3805, %v3797
    %v3982 = vpack.c.b16 %v3806, %v3798
    %v3983 = vpack.c.b16 %v3807, %v3799
    %v3984 = vpack.c.b16 %v3808, %v3800
    %v3985 = vpack.c.b16 %v3809, %v3801
    %v3986 = vpack.c.b16 %v3810, %v3802
    %v3987 = vpack.c.b16 %v3811, %v3803
    %v3988 = vpack.c.b16 %v3812, %v3804
    %v3989 = vpack.c.b16 %v3821, %v3813
    %v3990 = vpack.c.b16 %v3822, %v3814
    %v3991 = vpack.c.b16 %v3823, %v3815
    %v3992 = vpack.c.b16 %v3824, %v3816
    %v3993 = vpack.c.b16 %v3825, %v3817
    %v3994 = vpack.c.b16 %v3826, %v3818
    %v3995 = vpack.c.b16 %v3827, %v3819
    %v3996 = vpack.c.b16 %v3828, %v3820
    %v3997 = vpack.c.b16 %v3837, %v3829
    %v3998 = vpack.c.b16 %v3838, %v3830
    %v3999 = vpack.c.b16 %v3839, %v3831
    %v4000 = vpack.c.b16 %v3840, %v3832
    %v4001 = vpack.c.b16 %v3841, %v3833
    %v4002 = vpack.c.b16 %v3842, %v3834
    %v4003 = vpack.c.b16 %v3843, %v3835
    %v4004 = vpack.c.b16 %v3844, %v3836
    %v4005 = vpack.c.b16 %v3853, %v3845
    %v4006 = vpack.c.b16 %v3854, %v3846
    %v4007 = vpack.c.b16 %v3855, %v3847
    %v4008 = vpack.c.b16 %v3856, %v3848
    %v4009 = vpack.c.b16 %v3857, %v3849
    %v4010 = vpack.c.b16 %v3858, %v3850
    %v4011 = vpack.c.b16 %v3859, %v3851
    %v4012 = vpack.c.b16 %v3860, %v3852
    %v4013 = vpack.c.b16 %v3869, %v3861
    %v4014 = vpack.c.b16 %v3870, %v3862
    %v4015 = vpack.c.b16 %v3871, %v3863
    %v4016 = vpack.c.b16 %v3872, %v3864
    %v4017 = vpack.c.b16 %v3873, %v3865
    %v4018 = vpack.c.b16 %v3874, %v3866
    %v4019 = vpack.c.b16 %v3875, %v3867
    %v4020 = vpack.c.b16 %v3876, %v3868
    %v4021 = vpack.c.b16 %v3885, %v3877
    %v4022 = vpack.c.b16 %v3886, %v3878
    %v4023 = vpack.c.b16 %v3887, %v3879
    %v4024 = vpack.c.b16 %v3888, %v3880
    %v4025 = vpack.c.b16 %v3889, %v3881
    %v4026 = vpack.c.b16 %v3890, %v3882
    %v4027 = vpack.c.b16 %v3891, %v3883
    %v4028 = vpack.c.b16 %v3892, %v3884
    %v4029 = vpack.c.b16 %v3901, %v3893
    %v4030 = vpack.c.b16 %v3902, %v3894
    %v4031 = vpack.c.b16 %v3903, %v3895
    %v4032 = vpack.c.b16 %v3904, %v3896
    %v4033 = vpack.c.b16 %v3905, %v3897
    %v4034 = vpack.c.b16 %v3906, %v3898
    %v4035 = vpack.c.b16 %v3907, %v3899
    %v4036 = vpack.c.b16 %v3908, %v3900
    %4165 = vmatprep.subr.bf16.mxu0 %v3966
    %4166 = vmatpush1.bf16.msra.mxu0 %v3965
    %4167 = vmatprep.subr.bf16.mxu0 %v3958
    %4168 = vmatpush1.bf16.msra.mxu0 %v3957
    %4169 = vmatprep.subr.bf16.mxu0 %v3950
    %4170 = vmatpush1.bf16.msra.mxu0 %v3949
    %4171 = vmatprep.subr.bf16.mxu0 %v3942
    %4172 = vmatpush1.bf16.msra.mxu0 %v3941
    %4173 = vmatprep.subr.bf16.mxu0 %v3934
    %4174 = vmatpush1.bf16.msra.mxu0 %v3933
    %4175 = vmatprep.subr.bf16.mxu0 %v3926
    %4176 = vmatpush1.bf16.msra.mxu0 %v3925
    %4177 = vmatprep.subr.bf16.mxu0 %v3918
    %4178 = vmatpush1.bf16.msra.mxu0 %v3917
    %4179 = vmatprep.subr.bf16.mxu0 %v3910
    %4180 = vmatpush1.bf16.msra.mxu0 %v3909
    %4181 = vmatprep.subr.bf16.mxu0 %v4030
    %4182 = vmatpush2.bf16.msra.mxu0 %v4029
    %4183 = vmatprep.subr.bf16.mxu0 %v4022
    %4184 = vmatpush2.bf16.msra.mxu0 %v4021
    %4185 = vmatprep.subr.bf16.mxu0 %v4014
    %4186 = vmatpush2.bf16.msra.mxu0 %v4013
    %4187 = vmatprep.subr.bf16.mxu0 %v4006
    %4188 = vmatpush2.bf16.msra.mxu0 %v4005
    %4189 = vmatprep.subr.bf16.mxu0 %v3998
    %4190 = vmatpush2.bf16.msra.mxu0 %v3997
    %4191 = vmatprep.subr.bf16.mxu0 %v3990
    %4192 = vmatpush2.bf16.msra.mxu0 %v3989
    %4193 = vmatprep.subr.bf16.mxu0 %v3982
    %4194 = vmatpush2.bf16.msra.mxu0 %v3981
    %4195 = vmatprep.subr.bf16.mxu0 %v3974
    %4196 = vmatpush2.bf16.msra.mxu0 %v3973
    %4197 = vmatprep.mubr.bf16.mxu0 %v3524
    %4198 = vmatmul.mubr.bf16.gmra.mxu0 %v3523
    %v4199 = vpop.f32.mrf.mxu0
    %v4200 = vadd.f32 0.0, %v4199
    %v4201 = vpop.f32.mrf.mxu0
    %v4202 = vadd.f32 0.0, %v4201
    %v4203 = vpop.f32.mrf.mxu0
    %v4204 = vpop.f32.mrf.mxu0
    %4205 = vdwg.mxu0
    %4206 = vmatprep.subr.bf16.mxu0 %v3968
    %4207 = vmatpush1.bf16.msra.mxu0 %v3967
    %4208 = vmatprep.subr.bf16.mxu0 %v3960
    %4209 = vmatpush1.bf16.msra.mxu0 %v3959
    %4210 = vmatprep.subr.bf16.mxu0 %v3952
    %4211 = vmatpush1.bf16.msra.mxu0 %v3951
    %4212 = vmatprep.subr.bf16.mxu0 %v3944
    %4213 = vmatpush1.bf16.msra.mxu0 %v3943
    %4214 = vmatprep.subr.bf16.mxu0 %v3936
    %4215 = vmatpush1.bf16.msra.mxu0 %v3935
    %4216 = vmatprep.subr.bf16.mxu0 %v3928
    %4217 = vmatpush1.bf16.msra.mxu0 %v3927
    %4218 = vmatprep.subr.bf16.mxu0 %v3920
    %4219 = vmatpush1.bf16.msra.mxu0 %v3919
    %4220 = vmatprep.subr.bf16.mxu0 %v3912
    %4221 = vmatpush1.bf16.msra.mxu0 %v3911
    %4222 = vmatprep.subr.bf16.mxu0 %v4032
    %4223 = vmatpush2.bf16.msra.mxu0 %v4031
    %4224 = vmatprep.subr.bf16.mxu0 %v4024
    %4225 = vmatpush2.bf16.msra.mxu0 %v4023
    %4226 = vmatprep.subr.bf16.mxu0 %v4016
    %4227 = vmatpush2.bf16.msra.mxu0 %v4015
    %4228 = vmatprep.subr.bf16.mxu0 %v4008
    %4229 = vmatpush2.bf16.msra.mxu0 %v4007
    %4230 = vmatprep.subr.bf16.mxu0 %v4000
    %4231 = vmatpush2.bf16.msra.mxu0 %v3999
    %4232 = vmatprep.subr.bf16.mxu0 %v3992
    %4233 = vmatpush2.bf16.msra.mxu0 %v3991
    %4234 = vmatprep.subr.bf16.mxu0 %v3984
    %4235 = vmatpush2.bf16.msra.mxu0 %v3983
    %4236 = vmatprep.subr.bf16.mxu0 %v3976
    %4237 = vmatpush2.bf16.msra.mxu0 %v3975
    %4238 = vmatprep.mubr.bf16.mxu0 %v3524
    %4239 = vmatmul.mubr.bf16.gmra.mxu0 %v3523
    %v4240 = vpop.f32.mrf.mxu0
    %v4241 = vadd.f32 0.0, %v4240
    %v4242 = vpop.f32.mrf.mxu0
    %v4243 = vadd.f32 0.0, %v4242
    %v4244 = vpop.f32.mrf.mxu0
    %v4245 = vpop.f32.mrf.mxu0
    %4246 = vdwg.mxu0
    %4247 = vmatprep.subr.bf16.mxu0 %v3970
    %4248 = vmatpush1.bf16.msra.mxu0 %v3969
    %4249 = vmatprep.subr.bf16.mxu0 %v3962
    %4250 = vmatpush1.bf16.msra.mxu0 %v3961
    %4251 = vmatprep.subr.bf16.mxu0 %v3954
    %4252 = vmatpush1.bf16.msra.mxu0 %v3953
    %4253 = vmatprep.subr.bf16.mxu0 %v3946
    %4254 = vmatpush1.bf16.msra.mxu0 %v3945
    %4255 = vmatprep.subr.bf16.mxu0 %v3938
    %4256 = vmatpush1.bf16.msra.mxu0 %v3937
    %4257 = vmatprep.subr.bf16.mxu0 %v3930
    %4258 = vmatpush1.bf16.msra.mxu0 %v3929
    %4259 = vmatprep.subr.bf16.mxu0 %v3922
    %4260 = vmatpush1.bf16.msra.mxu0 %v3921
    %4261 = vmatprep.subr.bf16.mxu0 %v3914
    %4262 = vmatpush1.bf16.msra.mxu0 %v3913
    %4263 = vmatprep.subr.bf16.mxu0 %v4034
    %4264 = vmatpush2.bf16.msra.mxu0 %v4033
    %4265 = vmatprep.subr.bf16.mxu0 %v4026
    %4266 = vmatpush2.bf16.msra.mxu0 %v4025
    %4267 = vmatprep.subr.bf16.mxu0 %v4018
    %4268 = vmatpush2.bf16.msra.mxu0 %v4017
    %4269 = vmatprep.subr.bf16.mxu0 %v4010
    %4270 = vmatpush2.bf16.msra.mxu0 %v4009
    %4271 = vmatprep.subr.bf16.mxu0 %v4002
    %4272 = vmatpush2.bf16.msra.mxu0 %v4001
    %4273 = vmatprep.subr.bf16.mxu0 %v3994
    %4274 = vmatpush2.bf16.msra.mxu0 %v3993
    %4275 = vmatprep.subr.bf16.mxu0 %v3986
    %4276 = vmatpush2.bf16.msra.mxu0 %v3985
    %4277 = vmatprep.subr.bf16.mxu0 %v3978
    %4278 = vmatpush2.bf16.msra.mxu0 %v3977
    %4279 = vmatprep.mubr.bf16.mxu0 %v3524
    %4280 = vmatmul.mubr.bf16.gmra.mxu0 %v3523
    %v4281 = vpop.f32.mrf.mxu0
    %v4282 = vadd.f32 0.0, %v4281
    %v4283 = vpop.f32.mrf.mxu0
    %v4284 = vadd.f32 0.0, %v4283
    %v4285 = vpop.f32.mrf.mxu0
    %v4286 = vpop.f32.mrf.mxu0
    %4287 = vdwg.mxu0
    %4288 = vmatprep.subr.bf16.mxu0 %v3972
    %4289 = vmatpush1.bf16.msra.mxu0 %v3971
    %4290 = vmatprep.subr.bf16.mxu0 %v3964
    %4291 = vmatpush1.bf16.msra.mxu0 %v3963
    %4292 = vmatprep.subr.bf16.mxu0 %v3956
    %4293 = vmatpush1.bf16.msra.mxu0 %v3955
    %4294 = vmatprep.subr.bf16.mxu0 %v3948
    %4295 = vmatpush1.bf16.msra.mxu0 %v3947
    %4296 = vmatprep.subr.bf16.mxu0 %v3940
    %4297 = vmatpush1.bf16.msra.mxu0 %v3939
    %4298 = vmatprep.subr.bf16.mxu0 %v3932
    %4299 = vmatpush1.bf16.msra.mxu0 %v3931
    %4300 = vmatprep.subr.bf16.mxu0 %v3924
    %4301 = vmatpush1.bf16.msra.mxu0 %v3923
    %4302 = vmatprep.subr.bf16.mxu0 %v3916
    %4303 = vmatpush1.bf16.msra.mxu0 %v3915
    %4304 = vmatprep.subr.bf16.mxu0 %v4036
    %4305 = vmatpush2.bf16.msra.mxu0 %v4035
    %4306 = vmatprep.subr.bf16.mxu0 %v4028
    %4307 = vmatpush2.bf16.msra.mxu0 %v4027
    %4308 = vmatprep.subr.bf16.mxu0 %v4020
    %4309 = vmatpush2.bf16.msra.mxu0 %v4019
    %4310 = vmatprep.subr.bf16.mxu0 %v4012
    %4311 = vmatpush2.bf16.msra.mxu0 %v4011
    %4312 = vmatprep.subr.bf16.mxu0 %v4004
    %4313 = vmatpush2.bf16.msra.mxu0 %v4003
    %4314 = vmatprep.subr.bf16.mxu0 %v3996
    %4315 = vmatpush2.bf16.msra.mxu0 %v3995
    %4316 = vmatprep.subr.bf16.mxu0 %v3988
    %4317 = vmatpush2.bf16.msra.mxu0 %v3987
    %4318 = vmatprep.subr.bf16.mxu0 %v3980
    %4319 = vmatpush2.bf16.msra.mxu0 %v3979
    %4320 = vmatprep.mubr.bf16.mxu0 %v3524
    %4321 = vmatmul.mubr.bf16.gmra.mxu0 %v3523
    %v4322 = vpop.f32.mrf.mxu0
    %v4323 = vadd.f32 0.0, %v4322
    %v4324 = vpop.f32.mrf.mxu0
    %v4325 = vadd.f32 0.0, %v4324
    %v4326 = vpop.f32.mrf.mxu0
    %v4327 = vpop.f32.mrf.mxu0
    %4328 = vdwg.mxu0
    %v4337 = vcombine.low %v4200, %v4202
    %v4338 = vcombine.low %v4241, %v4243
    %v4339 = vcombine.low %v4282, %v4284
    %v4340 = vcombine.low %v4323, %v4325
    %v4342 = vunpack.c.l.s4 1966171168
    %v4343 = vunpack.c.0.s8 %v4342
    %v4344 = vlaneseq
    %v4345 = vshrl.u32 %v4344, 7
    %v4346 = vsub.s32 %v4343, %v4345
    %v4347 = vrot.slane %v4337, %v4346
    %v4349 = vunpack.c.l.s4 1966171168
    %v4350 = vunpack.c.0.s8 %v4349
    %v4351 = vlaneseq
    %v4352 = vshrl.u32 %v4351, 7
    %v4353 = vsub.s32 %v4350, %v4352
    %v4354 = vrot.slane %v4338, %v4353
    %v4356 = vunpack.c.l.s4 1966171168
    %v4357 = vunpack.c.0.s8 %v4356
    %v4358 = vlaneseq
    %v4359 = vshrl.u32 %v4358, 7
    %v4360 = vsub.s32 %v4357, %v4359
    %v4361 = vrot.slane %v4339, %v4360
    %v4363 = vunpack.c.l.s4 1966171168
    %v4364 = vunpack.c.0.s8 %v4363
    %v4365 = vlaneseq
    %v4366 = vshrl.u32 %v4365, 7
    %v4367 = vsub.s32 %v4364, %v4366
    %v4368 = vrot.slane %v4340, %v4367
    %v4369 = vcombine.low %v4347, %v4354
    %v4370 = vcombine.high %v4347, %v4354
    %v4371 = vcombine.low %v4361, %v4368
    %v4372 = vcombine.high %v4361, %v4368
    %v4374 = vunpack.c.l.s4 1966171168
    %v4375 = vunpack.c.0.s8 %v4374
    %v4376 = vlaneseq
    %v4377 = vshrl.u32 %v4376, 7
    %v4378 = vsub.s32 %v4375, %v4377
    %v4379 = vrot.slane %v4369, %v4378
    %v4381 = vunpack.c.l.s4 1966171168
    %v4382 = vunpack.c.0.s8 %v4381
    %v4383 = vlaneseq
    %v4384 = vshrl.u32 %v4383, 7
    %v4385 = vsub.s32 %v4382, %v4384
    %v4386 = vrot.slane %v4370, %v4385
    %v4388 = vunpack.c.l.s4 1966171168
    %v4389 = vunpack.c.0.s8 %v4388
    %v4390 = vlaneseq
    %v4391 = vshrl.u32 %v4390, 7
    %v4392 = vsub.s32 %v4389, %v4391
    %v4393 = vrot.slane %v4371, %v4392
    %v4395 = vunpack.c.l.s4 1966171168
    %v4396 = vunpack.c.0.s8 %v4395
    %v4397 = vlaneseq
    %v4398 = vshrl.u32 %v4397, 7
    %v4399 = vsub.s32 %v4396, %v4398
    %v4400 = vrot.slane %v4372, %v4399
    %v4401 = vcombine.low %v4379, %v4393
    %v4402 = vcombine.low %v4386, %v4400
    %v4405 = vadd.f32 %v3518, %v4401
    %v4406 = vadd.f32 %v3522, %v4402
    %v4407 = vxor.u32 %v4405, 2147483648
    %v4408 = vxor.u32 %v4406, 2147483648
    %v4409 = vmul.f32 %v4407, 1.442695
    %v4410 = vpow.pop %v4409
    %v4411 = vmul.f32 %v4408, 1.442695
    %v4412 = vpow.pop %v4411
    %v4413 = vadd.f32 %v4410, 1.0
    %v4414 = vadd.f32 %v4412, 1.0
    %v4415 = vrcp.pop %v4413
    %v4416 = vmul.f32 1.0, %v4415
    %v4417 = vrcp.pop %v4414
    %v4418 = vmul.f32 1.0, %v4417
    %v4421 = vrot.slane %v4405, 6
    %v4422 = vrot.slane %v4406, 6
    %v4425 = vtanh.pop %v4421
    %v4426 = vtanh.pop %v4422
    %v4429 = vrot.slane %v4416, 2
    %v4430 = vrot.slane %v4418, 2
    %v4433 = vcombine.low %v3494, %v3511
    %v4435 = vunpack.c.l.s4 1966171168
    %v4436 = vunpack.c.0.s8 %v4435
    %v4437 = vlaneseq
    %v4438 = vshrl.u32 %v4437, 7
    %v4439 = vsub.s32 %v4436, %v4438
    %v4440 = vrot.slane %v4433, %v4439
    %v4441 = vcombine.high %v4440, %v4440
    %v4443 = vunpack.c.l.s4 1966171168
    %v4444 = vunpack.c.0.s8 %v4443
    %v4445 = vlaneseq
    %v4446 = vshrl.u32 %v4445, 7
    %v4447 = vsub.s32 %v4444, %v4446
    %v4448 = vrot.slane %v4440, %v4447
    %v4450 = vunpack.c.l.s4 1966171168
    %v4451 = vunpack.c.0.s8 %v4450
    %v4452 = vlaneseq
    %v4453 = vshrl.u32 %v4452, 7
    %v4454 = vsub.s32 %v4451, %v4453
    %v4455 = vrot.slane %v4441, %v4454
    %v4458 = vmul.f32 %v4429, %v4448
    %v4459 = vmul.f32 %v4430, %v4455
    %v4460 = vmul.f32 %v4416, %v4425
    %v4461 = vmul.f32 %v4418, %v4426
    %v4462 = vadd.f32 %v4458, %v4460
    %v4463 = vadd.f32 %v4459, %v4461
    %v4464 = vtanh.pop %v4462
    %v4465 = vtanh.pop %v4463
    %v4466 = vrot.slane %v4416, 4
    %v4467 = vrot.slane %v4418, 4
    %v4470 = vmul.f32 %v4466, %v4464
    %v4471 = vmul.f32 %v4467, %v4465
    %v4474 = vlaneseq
    %v4475 = vshrl.u32 %v4474, 7
    %v4476 = vsub.s32 0, %v4475
    %v4477 = vrot.slane %v4470, %v4476
    %v4478 = vlaneseq
    %v4479 = vshrl.u32 %v4478, 7
    %v4480 = vsub.s32 1, %v4479
    %v4481 = vrot.slane %v4470, %v4480
    %v4482 = vlaneseq
    %v4483 = vshrl.u32 %v4482, 7
    %v4484 = vsub.s32 0, %v4483
    %v4485 = vrot.slane %v4471, %v4484
    %v4486 = vlaneseq
    %v4487 = vshrl.u32 %v4486, 7
    %v4488 = vsub.s32 1, %v4487
    %v4489 = vrot.slane %v4471, %v4488
    %v4494 = vmul.f32 %v4477, %v3512
    %v4495 = vmul.f32 %v4481, %v3513
    %v4496 = vmul.f32 %v4485, %v3514
    %v4497 = vmul.f32 %v4489, %v3515
    %v4498 = vadd.f32 %v4494, %v4495
    %4499 = vadd.xlane.f32.xlu0 %v4498
    %v4500 = vpop.xlane.xlu0 %4499
    %v4501 = vadd.f32 %v4496, %v4497
    %4502 = vadd.xlane.f32.xlu0 %v4501
    %v4503 = vpop.xlane.xlu0 %4502
    %v4506 = vlaneseq
    %v4507 = vand.u32 %v4506, 127
    %v4508 = vlaneseq
    %v4509 = vshrl.u32 %v4508, 7
    %v4510 = vsub.s32 %v4507, %v4509
    %v4511 = vrot.slane %v4500, %v4510
    %v4512 = vlaneseq
    %v4513 = vshrl.u32 %v4512, 7
    %v4514 = vsub.s32 %v4507, %v4513
    %v4515 = vrot.slane %v4503, %v4514
    %v4516 = vsel %vm960, %v4515, %v4511
    %vm4518 = vcmask 58368
    %v4519 = vsel %vm4518, %v4516, -inf
    %4520 = vmax.xlane.f32.xlu0 %v4519
    %v4521 = vpop.xlane.xlu0 %4520
    %v4523 = vlaneseq
    %v4524 = vshrl.u32 %v4523, 7
    %v4525 = vsub.s32 0, %v4524
    %v4526 = vrot.slane %v4521, %v4525
    %v4527 = vlaneseq
    %v4528 = vshrl.u32 %v4527, 7
    %v4529 = vsub.s32 1, %v4528
    %v4530 = vrot.slane %v4521, %v4529
    %v4533 = vsub.f32 %v4500, %v4526
    %v4534 = vsub.f32 %v4503, %v4530
    %v4535 = vmul.f32 %v4533, 1.442695
    %v4536 = vpow.pop %v4535
    %v4537 = vmul.f32 %v4534, 1.442695
    %v4538 = vpow.pop %v4537
    %4541 = vset.pattern.permute.xlu0 0
    %4542 = vperm.xlu0 %4541, %v4536
    %v4543 = vpop.permute.xlu0 %4542
    %4544 = vset.pattern.permute.xlu0 0
    %4545 = vperm.xlu0 %4544, %v4538
    %v4546 = vpop.permute.xlu0 %4545
    %v4547 = vlaneseq
    %v4548 = vshrl.u32 %v4547, 7
    %v4549 = vsub.s32 %v4507, %v4548
    %v4550 = vrot.slane %v4543, %v4549
    %v4551 = vlaneseq
    %v4552 = vshrl.u32 %v4551, 7
    %v4553 = vsub.s32 %v4507, %v4552
    %v4554 = vrot.slane %v4546, %v4553
    %v4555 = vsel %vm960, %v4554, %v4550
    %v4557 = vsel %vm4518, %v4555, 0.0
    %4558 = vadd.xlane.f32.xlu0 %v4557
    %v4559 = vpop.xlane.xlu0 %4558
    %v4560 = vrcp.pop %v4559
    %v4562 = vlaneseq
    %v4563 = vshrl.u32 %v4562, 7
    %v4564 = vsub.s32 0, %v4563
    %v4565 = vrot.slane %v4560, %v4564
    %v4566 = vlaneseq
    %v4567 = vshrl.u32 %v4566, 7
    %v4568 = vsub.s32 1, %v4567
    %v4569 = vrot.slane %v4560, %v4568
    %v4572 = vmul.f32 %v4536, %v4565
    %v4573 = vmul.f32 %v4538, %v4569
    %4575 = vset.pattern.permute.xlu0 0
    %4576 = vperm.xlu0 %4575, %v4572
    %v4577 = vpop.permute.xlu0 %4576
    %4580 = vset.pattern.permute.xlu0 0
    %4581 = vperm.xlu0 %4580, %v4573
    %v4582 = vpop.permute.xlu0 %4581
    %v4584 = vmul.f32 %v4577, %v3512
    %v4585 = vmul.f32 %v4577, %v3513
    %v4586 = vmul.f32 %v4582, %v3514
    %v4587 = vmul.f32 %v4582, %v3515
    %v4588 = vrot.slane %v4584, 4
    %v4589 = vadd.f32 %v4584, %v4588
    %v4590 = vrot.slane %v4589, 2
    %v4591 = vadd.f32 %v4589, %v4590
    %v4592 = vrot.slane %v4591, 1
    %v4593 = vadd.f32 %v4591, %v4592
    %v4594 = vrot.slane %v4585, 4
    %v4595 = vadd.f32 %v4585, %v4594
    %v4596 = vrot.slane %v4595, 2
    %v4597 = vadd.f32 %v4595, %v4596
    %v4598 = vrot.slane %v4597, 1
    %v4599 = vadd.f32 %v4597, %v4598
    %v4600 = vrot.slane %v4586, 4
    %v4601 = vadd.f32 %v4586, %v4600
    %v4602 = vrot.slane %v4601, 2
    %v4603 = vadd.f32 %v4601, %v4602
    %v4604 = vrot.slane %v4603, 1
    %v4605 = vadd.f32 %v4603, %v4604
    %v4606 = vrot.slane %v4587, 4
    %v4607 = vadd.f32 %v4587, %v4606
    %v4608 = vrot.slane %v4607, 2
    %v4609 = vadd.f32 %v4607, %v4608
    %v4610 = vrot.slane %v4609, 1
    %v4611 = vadd.f32 %v4609, %v4610
    %v4612 = vpack.c.bf16 %v4477, %v4477
    %v4613 = vpack.c.bf16 %v4481, %v4481
    %v4614 = vpack.c.bf16 %v4485, %v4485
    %v4615 = vpack.c.bf16 %v4489, %v4489
    %v4616 = vpack.c.bf16 %v4593, %v4593
    %v4617 = vpack.c.bf16 %v4599, %v4599
    %v4618 = vpack.c.bf16 %v4605, %v4605
    %v4619 = vpack.c.bf16 %v4611, %v4611
    %v4624 = vunpack.c.l.b16 %v4616
    %v4625 = vunpack.c.l.b16 %v4617
    %v4626 = vunpack.c.l.b16 %v4618
    %v4627 = vunpack.c.l.b16 %v4619
    %v4628 = vsel %vm960, %v4626, %v4624
    %v4629 = vsel %vm960, %v4627, %v4625
    %v4630 = vpack.c.b16 %v4628, %v4628
    %v4631 = vpack.c.b16 %v4629, %v4629
    %v4666 = vunpack.c.l.b16 %v255
    %v4667 = vunpack.c.l.b16 %v256
    %v4668 = vunpack.c.l.b16 %v257
    %v4669 = vunpack.c.l.b16 %v258
    %v4670 = vunpack.c.l.b16 %v259
    %v4671 = vunpack.c.l.b16 %v260
    %v4672 = vunpack.c.l.b16 %v261
    %v4673 = vunpack.c.l.b16 %v262
    %v4674 = vunpack.c.l.b16 %v263
    %v4675 = vunpack.c.l.b16 %v264
    %v4676 = vunpack.c.l.b16 %v265
    %v4677 = vunpack.c.l.b16 %v266
    %v4678 = vunpack.c.l.b16 %v267
    %v4679 = vunpack.c.l.b16 %v268
    %v4680 = vunpack.c.l.b16 %v269
    %v4681 = vunpack.c.l.b16 %v270
    %v4682 = vunpack.c.l.b16 %v271
    %v4683 = vunpack.c.l.b16 %v272
    %v4684 = vunpack.c.l.b16 %v273
    %v4685 = vunpack.c.l.b16 %v274
    %v4686 = vunpack.c.l.b16 %v275
    %v4687 = vunpack.c.l.b16 %v276
    %v4688 = vunpack.c.l.b16 %v277
    %v4689 = vunpack.c.l.b16 %v278
    %v4690 = vunpack.c.l.b16 %v279
    %v4691 = vunpack.c.l.b16 %v280
    %v4692 = vunpack.c.l.b16 %v281
    %v4693 = vunpack.c.l.b16 %v282
    %v4694 = vunpack.c.l.b16 %v283
    %v4695 = vunpack.c.l.b16 %v284
    %v4696 = vunpack.c.l.b16 %v285
    %v4697 = vunpack.c.l.b16 %v286
    %v4698 = vpack.c.b16 %v4667, %v4666
    %v4699 = vpack.c.b16 %v4669, %v4668
    %v4700 = vpack.c.b16 %v4671, %v4670
    %v4701 = vpack.c.b16 %v4673, %v4672
    %v4702 = vpack.c.b16 %v4675, %v4674
    %v4703 = vpack.c.b16 %v4677, %v4676
    %v4704 = vpack.c.b16 %v4679, %v4678
    %v4705 = vpack.c.b16 %v4681, %v4680
    %v4706 = vpack.c.b16 %v4683, %v4682
    %v4707 = vpack.c.b16 %v4685, %v4684
    %v4708 = vpack.c.b16 %v4687, %v4686
    %v4709 = vpack.c.b16 %v4689, %v4688
    %v4710 = vpack.c.b16 %v4691, %v4690
    %v4711 = vpack.c.b16 %v4693, %v4692
    %v4712 = vpack.c.b16 %v4695, %v4694
    %v4713 = vpack.c.b16 %v4697, %v4696
    %4730 = vmatprep.subr.bf16.mxu0 0
    %4731 = vmatpush1.bf16.msra.mxu0 %v4705
    %4732 = vmatprep.subr.bf16.mxu0 0
    %4733 = vmatpush1.bf16.msra.mxu0 %v4704
    %4734 = vmatprep.subr.bf16.mxu0 0
    %4735 = vmatpush1.bf16.msra.mxu0 %v4703
    %4736 = vmatprep.subr.bf16.mxu0 0
    %4737 = vmatpush1.bf16.msra.mxu0 %v4702
    %4738 = vmatprep.subr.bf16.mxu0 0
    %4739 = vmatpush1.bf16.msra.mxu0 %v4701
    %4740 = vmatprep.subr.bf16.mxu0 0
    %4741 = vmatpush1.bf16.msra.mxu0 %v4700
    %4742 = vmatprep.subr.bf16.mxu0 0
    %4743 = vmatpush1.bf16.msra.mxu0 %v4699
    %4744 = vmatprep.subr.bf16.mxu0 0
    %4745 = vmatpush1.bf16.msra.mxu0 %v4698
    %4746 = vmatprep.subr.bf16.mxu0 0
    %4747 = vmatpush2.bf16.msra.mxu0 %v4713
    %4748 = vmatprep.subr.bf16.mxu0 0
    %4749 = vmatpush2.bf16.msra.mxu0 %v4712
    %4750 = vmatprep.subr.bf16.mxu0 0
    %4751 = vmatpush2.bf16.msra.mxu0 %v4711
    %4752 = vmatprep.subr.bf16.mxu0 0
    %4753 = vmatpush2.bf16.msra.mxu0 %v4710
    %4754 = vmatprep.subr.bf16.mxu0 0
    %4755 = vmatpush2.bf16.msra.mxu0 %v4709
    %4756 = vmatprep.subr.bf16.mxu0 0
    %4757 = vmatpush2.bf16.msra.mxu0 %v4708
    %4758 = vmatprep.subr.bf16.mxu0 0
    %4759 = vmatpush2.bf16.msra.mxu0 %v4707
    %4760 = vmatprep.subr.bf16.mxu0 0
    %4761 = vmatpush2.bf16.msra.mxu0 %v4706
    %4762 = vmatprep.mubr.bf16.mxu0 %v4631
    %4763 = vmatmul.mubr.bf16.gmra.mxu0 %v4630
    %v4764 = vpop.f32.mrf.mxu0
    %v4765 = vadd.f32 0.0, %v4764
    %v4766 = vpop.f32.mrf.mxu0
    %v4767 = vpop.f32.mrf.mxu0
    %v4768 = vpop.f32.mrf.mxu0
    %4769 = vdwg.mxu0
    %v4774 = vunpack.c.l.b16 %v4612
    %v4775 = vunpack.c.l.b16 %v4613
    %v4776 = vunpack.c.l.b16 %v4614
    %v4777 = vunpack.c.l.b16 %v4615
    %v4778 = vrot.slane %v4776, 7
    %v4779 = vsel %vm960, %v4778, %v4774
    %v4780 = vrot.slane %v4777, 7
    %v4781 = vsel %vm960, %v4780, %v4775
    %v4782 = vpack.c.b16 %v4779, %v4779
    %v4783 = vpack.c.b16 %v4781, %v4781
    %v4818 = vunpack.c.l.b16 %v223
    %v4819 = vunpack.c.l.b16 %v224
    %v4820 = vunpack.c.l.b16 %v225
    %v4821 = vunpack.c.l.b16 %v226
    %v4822 = vunpack.c.l.b16 %v227
    %v4823 = vunpack.c.l.b16 %v228
    %v4824 = vunpack.c.l.b16 %v229
    %v4825 = vunpack.c.l.b16 %v230
    %v4826 = vunpack.c.l.b16 %v231
    %v4827 = vunpack.c.l.b16 %v232
    %v4828 = vunpack.c.l.b16 %v233
    %v4829 = vunpack.c.l.b16 %v234
    %v4830 = vunpack.c.l.b16 %v235
    %v4831 = vunpack.c.l.b16 %v236
    %v4832 = vunpack.c.l.b16 %v237
    %v4833 = vunpack.c.l.b16 %v238
    %v4834 = vunpack.c.l.b16 %v239
    %v4835 = vunpack.c.l.b16 %v240
    %v4836 = vunpack.c.l.b16 %v241
    %v4837 = vunpack.c.l.b16 %v242
    %v4838 = vunpack.c.l.b16 %v243
    %v4839 = vunpack.c.l.b16 %v244
    %v4840 = vunpack.c.l.b16 %v245
    %v4841 = vunpack.c.l.b16 %v246
    %v4842 = vunpack.c.l.b16 %v247
    %v4843 = vunpack.c.l.b16 %v248
    %v4844 = vunpack.c.l.b16 %v249
    %v4845 = vunpack.c.l.b16 %v250
    %v4846 = vunpack.c.l.b16 %v251
    %v4847 = vunpack.c.l.b16 %v252
    %v4848 = vunpack.c.l.b16 %v253
    %v4849 = vunpack.c.l.b16 %v254
    %v4850 = vpack.c.b16 %v4819, %v4818
    %v4851 = vpack.c.b16 %v4821, %v4820
    %v4852 = vpack.c.b16 %v4823, %v4822
    %v4853 = vpack.c.b16 %v4825, %v4824
    %v4854 = vpack.c.b16 %v4827, %v4826
    %v4855 = vpack.c.b16 %v4829, %v4828
    %v4856 = vpack.c.b16 %v4831, %v4830
    %v4857 = vpack.c.b16 %v4833, %v4832
    %v4858 = vpack.c.b16 %v4835, %v4834
    %v4859 = vpack.c.b16 %v4837, %v4836
    %v4860 = vpack.c.b16 %v4839, %v4838
    %v4861 = vpack.c.b16 %v4841, %v4840
    %v4862 = vpack.c.b16 %v4843, %v4842
    %v4863 = vpack.c.b16 %v4845, %v4844
    %v4864 = vpack.c.b16 %v4847, %v4846
    %v4865 = vpack.c.b16 %v4849, %v4848
    %4882 = vmatprep.subr.bf16.mxu0 0
    %4883 = vmatpush1.bf16.msra.mxu0 %v4857
    %4884 = vmatprep.subr.bf16.mxu0 0
    %4885 = vmatpush1.bf16.msra.mxu0 %v4856
    %4886 = vmatprep.subr.bf16.mxu0 0
    %4887 = vmatpush1.bf16.msra.mxu0 %v4855
    %4888 = vmatprep.subr.bf16.mxu0 0
    %4889 = vmatpush1.bf16.msra.mxu0 %v4854
    %4890 = vmatprep.subr.bf16.mxu0 0
    %4891 = vmatpush1.bf16.msra.mxu0 %v4853
    %4892 = vmatprep.subr.bf16.mxu0 0
    %4893 = vmatpush1.bf16.msra.mxu0 %v4852
    %4894 = vmatprep.subr.bf16.mxu0 0
    %4895 = vmatpush1.bf16.msra.mxu0 %v4851
    %4896 = vmatprep.subr.bf16.mxu0 0
    %4897 = vmatpush1.bf16.msra.mxu0 %v4850
    %4898 = vmatprep.subr.bf16.mxu0 0
    %4899 = vmatpush2.bf16.msra.mxu0 %v4865
    %4900 = vmatprep.subr.bf16.mxu0 0
    %4901 = vmatpush2.bf16.msra.mxu0 %v4864
    %4902 = vmatprep.subr.bf16.mxu0 0
    %4903 = vmatpush2.bf16.msra.mxu0 %v4863
    %4904 = vmatprep.subr.bf16.mxu0 0
    %4905 = vmatpush2.bf16.msra.mxu0 %v4862
    %4906 = vmatprep.subr.bf16.mxu0 0
    %4907 = vmatpush2.bf16.msra.mxu0 %v4861
    %4908 = vmatprep.subr.bf16.mxu0 0
    %4909 = vmatpush2.bf16.msra.mxu0 %v4860
    %4910 = vmatprep.subr.bf16.mxu0 0
    %4911 = vmatpush2.bf16.msra.mxu0 %v4859
    %4912 = vmatprep.subr.bf16.mxu0 0
    %4913 = vmatpush2.bf16.msra.mxu0 %v4858
    %4914 = vmatprep.mubr.bf16.mxu0 %v4783
    %4915 = vmatmul.mubr.bf16.gmra.mxu0 %v4782
    %v4916 = vpop.f32.mrf.mxu0
    %v4917 = vadd.f32 %v4765, %v4916
    %v4918 = vpop.f32.mrf.mxu0
    %v4919 = vpop.f32.mrf.mxu0
    %v4920 = vpop.f32.mrf.mxu0
    %4921 = vdwg.mxu0
    %v4922 = vadd.f32 %v4917, %v292
    %vm4923 = vcmask 1041408
    %v4924 = vsel %vm4923, %v4922, -inf
    %4925 = vmax.xlane.f32.xlu0 %v4924
    %v4926 = vpop.xlane.xlu0 %4925
    %v4927 = vsub.f32 %v4922, %v4926
    %v4928 = vmul.f32 %v4927, 1.442695
    %v4929 = vpow.pop %v4928
    %v4930 = vsel %vm4923, %v4929, 0.0
    %4931 = vadd.xlane.f32.xlu0 %v4930
    %v4932 = vpop.xlane.xlu0 %4931
    %v4933 = vlog2.pop %v4932
    %v4934 = vmul.f32 %v4933, 0.6931472
    %v4935 = vadd.f32 %v4926, %v4934
    %v4936 = vsub.f32 %v4922, %v4935
    %v4939 = vunpack.c.l.s4 1966171168
    %v4940 = vunpack.c.0.s8 %v4939
    %v4941 = vlaneseq
    %v4942 = vshrl.u32 %v4941, 7
    %v4943 = vsub.s32 %v4940, %v4942
    %v4944 = vrot.slane %v4936, %v4943
    %v4945 = vcombine.high %v4944, %v4944
    %v4947 = vunpack.c.l.s4 1966171168
    %v4948 = vunpack.c.0.s8 %v4947
    %v4949 = vlaneseq
    %v4950 = vshrl.u32 %v4949, 7
    %v4951 = vsub.s32 %v4948, %v4950
    %v4952 = vrot.slane %v4944, %v4951
    %v4954 = vunpack.c.l.s4 1966171168
    %v4955 = vunpack.c.0.s8 %v4954
    %v4956 = vlaneseq
    %v4957 = vshrl.u32 %v4956, 7
    %v4958 = vsub.s32 %v4955, %v4957
    %v4959 = vrot.slane %v4945, %v4958
    %4962 = vst [vmem:[#allocation3] sm:$0x1] %v4952
    %4963 = vst [vmem:[#allocation3 + $0x8] sm:$0x1] %v4959
    %s4964 = scalar_lea.vmem %s1, 1
    %v4965 = vld [vmem:[%s4964] ss:$8 sm:$0xf]
    %v4966 = vld [vmem:[%s4964] ss:$8 sm:$0xf0]
    %v4967 = vor.u32 %v4965, %v4966
    %s4968 = scalar_lea.vmem %s1, 65
    %v4969 = vld [vmem:[%s4968] ss:$8 sm:$0xf]
    %v4970 = vld [vmem:[%s4968] ss:$8 sm:$0xf0]
    %v4971 = vor.u32 %v4969, %v4970
    %4972 = vmatprep.subr.bf16.mxu0 %v3966
    %4973 = vmatpush1.bf16.msra.mxu0 %v3965
    %4974 = vmatprep.subr.bf16.mxu0 %v3958
    %4975 = vmatpush1.bf16.msra.mxu0 %v3957
    %4976 = vmatprep.subr.bf16.mxu0 %v3950
    %4977 = vmatpush1.bf16.msra.mxu0 %v3949
    %4978 = vmatprep.subr.bf16.mxu0 %v3942
    %4979 = vmatpush1.bf16.msra.mxu0 %v3941
    %4980 = vmatprep.subr.bf16.mxu0 %v3934
    %4981 = vmatpush1.bf16.msra.mxu0 %v3933
    %4982 = vmatprep.subr.bf16.mxu0 %v3926
    %4983 = vmatpush1.bf16.msra.mxu0 %v3925
    %4984 = vmatprep.subr.bf16.mxu0 %v3918
    %4985 = vmatpush1.bf16.msra.mxu0 %v3917
    %4986 = vmatprep.subr.bf16.mxu0 %v3910
    %4987 = vmatpush1.bf16.msra.mxu0 %v3909
    %4988 = vmatprep.subr.bf16.mxu0 %v4030
    %4989 = vmatpush2.bf16.msra.mxu0 %v4029
    %4990 = vmatprep.subr.bf16.mxu0 %v4022
    %4991 = vmatpush2.bf16.msra.mxu0 %v4021
    %4992 = vmatprep.subr.bf16.mxu0 %v4014
    %4993 = vmatpush2.bf16.msra.mxu0 %v4013
    %4994 = vmatprep.subr.bf16.mxu0 %v4006
    %4995 = vmatpush2.bf16.msra.mxu0 %v4005
    %4996 = vmatprep.subr.bf16.mxu0 %v3998
    %4997 = vmatpush2.bf16.msra.mxu0 %v3997
    %4998 = vmatprep.subr.bf16.mxu0 %v3990
    %4999 = vmatpush2.bf16.msra.mxu0 %v3989
    %5000 = vmatprep.subr.bf16.mxu0 %v3982
    %5001 = vmatpush2.bf16.msra.mxu0 %v3981
    %5002 = vmatprep.subr.bf16.mxu0 %v3974
    %5003 = vmatpush2.bf16.msra.mxu0 %v3973
    %5004 = vmatprep.mubr.bf16.mxu0 %v4783
    %5005 = vmatmul.mubr.bf16.gmra.mxu0 %v4782
    %v5006 = vpop.f32.mrf.mxu0
    %v5007 = vadd.f32 0.0, %v5006
    %v5008 = vpop.f32.mrf.mxu0
    %v5009 = vadd.f32 0.0, %v5008
    %v5010 = vpop.f32.mrf.mxu0
    %v5011 = vpop.f32.mrf.mxu0
    %5012 = vdwg.mxu0
    %5013 = vmatprep.subr.bf16.mxu0 %v3968
    %5014 = vmatpush1.bf16.msra.mxu0 %v3967
    %5015 = vmatprep.subr.bf16.mxu0 %v3960
    %5016 = vmatpush1.bf16.msra.mxu0 %v3959
    %5017 = vmatprep.subr.bf16.mxu0 %v3952
    %5018 = vmatpush1.bf16.msra.mxu0 %v3951
    %5019 = vmatprep.subr.bf16.mxu0 %v3944
    %5020 = vmatpush1.bf16.msra.mxu0 %v3943
    %5021 = vmatprep.subr.bf16.mxu0 %v3936
    %5022 = vmatpush1.bf16.msra.mxu0 %v3935
    %5023 = vmatprep.subr.bf16.mxu0 %v3928
    %5024 = vmatpush1.bf16.msra.mxu0 %v3927
    %5025 = vmatprep.subr.bf16.mxu0 %v3920
    %5026 = vmatpush1.bf16.msra.mxu0 %v3919
    %5027 = vmatprep.subr.bf16.mxu0 %v3912
    %5028 = vmatpush1.bf16.msra.mxu0 %v3911
    %5029 = vmatprep.subr.bf16.mxu0 %v4032
    %5030 = vmatpush2.bf16.msra.mxu0 %v4031
    %5031 = vmatprep.subr.bf16.mxu0 %v4024
    %5032 = vmatpush2.bf16.msra.mxu0 %v4023
    %5033 = vmatprep.subr.bf16.mxu0 %v4016
    %5034 = vmatpush2.bf16.msra.mxu0 %v4015
    %5035 = vmatprep.subr.bf16.mxu0 %v4008
    %5036 = vmatpush2.bf16.msra.mxu0 %v4007
    %5037 = vmatprep.subr.bf16.mxu0 %v4000
    %5038 = vmatpush2.bf16.msra.mxu0 %v3999
    %5039 = vmatprep.subr.bf16.mxu0 %v3992
    %5040 = vmatpush2.bf16.msra.mxu0 %v3991
    %5041 = vmatprep.subr.bf16.mxu0 %v3984
    %5042 = vmatpush2.bf16.msra.mxu0 %v3983
    %5043 = vmatprep.subr.bf16.mxu0 %v3976
    %5044 = vmatpush2.bf16.msra.mxu0 %v3975
    %5045 = vmatprep.mubr.bf16.mxu0 %v4783
    %5046 = vmatmul.mubr.bf16.gmra.mxu0 %v4782
    %v5047 = vpop.f32.mrf.mxu0
    %v5048 = vadd.f32 0.0, %v5047
    %v5049 = vpop.f32.mrf.mxu0
    %v5050 = vadd.f32 0.0, %v5049
    %v5051 = vpop.f32.mrf.mxu0
    %v5052 = vpop.f32.mrf.mxu0
    %5053 = vdwg.mxu0
    %5054 = vmatprep.subr.bf16.mxu0 %v3970
    %5055 = vmatpush1.bf16.msra.mxu0 %v3969
    %5056 = vmatprep.subr.bf16.mxu0 %v3962
    %5057 = vmatpush1.bf16.msra.mxu0 %v3961
    %5058 = vmatprep.subr.bf16.mxu0 %v3954
    %5059 = vmatpush1.bf16.msra.mxu0 %v3953
    %5060 = vmatprep.subr.bf16.mxu0 %v3946
    %5061 = vmatpush1.bf16.msra.mxu0 %v3945
    %5062 = vmatprep.subr.bf16.mxu0 %v3938
    %5063 = vmatpush1.bf16.msra.mxu0 %v3937
    %5064 = vmatprep.subr.bf16.mxu0 %v3930
    %5065 = vmatpush1.bf16.msra.mxu0 %v3929
    %5066 = vmatprep.subr.bf16.mxu0 %v3922
    %5067 = vmatpush1.bf16.msra.mxu0 %v3921
    %5068 = vmatprep.subr.bf16.mxu0 %v3914
    %5069 = vmatpush1.bf16.msra.mxu0 %v3913
    %5070 = vmatprep.subr.bf16.mxu0 %v4034
    %5071 = vmatpush2.bf16.msra.mxu0 %v4033
    %5072 = vmatprep.subr.bf16.mxu0 %v4026
    %5073 = vmatpush2.bf16.msra.mxu0 %v4025
    %5074 = vmatprep.subr.bf16.mxu0 %v4018
    %5075 = vmatpush2.bf16.msra.mxu0 %v4017
    %5076 = vmatprep.subr.bf16.mxu0 %v4010
    %5077 = vmatpush2.bf16.msra.mxu0 %v4009
    %5078 = vmatprep.subr.bf16.mxu0 %v4002
    %5079 = vmatpush2.bf16.msra.mxu0 %v4001
    %5080 = vmatprep.subr.bf16.mxu0 %v3994
    %5081 = vmatpush2.bf16.msra.mxu0 %v3993
    %5082 = vmatprep.subr.bf16.mxu0 %v3986
    %5083 = vmatpush2.bf16.msra.mxu0 %v3985
    %5084 = vmatprep.subr.bf16.mxu0 %v3978
    %5085 = vmatpush2.bf16.msra.mxu0 %v3977
    %5086 = vmatprep.mubr.bf16.mxu0 %v4783
    %5087 = vmatmul.mubr.bf16.gmra.mxu0 %v4782
    %v5088 = vpop.f32.mrf.mxu0
    %v5089 = vadd.f32 0.0, %v5088
    %v5090 = vpop.f32.mrf.mxu0
    %v5091 = vadd.f32 0.0, %v5090
    %v5092 = vpop.f32.mrf.mxu0
    %v5093 = vpop.f32.mrf.mxu0
    %5094 = vdwg.mxu0
    %5095 = vmatprep.subr.bf16.mxu0 %v3972
    %5096 = vmatpush1.bf16.msra.mxu0 %v3971
    %5097 = vmatprep.subr.bf16.mxu0 %v3964
    %5098 = vmatpush1.bf16.msra.mxu0 %v3963
    %5099 = vmatprep.subr.bf16.mxu0 %v3956
    %5100 = vmatpush1.bf16.msra.mxu0 %v3955
    %5101 = vmatprep.subr.bf16.mxu0 %v3948
    %5102 = vmatpush1.bf16.msra.mxu0 %v3947
    %5103 = vmatprep.subr.bf16.mxu0 %v3940
    %5104 = vmatpush1.bf16.msra.mxu0 %v3939
    %5105 = vmatprep.subr.bf16.mxu0 %v3932
    %5106 = vmatpush1.bf16.msra.mxu0 %v3931
    %5107 = vmatprep.subr.bf16.mxu0 %v3924
    %5108 = vmatpush1.bf16.msra.mxu0 %v3923
    %5109 = vmatprep.subr.bf16.mxu0 %v3916
    %5110 = vmatpush1.bf16.msra.mxu0 %v3915
    %5111 = vmatprep.subr.bf16.mxu0 %v4036
    %5112 = vmatpush2.bf16.msra.mxu0 %v4035
    %5113 = vmatprep.subr.bf16.mxu0 %v4028
    %5114 = vmatpush2.bf16.msra.mxu0 %v4027
    %5115 = vmatprep.subr.bf16.mxu0 %v4020
    %5116 = vmatpush2.bf16.msra.mxu0 %v4019
    %5117 = vmatprep.subr.bf16.mxu0 %v4012
    %5118 = vmatpush2.bf16.msra.mxu0 %v4011
    %5119 = vmatprep.subr.bf16.mxu0 %v4004
    %5120 = vmatpush2.bf16.msra.mxu0 %v4003
    %5121 = vmatprep.subr.bf16.mxu0 %v3996
    %5122 = vmatpush2.bf16.msra.mxu0 %v3995
    %5123 = vmatprep.subr.bf16.mxu0 %v3988
    %5124 = vmatpush2.bf16.msra.mxu0 %v3987
    %5125 = vmatprep.subr.bf16.mxu0 %v3980
    %5126 = vmatpush2.bf16.msra.mxu0 %v3979
    %5127 = vmatprep.mubr.bf16.mxu0 %v4783
    %5128 = vmatmul.mubr.bf16.gmra.mxu0 %v4782
    %v5129 = vpop.f32.mrf.mxu0
    %v5130 = vadd.f32 0.0, %v5129
    %v5131 = vpop.f32.mrf.mxu0
    %v5132 = vadd.f32 0.0, %v5131
    %v5133 = vpop.f32.mrf.mxu0
    %v5134 = vpop.f32.mrf.mxu0
    %5135 = vdwg.mxu0
    %v5144 = vcombine.low %v5007, %v5009
    %v5145 = vcombine.low %v5048, %v5050
    %v5146 = vcombine.low %v5089, %v5091
    %v5147 = vcombine.low %v5130, %v5132
    %v5149 = vunpack.c.l.s4 1966171168
    %v5150 = vunpack.c.0.s8 %v5149
    %v5151 = vlaneseq
    %v5152 = vshrl.u32 %v5151, 7
    %v5153 = vsub.s32 %v5150, %v5152
    %v5154 = vrot.slane %v5144, %v5153
    %v5156 = vunpack.c.l.s4 1966171168
    %v5157 = vunpack.c.0.s8 %v5156
    %v5158 = vlaneseq
    %v5159 = vshrl.u32 %v5158, 7
    %v5160 = vsub.s32 %v5157, %v5159
    %v5161 = vrot.slane %v5145, %v5160
    %v5163 = vunpack.c.l.s4 1966171168
    %v5164 = vunpack.c.0.s8 %v5163
    %v5165 = vlaneseq
    %v5166 = vshrl.u32 %v5165, 7
    %v5167 = vsub.s32 %v5164, %v5166
    %v5168 = vrot.slane %v5146, %v5167
    %v5170 = vunpack.c.l.s4 1966171168
    %v5171 = vunpack.c.0.s8 %v5170
    %v5172 = vlaneseq
    %v5173 = vshrl.u32 %v5172, 7
    %v5174 = vsub.s32 %v5171, %v5173
    %v5175 = vrot.slane %v5147, %v5174
    %v5176 = vcombine.low %v5154, %v5161
    %v5177 = vcombine.high %v5154, %v5161
    %v5178 = vcombine.low %v5168, %v5175
    %v5179 = vcombine.high %v5168, %v5175
    %v5181 = vunpack.c.l.s4 1966171168
    %v5182 = vunpack.c.0.s8 %v5181
    %v5183 = vlaneseq
    %v5184 = vshrl.u32 %v5183, 7
    %v5185 = vsub.s32 %v5182, %v5184
    %v5186 = vrot.slane %v5176, %v5185
    %v5188 = vunpack.c.l.s4 1966171168
    %v5189 = vunpack.c.0.s8 %v5188
    %v5190 = vlaneseq
    %v5191 = vshrl.u32 %v5190, 7
    %v5192 = vsub.s32 %v5189, %v5191
    %v5193 = vrot.slane %v5177, %v5192
    %v5195 = vunpack.c.l.s4 1966171168
    %v5196 = vunpack.c.0.s8 %v5195
    %v5197 = vlaneseq
    %v5198 = vshrl.u32 %v5197, 7
    %v5199 = vsub.s32 %v5196, %v5198
    %v5200 = vrot.slane %v5178, %v5199
    %v5202 = vunpack.c.l.s4 1966171168
    %v5203 = vunpack.c.0.s8 %v5202
    %v5204 = vlaneseq
    %v5205 = vshrl.u32 %v5204, 7
    %v5206 = vsub.s32 %v5203, %v5205
    %v5207 = vrot.slane %v5179, %v5206
    %v5208 = vcombine.low %v5186, %v5200
    %v5209 = vcombine.low %v5193, %v5207
    %v5212 = vadd.f32 %v4967, %v5208
    %v5213 = vadd.f32 %v4971, %v5209
    %v5214 = vxor.u32 %v5212, 2147483648
    %v5215 = vxor.u32 %v5213, 2147483648
    %v5216 = vmul.f32 %v5214, 1.442695
    %v5217 = vpow.pop %v5216
    %v5218 = vmul.f32 %v5215, 1.442695
    %v5219 = vpow.pop %v5218
    %v5220 = vadd.f32 %v5217, 1.0
    %v5221 = vadd.f32 %v5219, 1.0
    %v5222 = vrcp.pop %v5220
    %v5223 = vmul.f32 1.0, %v5222
    %v5224 = vrcp.pop %v5221
    %v5225 = vmul.f32 1.0, %v5224
    %v5228 = vrot.slane %v5212, 6
    %v5229 = vrot.slane %v5213, 6
    %v5232 = vtanh.pop %v5228
    %v5233 = vtanh.pop %v5229
    %v5236 = vrot.slane %v5223, 2
    %v5237 = vrot.slane %v5225, 2
    %v5240 = vmul.f32 %v5236, %v4462
    %v5241 = vmul.f32 %v5237, %v4463
    %v5242 = vmul.f32 %v5223, %v5232
    %v5243 = vmul.f32 %v5225, %v5233
    %v5244 = vadd.f32 %v5240, %v5242
    %v5245 = vadd.f32 %v5241, %v5243
    %v5246 = vtanh.pop %v5244
    %v5247 = vtanh.pop %v5245
    %v5248 = vrot.slane %v5223, 4
    %v5249 = vrot.slane %v5225, 4
    %v5252 = vmul.f32 %v5248, %v5246
    %v5253 = vmul.f32 %v5249, %v5247
    %v5256 = vlaneseq
    %v5257 = vshrl.u32 %v5256, 7
    %v5258 = vsub.s32 0, %v5257
    %v5259 = vrot.slane %v5252, %v5258
    %v5260 = vlaneseq
    %v5261 = vshrl.u32 %v5260, 7
    %v5262 = vsub.s32 1, %v5261
    %v5263 = vrot.slane %v5252, %v5262
    %v5264 = vlaneseq
    %v5265 = vshrl.u32 %v5264, 7
    %v5266 = vsub.s32 0, %v5265
    %v5267 = vrot.slane %v5253, %v5266
    %v5268 = vlaneseq
    %v5269 = vshrl.u32 %v5268, 7
    %v5270 = vsub.s32 1, %v5269
    %v5271 = vrot.slane %v5253, %v5270
    %v5276 = vmul.f32 %v5259, %v3512
    %v5277 = vmul.f32 %v5263, %v3513
    %v5278 = vmul.f32 %v5267, %v3514
    %v5279 = vmul.f32 %v5271, %v3515
    %v5280 = vadd.f32 %v5276, %v5277
    %5281 = vadd.xlane.f32.xlu0 %v5280
    %v5282 = vpop.xlane.xlu0 %5281
    %v5283 = vadd.f32 %v5278, %v5279
    %5284 = vadd.xlane.f32.xlu0 %v5283
    %v5285 = vpop.xlane.xlu0 %5284
    %v5288 = vlaneseq
    %v5289 = vshrl.u32 %v5288, 7
    %v5290 = vsub.s32 %v4507, %v5289
    %v5291 = vrot.slane %v5282, %v5290
    %v5292 = vlaneseq
    %v5293 = vshrl.u32 %v5292, 7
    %v5294 = vsub.s32 %v4507, %v5293
    %v5295 = vrot.slane %v5285, %v5294
    %v5296 = vsel %vm960, %v5295, %v5291
    %v5298 = vsel %vm4518, %v5296, -inf
    %5299 = vmax.xlane.f32.xlu0 %v5298
    %v5300 = vpop.xlane.xlu0 %5299
    %v5302 = vlaneseq
    %v5303 = vshrl.u32 %v5302, 7
    %v5304 = vsub.s32 0, %v5303
    %v5305 = vrot.slane %v5300, %v5304
    %v5306 = vlaneseq
    %v5307 = vshrl.u32 %v5306, 7
    %v5308 = vsub.s32 1, %v5307
    %v5309 = vrot.slane %v5300, %v5308
    %v5312 = vsub.f32 %v5282, %v5305
    %v5313 = vsub.f32 %v5285, %v5309
    %v5314 = vmul.f32 %v5312, 1.442695
    %v5315 = vpow.pop %v5314
    %v5316 = vmul.f32 %v5313, 1.442695
    %v5317 = vpow.pop %v5316
    %5320 = vset.pattern.permute.xlu0 0
    %5321 = vperm.xlu0 %5320, %v5315
    %v5322 = vpop.permute.xlu0 %5321
    %5323 = vset.pattern.permute.xlu0 0
    %5324 = vperm.xlu0 %5323, %v5317
    %v5325 = vpop.permute.xlu0 %5324
    %v5326 = vlaneseq
    %v5327 = vshrl.u32 %v5326, 7
    %v5328 = vsub.s32 %v4507, %v5327
    %v5329 = vrot.slane %v5322, %v5328
    %v5330 = vlaneseq
    %v5331 = vshrl.u32 %v5330, 7
    %v5332 = vsub.s32 %v4507, %v5331
    %v5333 = vrot.slane %v5325, %v5332
    %v5334 = vsel %vm960, %v5333, %v5329
    %v5336 = vsel %vm4518, %v5334, 0.0
    %5337 = vadd.xlane.f32.xlu0 %v5336
    %v5338 = vpop.xlane.xlu0 %5337
    %v5339 = vrcp.pop %v5338
    %v5341 = vlaneseq
    %v5342 = vshrl.u32 %v5341, 7
    %v5343 = vsub.s32 0, %v5342
    %v5344 = vrot.slane %v5339, %v5343
    %v5345 = vlaneseq
    %v5346 = vshrl.u32 %v5345, 7
    %v5347 = vsub.s32 1, %v5346
    %v5348 = vrot.slane %v5339, %v5347
    %v5351 = vmul.f32 %v5315, %v5344
    %v5352 = vmul.f32 %v5317, %v5348
    %5354 = vset.pattern.permute.xlu0 0
    %5355 = vperm.xlu0 %5354, %v5351
    %v5356 = vpop.permute.xlu0 %5355
    %5359 = vset.pattern.permute.xlu0 0
    %5360 = vperm.xlu0 %5359, %v5352
    %v5361 = vpop.permute.xlu0 %5360
    %v5363 = vmul.f32 %v5356, %v3512
    %v5364 = vmul.f32 %v5356, %v3513
    %v5365 = vmul.f32 %v5361, %v3514
    %v5366 = vmul.f32 %v5361, %v3515
    %v5367 = vrot.slane %v5363, 4
    %v5368 = vadd.f32 %v5363, %v5367
    %v5369 = vrot.slane %v5368, 2
    %v5370 = vadd.f32 %v5368, %v5369
    %v5371 = vrot.slane %v5370, 1
    %v5372 = vadd.f32 %v5370, %v5371
    %v5373 = vrot.slane %v5364, 4
    %v5374 = vadd.f32 %v5364, %v5373
    %v5375 = vrot.slane %v5374, 2
    %v5376 = vadd.f32 %v5374, %v5375
    %v5377 = vrot.slane %v5376, 1
    %v5378 = vadd.f32 %v5376, %v5377
    %v5379 = vrot.slane %v5365, 4
    %v5380 = vadd.f32 %v5365, %v5379
    %v5381 = vrot.slane %v5380, 2
    %v5382 = vadd.f32 %v5380, %v5381
    %v5383 = vrot.slane %v5382, 1
    %v5384 = vadd.f32 %v5382, %v5383
    %v5385 = vrot.slane %v5366, 4
    %v5386 = vadd.f32 %v5366, %v5385
    %v5387 = vrot.slane %v5386, 2
    %v5388 = vadd.f32 %v5386, %v5387
    %v5389 = vrot.slane %v5388, 1
    %v5390 = vadd.f32 %v5388, %v5389
    %v5391 = vpack.c.bf16 %v5259, %v5259
    %v5392 = vpack.c.bf16 %v5263, %v5263
    %v5393 = vpack.c.bf16 %v5267, %v5267
    %v5394 = vpack.c.bf16 %v5271, %v5271
    %v5395 = vpack.c.bf16 %v5372, %v5372
    %v5396 = vpack.c.bf16 %v5378, %v5378
    %v5397 = vpack.c.bf16 %v5384, %v5384
    %v5398 = vpack.c.bf16 %v5390, %v5390
    %v5403 = vunpack.c.l.b16 %v5395
    %v5404 = vunpack.c.l.b16 %v5396
    %v5405 = vunpack.c.l.b16 %v5397
    %v5406 = vunpack.c.l.b16 %v5398
    %v5407 = vsel %vm960, %v5405, %v5403
    %v5408 = vsel %vm960, %v5406, %v5404
    %v5409 = vpack.c.b16 %v5407, %v5407
    %v5410 = vpack.c.b16 %v5408, %v5408
    %5413 = vmatprep.subr.bf16.mxu0 0
    %5414 = vmatpush1.bf16.msra.mxu0 %v4705
    %5415 = vmatprep.subr.bf16.mxu0 0
    %5416 = vmatpush1.bf16.msra.mxu0 %v4704
    %5417 = vmatprep.subr.bf16.mxu0 0
    %5418 = vmatpush1.bf16.msra.mxu0 %v4703
    %5419 = vmatprep.subr.bf16.mxu0 0
    %5420 = vmatpush1.bf16.msra.mxu0 %v4702
    %5421 = vmatprep.subr.bf16.mxu0 0
    %5422 = vmatpush1.bf16.msra.mxu0 %v4701
    %5423 = vmatprep.subr.bf16.mxu0 0
    %5424 = vmatpush1.bf16.msra.mxu0 %v4700
    %5425 = vmatprep.subr.bf16.mxu0 0
    %5426 = vmatpush1.bf16.msra.mxu0 %v4699
    %5427 = vmatprep.subr.bf16.mxu0 0
    %5428 = vmatpush1.bf16.msra.mxu0 %v4698
    %5429 = vmatprep.subr.bf16.mxu0 0
    %5430 = vmatpush2.bf16.msra.mxu0 %v4713
    %5431 = vmatprep.subr.bf16.mxu0 0
    %5432 = vmatpush2.bf16.msra.mxu0 %v4712
    %5433 = vmatprep.subr.bf16.mxu0 0
    %5434 = vmatpush2.bf16.msra.mxu0 %v4711
    %5435 = vmatprep.subr.bf16.mxu0 0
    %5436 = vmatpush2.bf16.msra.mxu0 %v4710
    %5437 = vmatprep.subr.bf16.mxu0 0
    %5438 = vmatpush2.bf16.msra.mxu0 %v4709
    %5439 = vmatprep.subr.bf16.mxu0 0
    %5440 = vmatpush2.bf16.msra.mxu0 %v4708
    %5441 = vmatprep.subr.bf16.mxu0 0
    %5442 = vmatpush2.bf16.msra.mxu0 %v4707
    %5443 = vmatprep.subr.bf16.mxu0 0
    %5444 = vmatpush2.bf16.msra.mxu0 %v4706
    %5445 = vmatprep.mubr.bf16.mxu0 %v5410
    %5446 = vmatmul.mubr.bf16.gmra.mxu0 %v5409
    %v5447 = vpop.f32.mrf.mxu0
    %v5448 = vadd.f32 0.0, %v5447
    %v5449 = vpop.f32.mrf.mxu0
    %v5450 = vpop.f32.mrf.mxu0
    %v5451 = vpop.f32.mrf.mxu0
    %5452 = vdwg.mxu0
    %v5457 = vunpack.c.l.b16 %v5391
    %v5458 = vunpack.c.l.b16 %v5392
    %v5459 = vunpack.c.l.b16 %v5393
    %v5460 = vunpack.c.l.b16 %v5394
    %v5461 = vrot.slane %v5459, 7
    %v5462 = vsel %vm960, %v5461, %v5457
    %v5463 = vrot.slane %v5460, 7
    %v5464 = vsel %vm960, %v5463, %v5458
    %v5465 = vpack.c.b16 %v5462, %v5462
    %v5466 = vpack.c.b16 %v5464, %v5464
    %5469 = vmatprep.subr.bf16.mxu0 0
    %5470 = vmatpush1.bf16.msra.mxu0 %v4857
    %5471 = vmatprep.subr.bf16.mxu0 0
    %5472 = vmatpush1.bf16.msra.mxu0 %v4856
    %5473 = vmatprep.subr.bf16.mxu0 0
    %5474 = vmatpush1.bf16.msra.mxu0 %v4855
    %5475 = vmatprep.subr.bf16.mxu0 0
    %5476 = vmatpush1.bf16.msra.mxu0 %v4854
    %5477 = vmatprep.subr.bf16.mxu0 0
    %5478 = vmatpush1.bf16.msra.mxu0 %v4853
    %5479 = vmatprep.subr.bf16.mxu0 0
    %5480 = vmatpush1.bf16.msra.mxu0 %v4852
    %5481 = vmatprep.subr.bf16.mxu0 0
    %5482 = vmatpush1.bf16.msra.mxu0 %v4851
    %5483 = vmatprep.subr.bf16.mxu0 0
    %5484 = vmatpush1.bf16.msra.mxu0 %v4850
    %5485 = vmatprep.subr.bf16.mxu0 0
    %5486 = vmatpush2.bf16.msra.mxu0 %v4865
    %5487 = vmatprep.subr.bf16.mxu0 0
    %5488 = vmatpush2.bf16.msra.mxu0 %v4864
    %5489 = vmatprep.subr.bf16.mxu0 0
    %5490 = vmatpush2.bf16.msra.mxu0 %v4863
    %5491 = vmatprep.subr.bf16.mxu0 0
    %5492 = vmatpush2.bf16.msra.mxu0 %v4862
    %5493 = vmatprep.subr.bf16.mxu0 0
    %5494 = vmatpush2.bf16.msra.mxu0 %v4861
    %5495 = vmatprep.subr.bf16.mxu0 0
    %5496 = vmatpush2.bf16.msra.mxu0 %v4860
    %5497 = vmatprep.subr.bf16.mxu0 0
    %5498 = vmatpush2.bf16.msra.mxu0 %v4859
    %5499 = vmatprep.subr.bf16.mxu0 0
    %5500 = vmatpush2.bf16.msra.mxu0 %v4858
    %5501 = vmatprep.mubr.bf16.mxu0 %v5466
    %5502 = vmatmul.mubr.bf16.gmra.mxu0 %v5465
    %v5503 = vpop.f32.mrf.mxu0
    %v5504 = vadd.f32 %v5448, %v5503
    %v5505 = vpop.f32.mrf.mxu0
    %v5506 = vpop.f32.mrf.mxu0
    %v5507 = vpop.f32.mrf.mxu0
    %5508 = vdwg.mxu0
    %v5509 = vadd.f32 %v5504, %v292
    %v5510 = vsel %vm4923, %v5509, -inf
    %5511 = vmax.xlane.f32.xlu0 %v5510
    %v5512 = vpop.xlane.xlu0 %5511
    %v5513 = vsub.f32 %v5509, %v5512
    %v5514 = vmul.f32 %v5513, 1.442695
    %v5515 = vpow.pop %v5514
    %v5516 = vsel %vm4923, %v5515, 0.0
    %5517 = vadd.xlane.f32.xlu0 %v5516
    %v5518 = vpop.xlane.xlu0 %5517
    %v5519 = vlog2.pop %v5518
    %v5520 = vmul.f32 %v5519, 0.6931472
    %v5521 = vadd.f32 %v5512, %v5520
    %v5522 = vsub.f32 %v5509, %v5521
    %v5525 = vunpack.c.l.s4 1966171168
    %v5526 = vunpack.c.0.s8 %v5525
    %v5527 = vlaneseq
    %v5528 = vshrl.u32 %v5527, 7
    %v5529 = vsub.s32 %v5526, %v5528
    %v5530 = vrot.slane %v5522, %v5529
    %v5531 = vcombine.high %v5530, %v5530
    %v5533 = vunpack.c.l.s4 1966171168
    %v5534 = vunpack.c.0.s8 %v5533
    %v5535 = vlaneseq
    %v5536 = vshrl.u32 %v5535, 7
    %v5537 = vsub.s32 %v5534, %v5536
    %v5538 = vrot.slane %v5530, %v5537
    %v5540 = vunpack.c.l.s4 1966171168
    %v5541 = vunpack.c.0.s8 %v5540
    %v5542 = vlaneseq
    %v5543 = vshrl.u32 %v5542, 7
    %v5544 = vsub.s32 %v5541, %v5543
    %v5545 = vrot.slane %v5531, %v5544
    %5548 = vst [vmem:[#allocation3 + $0x1] sm:$0x1] %v5538
    %5549 = vst [vmem:[#allocation3 + $0x9] sm:$0x1] %v5545
    %s5550 = scalar_lea.vmem %s1, 2
    %v5551 = vld [vmem:[%s5550] ss:$8 sm:$0xf]
    %v5552 = vld [vmem:[%s5550] ss:$8 sm:$0xf0]
    %v5553 = vor.u32 %v5551, %v5552
    %s5554 = scalar_lea.vmem %s1, 66
    %v5555 = vld [vmem:[%s5554] ss:$8 sm:$0xf]
    %v5556 = vld [vmem:[%s5554] ss:$8 sm:$0xf0]
    %v5557 = vor.u32 %v5555, %v5556
    %5558 = vmatprep.subr.bf16.mxu0 %v3966
    %5559 = vmatpush1.bf16.msra.mxu0 %v3965
    %5560 = vmatprep.subr.bf16.mxu0 %v3958
    %5561 = vmatpush1.bf16.msra.mxu0 %v3957
    %5562 = vmatprep.subr.bf16.mxu0 %v3950
    %5563 = vmatpush1.bf16.msra.mxu0 %v3949
    %5564 = vmatprep.subr.bf16.mxu0 %v3942
    %5565 = vmatpush1.bf16.msra.mxu0 %v3941
    %5566 = vmatprep.subr.bf16.mxu0 %v3934
    %5567 = vmatpush1.bf16.msra.mxu0 %v3933
    %5568 = vmatprep.subr.bf16.mxu0 %v3926
    %5569 = vmatpush1.bf16.msra.mxu0 %v3925
    %5570 = vmatprep.subr.bf16.mxu0 %v3918
    %5571 = vmatpush1.bf16.msra.mxu0 %v3917
    %5572 = vmatprep.subr.bf16.mxu0 %v3910
    %5573 = vmatpush1.bf16.msra.mxu0 %v3909
    %5574 = vmatprep.subr.bf16.mxu0 %v4030
    %5575 = vmatpush2.bf16.msra.mxu0 %v4029
    %5576 = vmatprep.subr.bf16.mxu0 %v4022
    %5577 = vmatpush2.bf16.msra.mxu0 %v4021
    %5578 = vmatprep.subr.bf16.mxu0 %v4014
    %5579 = vmatpush2.bf16.msra.mxu0 %v4013
    %5580 = vmatprep.subr.bf16.mxu0 %v4006
    %5581 = vmatpush2.bf16.msra.mxu0 %v4005
    %5582 = vmatprep.subr.bf16.mxu0 %v3998
    %5583 = vmatpush2.bf16.msra.mxu0 %v3997
    %5584 = vmatprep.subr.bf16.mxu0 %v3990
    %5585 = vmatpush2.bf16.msra.mxu0 %v3989
    %5586 = vmatprep.subr.bf16.mxu0 %v3982
    %5587 = vmatpush2.bf16.msra.mxu0 %v3981
    %5588 = vmatprep.subr.bf16.mxu0 %v3974
    %5589 = vmatpush2.bf16.msra.mxu0 %v3973
    %5590 = vmatprep.mubr.bf16.mxu0 %v5466
    %5591 = vmatmul.mubr.bf16.gmra.mxu0 %v5465
    %v5592 = vpop.f32.mrf.mxu0
    %v5593 = vadd.f32 0.0, %v5592
    %v5594 = vpop.f32.mrf.mxu0
    %v5595 = vadd.f32 0.0, %v5594
    %v5596 = vpop.f32.mrf.mxu0
    %v5597 = vpop.f32.mrf.mxu0
    %5598 = vdwg.mxu0
    %5599 = vmatprep.subr.bf16.mxu0 %v3968
    %5600 = vmatpush1.bf16.msra.mxu0 %v3967
    %5601 = vmatprep.subr.bf16.mxu0 %v3960
    %5602 = vmatpush1.bf16.msra.mxu0 %v3959
    %5603 = vmatprep.subr.bf16.mxu0 %v3952
    %5604 = vmatpush1.bf16.msra.mxu0 %v3951
    %5605 = vmatprep.subr.bf16.mxu0 %v3944
    %5606 = vmatpush1.bf16.msra.mxu0 %v3943
    %5607 = vmatprep.subr.bf16.mxu0 %v3936
    %5608 = vmatpush1.bf16.msra.mxu0 %v3935
    %5609 = vmatprep.subr.bf16.mxu0 %v3928
    %5610 = vmatpush1.bf16.msra.mxu0 %v3927
    %5611 = vmatprep.subr.bf16.mxu0 %v3920
    %5612 = vmatpush1.bf16.msra.mxu0 %v3919
    %5613 = vmatprep.subr.bf16.mxu0 %v3912
    %5614 = vmatpush1.bf16.msra.mxu0 %v3911
    %5615 = vmatprep.subr.bf16.mxu0 %v4032
    %5616 = vmatpush2.bf16.msra.mxu0 %v4031
    %5617 = vmatprep.subr.bf16.mxu0 %v4024
    %5618 = vmatpush2.bf16.msra.mxu0 %v4023
    %5619 = vmatprep.subr.bf16.mxu0 %v4016
    %5620 = vmatpush2.bf16.msra.mxu0 %v4015
    %5621 = vmatprep.subr.bf16.mxu0 %v4008
    %5622 = vmatpush2.bf16.msra.mxu0 %v4007
    %5623 = vmatprep.subr.bf16.mxu0 %v4000
    %5624 = vmatpush2.bf16.msra.mxu0 %v3999
    %5625 = vmatprep.subr.bf16.mxu0 %v3992
    %5626 = vmatpush2.bf16.msra.mxu0 %v3991
    %5627 = vmatprep.subr.bf16.mxu0 %v3984
    %5628 = vmatpush2.bf16.msra.mxu0 %v3983
    %5629 = vmatprep.subr.bf16.mxu0 %v3976
    %5630 = vmatpush2.bf16.msra.mxu0 %v3975
    %5631 = vmatprep.mubr.bf16.mxu0 %v5466
    %5632 = vmatmul.mubr.bf16.gmra.mxu0 %v5465
    %v5633 = vpop.f32.mrf.mxu0
    %v5634 = vadd.f32 0.0, %v5633
    %v5635 = vpop.f32.mrf.mxu0
    %v5636 = vadd.f32 0.0, %v5635
    %v5637 = vpop.f32.mrf.mxu0
    %v5638 = vpop.f32.mrf.mxu0
    %5639 = vdwg.mxu0
    %5640 = vmatprep.subr.bf16.mxu0 %v3970
    %5641 = vmatpush1.bf16.msra.mxu0 %v3969
    %5642 = vmatprep.subr.bf16.mxu0 %v3962
    %5643 = vmatpush1.bf16.msra.mxu0 %v3961
    %5644 = vmatprep.subr.bf16.mxu0 %v3954
    %5645 = vmatpush1.bf16.msra.mxu0 %v3953
    %5646 = vmatprep.subr.bf16.mxu0 %v3946
    %5647 = vmatpush1.bf16.msra.mxu0 %v3945
    %5648 = vmatprep.subr.bf16.mxu0 %v3938
    %5649 = vmatpush1.bf16.msra.mxu0 %v3937
    %5650 = vmatprep.subr.bf16.mxu0 %v3930
    %5651 = vmatpush1.bf16.msra.mxu0 %v3929
    %5652 = vmatprep.subr.bf16.mxu0 %v3922
    %5653 = vmatpush1.bf16.msra.mxu0 %v3921
    %5654 = vmatprep.subr.bf16.mxu0 %v3914
    %5655 = vmatpush1.bf16.msra.mxu0 %v3913
    %5656 = vmatprep.subr.bf16.mxu0 %v4034
    %5657 = vmatpush2.bf16.msra.mxu0 %v4033
    %5658 = vmatprep.subr.bf16.mxu0 %v4026
    %5659 = vmatpush2.bf16.msra.mxu0 %v4025
    %5660 = vmatprep.subr.bf16.mxu0 %v4018
    %5661 = vmatpush2.bf16.msra.mxu0 %v4017
    %5662 = vmatprep.subr.bf16.mxu0 %v4010
    %5663 = vmatpush2.bf16.msra.mxu0 %v4009
    %5664 = vmatprep.subr.bf16.mxu0 %v4002
    %5665 = vmatpush2.bf16.msra.mxu0 %v4001
    %5666 = vmatprep.subr.bf16.mxu0 %v3994
    %5667 = vmatpush2.bf16.msra.mxu0 %v3993
    %5668 = vmatprep.subr.bf16.mxu0 %v3986
    %5669 = vmatpush2.bf16.msra.mxu0 %v3985
    %5670 = vmatprep.subr.bf16.mxu0 %v3978
    %5671 = vmatpush2.bf16.msra.mxu0 %v3977
    %5672 = vmatprep.mubr.bf16.mxu0 %v5466
    %5673 = vmatmul.mubr.bf16.gmra.mxu0 %v5465
    %v5674 = vpop.f32.mrf.mxu0
    %v5675 = vadd.f32 0.0, %v5674
    %v5676 = vpop.f32.mrf.mxu0
    %v5677 = vadd.f32 0.0, %v5676
    %v5678 = vpop.f32.mrf.mxu0
    %v5679 = vpop.f32.mrf.mxu0
    %5680 = vdwg.mxu0
    %5681 = vmatprep.subr.bf16.mxu0 %v3972
    %5682 = vmatpush1.bf16.msra.mxu0 %v3971
    %5683 = vmatprep.subr.bf16.mxu0 %v3964
    %5684 = vmatpush1.bf16.msra.mxu0 %v3963
    %5685 = vmatprep.subr.bf16.mxu0 %v3956
    %5686 = vmatpush1.bf16.msra.mxu0 %v3955
    %5687 = vmatprep.subr.bf16.mxu0 %v3948
    %5688 = vmatpush1.bf16.msra.mxu0 %v3947
    %5689 = vmatprep.subr.bf16.mxu0 %v3940
    %5690 = vmatpush1.bf16.msra.mxu0 %v3939
    %5691 = vmatprep.subr.bf16.mxu0 %v3932
    %5692 = vmatpush1.bf16.msra.mxu0 %v3931
    %5693 = vmatprep.subr.bf16.mxu0 %v3924
    %5694 = vmatpush1.bf16.msra.mxu0 %v3923
    %5695 = vmatprep.subr.bf16.mxu0 %v3916
    %5696 = vmatpush1.bf16.msra.mxu0 %v3915
    %5697 = vmatprep.subr.bf16.mxu0 %v4036
    %5698 = vmatpush2.bf16.msra.mxu0 %v4035
    %5699 = vmatprep.subr.bf16.mxu0 %v4028
    %5700 = vmatpush2.bf16.msra.mxu0 %v4027
    %5701 = vmatprep.subr.bf16.mxu0 %v4020
    %5702 = vmatpush2.bf16.msra.mxu0 %v4019
    %5703 = vmatprep.subr.bf16.mxu0 %v4012
    %5704 = vmatpush2.bf16.msra.mxu0 %v4011
    %5705 = vmatprep.subr.bf16.mxu0 %v4004
    %5706 = vmatpush2.bf16.msra.mxu0 %v4003
    %5707 = vmatprep.subr.bf16.mxu0 %v3996
    %5708 = vmatpush2.bf16.msra.mxu0 %v3995
    %5709 = vmatprep.subr.bf16.mxu0 %v3988
    %5710 = vmatpush2.bf16.msra.mxu0 %v3987
    %5711 = vmatprep.subr.bf16.mxu0 %v3980
    %5712 = vmatpush2.bf16.msra.mxu0 %v3979
    %5713 = vmatprep.mubr.bf16.mxu0 %v5466
    %5714 = vmatmul.mubr.bf16.gmra.mxu0 %v5465
    %v5715 = vpop.f32.mrf.mxu0
    %v5716 = vadd.f32 0.0, %v5715
    %v5717 = vpop.f32.mrf.mxu0
    %v5718 = vadd.f32 0.0, %v5717
    %v5719 = vpop.f32.mrf.mxu0
    %v5720 = vpop.f32.mrf.mxu0
    %5721 = vdwg.mxu0
    %v5730 = vcombine.low %v5593, %v5595
    %v5731 = vcombine.low %v5634, %v5636
    %v5732 = vcombine.low %v5675, %v5677
    %v5733 = vcombine.low %v5716, %v5718
    %v5735 = vunpack.c.l.s4 1966171168
    %v5736 = vunpack.c.0.s8 %v5735
    %v5737 = vlaneseq
    %v5738 = vshrl.u32 %v5737, 7
    %v5739 = vsub.s32 %v5736, %v5738
    %v5740 = vrot.slane %v5730, %v5739
    %v5742 = vunpack.c.l.s4 1966171168
    %v5743 = vunpack.c.0.s8 %v5742
    %v5744 = vlaneseq
    %v5745 = vshrl.u32 %v5744, 7
    %v5746 = vsub.s32 %v5743, %v5745
    %v5747 = vrot.slane %v5731, %v5746
    %v5749 = vunpack.c.l.s4 1966171168
    %v5750 = vunpack.c.0.s8 %v5749
    %v5751 = vlaneseq
    %v5752 = vshrl.u32 %v5751, 7
    %v5753 = vsub.s32 %v5750, %v5752
    %v5754 = vrot.slane %v5732, %v5753
    %v5756 = vunpack.c.l.s4 1966171168
    %v5757 = vunpack.c.0.s8 %v5756
    %v5758 = vlaneseq
    %v5759 = vshrl.u32 %v5758, 7
    %v5760 = vsub.s32 %v5757, %v5759
    %v5761 = vrot.slane %v5733, %v5760
    %v5762 = vcombine.low %v5740, %v5747
    %v5763 = vcombine.high %v5740, %v5747
    %v5764 = vcombine.low %v5754, %v5761
    %v5765 = vcombine.high %v5754, %v5761
    %v5767 = vunpack.c.l.s4 1966171168
    %v5768 = vunpack.c.0.s8 %v5767
    %v5769 = vlaneseq
    %v5770 = vshrl.u32 %v5769, 7
    %v5771 = vsub.s32 %v5768, %v5770
    %v5772 = vrot.slane %v5762, %v5771
    %v5774 = vunpack.c.l.s4 1966171168
    %v5775 = vunpack.c.0.s8 %v5774
    %v5776 = vlaneseq
    %v5777 = vshrl.u32 %v5776, 7
    %v5778 = vsub.s32 %v5775, %v5777
    %v5779 = vrot.slane %v5763, %v5778
    %v5781 = vunpack.c.l.s4 1966171168
    %v5782 = vunpack.c.0.s8 %v5781
    %v5783 = vlaneseq
    %v5784 = vshrl.u32 %v5783, 7
    %v5785 = vsub.s32 %v5782, %v5784
    %v5786 = vrot.slane %v5764, %v5785
    %v5788 = vunpack.c.l.s4 1966171168
    %v5789 = vunpack.c.0.s8 %v5788
    %v5790 = vlaneseq
    %v5791 = vshrl.u32 %v5790, 7
    %v5792 = vsub.s32 %v5789, %v5791
    %v5793 = vrot.slane %v5765, %v5792
    %v5794 = vcombine.low %v5772, %v5786
    %v5795 = vcombine.low %v5779, %v5793
    %v5798 = vadd.f32 %v5553, %v5794
    %v5799 = vadd.f32 %v5557, %v5795
    %v5800 = vxor.u32 %v5798, 2147483648
    %v5801 = vxor.u32 %v5799, 2147483648
    %v5802 = vmul.f32 %v5800, 1.442695
    %v5803 = vpow.pop %v5802
    %v5804 = vmul.f32 %v5801, 1.442695
    %v5805 = vpow.pop %v5804
    %v5806 = vadd.f32 %v5803, 1.0
    %v5807 = vadd.f32 %v5805, 1.0
    %v5808 = vrcp.pop %v5806
    %v5809 = vmul.f32 1.0, %v5808
    %v5810 = vrcp.pop %v5807
    %v5811 = vmul.f32 1.0, %v5810
    %v5814 = vrot.slane %v5798, 6
    %v5815 = vrot.slane %v5799, 6
    %v5818 = vtanh.pop %v5814
    %v5819 = vtanh.pop %v5815
    %v5822 = vrot.slane %v5809, 2
    %v5823 = vrot.slane %v5811, 2
    %v5826 = vmul.f32 %v5822, %v5244
    %v5827 = vmul.f32 %v5823, %v5245
    %v5828 = vmul.f32 %v5809, %v5818
    %v5829 = vmul.f32 %v5811, %v5819
    %v5830 = vadd.f32 %v5826, %v5828
    %v5831 = vadd.f32 %v5827, %v5829
    %v5832 = vtanh.pop %v5830
    %v5833 = vtanh.pop %v5831
    %v5834 = vrot.slane %v5809, 4
    %v5835 = vrot.slane %v5811, 4
    %v5838 = vmul.f32 %v5834, %v5832
    %v5839 = vmul.f32 %v5835, %v5833
    %v5842 = vlaneseq
    %v5843 = vshrl.u32 %v5842, 7
    %v5844 = vsub.s32 0, %v5843
    %v5845 = vrot.slane %v5838, %v5844
    %v5846 = vlaneseq
    %v5847 = vshrl.u32 %v5846, 7
    %v5848 = vsub.s32 1, %v5847
    %v5849 = vrot.slane %v5838, %v5848
    %v5850 = vlaneseq
    %v5851 = vshrl.u32 %v5850, 7
    %v5852 = vsub.s32 0, %v5851
    %v5853 = vrot.slane %v5839, %v5852
    %v5854 = vlaneseq
    %v5855 = vshrl.u32 %v5854, 7
    %v5856 = vsub.s32 1, %v5855
    %v5857 = vrot.slane %v5839, %v5856
    %v5862 = vmul.f32 %v5845, %v3512
    %v5863 = vmul.f32 %v5849, %v3513
    %v5864 = vmul.f32 %v5853, %v3514
    %v5865 = vmul.f32 %v5857, %v3515
    %v5866 = vadd.f32 %v5862, %v5863
    %5867 = vadd.xlane.f32.xlu0 %v5866
    %v5868 = vpop.xlane.xlu0 %5867
    %v5869 = vadd.f32 %v5864, %v5865
    %5870 = vadd.xlane.f32.xlu0 %v5869
    %v5871 = vpop.xlane.xlu0 %5870
    %v5874 = vlaneseq
    %v5875 = vshrl.u32 %v5874, 7
    %v5876 = vsub.s32 %v4507, %v5875
    %v5877 = vrot.slane %v5868, %v5876
    %v5878 = vlaneseq
    %v5879 = vshrl.u32 %v5878, 7
    %v5880 = vsub.s32 %v4507, %v5879
    %v5881 = vrot.slane %v5871, %v5880
    %v5882 = vsel %vm960, %v5881, %v5877
    %v5884 = vsel %vm4518, %v5882, -inf
    %5885 = vmax.xlane.f32.xlu0 %v5884
    %v5886 = vpop.xlane.xlu0 %5885
    %v5888 = vlaneseq
    %v5889 = vshrl.u32 %v5888, 7
    %v5890 = vsub.s32 0, %v5889
    %v5891 = vrot.slane %v5886, %v5890
    %v5892 = vlaneseq
    %v5893 = vshrl.u32 %v5892, 7
    %v5894 = vsub.s32 1, %v5893
    %v5895 = vrot.slane %v5886, %v5894
    %v5898 = vsub.f32 %v5868, %v5891
    %v5899 = vsub.f32 %v5871, %v5895
    %v5900 = vmul.f32 %v5898, 1.442695
    %v5901 = vpow.pop %v5900
    %v5902 = vmul.f32 %v5899, 1.442695
    %v5903 = vpow.pop %v5902
    %5906 = vset.pattern.permute.xlu0 0
    %5907 = vperm.xlu0 %5906, %v5901
    %v5908 = vpop.permute.xlu0 %5907
    %5909 = vset.pattern.permute.xlu0 0
    %5910 = vperm.xlu0 %5909, %v5903
    %v5911 = vpop.permute.xlu0 %5910
    %v5912 = vlaneseq
    %v5913 = vshrl.u32 %v5912, 7
    %v5914 = vsub.s32 %v4507, %v5913
    %v5915 = vrot.slane %v5908, %v5914
    %v5916 = vlaneseq
    %v5917 = vshrl.u32 %v5916, 7
    %v5918 = vsub.s32 %v4507, %v5917
    %v5919 = vrot.slane %v5911, %v5918
    %v5920 = vsel %vm960, %v5919, %v5915
    %v5922 = vsel %vm4518, %v5920, 0.0
    %5923 = vadd.xlane.f32.xlu0 %v5922
    %v5924 = vpop.xlane.xlu0 %5923
    %v5925 = vrcp.pop %v5924
    %v5927 = vlaneseq
    %v5928 = vshrl.u32 %v5927, 7
    %v5929 = vsub.s32 0, %v5928
    %v5930 = vrot.slane %v5925, %v5929
    %v5931 = vlaneseq
    %v5932 = vshrl.u32 %v5931, 7
    %v5933 = vsub.s32 1, %v5932
    %v5934 = vrot.slane %v5925, %v5933
    %v5937 = vmul.f32 %v5901, %v5930
    %v5938 = vmul.f32 %v5903, %v5934
    %5940 = vset.pattern.permute.xlu0 0
    %5941 = vperm.xlu0 %5940, %v5937
    %v5942 = vpop.permute.xlu0 %5941
    %5945 = vset.pattern.permute.xlu0 0
    %5946 = vperm.xlu0 %5945, %v5938
    %v5947 = vpop.permute.xlu0 %5946
    %v5949 = vmul.f32 %v5942, %v3512
    %v5950 = vmul.f32 %v5942, %v3513
    %v5951 = vmul.f32 %v5947, %v3514
    %v5952 = vmul.f32 %v5947, %v3515
    %v5953 = vrot.slane %v5949, 4
    %v5954 = vadd.f32 %v5949, %v5953
    %v5955 = vrot.slane %v5954, 2
    %v5956 = vadd.f32 %v5954, %v5955
    %v5957 = vrot.slane %v5956, 1
    %v5958 = vadd.f32 %v5956, %v5957
    %v5959 = vrot.slane %v5950, 4
    %v5960 = vadd.f32 %v5950, %v5959
    %v5961 = vrot.slane %v5960, 2
    %v5962 = vadd.f32 %v5960, %v5961
    %v5963 = vrot.slane %v5962, 1
    %v5964 = vadd.f32 %v5962, %v5963
    %v5965 = vrot.slane %v5951, 4
    %v5966 = vadd.f32 %v5951, %v5965
    %v5967 = vrot.slane %v5966, 2
    %v5968 = vadd.f32 %v5966, %v5967
    %v5969 = vrot.slane %v5968, 1
    %v5970 = vadd.f32 %v5968, %v5969
    %v5971 = vrot.slane %v5952, 4
    %v5972 = vadd.f32 %v5952, %v5971
    %v5973 = vrot.slane %v5972, 2
    %v5974 = vadd.f32 %v5972, %v5973
    %v5975 = vrot.slane %v5974, 1
    %v5976 = vadd.f32 %v5974, %v5975
    %v5977 = vpack.c.bf16 %v5845, %v5845
    %v5978 = vpack.c.bf16 %v5849, %v5849
    %v5979 = vpack.c.bf16 %v5853, %v5853
    %v5980 = vpack.c.bf16 %v5857, %v5857
    %v5981 = vpack.c.bf16 %v5958, %v5958
    %v5982 = vpack.c.bf16 %v5964, %v5964
    %v5983 = vpack.c.bf16 %v5970, %v5970
    %v5984 = vpack.c.bf16 %v5976, %v5976
    %v5989 = vunpack.c.l.b16 %v5981
    %v5990 = vunpack.c.l.b16 %v5982
    %v5991 = vunpack.c.l.b16 %v5983
    %v5992 = vunpack.c.l.b16 %v5984
    %v5993 = vsel %vm960, %v5991, %v5989
    %v5994 = vsel %vm960, %v5992, %v5990
    %v5995 = vpack.c.b16 %v5993, %v5993
    %v5996 = vpack.c.b16 %v5994, %v5994
    %5999 = vmatprep.subr.bf16.mxu0 0
    %6000 = vmatpush1.bf16.msra.mxu0 %v4705
    %6001 = vmatprep.subr.bf16.mxu0 0
    %6002 = vmatpush1.bf16.msra.mxu0 %v4704
    %6003 = vmatprep.subr.bf16.mxu0 0
    %6004 = vmatpush1.bf16.msra.mxu0 %v4703
    %6005 = vmatprep.subr.bf16.mxu0 0
    %6006 = vmatpush1.bf16.msra.mxu0 %v4702
    %6007 = vmatprep.subr.bf16.mxu0 0
    %6008 = vmatpush1.bf16.msra.mxu0 %v4701
    %6009 = vmatprep.subr.bf16.mxu0 0
    %6010 = vmatpush1.bf16.msra.mxu0 %v4700
    %6011 = vmatprep.subr.bf16.mxu0 0
    %6012 = vmatpush1.bf16.msra.mxu0 %v4699
    %6013 = vmatprep.subr.bf16.mxu0 0
    %6014 = vmatpush1.bf16.msra.mxu0 %v4698
    %6015 = vmatprep.subr.bf16.mxu0 0
    %6016 = vmatpush2.bf16.msra.mxu0 %v4713
    %6017 = vmatprep.subr.bf16.mxu0 0
    %6018 = vmatpush2.bf16.msra.mxu0 %v4712
    %6019 = vmatprep.subr.bf16.mxu0 0
    %6020 = vmatpush2.bf16.msra.mxu0 %v4711
    %6021 = vmatprep.subr.bf16.mxu0 0
    %6022 = vmatpush2.bf16.msra.mxu0 %v4710
    %6023 = vmatprep.subr.bf16.mxu0 0
    %6024 = vmatpush2.bf16.msra.mxu0 %v4709
    %6025 = vmatprep.subr.bf16.mxu0 0
    %6026 = vmatpush2.bf16.msra.mxu0 %v4708
    %6027 = vmatprep.subr.bf16.mxu0 0
    %6028 = vmatpush2.bf16.msra.mxu0 %v4707
    %6029 = vmatprep.subr.bf16.mxu0 0
    %6030 = vmatpush2.bf16.msra.mxu0 %v4706
    %6031 = vmatprep.mubr.bf16.mxu0 %v5996
    %6032 = vmatmul.mubr.bf16.gmra.mxu0 %v5995
    %v6033 = vpop.f32.mrf.mxu0
    %v6034 = vadd.f32 0.0, %v6033
    %v6035 = vpop.f32.mrf.mxu0
    %v6036 = vpop.f32.mrf.mxu0
    %v6037 = vpop.f32.mrf.mxu0
    %6038 = vdwg.mxu0
    %v6043 = vunpack.c.l.b16 %v5977
    %v6044 = vunpack.c.l.b16 %v5978
    %v6045 = vunpack.c.l.b16 %v5979
    %v6046 = vunpack.c.l.b16 %v5980
    %v6047 = vrot.slane %v6045, 7
    %v6048 = vsel %vm960, %v6047, %v6043
    %v6049 = vrot.slane %v6046, 7
    %v6050 = vsel %vm960, %v6049, %v6044
    %v6051 = vpack.c.b16 %v6048, %v6048
    %v6052 = vpack.c.b16 %v6050, %v6050
    %6055 = vmatprep.subr.bf16.mxu0 0
    %6056 = vmatpush1.bf16.msra.mxu0 %v4857
    %6057 = vmatprep.subr.bf16.mxu0 0
    %6058 = vmatpush1.bf16.msra.mxu0 %v4856
    %6059 = vmatprep.subr.bf16.mxu0 0
    %6060 = vmatpush1.bf16.msra.mxu0 %v4855
    %6061 = vmatprep.subr.bf16.mxu0 0
    %6062 = vmatpush1.bf16.msra.mxu0 %v4854
    %6063 = vmatprep.subr.bf16.mxu0 0
    %6064 = vmatpush1.bf16.msra.mxu0 %v4853
    %6065 = vmatprep.subr.bf16.mxu0 0
    %6066 = vmatpush1.bf16.msra.mxu0 %v4852
    %6067 = vmatprep.subr.bf16.mxu0 0
    %6068 = vmatpush1.bf16.msra.mxu0 %v4851
    %6069 = vmatprep.subr.bf16.mxu0 0
    %6070 = vmatpush1.bf16.msra.mxu0 %v4850
    %6071 = vmatprep.subr.bf16.mxu0 0
    %6072 = vmatpush2.bf16.msra.mxu0 %v4865
    %6073 = vmatprep.subr.bf16.mxu0 0
    %6074 = vmatpush2.bf16.msra.mxu0 %v4864
    %6075 = vmatprep.subr.bf16.mxu0 0
    %6076 = vmatpush2.bf16.msra.mxu0 %v4863
    %6077 = vmatprep.subr.bf16.mxu0 0
    %6078 = vmatpush2.bf16.msra.mxu0 %v4862
    %6079 = vmatprep.subr.bf16.mxu0 0
    %6080 = vmatpush2.bf16.msra.mxu0 %v4861
    %6081 = vmatprep.subr.bf16.mxu0 0
    %6082 = vmatpush2.bf16.msra.mxu0 %v4860
    %6083 = vmatprep.subr.bf16.mxu0 0
    %6084 = vmatpush2.bf16.msra.mxu0 %v4859
    %6085 = vmatprep.subr.bf16.mxu0 0
    %6086 = vmatpush2.bf16.msra.mxu0 %v4858
    %6087 = vmatprep.mubr.bf16.mxu0 %v6052
    %6088 = vmatmul.mubr.bf16.gmra.mxu0 %v6051
    %v6089 = vpop.f32.mrf.mxu0
    %v6090 = vadd.f32 %v6034, %v6089
    %v6091 = vpop.f32.mrf.mxu0
    %v6092 = vpop.f32.mrf.mxu0
    %v6093 = vpop.f32.mrf.mxu0
    %6094 = vdwg.mxu0
    %v6095 = vadd.f32 %v6090, %v292
    %v6096 = vsel %vm4923, %v6095, -inf
    %6097 = vmax.xlane.f32.xlu0 %v6096
    %v6098 = vpop.xlane.xlu0 %6097
    %v6099 = vsub.f32 %v6095, %v6098
    %v6100 = vmul.f32 %v6099, 1.442695
    %v6101 = vpow.pop %v6100
    %v6102 = vsel %vm4923, %v6101, 0.0
    %6103 = vadd.xlane.f32.xlu0 %v6102
    %v6104 = vpop.xlane.xlu0 %6103
    %v6105 = vlog2.pop %v6104
    %v6106 = vmul.f32 %v6105, 0.6931472
    %v6107 = vadd.f32 %v6098, %v6106
    %v6108 = vsub.f32 %v6095, %v6107
    %v6111 = vunpack.c.l.s4 1966171168
    %v6112 = vunpack.c.0.s8 %v6111
    %v6113 = vlaneseq
    %v6114 = vshrl.u32 %v6113, 7
    %v6115 = vsub.s32 %v6112, %v6114
    %v6116 = vrot.slane %v6108, %v6115
    %v6117 = vcombine.high %v6116, %v6116
    %v6119 = vunpack.c.l.s4 1966171168
    %v6120 = vunpack.c.0.s8 %v6119
    %v6121 = vlaneseq
    %v6122 = vshrl.u32 %v6121, 7
    %v6123 = vsub.s32 %v6120, %v6122
    %v6124 = vrot.slane %v6116, %v6123
    %v6126 = vunpack.c.l.s4 1966171168
    %v6127 = vunpack.c.0.s8 %v6126
    %v6128 = vlaneseq
    %v6129 = vshrl.u32 %v6128, 7
    %v6130 = vsub.s32 %v6127, %v6129
    %v6131 = vrot.slane %v6117, %v6130
    %6134 = vst [vmem:[#allocation3 + $0x2] sm:$0x1] %v6124
    %6135 = vst [vmem:[#allocation3 + $0xa] sm:$0x1] %v6131
    %s6136 = scalar_lea.vmem %s1, 3
    %v6137 = vld [vmem:[%s6136] ss:$8 sm:$0xf]
    %v6138 = vld [vmem:[%s6136] ss:$8 sm:$0xf0]
    %v6139 = vor.u32 %v6137, %v6138
    %s6140 = scalar_lea.vmem %s1, 67
    %v6141 = vld [vmem:[%s6140] ss:$8 sm:$0xf]
    %v6142 = vld [vmem:[%s6140] ss:$8 sm:$0xf0]
    %v6143 = vor.u32 %v6141, %v6142
    %6144 = vmatprep.subr.bf16.mxu0 %v3966
    %6145 = vmatpush1.bf16.msra.mxu0 %v3965
    %6146 = vmatprep.subr.bf16.mxu0 %v3958
    %6147 = vmatpush1.bf16.msra.mxu0 %v3957
    %6148 = vmatprep.subr.bf16.mxu0 %v3950
    %6149 = vmatpush1.bf16.msra.mxu0 %v3949
    %6150 = vmatprep.subr.bf16.mxu0 %v3942
    %6151 = vmatpush1.bf16.msra.mxu0 %v3941
    %6152 = vmatprep.subr.bf16.mxu0 %v3934
    %6153 = vmatpush1.bf16.msra.mxu0 %v3933
    %6154 = vmatprep.subr.bf16.mxu0 %v3926
    %6155 = vmatpush1.bf16.msra.mxu0 %v3925
    %6156 = vmatprep.subr.bf16.mxu0 %v3918
    %6157 = vmatpush1.bf16.msra.mxu0 %v3917
    %6158 = vmatprep.subr.bf16.mxu0 %v3910
    %6159 = vmatpush1.bf16.msra.mxu0 %v3909
    %6160 = vmatprep.subr.bf16.mxu0 %v4030
    %6161 = vmatpush2.bf16.msra.mxu0 %v4029
    %6162 = vmatprep.subr.bf16.mxu0 %v4022
    %6163 = vmatpush2.bf16.msra.mxu0 %v4021
    %6164 = vmatprep.subr.bf16.mxu0 %v4014
    %6165 = vmatpush2.bf16.msra.mxu0 %v4013
    %6166 = vmatprep.subr.bf16.mxu0 %v4006
    %6167 = vmatpush2.bf16.msra.mxu0 %v4005
    %6168 = vmatprep.subr.bf16.mxu0 %v3998
    %6169 = vmatpush2.bf16.msra.mxu0 %v3997
    %6170 = vmatprep.subr.bf16.mxu0 %v3990
    %6171 = vmatpush2.bf16.msra.mxu0 %v3989
    %6172 = vmatprep.subr.bf16.mxu0 %v3982
    %6173 = vmatpush2.bf16.msra.mxu0 %v3981
    %6174 = vmatprep.subr.bf16.mxu0 %v3974
    %6175 = vmatpush2.bf16.msra.mxu0 %v3973
    %6176 = vmatprep.mubr.bf16.mxu0 %v6052
    %6177 = vmatmul.mubr.bf16.gmra.mxu0 %v6051
    %v6178 = vpop.f32.mrf.mxu0
    %v6179 = vadd.f32 0.0, %v6178
    %v6180 = vpop.f32.mrf.mxu0
    %v6181 = vadd.f32 0.0, %v6180
    %v6182 = vpop.f32.mrf.mxu0
    %v6183 = vpop.f32.mrf.mxu0
    %6184 = vdwg.mxu0
    %6185 = vmatprep.subr.bf16.mxu0 %v3968
    %6186 = vmatpush1.bf16.msra.mxu0 %v3967
    %6187 = vmatprep.subr.bf16.mxu0 %v3960
    %6188 = vmatpush1.bf16.msra.mxu0 %v3959
    %6189 = vmatprep.subr.bf16.mxu0 %v3952
    %6190 = vmatpush1.bf16.msra.mxu0 %v3951
    %6191 = vmatprep.subr.bf16.mxu0 %v3944
    %6192 = vmatpush1.bf16.msra.mxu0 %v3943
    %6193 = vmatprep.subr.bf16.mxu0 %v3936
    %6194 = vmatpush1.bf16.msra.mxu0 %v3935
    %6195 = vmatprep.subr.bf16.mxu0 %v3928
    %6196 = vmatpush1.bf16.msra.mxu0 %v3927
    %6197 = vmatprep.subr.bf16.mxu0 %v3920
    %6198 = vmatpush1.bf16.msra.mxu0 %v3919
    %6199 = vmatprep.subr.bf16.mxu0 %v3912
    %6200 = vmatpush1.bf16.msra.mxu0 %v3911
    %6201 = vmatprep.subr.bf16.mxu0 %v4032
    %6202 = vmatpush2.bf16.msra.mxu0 %v4031
    %6203 = vmatprep.subr.bf16.mxu0 %v4024
    %6204 = vmatpush2.bf16.msra.mxu0 %v4023
    %6205 = vmatprep.subr.bf16.mxu0 %v4016
    %6206 = vmatpush2.bf16.msra.mxu0 %v4015
    %6207 = vmatprep.subr.bf16.mxu0 %v4008
    %6208 = vmatpush2.bf16.msra.mxu0 %v4007
    %6209 = vmatprep.subr.bf16.mxu0 %v4000
    %6210 = vmatpush2.bf16.msra.mxu0 %v3999
    %6211 = vmatprep.subr.bf16.mxu0 %v3992
    %6212 = vmatpush2.bf16.msra.mxu0 %v3991
    %6213 = vmatprep.subr.bf16.mxu0 %v3984
    %6214 = vmatpush2.bf16.msra.mxu0 %v3983
    %6215 = vmatprep.subr.bf16.mxu0 %v3976
    %6216 = vmatpush2.bf16.msra.mxu0 %v3975
    %6217 = vmatprep.mubr.bf16.mxu0 %v6052
    %6218 = vmatmul.mubr.bf16.gmra.mxu0 %v6051
    %v6219 = vpop.f32.mrf.mxu0
    %v6220 = vadd.f32 0.0, %v6219
    %v6221 = vpop.f32.mrf.mxu0
    %v6222 = vadd.f32 0.0, %v6221
    %v6223 = vpop.f32.mrf.mxu0
    %v6224 = vpop.f32.mrf.mxu0
    %6225 = vdwg.mxu0
    %6226 = vmatprep.subr.bf16.mxu0 %v3970
    %6227 = vmatpush1.bf16.msra.mxu0 %v3969
    %6228 = vmatprep.subr.bf16.mxu0 %v3962
    %6229 = vmatpush1.bf16.msra.mxu0 %v3961
    %6230 = vmatprep.subr.bf16.mxu0 %v3954
    %6231 = vmatpush1.bf16.msra.mxu0 %v3953
    %6232 = vmatprep.subr.bf16.mxu0 %v3946
    %6233 = vmatpush1.bf16.msra.mxu0 %v3945
    %6234 = vmatprep.subr.bf16.mxu0 %v3938
    %6235 = vmatpush1.bf16.msra.mxu0 %v3937
    %6236 = vmatprep.subr.bf16.mxu0 %v3930
    %6237 = vmatpush1.bf16.msra.mxu0 %v3929
    %6238 = vmatprep.subr.bf16.mxu0 %v3922
    %6239 = vmatpush1.bf16.msra.mxu0 %v3921
    %6240 = vmatprep.subr.bf16.mxu0 %v3914
    %6241 = vmatpush1.bf16.msra.mxu0 %v3913
    %6242 = vmatprep.subr.bf16.mxu0 %v4034
    %6243 = vmatpush2.bf16.msra.mxu0 %v4033
    %6244 = vmatprep.subr.bf16.mxu0 %v4026
    %6245 = vmatpush2.bf16.msra.mxu0 %v4025
    %6246 = vmatprep.subr.bf16.mxu0 %v4018
    %6247 = vmatpush2.bf16.msra.mxu0 %v4017
    %6248 = vmatprep.subr.bf16.mxu0 %v4010
    %6249 = vmatpush2.bf16.msra.mxu0 %v4009
    %6250 = vmatprep.subr.bf16.mxu0 %v4002
    %6251 = vmatpush2.bf16.msra.mxu0 %v4001
    %6252 = vmatprep.subr.bf16.mxu0 %v3994
    %6253 = vmatpush2.bf16.msra.mxu0 %v3993
    %6254 = vmatprep.subr.bf16.mxu0 %v3986
    %6255 = vmatpush2.bf16.msra.mxu0 %v3985
    %6256 = vmatprep.subr.bf16.mxu0 %v3978
    %6257 = vmatpush2.bf16.msra.mxu0 %v3977
    %6258 = vmatprep.mubr.bf16.mxu0 %v6052
    %6259 = vmatmul.mubr.bf16.gmra.mxu0 %v6051
    %v6260 = vpop.f32.mrf.mxu0
    %v6261 = vadd.f32 0.0, %v6260
    %v6262 = vpop.f32.mrf.mxu0
    %v6263 = vadd.f32 0.0, %v6262
    %v6264 = vpop.f32.mrf.mxu0
    %v6265 = vpop.f32.mrf.mxu0
    %6266 = vdwg.mxu0
    %6267 = vmatprep.subr.bf16.mxu0 %v3972
    %6268 = vmatpush1.bf16.msra.mxu0 %v3971
    %6269 = vmatprep.subr.bf16.mxu0 %v3964
    %6270 = vmatpush1.bf16.msra.mxu0 %v3963
    %6271 = vmatprep.subr.bf16.mxu0 %v3956
    %6272 = vmatpush1.bf16.msra.mxu0 %v3955
    %6273 = vmatprep.subr.bf16.mxu0 %v3948
    %6274 = vmatpush1.bf16.msra.mxu0 %v3947
    %6275 = vmatprep.subr.bf16.mxu0 %v3940
    %6276 = vmatpush1.bf16.msra.mxu0 %v3939
    %6277 = vmatprep.subr.bf16.mxu0 %v3932
    %6278 = vmatpush1.bf16.msra.mxu0 %v3931
    %6279 = vmatprep.subr.bf16.mxu0 %v3924
    %6280 = vmatpush1.bf16.msra.mxu0 %v3923
    %6281 = vmatprep.subr.bf16.mxu0 %v3916
    %6282 = vmatpush1.bf16.msra.mxu0 %v3915
    %6283 = vmatprep.subr.bf16.mxu0 %v4036
    %6284 = vmatpush2.bf16.msra.mxu0 %v4035
    %6285 = vmatprep.subr.bf16.mxu0 %v4028
    %6286 = vmatpush2.bf16.msra.mxu0 %v4027
    %6287 = vmatprep.subr.bf16.mxu0 %v4020
    %6288 = vmatpush2.bf16.msra.mxu0 %v4019
    %6289 = vmatprep.subr.bf16.mxu0 %v4012
    %6290 = vmatpush2.bf16.msra.mxu0 %v4011
    %6291 = vmatprep.subr.bf16.mxu0 %v4004
    %6292 = vmatpush2.bf16.msra.mxu0 %v4003
    %6293 = vmatprep.subr.bf16.mxu0 %v3996
    %6294 = vmatpush2.bf16.msra.mxu0 %v3995
    %6295 = vmatprep.subr.bf16.mxu0 %v3988
    %6296 = vmatpush2.bf16.msra.mxu0 %v3987
    %6297 = vmatprep.subr.bf16.mxu0 %v3980
    %6298 = vmatpush2.bf16.msra.mxu0 %v3979
    %6299 = vmatprep.mubr.bf16.mxu0 %v6052
    %6300 = vmatmul.mubr.bf16.gmra.mxu0 %v6051
    %v6301 = vpop.f32.mrf.mxu0
    %v6302 = vadd.f32 0.0, %v6301
    %v6303 = vpop.f32.mrf.mxu0
    %v6304 = vadd.f32 0.0, %v6303
    %v6305 = vpop.f32.mrf.mxu0
    %v6306 = vpop.f32.mrf.mxu0
    %6307 = vdwg.mxu0
    %v6316 = vcombine.low %v6179, %v6181
    %v6317 = vcombine.low %v6220, %v6222
    %v6318 = vcombine.low %v6261, %v6263
    %v6319 = vcombine.low %v6302, %v6304
    %v6321 = vunpack.c.l.s4 1966171168
    %v6322 = vunpack.c.0.s8 %v6321
    %v6323 = vlaneseq
    %v6324 = vshrl.u32 %v6323, 7
    %v6325 = vsub.s32 %v6322, %v6324
    %v6326 = vrot.slane %v6316, %v6325
    %v6328 = vunpack.c.l.s4 1966171168
    %v6329 = vunpack.c.0.s8 %v6328
    %v6330 = vlaneseq
    %v6331 = vshrl.u32 %v6330, 7
    %v6332 = vsub.s32 %v6329, %v6331
    %v6333 = vrot.slane %v6317, %v6332
    %v6335 = vunpack.c.l.s4 1966171168
    %v6336 = vunpack.c.0.s8 %v6335
    %v6337 = vlaneseq
    %v6338 = vshrl.u32 %v6337, 7
    %v6339 = vsub.s32 %v6336, %v6338
    %v6340 = vrot.slane %v6318, %v6339
    %v6342 = vunpack.c.l.s4 1966171168
    %v6343 = vunpack.c.0.s8 %v6342
    %v6344 = vlaneseq
    %v6345 = vshrl.u32 %v6344, 7
    %v6346 = vsub.s32 %v6343, %v6345
    %v6347 = vrot.slane %v6319, %v6346
    %v6348 = vcombine.low %v6326, %v6333
    %v6349 = vcombine.high %v6326, %v6333
    %v6350 = vcombine.low %v6340, %v6347
    %v6351 = vcombine.high %v6340, %v6347
    %v6353 = vunpack.c.l.s4 1966171168
    %v6354 = vunpack.c.0.s8 %v6353
    %v6355 = vlaneseq
    %v6356 = vshrl.u32 %v6355, 7
    %v6357 = vsub.s32 %v6354, %v6356
    %v6358 = vrot.slane %v6348, %v6357
    %v6360 = vunpack.c.l.s4 1966171168
    %v6361 = vunpack.c.0.s8 %v6360
    %v6362 = vlaneseq
    %v6363 = vshrl.u32 %v6362, 7
    %v6364 = vsub.s32 %v6361, %v6363
    %v6365 = vrot.slane %v6349, %v6364
    %v6367 = vunpack.c.l.s4 1966171168
    %v6368 = vunpack.c.0.s8 %v6367
    %v6369 = vlaneseq
    %v6370 = vshrl.u32 %v6369, 7
    %v6371 = vsub.s32 %v6368, %v6370
    %v6372 = vrot.slane %v6350, %v6371
    %v6374 = vunpack.c.l.s4 1966171168
    %v6375 = vunpack.c.0.s8 %v6374
    %v6376 = vlaneseq
    %v6377 = vshrl.u32 %v6376, 7
    %v6378 = vsub.s32 %v6375, %v6377
    %v6379 = vrot.slane %v6351, %v6378
    %v6380 = vcombine.low %v6358, %v6372
    %v6381 = vcombine.low %v6365, %v6379
    %v6384 = vadd.f32 %v6139, %v6380
    %v6385 = vadd.f32 %v6143, %v6381
    %v6386 = vxor.u32 %v6384, 2147483648
    %v6387 = vxor.u32 %v6385, 2147483648
    %v6388 = vmul.f32 %v6386, 1.442695
    %v6389 = vpow.pop %v6388
    %v6390 = vmul.f32 %v6387, 1.442695
    %v6391 = vpow.pop %v6390
    %v6392 = vadd.f32 %v6389, 1.0
    %v6393 = vadd.f32 %v6391, 1.0
    %v6394 = vrcp.pop %v6392
    %v6395 = vmul.f32 1.0, %v6394
    %v6396 = vrcp.pop %v6393
    %v6397 = vmul.f32 1.0, %v6396
    %v6400 = vrot.slane %v6384, 6
    %v6401 = vrot.slane %v6385, 6
    %v6404 = vtanh.pop %v6400
    %v6405 = vtanh.pop %v6401
    %v6408 = vrot.slane %v6395, 2
    %v6409 = vrot.slane %v6397, 2
    %v6412 = vmul.f32 %v6408, %v5830
    %v6413 = vmul.f32 %v6409, %v5831
    %v6414 = vmul.f32 %v6395, %v6404
    %v6415 = vmul.f32 %v6397, %v6405
    %v6416 = vadd.f32 %v6412, %v6414
    %v6417 = vadd.f32 %v6413, %v6415
    %v6418 = vtanh.pop %v6416
    %v6419 = vtanh.pop %v6417
    %v6420 = vrot.slane %v6395, 4
    %v6421 = vrot.slane %v6397, 4
    %v6424 = vmul.f32 %v6420, %v6418
    %v6425 = vmul.f32 %v6421, %v6419
    %v6428 = vlaneseq
    %v6429 = vshrl.u32 %v6428, 7
    %v6430 = vsub.s32 0, %v6429
    %v6431 = vrot.slane %v6424, %v6430
    %v6432 = vlaneseq
    %v6433 = vshrl.u32 %v6432, 7
    %v6434 = vsub.s32 1, %v6433
    %v6435 = vrot.slane %v6424, %v6434
    %v6436 = vlaneseq
    %v6437 = vshrl.u32 %v6436, 7
    %v6438 = vsub.s32 0, %v6437
    %v6439 = vrot.slane %v6425, %v6438
    %v6440 = vlaneseq
    %v6441 = vshrl.u32 %v6440, 7
    %v6442 = vsub.s32 1, %v6441
    %v6443 = vrot.slane %v6425, %v6442
    %v6448 = vmul.f32 %v6431, %v3512
    %v6449 = vmul.f32 %v6435, %v3513
    %v6450 = vmul.f32 %v6439, %v3514
    %v6451 = vmul.f32 %v6443, %v3515
    %v6452 = vadd.f32 %v6448, %v6449
    %6453 = vadd.xlane.f32.xlu0 %v6452
    %v6454 = vpop.xlane.xlu0 %6453
    %v6455 = vadd.f32 %v6450, %v6451
    %6456 = vadd.xlane.f32.xlu0 %v6455
    %v6457 = vpop.xlane.xlu0 %6456
    %v6460 = vlaneseq
    %v6461 = vshrl.u32 %v6460, 7
    %v6462 = vsub.s32 %v4507, %v6461
    %v6463 = vrot.slane %v6454, %v6462
    %v6464 = vlaneseq
    %v6465 = vshrl.u32 %v6464, 7
    %v6466 = vsub.s32 %v4507, %v6465
    %v6467 = vrot.slane %v6457, %v6466
    %v6468 = vsel %vm960, %v6467, %v6463
    %v6470 = vsel %vm4518, %v6468, -inf
    %6471 = vmax.xlane.f32.xlu0 %v6470
    %v6472 = vpop.xlane.xlu0 %6471
    %v6474 = vlaneseq
    %v6475 = vshrl.u32 %v6474, 7
    %v6476 = vsub.s32 0, %v6475
    %v6477 = vrot.slane %v6472, %v6476
    %v6478 = vlaneseq
    %v6479 = vshrl.u32 %v6478, 7
    %v6480 = vsub.s32 1, %v6479
    %v6481 = vrot.slane %v6472, %v6480
    %v6484 = vsub.f32 %v6454, %v6477
    %v6485 = vsub.f32 %v6457, %v6481
    %v6486 = vmul.f32 %v6484, 1.442695
    %v6487 = vpow.pop %v6486
    %v6488 = vmul.f32 %v6485, 1.442695
    %v6489 = vpow.pop %v6488
    %6492 = vset.pattern.permute.xlu0 0
    %6493 = vperm.xlu0 %6492, %v6487
    %v6494 = vpop.permute.xlu0 %6493
    %6495 = vset.pattern.permute.xlu0 0
    %6496 = vperm.xlu0 %6495, %v6489
    %v6497 = vpop.permute.xlu0 %6496
    %v6498 = vlaneseq
    %v6499 = vshrl.u32 %v6498, 7
    %v6500 = vsub.s32 %v4507, %v6499
    %v6501 = vrot.slane %v6494, %v6500
    %v6502 = vlaneseq
    %v6503 = vshrl.u32 %v6502, 7
    %v6504 = vsub.s32 %v4507, %v6503
    %v6505 = vrot.slane %v6497, %v6504
    %v6506 = vsel %vm960, %v6505, %v6501
    %v6508 = vsel %vm4518, %v6506, 0.0
    %6509 = vadd.xlane.f32.xlu0 %v6508
    %v6510 = vpop.xlane.xlu0 %6509
    %v6511 = vrcp.pop %v6510
    %v6513 = vlaneseq
    %v6514 = vshrl.u32 %v6513, 7
    %v6515 = vsub.s32 0, %v6514
    %v6516 = vrot.slane %v6511, %v6515
    %v6517 = vlaneseq
    %v6518 = vshrl.u32 %v6517, 7
    %v6519 = vsub.s32 1, %v6518
    %v6520 = vrot.slane %v6511, %v6519
    %v6523 = vmul.f32 %v6487, %v6516
    %v6524 = vmul.f32 %v6489, %v6520
    %6526 = vset.pattern.permute.xlu0 0
    %6527 = vperm.xlu0 %6526, %v6523
    %v6528 = vpop.permute.xlu0 %6527
    %6531 = vset.pattern.permute.xlu0 0
    %6532 = vperm.xlu0 %6531, %v6524
    %v6533 = vpop.permute.xlu0 %6532
    %v6535 = vmul.f32 %v6528, %v3512
    %v6536 = vmul.f32 %v6528, %v3513
    %v6537 = vmul.f32 %v6533, %v3514
    %v6538 = vmul.f32 %v6533, %v3515
    %v6539 = vrot.slane %v6535, 4
    %v6540 = vadd.f32 %v6535, %v6539
    %v6541 = vrot.slane %v6540, 2
    %v6542 = vadd.f32 %v6540, %v6541
    %v6543 = vrot.slane %v6542, 1
    %v6544 = vadd.f32 %v6542, %v6543
    %v6545 = vrot.slane %v6536, 4
    %v6546 = vadd.f32 %v6536, %v6545
    %v6547 = vrot.slane %v6546, 2
    %v6548 = vadd.f32 %v6546, %v6547
    %v6549 = vrot.slane %v6548, 1
    %v6550 = vadd.f32 %v6548, %v6549
    %v6551 = vrot.slane %v6537, 4
    %v6552 = vadd.f32 %v6537, %v6551
    %v6553 = vrot.slane %v6552, 2
    %v6554 = vadd.f32 %v6552, %v6553
    %v6555 = vrot.slane %v6554, 1
    %v6556 = vadd.f32 %v6554, %v6555
    %v6557 = vrot.slane %v6538, 4
    %v6558 = vadd.f32 %v6538, %v6557
    %v6559 = vrot.slane %v6558, 2
    %v6560 = vadd.f32 %v6558, %v6559
    %v6561 = vrot.slane %v6560, 1
    %v6562 = vadd.f32 %v6560, %v6561
    %v6563 = vpack.c.bf16 %v6431, %v6431
    %v6564 = vpack.c.bf16 %v6435, %v6435
    %v6565 = vpack.c.bf16 %v6439, %v6439
    %v6566 = vpack.c.bf16 %v6443, %v6443
    %v6567 = vpack.c.bf16 %v6544, %v6544
    %v6568 = vpack.c.bf16 %v6550, %v6550
    %v6569 = vpack.c.bf16 %v6556, %v6556
    %v6570 = vpack.c.bf16 %v6562, %v6562
    %v6575 = vunpack.c.l.b16 %v6567
    %v6576 = vunpack.c.l.b16 %v6568
    %v6577 = vunpack.c.l.b16 %v6569
    %v6578 = vunpack.c.l.b16 %v6570
    %v6579 = vsel %vm960, %v6577, %v6575
    %v6580 = vsel %vm960, %v6578, %v6576
    %v6581 = vpack.c.b16 %v6579, %v6579
    %v6582 = vpack.c.b16 %v6580, %v6580
    %6585 = vmatprep.subr.bf16.mxu0 0
    %6586 = vmatpush1.bf16.msra.mxu0 %v4705
    %6587 = vmatprep.subr.bf16.mxu0 0
    %6588 = vmatpush1.bf16.msra.mxu0 %v4704
    %6589 = vmatprep.subr.bf16.mxu0 0
    %6590 = vmatpush1.bf16.msra.mxu0 %v4703
    %6591 = vmatprep.subr.bf16.mxu0 0
    %6592 = vmatpush1.bf16.msra.mxu0 %v4702
    %6593 = vmatprep.subr.bf16.mxu0 0
    %6594 = vmatpush1.bf16.msra.mxu0 %v4701
    %6595 = vmatprep.subr.bf16.mxu0 0
    %6596 = vmatpush1.bf16.msra.mxu0 %v4700
    %6597 = vmatprep.subr.bf16.mxu0 0
    %6598 = vmatpush1.bf16.msra.mxu0 %v4699
    %6599 = vmatprep.subr.bf16.mxu0 0
    %6600 = vmatpush1.bf16.msra.mxu0 %v4698
    %6601 = vmatprep.subr.bf16.mxu0 0
    %6602 = vmatpush2.bf16.msra.mxu0 %v4713
    %6603 = vmatprep.subr.bf16.mxu0 0
    %6604 = vmatpush2.bf16.msra.mxu0 %v4712
    %6605 = vmatprep.subr.bf16.mxu0 0
    %6606 = vmatpush2.bf16.msra.mxu0 %v4711
    %6607 = vmatprep.subr.bf16.mxu0 0
    %6608 = vmatpush2.bf16.msra.mxu0 %v4710
    %6609 = vmatprep.subr.bf16.mxu0 0
    %6610 = vmatpush2.bf16.msra.mxu0 %v4709
    %6611 = vmatprep.subr.bf16.mxu0 0
    %6612 = vmatpush2.bf16.msra.mxu0 %v4708
    %6613 = vmatprep.subr.bf16.mxu0 0
    %6614 = vmatpush2.bf16.msra.mxu0 %v4707
    %6615 = vmatprep.subr.bf16.mxu0 0
    %6616 = vmatpush2.bf16.msra.mxu0 %v4706
    %6617 = vmatprep.mubr.bf16.mxu0 %v6582
    %6618 = vmatmul.mubr.bf16.gmra.mxu0 %v6581
    %v6619 = vpop.f32.mrf.mxu0
    %v6620 = vadd.f32 0.0, %v6619
    %v6621 = vpop.f32.mrf.mxu0
    %v6622 = vpop.f32.mrf.mxu0
    %v6623 = vpop.f32.mrf.mxu0
    %6624 = vdwg.mxu0
    %v6629 = vunpack.c.l.b16 %v6563
    %v6630 = vunpack.c.l.b16 %v6564
    %v6631 = vunpack.c.l.b16 %v6565
    %v6632 = vunpack.c.l.b16 %v6566
    %v6633 = vrot.slane %v6631, 7
    %v6634 = vsel %vm960, %v6633, %v6629
    %v6635 = vrot.slane %v6632, 7
    %v6636 = vsel %vm960, %v6635, %v6630
    %v6637 = vpack.c.b16 %v6634, %v6634
    %v6638 = vpack.c.b16 %v6636, %v6636
    %6641 = vmatprep.subr.bf16.mxu0 0
    %6642 = vmatpush1.bf16.msra.mxu0 %v4857
    %6643 = vmatprep.subr.bf16.mxu0 0
    %6644 = vmatpush1.bf16.msra.mxu0 %v4856
    %6645 = vmatprep.subr.bf16.mxu0 0
    %6646 = vmatpush1.bf16.msra.mxu0 %v4855
    %6647 = vmatprep.subr.bf16.mxu0 0
    %6648 = vmatpush1.bf16.msra.mxu0 %v4854
    %6649 = vmatprep.subr.bf16.mxu0 0
    %6650 = vmatpush1.bf16.msra.mxu0 %v4853
    %6651 = vmatprep.subr.bf16.mxu0 0
    %6652 = vmatpush1.bf16.msra.mxu0 %v4852
    %6653 = vmatprep.subr.bf16.mxu0 0
    %6654 = vmatpush1.bf16.msra.mxu0 %v4851
    %6655 = vmatprep.subr.bf16.mxu0 0
    %6656 = vmatpush1.bf16.msra.mxu0 %v4850
    %6657 = vmatprep.subr.bf16.mxu0 0
    %6658 = vmatpush2.bf16.msra.mxu0 %v4865
    %6659 = vmatprep.subr.bf16.mxu0 0
    %6660 = vmatpush2.bf16.msra.mxu0 %v4864
    %6661 = vmatprep.subr.bf16.mxu0 0
    %6662 = vmatpush2.bf16.msra.mxu0 %v4863
    %6663 = vmatprep.subr.bf16.mxu0 0
    %6664 = vmatpush2.bf16.msra.mxu0 %v4862
    %6665 = vmatprep.subr.bf16.mxu0 0
    %6666 = vmatpush2.bf16.msra.mxu0 %v4861
    %6667 = vmatprep.subr.bf16.mxu0 0
    %6668 = vmatpush2.bf16.msra.mxu0 %v4860
    %6669 = vmatprep.subr.bf16.mxu0 0
    %6670 = vmatpush2.bf16.msra.mxu0 %v4859
    %6671 = vmatprep.subr.bf16.mxu0 0
    %6672 = vmatpush2.bf16.msra.mxu0 %v4858
    %6673 = vmatprep.mubr.bf16.mxu0 %v6638
    %6674 = vmatmul.mubr.bf16.gmra.mxu0 %v6637
    %v6675 = vpop.f32.mrf.mxu0
    %v6676 = vadd.f32 %v6620, %v6675
    %v6677 = vpop.f32.mrf.mxu0
    %v6678 = vpop.f32.mrf.mxu0
    %v6679 = vpop.f32.mrf.mxu0
    %6680 = vdwg.mxu0
    %v6681 = vadd.f32 %v6676, %v292
    %v6682 = vsel %vm4923, %v6681, -inf
    %6683 = vmax.xlane.f32.xlu0 %v6682
    %v6684 = vpop.xlane.xlu0 %6683
    %v6685 = vsub.f32 %v6681, %v6684
    %v6686 = vmul.f32 %v6685, 1.442695
    %v6687 = vpow.pop %v6686
    %v6688 = vsel %vm4923, %v6687, 0.0
    %6689 = vadd.xlane.f32.xlu0 %v6688
    %v6690 = vpop.xlane.xlu0 %6689
    %v6691 = vlog2.pop %v6690
    %v6692 = vmul.f32 %v6691, 0.6931472
    %v6693 = vadd.f32 %v6684, %v6692
    %v6694 = vsub.f32 %v6681, %v6693
    %v6697 = vunpack.c.l.s4 1966171168
    %v6698 = vunpack.c.0.s8 %v6697
    %v6699 = vlaneseq
    %v6700 = vshrl.u32 %v6699, 7
    %v6701 = vsub.s32 %v6698, %v6700
    %v6702 = vrot.slane %v6694, %v6701
    %v6703 = vcombine.high %v6702, %v6702
    %v6705 = vunpack.c.l.s4 1966171168
    %v6706 = vunpack.c.0.s8 %v6705
    %v6707 = vlaneseq
    %v6708 = vshrl.u32 %v6707, 7
    %v6709 = vsub.s32 %v6706, %v6708
    %v6710 = vrot.slane %v6702, %v6709
    %v6712 = vunpack.c.l.s4 1966171168
    %v6713 = vunpack.c.0.s8 %v6712
    %v6714 = vlaneseq
    %v6715 = vshrl.u32 %v6714, 7
    %v6716 = vsub.s32 %v6713, %v6715
    %v6717 = vrot.slane %v6703, %v6716
    %6720 = vst [vmem:[#allocation3 + $0x3] sm:$0x1] %v6710
    %6721 = vst [vmem:[#allocation3 + $0xb] sm:$0x1] %v6717
    %s6722 = scalar_lea.vmem %s1, 4
    %v6723 = vld [vmem:[%s6722] ss:$8 sm:$0xf]
    %v6724 = vld [vmem:[%s6722] ss:$8 sm:$0xf0]
    %v6725 = vor.u32 %v6723, %v6724
    %s6726 = scalar_lea.vmem %s1, 68
    %v6727 = vld [vmem:[%s6726] ss:$8 sm:$0xf]
    %v6728 = vld [vmem:[%s6726] ss:$8 sm:$0xf0]
    %v6729 = vor.u32 %v6727, %v6728
    %6730 = vmatprep.subr.bf16.mxu0 %v3966
    %6731 = vmatpush1.bf16.msra.mxu0 %v3965
    %6732 = vmatprep.subr.bf16.mxu0 %v3958
    %6733 = vmatpush1.bf16.msra.mxu0 %v3957
    %6734 = vmatprep.subr.bf16.mxu0 %v3950
    %6735 = vmatpush1.bf16.msra.mxu0 %v3949
    %6736 = vmatprep.subr.bf16.mxu0 %v3942
    %6737 = vmatpush1.bf16.msra.mxu0 %v3941
    %6738 = vmatprep.subr.bf16.mxu0 %v3934
    %6739 = vmatpush1.bf16.msra.mxu0 %v3933
    %6740 = vmatprep.subr.bf16.mxu0 %v3926
    %6741 = vmatpush1.bf16.msra.mxu0 %v3925
    %6742 = vmatprep.subr.bf16.mxu0 %v3918
    %6743 = vmatpush1.bf16.msra.mxu0 %v3917
    %6744 = vmatprep.subr.bf16.mxu0 %v3910
    %6745 = vmatpush1.bf16.msra.mxu0 %v3909
    %6746 = vmatprep.subr.bf16.mxu0 %v4030
    %6747 = vmatpush2.bf16.msra.mxu0 %v4029
    %6748 = vmatprep.subr.bf16.mxu0 %v4022
    %6749 = vmatpush2.bf16.msra.mxu0 %v4021
    %6750 = vmatprep.subr.bf16.mxu0 %v4014
    %6751 = vmatpush2.bf16.msra.mxu0 %v4013
    %6752 = vmatprep.subr.bf16.mxu0 %v4006
    %6753 = vmatpush2.bf16.msra.mxu0 %v4005
    %6754 = vmatprep.subr.bf16.mxu0 %v3998
    %6755 = vmatpush2.bf16.msra.mxu0 %v3997
    %6756 = vmatprep.subr.bf16.mxu0 %v3990
    %6757 = vmatpush2.bf16.msra.mxu0 %v3989
    %6758 = vmatprep.subr.bf16.mxu0 %v3982
    %6759 = vmatpush2.bf16.msra.mxu0 %v3981
    %6760 = vmatprep.subr.bf16.mxu0 %v3974
    %6761 = vmatpush2.bf16.msra.mxu0 %v3973
    %6762 = vmatprep.mubr.bf16.mxu0 %v6638
    %6763 = vmatmul.mubr.bf16.gmra.mxu0 %v6637
    %v6764 = vpop.f32.mrf.mxu0
    %v6765 = vadd.f32 0.0, %v6764
    %v6766 = vpop.f32.mrf.mxu0
    %v6767 = vadd.f32 0.0, %v6766
    %v6768 = vpop.f32.mrf.mxu0
    %v6769 = vpop.f32.mrf.mxu0
    %6770 = vdwg.mxu0
    %6771 = vmatprep.subr.bf16.mxu0 %v3968
    %6772 = vmatpush1.bf16.msra.mxu0 %v3967
    %6773 = vmatprep.subr.bf16.mxu0 %v3960
    %6774 = vmatpush1.bf16.msra.mxu0 %v3959
    %6775 = vmatprep.subr.bf16.mxu0 %v3952
    %6776 = vmatpush1.bf16.msra.mxu0 %v3951
    %6777 = vmatprep.subr.bf16.mxu0 %v3944
    %6778 = vmatpush1.bf16.msra.mxu0 %v3943
    %6779 = vmatprep.subr.bf16.mxu0 %v3936
    %6780 = vmatpush1.bf16.msra.mxu0 %v3935
    %6781 = vmatprep.subr.bf16.mxu0 %v3928
    %6782 = vmatpush1.bf16.msra.mxu0 %v3927
    %6783 = vmatprep.subr.bf16.mxu0 %v3920
    %6784 = vmatpush1.bf16.msra.mxu0 %v3919
    %6785 = vmatprep.subr.bf16.mxu0 %v3912
    %6786 = vmatpush1.bf16.msra.mxu0 %v3911
    %6787 = vmatprep.subr.bf16.mxu0 %v4032
    %6788 = vmatpush2.bf16.msra.mxu0 %v4031
    %6789 = vmatprep.subr.bf16.mxu0 %v4024
    %6790 = vmatpush2.bf16.msra.mxu0 %v4023
    %6791 = vmatprep.subr.bf16.mxu0 %v4016
    %6792 = vmatpush2.bf16.msra.mxu0 %v4015
    %6793 = vmatprep.subr.bf16.mxu0 %v4008
    %6794 = vmatpush2.bf16.msra.mxu0 %v4007
    %6795 = vmatprep.subr.bf16.mxu0 %v4000
    %6796 = vmatpush2.bf16.msra.mxu0 %v3999
    %6797 = vmatprep.subr.bf16.mxu0 %v3992
    %6798 = vmatpush2.bf16.msra.mxu0 %v3991
    %6799 = vmatprep.subr.bf16.mxu0 %v3984
    %6800 = vmatpush2.bf16.msra.mxu0 %v3983
    %6801 = vmatprep.subr.bf16.mxu0 %v3976
    %6802 = vmatpush2.bf16.msra.mxu0 %v3975
    %6803 = vmatprep.mubr.bf16.mxu0 %v6638
    %6804 = vmatmul.mubr.bf16.gmra.mxu0 %v6637
    %v6805 = vpop.f32.mrf.mxu0
    %v6806 = vadd.f32 0.0, %v6805
    %v6807 = vpop.f32.mrf.mxu0
    %v6808 = vadd.f32 0.0, %v6807
    %v6809 = vpop.f32.mrf.mxu0
    %v6810 = vpop.f32.mrf.mxu0
    %6811 = vdwg.mxu0
    %6812 = vmatprep.subr.bf16.mxu0 %v3970
    %6813 = vmatpush1.bf16.msra.mxu0 %v3969
    %6814 = vmatprep.subr.bf16.mxu0 %v3962
    %6815 = vmatpush1.bf16.msra.mxu0 %v3961
    %6816 = vmatprep.subr.bf16.mxu0 %v3954
    %6817 = vmatpush1.bf16.msra.mxu0 %v3953
    %6818 = vmatprep.subr.bf16.mxu0 %v3946
    %6819 = vmatpush1.bf16.msra.mxu0 %v3945
    %6820 = vmatprep.subr.bf16.mxu0 %v3938
    %6821 = vmatpush1.bf16.msra.mxu0 %v3937
    %6822 = vmatprep.subr.bf16.mxu0 %v3930
    %6823 = vmatpush1.bf16.msra.mxu0 %v3929
    %6824 = vmatprep.subr.bf16.mxu0 %v3922
    %6825 = vmatpush1.bf16.msra.mxu0 %v3921
    %6826 = vmatprep.subr.bf16.mxu0 %v3914
    %6827 = vmatpush1.bf16.msra.mxu0 %v3913
    %6828 = vmatprep.subr.bf16.mxu0 %v4034
    %6829 = vmatpush2.bf16.msra.mxu0 %v4033
    %6830 = vmatprep.subr.bf16.mxu0 %v4026
    %6831 = vmatpush2.bf16.msra.mxu0 %v4025
    %6832 = vmatprep.subr.bf16.mxu0 %v4018
    %6833 = vmatpush2.bf16.msra.mxu0 %v4017
    %6834 = vmatprep.subr.bf16.mxu0 %v4010
    %6835 = vmatpush2.bf16.msra.mxu0 %v4009
    %6836 = vmatprep.subr.bf16.mxu0 %v4002
    %6837 = vmatpush2.bf16.msra.mxu0 %v4001
    %6838 = vmatprep.subr.bf16.mxu0 %v3994
    %6839 = vmatpush2.bf16.msra.mxu0 %v3993
    %6840 = vmatprep.subr.bf16.mxu0 %v3986
    %6841 = vmatpush2.bf16.msra.mxu0 %v3985
    %6842 = vmatprep.subr.bf16.mxu0 %v3978
    %6843 = vmatpush2.bf16.msra.mxu0 %v3977
    %6844 = vmatprep.mubr.bf16.mxu0 %v6638
    %6845 = vmatmul.mubr.bf16.gmra.mxu0 %v6637
    %v6846 = vpop.f32.mrf.mxu0
    %v6847 = vadd.f32 0.0, %v6846
    %v6848 = vpop.f32.mrf.mxu0
    %v6849 = vadd.f32 0.0, %v6848
    %v6850 = vpop.f32.mrf.mxu0
    %v6851 = vpop.f32.mrf.mxu0
    %6852 = vdwg.mxu0
    %6853 = vmatprep.subr.bf16.mxu0 %v3972
    %6854 = vmatpush1.bf16.msra.mxu0 %v3971
    %6855 = vmatprep.subr.bf16.mxu0 %v3964
    %6856 = vmatpush1.bf16.msra.mxu0 %v3963
    %6857 = vmatprep.subr.bf16.mxu0 %v3956
    %6858 = vmatpush1.bf16.msra.mxu0 %v3955
    %6859 = vmatprep.subr.bf16.mxu0 %v3948
    %6860 = vmatpush1.bf16.msra.mxu0 %v3947
    %6861 = vmatprep.subr.bf16.mxu0 %v3940
    %6862 = vmatpush1.bf16.msra.mxu0 %v3939
    %6863 = vmatprep.subr.bf16.mxu0 %v3932
    %6864 = vmatpush1.bf16.msra.mxu0 %v3931
    %6865 = vmatprep.subr.bf16.mxu0 %v3924
    %6866 = vmatpush1.bf16.msra.mxu0 %v3923
    %6867 = vmatprep.subr.bf16.mxu0 %v3916
    %6868 = vmatpush1.bf16.msra.mxu0 %v3915
    %6869 = vmatprep.subr.bf16.mxu0 %v4036
    %6870 = vmatpush2.bf16.msra.mxu0 %v4035
    %6871 = vmatprep.subr.bf16.mxu0 %v4028
    %6872 = vmatpush2.bf16.msra.mxu0 %v4027
    %6873 = vmatprep.subr.bf16.mxu0 %v4020
    %6874 = vmatpush2.bf16.msra.mxu0 %v4019
    %6875 = vmatprep.subr.bf16.mxu0 %v4012
    %6876 = vmatpush2.bf16.msra.mxu0 %v4011
    %6877 = vmatprep.subr.bf16.mxu0 %v4004
    %6878 = vmatpush2.bf16.msra.mxu0 %v4003
    %6879 = vmatprep.subr.bf16.mxu0 %v3996
    %6880 = vmatpush2.bf16.msra.mxu0 %v3995
    %6881 = vmatprep.subr.bf16.mxu0 %v3988
    %6882 = vmatpush2.bf16.msra.mxu0 %v3987
    %6883 = vmatprep.subr.bf16.mxu0 %v3980
    %6884 = vmatpush2.bf16.msra.mxu0 %v3979
    %6885 = vmatprep.mubr.bf16.mxu0 %v6638
    %6886 = vmatmul.mubr.bf16.gmra.mxu0 %v6637
    %v6887 = vpop.f32.mrf.mxu0
    %v6888 = vadd.f32 0.0, %v6887
    %v6889 = vpop.f32.mrf.mxu0
    %v6890 = vadd.f32 0.0, %v6889
    %v6891 = vpop.f32.mrf.mxu0
    %v6892 = vpop.f32.mrf.mxu0
    %6893 = vdwg.mxu0
    %v6902 = vcombine.low %v6765, %v6767
    %v6903 = vcombine.low %v6806, %v6808
    %v6904 = vcombine.low %v6847, %v6849
    %v6905 = vcombine.low %v6888, %v6890
    %v6907 = vunpack.c.l.s4 1966171168
    %v6908 = vunpack.c.0.s8 %v6907
    %v6909 = vlaneseq
    %v6910 = vshrl.u32 %v6909, 7
    %v6911 = vsub.s32 %v6908, %v6910
    %v6912 = vrot.slane %v6902, %v6911
    %v6914 = vunpack.c.l.s4 1966171168
    %v6915 = vunpack.c.0.s8 %v6914
    %v6916 = vlaneseq
    %v6917 = vshrl.u32 %v6916, 7
    %v6918 = vsub.s32 %v6915, %v6917
    %v6919 = vrot.slane %v6903, %v6918
    %v6921 = vunpack.c.l.s4 1966171168
    %v6922 = vunpack.c.0.s8 %v6921
    %v6923 = vlaneseq
    %v6924 = vshrl.u32 %v6923, 7
    %v6925 = vsub.s32 %v6922, %v6924
    %v6926 = vrot.slane %v6904, %v6925
    %v6928 = vunpack.c.l.s4 1966171168
    %v6929 = vunpack.c.0.s8 %v6928
    %v6930 = vlaneseq
    %v6931 = vshrl.u32 %v6930, 7
    %v6932 = vsub.s32 %v6929, %v6931
    %v6933 = vrot.slane %v6905, %v6932
    %v6934 = vcombine.low %v6912, %v6919
    %v6935 = vcombine.high %v6912, %v6919
    %v6936 = vcombine.low %v6926, %v6933
    %v6937 = vcombine.high %v6926, %v6933
    %v6939 = vunpack.c.l.s4 1966171168
    %v6940 = vunpack.c.0.s8 %v6939
    %v6941 = vlaneseq
    %v6942 = vshrl.u32 %v6941, 7
    %v6943 = vsub.s32 %v6940, %v6942
    %v6944 = vrot.slane %v6934, %v6943
    %v6946 = vunpack.c.l.s4 1966171168
    %v6947 = vunpack.c.0.s8 %v6946
    %v6948 = vlaneseq
    %v6949 = vshrl.u32 %v6948, 7
    %v6950 = vsub.s32 %v6947, %v6949
    %v6951 = vrot.slane %v6935, %v6950
    %v6953 = vunpack.c.l.s4 1966171168
    %v6954 = vunpack.c.0.s8 %v6953
    %v6955 = vlaneseq
    %v6956 = vshrl.u32 %v6955, 7
    %v6957 = vsub.s32 %v6954, %v6956
    %v6958 = vrot.slane %v6936, %v6957
    %v6960 = vunpack.c.l.s4 1966171168
    %v6961 = vunpack.c.0.s8 %v6960
    %v6962 = vlaneseq
    %v6963 = vshrl.u32 %v6962, 7
    %v6964 = vsub.s32 %v6961, %v6963
    %v6965 = vrot.slane %v6937, %v6964
    %v6966 = vcombine.low %v6944, %v6958
    %v6967 = vcombine.low %v6951, %v6965
    %v6970 = vadd.f32 %v6725, %v6966
    %v6971 = vadd.f32 %v6729, %v6967
    %v6972 = vxor.u32 %v6970, 2147483648
    %v6973 = vxor.u32 %v6971, 2147483648
    %v6974 = vmul.f32 %v6972, 1.442695
    %v6975 = vpow.pop %v6974
    %v6976 = vmul.f32 %v6973, 1.442695
    %v6977 = vpow.pop %v6976
    %v6978 = vadd.f32 %v6975, 1.0
    %v6979 = vadd.f32 %v6977, 1.0
    %v6980 = vrcp.pop %v6978
    %v6981 = vmul.f32 1.0, %v6980
    %v6982 = vrcp.pop %v6979
    %v6983 = vmul.f32 1.0, %v6982
    %v6986 = vrot.slane %v6970, 6
    %v6987 = vrot.slane %v6971, 6
    %v6990 = vtanh.pop %v6986
    %v6991 = vtanh.pop %v6987
    %v6994 = vrot.slane %v6981, 2
    %v6995 = vrot.slane %v6983, 2
    %v6998 = vmul.f32 %v6994, %v6416
    %v6999 = vmul.f32 %v6995, %v6417
    %v7000 = vmul.f32 %v6981, %v6990
    %v7001 = vmul.f32 %v6983, %v6991
    %v7002 = vadd.f32 %v6998, %v7000
    %v7003 = vadd.f32 %v6999, %v7001
    %v7004 = vtanh.pop %v7002
    %v7005 = vtanh.pop %v7003
    %v7006 = vrot.slane %v6981, 4
    %v7007 = vrot.slane %v6983, 4
    %v7010 = vmul.f32 %v7006, %v7004
    %v7011 = vmul.f32 %v7007, %v7005
    %v7014 = vlaneseq
    %v7015 = vshrl.u32 %v7014, 7
    %v7016 = vsub.s32 0, %v7015
    %v7017 = vrot.slane %v7010, %v7016
    %v7018 = vlaneseq
    %v7019 = vshrl.u32 %v7018, 7
    %v7020 = vsub.s32 1, %v7019
    %v7021 = vrot.slane %v7010, %v7020
    %v7022 = vlaneseq
    %v7023 = vshrl.u32 %v7022, 7
    %v7024 = vsub.s32 0, %v7023
    %v7025 = vrot.slane %v7011, %v7024
    %v7026 = vlaneseq
    %v7027 = vshrl.u32 %v7026, 7
    %v7028 = vsub.s32 1, %v7027
    %v7029 = vrot.slane %v7011, %v7028
    %v7034 = vmul.f32 %v7017, %v3512
    %v7035 = vmul.f32 %v7021, %v3513
    %v7036 = vmul.f32 %v7025, %v3514
    %v7037 = vmul.f32 %v7029, %v3515
    %v7038 = vadd.f32 %v7034, %v7035
    %7039 = vadd.xlane.f32.xlu0 %v7038
    %v7040 = vpop.xlane.xlu0 %7039
    %v7041 = vadd.f32 %v7036, %v7037
    %7042 = vadd.xlane.f32.xlu0 %v7041
    %v7043 = vpop.xlane.xlu0 %7042
    %v7046 = vlaneseq
    %v7047 = vshrl.u32 %v7046, 7
    %v7048 = vsub.s32 %v4507, %v7047
    %v7049 = vrot.slane %v7040, %v7048
    %v7050 = vlaneseq
    %v7051 = vshrl.u32 %v7050, 7
    %v7052 = vsub.s32 %v4507, %v7051
    %v7053 = vrot.slane %v7043, %v7052
    %v7054 = vsel %vm960, %v7053, %v7049
    %v7056 = vsel %vm4518, %v7054, -inf
    %7057 = vmax.xlane.f32.xlu0 %v7056
    %v7058 = vpop.xlane.xlu0 %7057
    %v7060 = vlaneseq
    %v7061 = vshrl.u32 %v7060, 7
    %v7062 = vsub.s32 0, %v7061
    %v7063 = vrot.slane %v7058, %v7062
    %v7064 = vlaneseq
    %v7065 = vshrl.u32 %v7064, 7
    %v7066 = vsub.s32 1, %v7065
    %v7067 = vrot.slane %v7058, %v7066
    %v7070 = vsub.f32 %v7040, %v7063
    %v7071 = vsub.f32 %v7043, %v7067
    %v7072 = vmul.f32 %v7070, 1.442695
    %v7073 = vpow.pop %v7072
    %v7074 = vmul.f32 %v7071, 1.442695
    %v7075 = vpow.pop %v7074
    %7078 = vset.pattern.permute.xlu0 0
    %7079 = vperm.xlu0 %7078, %v7073
    %v7080 = vpop.permute.xlu0 %7079
    %7081 = vset.pattern.permute.xlu0 0
    %7082 = vperm.xlu0 %7081, %v7075
    %v7083 = vpop.permute.xlu0 %7082
    %v7084 = vlaneseq
    %v7085 = vshrl.u32 %v7084, 7
    %v7086 = vsub.s32 %v4507, %v7085
    %v7087 = vrot.slane %v7080, %v7086
    %v7088 = vlaneseq
    %v7089 = vshrl.u32 %v7088, 7
    %v7090 = vsub.s32 %v4507, %v7089
    %v7091 = vrot.slane %v7083, %v7090
    %v7092 = vsel %vm960, %v7091, %v7087
    %v7094 = vsel %vm4518, %v7092, 0.0
    %7095 = vadd.xlane.f32.xlu0 %v7094
    %v7096 = vpop.xlane.xlu0 %7095
    %v7097 = vrcp.pop %v7096
    %v7099 = vlaneseq
    %v7100 = vshrl.u32 %v7099, 7
    %v7101 = vsub.s32 0, %v7100
    %v7102 = vrot.slane %v7097, %v7101
    %v7103 = vlaneseq
    %v7104 = vshrl.u32 %v7103, 7
    %v7105 = vsub.s32 1, %v7104
    %v7106 = vrot.slane %v7097, %v7105
    %v7109 = vmul.f32 %v7073, %v7102
    %v7110 = vmul.f32 %v7075, %v7106
    %7112 = vset.pattern.permute.xlu0 0
    %7113 = vperm.xlu0 %7112, %v7109
    %v7114 = vpop.permute.xlu0 %7113
    %7117 = vset.pattern.permute.xlu0 0
    %7118 = vperm.xlu0 %7117, %v7110
    %v7119 = vpop.permute.xlu0 %7118
    %v7121 = vmul.f32 %v7114, %v3512
    %v7122 = vmul.f32 %v7114, %v3513
    %v7123 = vmul.f32 %v7119, %v3514
    %v7124 = vmul.f32 %v7119, %v3515
    %v7125 = vrot.slane %v7121, 4
    %v7126 = vadd.f32 %v7121, %v7125
    %v7127 = vrot.slane %v7126, 2
    %v7128 = vadd.f32 %v7126, %v7127
    %v7129 = vrot.slane %v7128, 1
    %v7130 = vadd.f32 %v7128, %v7129
    %v7131 = vrot.slane %v7122, 4
    %v7132 = vadd.f32 %v7122, %v7131
    %v7133 = vrot.slane %v7132, 2
    %v7134 = vadd.f32 %v7132, %v7133
    %v7135 = vrot.slane %v7134, 1
    %v7136 = vadd.f32 %v7134, %v7135
    %v7137 = vrot.slane %v7123, 4
    %v7138 = vadd.f32 %v7123, %v7137
    %v7139 = vrot.slane %v7138, 2
    %v7140 = vadd.f32 %v7138, %v7139
    %v7141 = vrot.slane %v7140, 1
    %v7142 = vadd.f32 %v7140, %v7141
    %v7143 = vrot.slane %v7124, 4
    %v7144 = vadd.f32 %v7124, %v7143
    %v7145 = vrot.slane %v7144, 2
    %v7146 = vadd.f32 %v7144, %v7145
    %v7147 = vrot.slane %v7146, 1
    %v7148 = vadd.f32 %v7146, %v7147
    %v7149 = vpack.c.bf16 %v7017, %v7017
    %v7150 = vpack.c.bf16 %v7021, %v7021
    %v7151 = vpack.c.bf16 %v7025, %v7025
    %v7152 = vpack.c.bf16 %v7029, %v7029
    %v7153 = vpack.c.bf16 %v7130, %v7130
    %v7154 = vpack.c.bf16 %v7136, %v7136
    %v7155 = vpack.c.bf16 %v7142, %v7142
    %v7156 = vpack.c.bf16 %v7148, %v7148
    %v7161 = vunpack.c.l.b16 %v7153
    %v7162 = vunpack.c.l.b16 %v7154
    %v7163 = vunpack.c.l.b16 %v7155
    %v7164 = vunpack.c.l.b16 %v7156
    %v7165 = vsel %vm960, %v7163, %v7161
    %v7166 = vsel %vm960, %v7164, %v7162
    %v7167 = vpack.c.b16 %v7165, %v7165
    %v7168 = vpack.c.b16 %v7166, %v7166
    %7171 = vmatprep.subr.bf16.mxu0 0
    %7172 = vmatpush1.bf16.msra.mxu0 %v4705
    %7173 = vmatprep.subr.bf16.mxu0 0
    %7174 = vmatpush1.bf16.msra.mxu0 %v4704
    %7175 = vmatprep.subr.bf16.mxu0 0
    %7176 = vmatpush1.bf16.msra.mxu0 %v4703
    %7177 = vmatprep.subr.bf16.mxu0 0
    %7178 = vmatpush1.bf16.msra.mxu0 %v4702
    %7179 = vmatprep.subr.bf16.mxu0 0
    %7180 = vmatpush1.bf16.msra.mxu0 %v4701
    %7181 = vmatprep.subr.bf16.mxu0 0
    %7182 = vmatpush1.bf16.msra.mxu0 %v4700
    %7183 = vmatprep.subr.bf16.mxu0 0
    %7184 = vmatpush1.bf16.msra.mxu0 %v4699
    %7185 = vmatprep.subr.bf16.mxu0 0
    %7186 = vmatpush1.bf16.msra.mxu0 %v4698
    %7187 = vmatprep.subr.bf16.mxu0 0
    %7188 = vmatpush2.bf16.msra.mxu0 %v4713
    %7189 = vmatprep.subr.bf16.mxu0 0
    %7190 = vmatpush2.bf16.msra.mxu0 %v4712
    %7191 = vmatprep.subr.bf16.mxu0 0
    %7192 = vmatpush2.bf16.msra.mxu0 %v4711
    %7193 = vmatprep.subr.bf16.mxu0 0
    %7194 = vmatpush2.bf16.msra.mxu0 %v4710
    %7195 = vmatprep.subr.bf16.mxu0 0
    %7196 = vmatpush2.bf16.msra.mxu0 %v4709
    %7197 = vmatprep.subr.bf16.mxu0 0
    %7198 = vmatpush2.bf16.msra.mxu0 %v4708
    %7199 = vmatprep.subr.bf16.mxu0 0
    %7200 = vmatpush2.bf16.msra.mxu0 %v4707
    %7201 = vmatprep.subr.bf16.mxu0 0
    %7202 = vmatpush2.bf16.msra.mxu0 %v4706
    %7203 = vmatprep.mubr.bf16.mxu0 %v7168
    %7204 = vmatmul.mubr.bf16.gmra.mxu0 %v7167
    %v7205 = vpop.f32.mrf.mxu0
    %v7206 = vadd.f32 0.0, %v7205
    %v7207 = vpop.f32.mrf.mxu0
    %v7208 = vpop.f32.mrf.mxu0
    %v7209 = vpop.f32.mrf.mxu0
    %7210 = vdwg.mxu0
    %v7215 = vunpack.c.l.b16 %v7149
    %v7216 = vunpack.c.l.b16 %v7150
    %v7217 = vunpack.c.l.b16 %v7151
    %v7218 = vunpack.c.l.b16 %v7152
    %v7219 = vrot.slane %v7217, 7
    %v7220 = vsel %vm960, %v7219, %v7215
    %v7221 = vrot.slane %v7218, 7
    %v7222 = vsel %vm960, %v7221, %v7216
    %v7223 = vpack.c.b16 %v7220, %v7220
    %v7224 = vpack.c.b16 %v7222, %v7222
    %7227 = vmatprep.subr.bf16.mxu0 0
    %7228 = vmatpush1.bf16.msra.mxu0 %v4857
    %7229 = vmatprep.subr.bf16.mxu0 0
    %7230 = vmatpush1.bf16.msra.mxu0 %v4856
    %7231 = vmatprep.subr.bf16.mxu0 0
    %7232 = vmatpush1.bf16.msra.mxu0 %v4855
    %7233 = vmatprep.subr.bf16.mxu0 0
    %7234 = vmatpush1.bf16.msra.mxu0 %v4854
    %7235 = vmatprep.subr.bf16.mxu0 0
    %7236 = vmatpush1.bf16.msra.mxu0 %v4853
    %7237 = vmatprep.subr.bf16.mxu0 0
    %7238 = vmatpush1.bf16.msra.mxu0 %v4852
    %7239 = vmatprep.subr.bf16.mxu0 0
    %7240 = vmatpush1.bf16.msra.mxu0 %v4851
    %7241 = vmatprep.subr.bf16.mxu0 0
    %7242 = vmatpush1.bf16.msra.mxu0 %v4850
    %7243 = vmatprep.subr.bf16.mxu0 0
    %7244 = vmatpush2.bf16.msra.mxu0 %v4865
    %7245 = vmatprep.subr.bf16.mxu0 0
    %7246 = vmatpush2.bf16.msra.mxu0 %v4864
    %7247 = vmatprep.subr.bf16.mxu0 0
    %7248 = vmatpush2.bf16.msra.mxu0 %v4863
    %7249 = vmatprep.subr.bf16.mxu0 0
    %7250 = vmatpush2.bf16.msra.mxu0 %v4862
    %7251 = vmatprep.subr.bf16.mxu0 0
    %7252 = vmatpush2.bf16.msra.mxu0 %v4861
    %7253 = vmatprep.subr.bf16.mxu0 0
    %7254 = vmatpush2.bf16.msra.mxu0 %v4860
    %7255 = vmatprep.subr.bf16.mxu0 0
    %7256 = vmatpush2.bf16.msra.mxu0 %v4859
    %7257 = vmatprep.subr.bf16.mxu0 0
    %7258 = vmatpush2.bf16.msra.mxu0 %v4858
    %7259 = vmatprep.mubr.bf16.mxu0 %v7224
    %7260 = vmatmul.mubr.bf16.gmra.mxu0 %v7223
    %v7261 = vpop.f32.mrf.mxu0
    %v7262 = vadd.f32 %v7206, %v7261
    %v7263 = vpop.f32.mrf.mxu0
    %v7264 = vpop.f32.mrf.mxu0
    %v7265 = vpop.f32.mrf.mxu0
    %7266 = vdwg.mxu0
    %v7267 = vadd.f32 %v7262, %v292
    %v7268 = vsel %vm4923, %v7267, -inf
    %7269 = vmax.xlane.f32.xlu0 %v7268
    %v7270 = vpop.xlane.xlu0 %7269
    %v7271 = vsub.f32 %v7267, %v7270
    %v7272 = vmul.f32 %v7271, 1.442695
    %v7273 = vpow.pop %v7272
    %v7274 = vsel %vm4923, %v7273, 0.0
    %7275 = vadd.xlane.f32.xlu0 %v7274
    %v7276 = vpop.xlane.xlu0 %7275
    %v7277 = vlog2.pop %v7276
    %v7278 = vmul.f32 %v7277, 0.6931472
    %v7279 = vadd.f32 %v7270, %v7278
    %v7280 = vsub.f32 %v7267, %v7279
    %v7283 = vunpack.c.l.s4 1966171168
    %v7284 = vunpack.c.0.s8 %v7283
    %v7285 = vlaneseq
    %v7286 = vshrl.u32 %v7285, 7
    %v7287 = vsub.s32 %v7284, %v7286
    %v7288 = vrot.slane %v7280, %v7287
    %v7289 = vcombine.high %v7288, %v7288
    %v7291 = vunpack.c.l.s4 1966171168
    %v7292 = vunpack.c.0.s8 %v7291
    %v7293 = vlaneseq
    %v7294 = vshrl.u32 %v7293, 7
    %v7295 = vsub.s32 %v7292, %v7294
    %v7296 = vrot.slane %v7288, %v7295
    %v7298 = vunpack.c.l.s4 1966171168
    %v7299 = vunpack.c.0.s8 %v7298
    %v7300 = vlaneseq
    %v7301 = vshrl.u32 %v7300, 7
    %v7302 = vsub.s32 %v7299, %v7301
    %v7303 = vrot.slane %v7289, %v7302
    %7306 = vst [vmem:[#allocation3 + $0x4] sm:$0x1] %v7296
    %7307 = vst [vmem:[#allocation3 + $0xc] sm:$0x1] %v7303
    %s7308 = scalar_lea.vmem %s1, 5
    %v7309 = vld [vmem:[%s7308] ss:$8 sm:$0xf]
    %v7310 = vld [vmem:[%s7308] ss:$8 sm:$0xf0]
    %v7311 = vor.u32 %v7309, %v7310
    %s7312 = scalar_lea.vmem %s1, 69
    %v7313 = vld [vmem:[%s7312] ss:$8 sm:$0xf]
    %v7314 = vld [vmem:[%s7312] ss:$8 sm:$0xf0]
    %v7315 = vor.u32 %v7313, %v7314
    %7316 = vmatprep.subr.bf16.mxu0 %v3966
    %7317 = vmatpush1.bf16.msra.mxu0 %v3965
    %7318 = vmatprep.subr.bf16.mxu0 %v3958
    %7319 = vmatpush1.bf16.msra.mxu0 %v3957
    %7320 = vmatprep.subr.bf16.mxu0 %v3950
    %7321 = vmatpush1.bf16.msra.mxu0 %v3949
    %7322 = vmatprep.subr.bf16.mxu0 %v3942
    %7323 = vmatpush1.bf16.msra.mxu0 %v3941
    %7324 = vmatprep.subr.bf16.mxu0 %v3934
    %7325 = vmatpush1.bf16.msra.mxu0 %v3933
    %7326 = vmatprep.subr.bf16.mxu0 %v3926
    %7327 = vmatpush1.bf16.msra.mxu0 %v3925
    %7328 = vmatprep.subr.bf16.mxu0 %v3918
    %7329 = vmatpush1.bf16.msra.mxu0 %v3917
    %7330 = vmatprep.subr.bf16.mxu0 %v3910
    %7331 = vmatpush1.bf16.msra.mxu0 %v3909
    %7332 = vmatprep.subr.bf16.mxu0 %v4030
    %7333 = vmatpush2.bf16.msra.mxu0 %v4029
    %7334 = vmatprep.subr.bf16.mxu0 %v4022
    %7335 = vmatpush2.bf16.msra.mxu0 %v4021
    %7336 = vmatprep.subr.bf16.mxu0 %v4014
    %7337 = vmatpush2.bf16.msra.mxu0 %v4013
    %7338 = vmatprep.subr.bf16.mxu0 %v4006
    %7339 = vmatpush2.bf16.msra.mxu0 %v4005
    %7340 = vmatprep.subr.bf16.mxu0 %v3998
    %7341 = vmatpush2.bf16.msra.mxu0 %v3997
    %7342 = vmatprep.subr.bf16.mxu0 %v3990
    %7343 = vmatpush2.bf16.msra.mxu0 %v3989
    %7344 = vmatprep.subr.bf16.mxu0 %v3982
    %7345 = vmatpush2.bf16.msra.mxu0 %v3981
    %7346 = vmatprep.subr.bf16.mxu0 %v3974
    %7347 = vmatpush2.bf16.msra.mxu0 %v3973
    %7348 = vmatprep.mubr.bf16.mxu0 %v7224
    %7349 = vmatmul.mubr.bf16.gmra.mxu0 %v7223
    %v7350 = vpop.f32.mrf.mxu0
    %v7351 = vadd.f32 0.0, %v7350
    %v7352 = vpop.f32.mrf.mxu0
    %v7353 = vadd.f32 0.0, %v7352
    %v7354 = vpop.f32.mrf.mxu0
    %v7355 = vpop.f32.mrf.mxu0
    %7356 = vdwg.mxu0
    %7357 = vmatprep.subr.bf16.mxu0 %v3968
    %7358 = vmatpush1.bf16.msra.mxu0 %v3967
    %7359 = vmatprep.subr.bf16.mxu0 %v3960
    %7360 = vmatpush1.bf16.msra.mxu0 %v3959
    %7361 = vmatprep.subr.bf16.mxu0 %v3952
    %7362 = vmatpush1.bf16.msra.mxu0 %v3951
    %7363 = vmatprep.subr.bf16.mxu0 %v3944
    %7364 = vmatpush1.bf16.msra.mxu0 %v3943
    %7365 = vmatprep.subr.bf16.mxu0 %v3936
    %7366 = vmatpush1.bf16.msra.mxu0 %v3935
    %7367 = vmatprep.subr.bf16.mxu0 %v3928
    %7368 = vmatpush1.bf16.msra.mxu0 %v3927
    %7369 = vmatprep.subr.bf16.mxu0 %v3920
    %7370 = vmatpush1.bf16.msra.mxu0 %v3919
    %7371 = vmatprep.subr.bf16.mxu0 %v3912
    %7372 = vmatpush1.bf16.msra.mxu0 %v3911
    %7373 = vmatprep.subr.bf16.mxu0 %v4032
    %7374 = vmatpush2.bf16.msra.mxu0 %v4031
    %7375 = vmatprep.subr.bf16.mxu0 %v4024
    %7376 = vmatpush2.bf16.msra.mxu0 %v4023
    %7377 = vmatprep.subr.bf16.mxu0 %v4016
    %7378 = vmatpush2.bf16.msra.mxu0 %v4015
    %7379 = vmatprep.subr.bf16.mxu0 %v4008
    %7380 = vmatpush2.bf16.msra.mxu0 %v4007
    %7381 = vmatprep.subr.bf16.mxu0 %v4000
    %7382 = vmatpush2.bf16.msra.mxu0 %v3999
    %7383 = vmatprep.subr.bf16.mxu0 %v3992
    %7384 = vmatpush2.bf16.msra.mxu0 %v3991
    %7385 = vmatprep.subr.bf16.mxu0 %v3984
    %7386 = vmatpush2.bf16.msra.mxu0 %v3983
    %7387 = vmatprep.subr.bf16.mxu0 %v3976
    %7388 = vmatpush2.bf16.msra.mxu0 %v3975
    %7389 = vmatprep.mubr.bf16.mxu0 %v7224
    %7390 = vmatmul.mubr.bf16.gmra.mxu0 %v7223
    %v7391 = vpop.f32.mrf.mxu0
    %v7392 = vadd.f32 0.0, %v7391
    %v7393 = vpop.f32.mrf.mxu0
    %v7394 = vadd.f32 0.0, %v7393
    %v7395 = vpop.f32.mrf.mxu0
    %v7396 = vpop.f32.mrf.mxu0
    %7397 = vdwg.mxu0
    %7398 = vmatprep.subr.bf16.mxu0 %v3970
    %7399 = vmatpush1.bf16.msra.mxu0 %v3969
    %7400 = vmatprep.subr.bf16.mxu0 %v3962
    %7401 = vmatpush1.bf16.msra.mxu0 %v3961
    %7402 = vmatprep.subr.bf16.mxu0 %v3954
    %7403 = vmatpush1.bf16.msra.mxu0 %v3953
    %7404 = vmatprep.subr.bf16.mxu0 %v3946
    %7405 = vmatpush1.bf16.msra.mxu0 %v3945
    %7406 = vmatprep.subr.bf16.mxu0 %v3938
    %7407 = vmatpush1.bf16.msra.mxu0 %v3937
    %7408 = vmatprep.subr.bf16.mxu0 %v3930
    %7409 = vmatpush1.bf16.msra.mxu0 %v3929
    %7410 = vmatprep.subr.bf16.mxu0 %v3922
    %7411 = vmatpush1.bf16.msra.mxu0 %v3921
    %7412 = vmatprep.subr.bf16.mxu0 %v3914
    %7413 = vmatpush1.bf16.msra.mxu0 %v3913
    %7414 = vmatprep.subr.bf16.mxu0 %v4034
    %7415 = vmatpush2.bf16.msra.mxu0 %v4033
    %7416 = vmatprep.subr.bf16.mxu0 %v4026
    %7417 = vmatpush2.bf16.msra.mxu0 %v4025
    %7418 = vmatprep.subr.bf16.mxu0 %v4018
    %7419 = vmatpush2.bf16.msra.mxu0 %v4017
    %7420 = vmatprep.subr.bf16.mxu0 %v4010
    %7421 = vmatpush2.bf16.msra.mxu0 %v4009
    %7422 = vmatprep.subr.bf16.mxu0 %v4002
    %7423 = vmatpush2.bf16.msra.mxu0 %v4001
    %7424 = vmatprep.subr.bf16.mxu0 %v3994
    %7425 = vmatpush2.bf16.msra.mxu0 %v3993
    %7426 = vmatprep.subr.bf16.mxu0 %v3986
    %7427 = vmatpush2.bf16.msra.mxu0 %v3985
    %7428 = vmatprep.subr.bf16.mxu0 %v3978
    %7429 = vmatpush2.bf16.msra.mxu0 %v3977
    %7430 = vmatprep.mubr.bf16.mxu0 %v7224
    %7431 = vmatmul.mubr.bf16.gmra.mxu0 %v7223
    %v7432 = vpop.f32.mrf.mxu0
    %v7433 = vadd.f32 0.0, %v7432
    %v7434 = vpop.f32.mrf.mxu0
    %v7435 = vadd.f32 0.0, %v7434
    %v7436 = vpop.f32.mrf.mxu0
    %v7437 = vpop.f32.mrf.mxu0
    %7438 = vdwg.mxu0
    %7439 = vmatprep.subr.bf16.mxu0 %v3972
    %7440 = vmatpush1.bf16.msra.mxu0 %v3971
    %7441 = vmatprep.subr.bf16.mxu0 %v3964
    %7442 = vmatpush1.bf16.msra.mxu0 %v3963
    %7443 = vmatprep.subr.bf16.mxu0 %v3956
    %7444 = vmatpush1.bf16.msra.mxu0 %v3955
    %7445 = vmatprep.subr.bf16.mxu0 %v3948
    %7446 = vmatpush1.bf16.msra.mxu0 %v3947
    %7447 = vmatprep.subr.bf16.mxu0 %v3940
    %7448 = vmatpush1.bf16.msra.mxu0 %v3939
    %7449 = vmatprep.subr.bf16.mxu0 %v3932
    %7450 = vmatpush1.bf16.msra.mxu0 %v3931
    %7451 = vmatprep.subr.bf16.mxu0 %v3924
    %7452 = vmatpush1.bf16.msra.mxu0 %v3923
    %7453 = vmatprep.subr.bf16.mxu0 %v3916
    %7454 = vmatpush1.bf16.msra.mxu0 %v3915
    %7455 = vmatprep.subr.bf16.mxu0 %v4036
    %7456 = vmatpush2.bf16.msra.mxu0 %v4035
    %7457 = vmatprep.subr.bf16.mxu0 %v4028
    %7458 = vmatpush2.bf16.msra.mxu0 %v4027
    %7459 = vmatprep.subr.bf16.mxu0 %v4020
    %7460 = vmatpush2.bf16.msra.mxu0 %v4019
    %7461 = vmatprep.subr.bf16.mxu0 %v4012
    %7462 = vmatpush2.bf16.msra.mxu0 %v4011
    %7463 = vmatprep.subr.bf16.mxu0 %v4004
    %7464 = vmatpush2.bf16.msra.mxu0 %v4003
    %7465 = vmatprep.subr.bf16.mxu0 %v3996
    %7466 = vmatpush2.bf16.msra.mxu0 %v3995
    %7467 = vmatprep.subr.bf16.mxu0 %v3988
    %7468 = vmatpush2.bf16.msra.mxu0 %v3987
    %7469 = vmatprep.subr.bf16.mxu0 %v3980
    %7470 = vmatpush2.bf16.msra.mxu0 %v3979
    %7471 = vmatprep.mubr.bf16.mxu0 %v7224
    %7472 = vmatmul.mubr.bf16.gmra.mxu0 %v7223
    %v7473 = vpop.f32.mrf.mxu0
    %v7474 = vadd.f32 0.0, %v7473
    %v7475 = vpop.f32.mrf.mxu0
    %v7476 = vadd.f32 0.0, %v7475
    %v7477 = vpop.f32.mrf.mxu0
    %v7478 = vpop.f32.mrf.mxu0
    %7479 = vdwg.mxu0
    %v7488 = vcombine.low %v7351, %v7353
    %v7489 = vcombine.low %v7392, %v7394
    %v7490 = vcombine.low %v7433, %v7435
    %v7491 = vcombine.low %v7474, %v7476
    %v7493 = vunpack.c.l.s4 1966171168
    %v7494 = vunpack.c.0.s8 %v7493
    %v7495 = vlaneseq
    %v7496 = vshrl.u32 %v7495, 7
    %v7497 = vsub.s32 %v7494, %v7496
    %v7498 = vrot.slane %v7488, %v7497
    %v7500 = vunpack.c.l.s4 1966171168
    %v7501 = vunpack.c.0.s8 %v7500
    %v7502 = vlaneseq
    %v7503 = vshrl.u32 %v7502, 7
    %v7504 = vsub.s32 %v7501, %v7503
    %v7505 = vrot.slane %v7489, %v7504
    %v7507 = vunpack.c.l.s4 1966171168
    %v7508 = vunpack.c.0.s8 %v7507
    %v7509 = vlaneseq
    %v7510 = vshrl.u32 %v7509, 7
    %v7511 = vsub.s32 %v7508, %v7510
    %v7512 = vrot.slane %v7490, %v7511
    %v7514 = vunpack.c.l.s4 1966171168
    %v7515 = vunpack.c.0.s8 %v7514
    %v7516 = vlaneseq
    %v7517 = vshrl.u32 %v7516, 7
    %v7518 = vsub.s32 %v7515, %v7517
    %v7519 = vrot.slane %v7491, %v7518
    %v7520 = vcombine.low %v7498, %v7505
    %v7521 = vcombine.high %v7498, %v7505
    %v7522 = vcombine.low %v7512, %v7519
    %v7523 = vcombine.high %v7512, %v7519
    %v7525 = vunpack.c.l.s4 1966171168
    %v7526 = vunpack.c.0.s8 %v7525
    %v7527 = vlaneseq
    %v7528 = vshrl.u32 %v7527, 7
    %v7529 = vsub.s32 %v7526, %v7528
    %v7530 = vrot.slane %v7520, %v7529
    %v7532 = vunpack.c.l.s4 1966171168
    %v7533 = vunpack.c.0.s8 %v7532
    %v7534 = vlaneseq
    %v7535 = vshrl.u32 %v7534, 7
    %v7536 = vsub.s32 %v7533, %v7535
    %v7537 = vrot.slane %v7521, %v7536
    %v7539 = vunpack.c.l.s4 1966171168
    %v7540 = vunpack.c.0.s8 %v7539
    %v7541 = vlaneseq
    %v7542 = vshrl.u32 %v7541, 7
    %v7543 = vsub.s32 %v7540, %v7542
    %v7544 = vrot.slane %v7522, %v7543
    %v7546 = vunpack.c.l.s4 1966171168
    %v7547 = vunpack.c.0.s8 %v7546
    %v7548 = vlaneseq
    %v7549 = vshrl.u32 %v7548, 7
    %v7550 = vsub.s32 %v7547, %v7549
    %v7551 = vrot.slane %v7523, %v7550
    %v7552 = vcombine.low %v7530, %v7544
    %v7553 = vcombine.low %v7537, %v7551
    %v7556 = vadd.f32 %v7311, %v7552
    %v7557 = vadd.f32 %v7315, %v7553
    %v7558 = vxor.u32 %v7556, 2147483648
    %v7559 = vxor.u32 %v7557, 2147483648
    %v7560 = vmul.f32 %v7558, 1.442695
    %v7561 = vpow.pop %v7560
    %v7562 = vmul.f32 %v7559, 1.442695
    %v7563 = vpow.pop %v7562
    %v7564 = vadd.f32 %v7561, 1.0
    %v7565 = vadd.f32 %v7563, 1.0
    %v7566 = vrcp.pop %v7564
    %v7567 = vmul.f32 1.0, %v7566
    %v7568 = vrcp.pop %v7565
    %v7569 = vmul.f32 1.0, %v7568
    %v7572 = vrot.slane %v7556, 6
    %v7573 = vrot.slane %v7557, 6
    %v7576 = vtanh.pop %v7572
    %v7577 = vtanh.pop %v7573
    %v7580 = vrot.slane %v7567, 2
    %v7581 = vrot.slane %v7569, 2
    %v7584 = vmul.f32 %v7580, %v7002
    %v7585 = vmul.f32 %v7581, %v7003
    %v7586 = vmul.f32 %v7567, %v7576
    %v7587 = vmul.f32 %v7569, %v7577
    %v7588 = vadd.f32 %v7584, %v7586
    %v7589 = vadd.f32 %v7585, %v7587
    %v7590 = vtanh.pop %v7588
    %v7591 = vtanh.pop %v7589
    %v7592 = vrot.slane %v7567, 4
    %v7593 = vrot.slane %v7569, 4
    %v7596 = vmul.f32 %v7592, %v7590
    %v7597 = vmul.f32 %v7593, %v7591
    %v7600 = vlaneseq
    %v7601 = vshrl.u32 %v7600, 7
    %v7602 = vsub.s32 0, %v7601
    %v7603 = vrot.slane %v7596, %v7602
    %v7604 = vlaneseq
    %v7605 = vshrl.u32 %v7604, 7
    %v7606 = vsub.s32 1, %v7605
    %v7607 = vrot.slane %v7596, %v7606
    %v7608 = vlaneseq
    %v7609 = vshrl.u32 %v7608, 7
    %v7610 = vsub.s32 0, %v7609
    %v7611 = vrot.slane %v7597, %v7610
    %v7612 = vlaneseq
    %v7613 = vshrl.u32 %v7612, 7
    %v7614 = vsub.s32 1, %v7613
    %v7615 = vrot.slane %v7597, %v7614
    %v7620 = vmul.f32 %v7603, %v3512
    %v7621 = vmul.f32 %v7607, %v3513
    %v7622 = vmul.f32 %v7611, %v3514
    %v7623 = vmul.f32 %v7615, %v3515
    %v7624 = vadd.f32 %v7620, %v7621
    %7625 = vadd.xlane.f32.xlu0 %v7624
    %v7626 = vpop.xlane.xlu0 %7625
    %v7627 = vadd.f32 %v7622, %v7623
    %7628 = vadd.xlane.f32.xlu0 %v7627
    %v7629 = vpop.xlane.xlu0 %7628
    %v7632 = vlaneseq
    %v7633 = vshrl.u32 %v7632, 7
    %v7634 = vsub.s32 %v4507, %v7633
    %v7635 = vrot.slane %v7626, %v7634
    %v7636 = vlaneseq
    %v7637 = vshrl.u32 %v7636, 7
    %v7638 = vsub.s32 %v4507, %v7637
    %v7639 = vrot.slane %v7629, %v7638
    %v7640 = vsel %vm960, %v7639, %v7635
    %v7642 = vsel %vm4518, %v7640, -inf
    %7643 = vmax.xlane.f32.xlu0 %v7642
    %v7644 = vpop.xlane.xlu0 %7643
    %v7646 = vlaneseq
    %v7647 = vshrl.u32 %v7646, 7
    %v7648 = vsub.s32 0, %v7647
    %v7649 = vrot.slane %v7644, %v7648
    %v7650 = vlaneseq
    %v7651 = vshrl.u32 %v7650, 7
    %v7652 = vsub.s32 1, %v7651
    %v7653 = vrot.slane %v7644, %v7652
    %v7656 = vsub.f32 %v7626, %v7649
    %v7657 = vsub.f32 %v7629, %v7653
    %v7658 = vmul.f32 %v7656, 1.442695
    %v7659 = vpow.pop %v7658
    %v7660 = vmul.f32 %v7657, 1.442695
    %v7661 = vpow.pop %v7660
    %7664 = vset.pattern.permute.xlu0 0
    %7665 = vperm.xlu0 %7664, %v7659
    %v7666 = vpop.permute.xlu0 %7665
    %7667 = vset.pattern.permute.xlu0 0
    %7668 = vperm.xlu0 %7667, %v7661
    %v7669 = vpop.permute.xlu0 %7668
    %v7670 = vlaneseq
    %v7671 = vshrl.u32 %v7670, 7
    %v7672 = vsub.s32 %v4507, %v7671
    %v7673 = vrot.slane %v7666, %v7672
    %v7674 = vlaneseq
    %v7675 = vshrl.u32 %v7674, 7
    %v7676 = vsub.s32 %v4507, %v7675
    %v7677 = vrot.slane %v7669, %v7676
    %v7678 = vsel %vm960, %v7677, %v7673
    %v7680 = vsel %vm4518, %v7678, 0.0
    %7681 = vadd.xlane.f32.xlu0 %v7680
    %v7682 = vpop.xlane.xlu0 %7681
    %v7683 = vrcp.pop %v7682
    %v7685 = vlaneseq
    %v7686 = vshrl.u32 %v7685, 7
    %v7687 = vsub.s32 0, %v7686
    %v7688 = vrot.slane %v7683, %v7687
    %v7689 = vlaneseq
    %v7690 = vshrl.u32 %v7689, 7
    %v7691 = vsub.s32 1, %v7690
    %v7692 = vrot.slane %v7683, %v7691
    %v7695 = vmul.f32 %v7659, %v7688
    %v7696 = vmul.f32 %v7661, %v7692
    %7698 = vset.pattern.permute.xlu0 0
    %7699 = vperm.xlu0 %7698, %v7695
    %v7700 = vpop.permute.xlu0 %7699
    %7703 = vset.pattern.permute.xlu0 0
    %7704 = vperm.xlu0 %7703, %v7696
    %v7705 = vpop.permute.xlu0 %7704
    %v7707 = vmul.f32 %v7700, %v3512
    %v7708 = vmul.f32 %v7700, %v3513
    %v7709 = vmul.f32 %v7705, %v3514
    %v7710 = vmul.f32 %v7705, %v3515
    %v7711 = vrot.slane %v7707, 4
    %v7712 = vadd.f32 %v7707, %v7711
    %v7713 = vrot.slane %v7712, 2
    %v7714 = vadd.f32 %v7712, %v7713
    %v7715 = vrot.slane %v7714, 1
    %v7716 = vadd.f32 %v7714, %v7715
    %v7717 = vrot.slane %v7708, 4
    %v7718 = vadd.f32 %v7708, %v7717
    %v7719 = vrot.slane %v7718, 2
    %v7720 = vadd.f32 %v7718, %v7719
    %v7721 = vrot.slane %v7720, 1
    %v7722 = vadd.f32 %v7720, %v7721
    %v7723 = vrot.slane %v7709, 4
    %v7724 = vadd.f32 %v7709, %v7723
    %v7725 = vrot.slane %v7724, 2
    %v7726 = vadd.f32 %v7724, %v7725
    %v7727 = vrot.slane %v7726, 1
    %v7728 = vadd.f32 %v7726, %v7727
    %v7729 = vrot.slane %v7710, 4
    %v7730 = vadd.f32 %v7710, %v7729
    %v7731 = vrot.slane %v7730, 2
    %v7732 = vadd.f32 %v7730, %v7731
    %v7733 = vrot.slane %v7732, 1
    %v7734 = vadd.f32 %v7732, %v7733
    %v7735 = vpack.c.bf16 %v7603, %v7603
    %v7736 = vpack.c.bf16 %v7607, %v7607
    %v7737 = vpack.c.bf16 %v7611, %v7611
    %v7738 = vpack.c.bf16 %v7615, %v7615
    %v7739 = vpack.c.bf16 %v7716, %v7716
    %v7740 = vpack.c.bf16 %v7722, %v7722
    %v7741 = vpack.c.bf16 %v7728, %v7728
    %v7742 = vpack.c.bf16 %v7734, %v7734
    %v7747 = vunpack.c.l.b16 %v7739
    %v7748 = vunpack.c.l.b16 %v7740
    %v7749 = vunpack.c.l.b16 %v7741
    %v7750 = vunpack.c.l.b16 %v7742
    %v7751 = vsel %vm960, %v7749, %v7747
    %v7752 = vsel %vm960, %v7750, %v7748
    %v7753 = vpack.c.b16 %v7751, %v7751
    %v7754 = vpack.c.b16 %v7752, %v7752
    %7757 = vmatprep.subr.bf16.mxu0 0
    %7758 = vmatpush1.bf16.msra.mxu0 %v4705
    %7759 = vmatprep.subr.bf16.mxu0 0
    %7760 = vmatpush1.bf16.msra.mxu0 %v4704
    %7761 = vmatprep.subr.bf16.mxu0 0
    %7762 = vmatpush1.bf16.msra.mxu0 %v4703
    %7763 = vmatprep.subr.bf16.mxu0 0
    %7764 = vmatpush1.bf16.msra.mxu0 %v4702
    %7765 = vmatprep.subr.bf16.mxu0 0
    %7766 = vmatpush1.bf16.msra.mxu0 %v4701
    %7767 = vmatprep.subr.bf16.mxu0 0
    %7768 = vmatpush1.bf16.msra.mxu0 %v4700
    %7769 = vmatprep.subr.bf16.mxu0 0
    %7770 = vmatpush1.bf16.msra.mxu0 %v4699
    %7771 = vmatprep.subr.bf16.mxu0 0
    %7772 = vmatpush1.bf16.msra.mxu0 %v4698
    %7773 = vmatprep.subr.bf16.mxu0 0
    %7774 = vmatpush2.bf16.msra.mxu0 %v4713
    %7775 = vmatprep.subr.bf16.mxu0 0
    %7776 = vmatpush2.bf16.msra.mxu0 %v4712
    %7777 = vmatprep.subr.bf16.mxu0 0
    %7778 = vmatpush2.bf16.msra.mxu0 %v4711
    %7779 = vmatprep.subr.bf16.mxu0 0
    %7780 = vmatpush2.bf16.msra.mxu0 %v4710
    %7781 = vmatprep.subr.bf16.mxu0 0
    %7782 = vmatpush2.bf16.msra.mxu0 %v4709
    %7783 = vmatprep.subr.bf16.mxu0 0
    %7784 = vmatpush2.bf16.msra.mxu0 %v4708
    %7785 = vmatprep.subr.bf16.mxu0 0
    %7786 = vmatpush2.bf16.msra.mxu0 %v4707
    %7787 = vmatprep.subr.bf16.mxu0 0
    %7788 = vmatpush2.bf16.msra.mxu0 %v4706
    %7789 = vmatprep.mubr.bf16.mxu0 %v7754
    %7790 = vmatmul.mubr.bf16.gmra.mxu0 %v7753
    %v7791 = vpop.f32.mrf.mxu0
    %v7792 = vadd.f32 0.0, %v7791
    %v7793 = vpop.f32.mrf.mxu0
    %v7794 = vpop.f32.mrf.mxu0
    %v7795 = vpop.f32.mrf.mxu0
    %7796 = vdwg.mxu0
    %v7801 = vunpack.c.l.b16 %v7735
    %v7802 = vunpack.c.l.b16 %v7736
    %v7803 = vunpack.c.l.b16 %v7737
    %v7804 = vunpack.c.l.b16 %v7738
    %v7805 = vrot.slane %v7803, 7
    %v7806 = vsel %vm960, %v7805, %v7801
    %v7807 = vrot.slane %v7804, 7
    %v7808 = vsel %vm960, %v7807, %v7802
    %v7809 = vpack.c.b16 %v7806, %v7806
    %v7810 = vpack.c.b16 %v7808, %v7808
    %7813 = vmatprep.subr.bf16.mxu0 0
    %7814 = vmatpush1.bf16.msra.mxu0 %v4857
    %7815 = vmatprep.subr.bf16.mxu0 0
    %7816 = vmatpush1.bf16.msra.mxu0 %v4856
    %7817 = vmatprep.subr.bf16.mxu0 0
    %7818 = vmatpush1.bf16.msra.mxu0 %v4855
    %7819 = vmatprep.subr.bf16.mxu0 0
    %7820 = vmatpush1.bf16.msra.mxu0 %v4854
    %7821 = vmatprep.subr.bf16.mxu0 0
    %7822 = vmatpush1.bf16.msra.mxu0 %v4853
    %7823 = vmatprep.subr.bf16.mxu0 0
    %7824 = vmatpush1.bf16.msra.mxu0 %v4852
    %7825 = vmatprep.subr.bf16.mxu0 0
    %7826 = vmatpush1.bf16.msra.mxu0 %v4851
    %7827 = vmatprep.subr.bf16.mxu0 0
    %7828 = vmatpush1.bf16.msra.mxu0 %v4850
    %7829 = vmatprep.subr.bf16.mxu0 0
    %7830 = vmatpush2.bf16.msra.mxu0 %v4865
    %7831 = vmatprep.subr.bf16.mxu0 0
    %7832 = vmatpush2.bf16.msra.mxu0 %v4864
    %7833 = vmatprep.subr.bf16.mxu0 0
    %7834 = vmatpush2.bf16.msra.mxu0 %v4863
    %7835 = vmatprep.subr.bf16.mxu0 0
    %7836 = vmatpush2.bf16.msra.mxu0 %v4862
    %7837 = vmatprep.subr.bf16.mxu0 0
    %7838 = vmatpush2.bf16.msra.mxu0 %v4861
    %7839 = vmatprep.subr.bf16.mxu0 0
    %7840 = vmatpush2.bf16.msra.mxu0 %v4860
    %7841 = vmatprep.subr.bf16.mxu0 0
    %7842 = vmatpush2.bf16.msra.mxu0 %v4859
    %7843 = vmatprep.subr.bf16.mxu0 0
    %7844 = vmatpush2.bf16.msra.mxu0 %v4858
    %7845 = vmatprep.mubr.bf16.mxu0 %v7810
    %7846 = vmatmul.mubr.bf16.gmra.mxu0 %v7809
    %v7847 = vpop.f32.mrf.mxu0
    %v7848 = vadd.f32 %v7792, %v7847
    %v7849 = vpop.f32.mrf.mxu0
    %v7850 = vpop.f32.mrf.mxu0
    %v7851 = vpop.f32.mrf.mxu0
    %7852 = vdwg.mxu0
    %v7853 = vadd.f32 %v7848, %v292
    %v7854 = vsel %vm4923, %v7853, -inf
    %7855 = vmax.xlane.f32.xlu0 %v7854
    %v7856 = vpop.xlane.xlu0 %7855
    %v7857 = vsub.f32 %v7853, %v7856
    %v7858 = vmul.f32 %v7857, 1.442695
    %v7859 = vpow.pop %v7858
    %v7860 = vsel %vm4923, %v7859, 0.0
    %7861 = vadd.xlane.f32.xlu0 %v7860
    %v7862 = vpop.xlane.xlu0 %7861
    %v7863 = vlog2.pop %v7862
    %v7864 = vmul.f32 %v7863, 0.6931472
    %v7865 = vadd.f32 %v7856, %v7864
    %v7866 = vsub.f32 %v7853, %v7865
    %v7869 = vunpack.c.l.s4 1966171168
    %v7870 = vunpack.c.0.s8 %v7869
    %v7871 = vlaneseq
    %v7872 = vshrl.u32 %v7871, 7
    %v7873 = vsub.s32 %v7870, %v7872
    %v7874 = vrot.slane %v7866, %v7873
    %v7875 = vcombine.high %v7874, %v7874
    %v7877 = vunpack.c.l.s4 1966171168
    %v7878 = vunpack.c.0.s8 %v7877
    %v7879 = vlaneseq
    %v7880 = vshrl.u32 %v7879, 7
    %v7881 = vsub.s32 %v7878, %v7880
    %v7882 = vrot.slane %v7874, %v7881
    %v7884 = vunpack.c.l.s4 1966171168
    %v7885 = vunpack.c.0.s8 %v7884
    %v7886 = vlaneseq
    %v7887 = vshrl.u32 %v7886, 7
    %v7888 = vsub.s32 %v7885, %v7887
    %v7889 = vrot.slane %v7875, %v7888
    %7892 = vst [vmem:[#allocation3 + $0x5] sm:$0x1] %v7882
    %7893 = vst [vmem:[#allocation3 + $0xd] sm:$0x1] %v7889
    %s7894 = scalar_lea.vmem %s1, 6
    %v7895 = vld [vmem:[%s7894] ss:$8 sm:$0xf]
    %v7896 = vld [vmem:[%s7894] ss:$8 sm:$0xf0]
    %v7897 = vor.u32 %v7895, %v7896
    %s7898 = scalar_lea.vmem %s1, 70
    %v7899 = vld [vmem:[%s7898] ss:$8 sm:$0xf]
    %v7900 = vld [vmem:[%s7898] ss:$8 sm:$0xf0]
    %v7901 = vor.u32 %v7899, %v7900
    %7902 = vmatprep.subr.bf16.mxu0 %v3966
    %7903 = vmatpush1.bf16.msra.mxu0 %v3965
    %7904 = vmatprep.subr.bf16.mxu0 %v3958
    %7905 = vmatpush1.bf16.msra.mxu0 %v3957
    %7906 = vmatprep.subr.bf16.mxu0 %v3950
    %7907 = vmatpush1.bf16.msra.mxu0 %v3949
    %7908 = vmatprep.subr.bf16.mxu0 %v3942
    %7909 = vmatpush1.bf16.msra.mxu0 %v3941
    %7910 = vmatprep.subr.bf16.mxu0 %v3934
    %7911 = vmatpush1.bf16.msra.mxu0 %v3933
    %7912 = vmatprep.subr.bf16.mxu0 %v3926
    %7913 = vmatpush1.bf16.msra.mxu0 %v3925
    %7914 = vmatprep.subr.bf16.mxu0 %v3918
    %7915 = vmatpush1.bf16.msra.mxu0 %v3917
    %7916 = vmatprep.subr.bf16.mxu0 %v3910
    %7917 = vmatpush1.bf16.msra.mxu0 %v3909
    %7918 = vmatprep.subr.bf16.mxu0 %v4030
    %7919 = vmatpush2.bf16.msra.mxu0 %v4029
    %7920 = vmatprep.subr.bf16.mxu0 %v4022
    %7921 = vmatpush2.bf16.msra.mxu0 %v4021
    %7922 = vmatprep.subr.bf16.mxu0 %v4014
    %7923 = vmatpush2.bf16.msra.mxu0 %v4013
    %7924 = vmatprep.subr.bf16.mxu0 %v4006
    %7925 = vmatpush2.bf16.msra.mxu0 %v4005
    %7926 = vmatprep.subr.bf16.mxu0 %v3998
    %7927 = vmatpush2.bf16.msra.mxu0 %v3997
    %7928 = vmatprep.subr.bf16.mxu0 %v3990
    %7929 = vmatpush2.bf16.msra.mxu0 %v3989
    %7930 = vmatprep.subr.bf16.mxu0 %v3982
    %7931 = vmatpush2.bf16.msra.mxu0 %v3981
    %7932 = vmatprep.subr.bf16.mxu0 %v3974
    %7933 = vmatpush2.bf16.msra.mxu0 %v3973
    %7934 = vmatprep.mubr.bf16.mxu0 %v7810
    %7935 = vmatmul.mubr.bf16.gmra.mxu0 %v7809
    %v7936 = vpop.f32.mrf.mxu0
    %v7937 = vadd.f32 0.0, %v7936
    %v7938 = vpop.f32.mrf.mxu0
    %v7939 = vadd.f32 0.0, %v7938
    %v7940 = vpop.f32.mrf.mxu0
    %v7941 = vpop.f32.mrf.mxu0
    %7942 = vdwg.mxu0
    %7943 = vmatprep.subr.bf16.mxu0 %v3968
    %7944 = vmatpush1.bf16.msra.mxu0 %v3967
    %7945 = vmatprep.subr.bf16.mxu0 %v3960
    %7946 = vmatpush1.bf16.msra.mxu0 %v3959
    %7947 = vmatprep.subr.bf16.mxu0 %v3952
    %7948 = vmatpush1.bf16.msra.mxu0 %v3951
    %7949 = vmatprep.subr.bf16.mxu0 %v3944
    %7950 = vmatpush1.bf16.msra.mxu0 %v3943
    %7951 = vmatprep.subr.bf16.mxu0 %v3936
    %7952 = vmatpush1.bf16.msra.mxu0 %v3935
    %7953 = vmatprep.subr.bf16.mxu0 %v3928
    %7954 = vmatpush1.bf16.msra.mxu0 %v3927
    %7955 = vmatprep.subr.bf16.mxu0 %v3920
    %7956 = vmatpush1.bf16.msra.mxu0 %v3919
    %7957 = vmatprep.subr.bf16.mxu0 %v3912
    %7958 = vmatpush1.bf16.msra.mxu0 %v3911
    %7959 = vmatprep.subr.bf16.mxu0 %v4032
    %7960 = vmatpush2.bf16.msra.mxu0 %v4031
    %7961 = vmatprep.subr.bf16.mxu0 %v4024
    %7962 = vmatpush2.bf16.msra.mxu0 %v4023
    %7963 = vmatprep.subr.bf16.mxu0 %v4016
    %7964 = vmatpush2.bf16.msra.mxu0 %v4015
    %7965 = vmatprep.subr.bf16.mxu0 %v4008
    %7966 = vmatpush2.bf16.msra.mxu0 %v4007
    %7967 = vmatprep.subr.bf16.mxu0 %v4000
    %7968 = vmatpush2.bf16.msra.mxu0 %v3999
    %7969 = vmatprep.subr.bf16.mxu0 %v3992
    %7970 = vmatpush2.bf16.msra.mxu0 %v3991
    %7971 = vmatprep.subr.bf16.mxu0 %v3984
    %7972 = vmatpush2.bf16.msra.mxu0 %v3983
    %7973 = vmatprep.subr.bf16.mxu0 %v3976
    %7974 = vmatpush2.bf16.msra.mxu0 %v3975
    %7975 = vmatprep.mubr.bf16.mxu0 %v7810
    %7976 = vmatmul.mubr.bf16.gmra.mxu0 %v7809
    %v7977 = vpop.f32.mrf.mxu0
    %v7978 = vadd.f32 0.0, %v7977
    %v7979 = vpop.f32.mrf.mxu0
    %v7980 = vadd.f32 0.0, %v7979
    %v7981 = vpop.f32.mrf.mxu0
    %v7982 = vpop.f32.mrf.mxu0
    %7983 = vdwg.mxu0
    %7984 = vmatprep.subr.bf16.mxu0 %v3970
    %7985 = vmatpush1.bf16.msra.mxu0 %v3969
    %7986 = vmatprep.subr.bf16.mxu0 %v3962
    %7987 = vmatpush1.bf16.msra.mxu0 %v3961
    %7988 = vmatprep.subr.bf16.mxu0 %v3954
    %7989 = vmatpush1.bf16.msra.mxu0 %v3953
    %7990 = vmatprep.subr.bf16.mxu0 %v3946
    %7991 = vmatpush1.bf16.msra.mxu0 %v3945
    %7992 = vmatprep.subr.bf16.mxu0 %v3938
    %7993 = vmatpush1.bf16.msra.mxu0 %v3937
    %7994 = vmatprep.subr.bf16.mxu0 %v3930
    %7995 = vmatpush1.bf16.msra.mxu0 %v3929
    %7996 = vmatprep.subr.bf16.mxu0 %v3922
    %7997 = vmatpush1.bf16.msra.mxu0 %v3921
    %7998 = vmatprep.subr.bf16.mxu0 %v3914
    %7999 = vmatpush1.bf16.msra.mxu0 %v3913
    %8000 = vmatprep.subr.bf16.mxu0 %v4034
    %8001 = vmatpush2.bf16.msra.mxu0 %v4033
    %8002 = vmatprep.subr.bf16.mxu0 %v4026
    %8003 = vmatpush2.bf16.msra.mxu0 %v4025
    %8004 = vmatprep.subr.bf16.mxu0 %v4018
    %8005 = vmatpush2.bf16.msra.mxu0 %v4017
    %8006 = vmatprep.subr.bf16.mxu0 %v4010
    %8007 = vmatpush2.bf16.msra.mxu0 %v4009
    %8008 = vmatprep.subr.bf16.mxu0 %v4002
    %8009 = vmatpush2.bf16.msra.mxu0 %v4001
    %8010 = vmatprep.subr.bf16.mxu0 %v3994
    %8011 = vmatpush2.bf16.msra.mxu0 %v3993
    %8012 = vmatprep.subr.bf16.mxu0 %v3986
    %8013 = vmatpush2.bf16.msra.mxu0 %v3985
    %8014 = vmatprep.subr.bf16.mxu0 %v3978
    %8015 = vmatpush2.bf16.msra.mxu0 %v3977
    %8016 = vmatprep.mubr.bf16.mxu0 %v7810
    %8017 = vmatmul.mubr.bf16.gmra.mxu0 %v7809
    %v8018 = vpop.f32.mrf.mxu0
    %v8019 = vadd.f32 0.0, %v8018
    %v8020 = vpop.f32.mrf.mxu0
    %v8021 = vadd.f32 0.0, %v8020
    %v8022 = vpop.f32.mrf.mxu0
    %v8023 = vpop.f32.mrf.mxu0
    %8024 = vdwg.mxu0
    %8025 = vmatprep.subr.bf16.mxu0 %v3972
    %8026 = vmatpush1.bf16.msra.mxu0 %v3971
    %8027 = vmatprep.subr.bf16.mxu0 %v3964
    %8028 = vmatpush1.bf16.msra.mxu0 %v3963
    %8029 = vmatprep.subr.bf16.mxu0 %v3956
    %8030 = vmatpush1.bf16.msra.mxu0 %v3955
    %8031 = vmatprep.subr.bf16.mxu0 %v3948
    %8032 = vmatpush1.bf16.msra.mxu0 %v3947
    %8033 = vmatprep.subr.bf16.mxu0 %v3940
    %8034 = vmatpush1.bf16.msra.mxu0 %v3939
    %8035 = vmatprep.subr.bf16.mxu0 %v3932
    %8036 = vmatpush1.bf16.msra.mxu0 %v3931
    %8037 = vmatprep.subr.bf16.mxu0 %v3924
    %8038 = vmatpush1.bf16.msra.mxu0 %v3923
    %8039 = vmatprep.subr.bf16.mxu0 %v3916
    %8040 = vmatpush1.bf16.msra.mxu0 %v3915
    %8041 = vmatprep.subr.bf16.mxu0 %v4036
    %8042 = vmatpush2.bf16.msra.mxu0 %v4035
    %8043 = vmatprep.subr.bf16.mxu0 %v4028
    %8044 = vmatpush2.bf16.msra.mxu0 %v4027
    %8045 = vmatprep.subr.bf16.mxu0 %v4020
    %8046 = vmatpush2.bf16.msra.mxu0 %v4019
    %8047 = vmatprep.subr.bf16.mxu0 %v4012
    %8048 = vmatpush2.bf16.msra.mxu0 %v4011
    %8049 = vmatprep.subr.bf16.mxu0 %v4004
    %8050 = vmatpush2.bf16.msra.mxu0 %v4003
    %8051 = vmatprep.subr.bf16.mxu0 %v3996
    %8052 = vmatpush2.bf16.msra.mxu0 %v3995
    %8053 = vmatprep.subr.bf16.mxu0 %v3988
    %8054 = vmatpush2.bf16.msra.mxu0 %v3987
    %8055 = vmatprep.subr.bf16.mxu0 %v3980
    %8056 = vmatpush2.bf16.msra.mxu0 %v3979
    %8057 = vmatprep.mubr.bf16.mxu0 %v7810
    %8058 = vmatmul.mubr.bf16.gmra.mxu0 %v7809
    %v8059 = vpop.f32.mrf.mxu0
    %v8060 = vadd.f32 0.0, %v8059
    %v8061 = vpop.f32.mrf.mxu0
    %v8062 = vadd.f32 0.0, %v8061
    %v8063 = vpop.f32.mrf.mxu0
    %v8064 = vpop.f32.mrf.mxu0
    %8065 = vdwg.mxu0
    %v8074 = vcombine.low %v7937, %v7939
    %v8075 = vcombine.low %v7978, %v7980
    %v8076 = vcombine.low %v8019, %v8021
    %v8077 = vcombine.low %v8060, %v8062
    %v8079 = vunpack.c.l.s4 1966171168
    %v8080 = vunpack.c.0.s8 %v8079
    %v8081 = vlaneseq
    %v8082 = vshrl.u32 %v8081, 7
    %v8083 = vsub.s32 %v8080, %v8082
    %v8084 = vrot.slane %v8074, %v8083
    %v8086 = vunpack.c.l.s4 1966171168
    %v8087 = vunpack.c.0.s8 %v8086
    %v8088 = vlaneseq
    %v8089 = vshrl.u32 %v8088, 7
    %v8090 = vsub.s32 %v8087, %v8089
    %v8091 = vrot.slane %v8075, %v8090
    %v8093 = vunpack.c.l.s4 1966171168
    %v8094 = vunpack.c.0.s8 %v8093
    %v8095 = vlaneseq
    %v8096 = vshrl.u32 %v8095, 7
    %v8097 = vsub.s32 %v8094, %v8096
    %v8098 = vrot.slane %v8076, %v8097
    %v8100 = vunpack.c.l.s4 1966171168
    %v8101 = vunpack.c.0.s8 %v8100
    %v8102 = vlaneseq
    %v8103 = vshrl.u32 %v8102, 7
    %v8104 = vsub.s32 %v8101, %v8103
    %v8105 = vrot.slane %v8077, %v8104
    %v8106 = vcombine.low %v8084, %v8091
    %v8107 = vcombine.high %v8084, %v8091
    %v8108 = vcombine.low %v8098, %v8105
    %v8109 = vcombine.high %v8098, %v8105
    %v8111 = vunpack.c.l.s4 1966171168
    %v8112 = vunpack.c.0.s8 %v8111
    %v8113 = vlaneseq
    %v8114 = vshrl.u32 %v8113, 7
    %v8115 = vsub.s32 %v8112, %v8114
    %v8116 = vrot.slane %v8106, %v8115
    %v8118 = vunpack.c.l.s4 1966171168
    %v8119 = vunpack.c.0.s8 %v8118
    %v8120 = vlaneseq
    %v8121 = vshrl.u32 %v8120, 7
    %v8122 = vsub.s32 %v8119, %v8121
    %v8123 = vrot.slane %v8107, %v8122
    %v8125 = vunpack.c.l.s4 1966171168
    %v8126 = vunpack.c.0.s8 %v8125
    %v8127 = vlaneseq
    %v8128 = vshrl.u32 %v8127, 7
    %v8129 = vsub.s32 %v8126, %v8128
    %v8130 = vrot.slane %v8108, %v8129
    %v8132 = vunpack.c.l.s4 1966171168
    %v8133 = vunpack.c.0.s8 %v8132
    %v8134 = vlaneseq
    %v8135 = vshrl.u32 %v8134, 7
    %v8136 = vsub.s32 %v8133, %v8135
    %v8137 = vrot.slane %v8109, %v8136
    %v8138 = vcombine.low %v8116, %v8130
    %v8139 = vcombine.low %v8123, %v8137
    %v8142 = vadd.f32 %v7897, %v8138
    %v8143 = vadd.f32 %v7901, %v8139
    %v8144 = vxor.u32 %v8142, 2147483648
    %v8145 = vxor.u32 %v8143, 2147483648
    %v8146 = vmul.f32 %v8144, 1.442695
    %v8147 = vpow.pop %v8146
    %v8148 = vmul.f32 %v8145, 1.442695
    %v8149 = vpow.pop %v8148
    %v8150 = vadd.f32 %v8147, 1.0
    %v8151 = vadd.f32 %v8149, 1.0
    %v8152 = vrcp.pop %v8150
    %v8153 = vmul.f32 1.0, %v8152
    %v8154 = vrcp.pop %v8151
    %v8155 = vmul.f32 1.0, %v8154
    %v8158 = vrot.slane %v8142, 6
    %v8159 = vrot.slane %v8143, 6
    %v8162 = vtanh.pop %v8158
    %v8163 = vtanh.pop %v8159
    %v8166 = vrot.slane %v8153, 2
    %v8167 = vrot.slane %v8155, 2
    %v8170 = vmul.f32 %v8166, %v7588
    %v8171 = vmul.f32 %v8167, %v7589
    %v8172 = vmul.f32 %v8153, %v8162
    %v8173 = vmul.f32 %v8155, %v8163
    %v8174 = vadd.f32 %v8170, %v8172
    %v8175 = vadd.f32 %v8171, %v8173
    %v8176 = vtanh.pop %v8174
    %v8177 = vtanh.pop %v8175
    %v8178 = vrot.slane %v8153, 4
    %v8179 = vrot.slane %v8155, 4
    %v8182 = vmul.f32 %v8178, %v8176
    %v8183 = vmul.f32 %v8179, %v8177
    %v8186 = vlaneseq
    %v8187 = vshrl.u32 %v8186, 7
    %v8188 = vsub.s32 0, %v8187
    %v8189 = vrot.slane %v8182, %v8188
    %v8190 = vlaneseq
    %v8191 = vshrl.u32 %v8190, 7
    %v8192 = vsub.s32 1, %v8191
    %v8193 = vrot.slane %v8182, %v8192
    %v8194 = vlaneseq
    %v8195 = vshrl.u32 %v8194, 7
    %v8196 = vsub.s32 0, %v8195
    %v8197 = vrot.slane %v8183, %v8196
    %v8198 = vlaneseq
    %v8199 = vshrl.u32 %v8198, 7
    %v8200 = vsub.s32 1, %v8199
    %v8201 = vrot.slane %v8183, %v8200
    %v8206 = vmul.f32 %v8189, %v3512
    %v8207 = vmul.f32 %v8193, %v3513
    %v8208 = vmul.f32 %v8197, %v3514
    %v8209 = vmul.f32 %v8201, %v3515
    %v8210 = vadd.f32 %v8206, %v8207
    %8211 = vadd.xlane.f32.xlu0 %v8210
    %v8212 = vpop.xlane.xlu0 %8211
    %v8213 = vadd.f32 %v8208, %v8209
    %8214 = vadd.xlane.f32.xlu0 %v8213
    %v8215 = vpop.xlane.xlu0 %8214
    %v8218 = vlaneseq
    %v8219 = vshrl.u32 %v8218, 7
    %v8220 = vsub.s32 %v4507, %v8219
    %v8221 = vrot.slane %v8212, %v8220
    %v8222 = vlaneseq
    %v8223 = vshrl.u32 %v8222, 7
    %v8224 = vsub.s32 %v4507, %v8223
    %v8225 = vrot.slane %v8215, %v8224
    %v8226 = vsel %vm960, %v8225, %v8221
    %v8228 = vsel %vm4518, %v8226, -inf
    %8229 = vmax.xlane.f32.xlu0 %v8228
    %v8230 = vpop.xlane.xlu0 %8229
    %v8232 = vlaneseq
    %v8233 = vshrl.u32 %v8232, 7
    %v8234 = vsub.s32 0, %v8233
    %v8235 = vrot.slane %v8230, %v8234
    %v8236 = vlaneseq
    %v8237 = vshrl.u32 %v8236, 7
    %v8238 = vsub.s32 1, %v8237
    %v8239 = vrot.slane %v8230, %v8238
    %v8242 = vsub.f32 %v8212, %v8235
    %v8243 = vsub.f32 %v8215, %v8239
    %v8244 = vmul.f32 %v8242, 1.442695
    %v8245 = vpow.pop %v8244
    %v8246 = vmul.f32 %v8243, 1.442695
    %v8247 = vpow.pop %v8246
    %8250 = vset.pattern.permute.xlu0 0
    %8251 = vperm.xlu0 %8250, %v8245
    %v8252 = vpop.permute.xlu0 %8251
    %8253 = vset.pattern.permute.xlu0 0
    %8254 = vperm.xlu0 %8253, %v8247
    %v8255 = vpop.permute.xlu0 %8254
    %v8256 = vlaneseq
    %v8257 = vshrl.u32 %v8256, 7
    %v8258 = vsub.s32 %v4507, %v8257
    %v8259 = vrot.slane %v8252, %v8258
    %v8260 = vlaneseq
    %v8261 = vshrl.u32 %v8260, 7
    %v8262 = vsub.s32 %v4507, %v8261
    %v8263 = vrot.slane %v8255, %v8262
    %v8264 = vsel %vm960, %v8263, %v8259
    %v8266 = vsel %vm4518, %v8264, 0.0
    %8267 = vadd.xlane.f32.xlu0 %v8266
    %v8268 = vpop.xlane.xlu0 %8267
    %v8269 = vrcp.pop %v8268
    %v8271 = vlaneseq
    %v8272 = vshrl.u32 %v8271, 7
    %v8273 = vsub.s32 0, %v8272
    %v8274 = vrot.slane %v8269, %v8273
    %v8275 = vlaneseq
    %v8276 = vshrl.u32 %v8275, 7
    %v8277 = vsub.s32 1, %v8276
    %v8278 = vrot.slane %v8269, %v8277
    %v8281 = vmul.f32 %v8245, %v8274
    %v8282 = vmul.f32 %v8247, %v8278
    %8284 = vset.pattern.permute.xlu0 0
    %8285 = vperm.xlu0 %8284, %v8281
    %v8286 = vpop.permute.xlu0 %8285
    %8289 = vset.pattern.permute.xlu0 0
    %8290 = vperm.xlu0 %8289, %v8282
    %v8291 = vpop.permute.xlu0 %8290
    %v8293 = vmul.f32 %v8286, %v3512
    %v8294 = vmul.f32 %v8286, %v3513
    %v8295 = vmul.f32 %v8291, %v3514
    %v8296 = vmul.f32 %v8291, %v3515
    %v8297 = vrot.slane %v8293, 4
    %v8298 = vadd.f32 %v8293, %v8297
    %v8299 = vrot.slane %v8298, 2
    %v8300 = vadd.f32 %v8298, %v8299
    %v8301 = vrot.slane %v8300, 1
    %v8302 = vadd.f32 %v8300, %v8301
    %v8303 = vrot.slane %v8294, 4
    %v8304 = vadd.f32 %v8294, %v8303
    %v8305 = vrot.slane %v8304, 2
    %v8306 = vadd.f32 %v8304, %v8305
    %v8307 = vrot.slane %v8306, 1
    %v8308 = vadd.f32 %v8306, %v8307
    %v8309 = vrot.slane %v8295, 4
    %v8310 = vadd.f32 %v8295, %v8309
    %v8311 = vrot.slane %v8310, 2
    %v8312 = vadd.f32 %v8310, %v8311
    %v8313 = vrot.slane %v8312, 1
    %v8314 = vadd.f32 %v8312, %v8313
    %v8315 = vrot.slane %v8296, 4
    %v8316 = vadd.f32 %v8296, %v8315
    %v8317 = vrot.slane %v8316, 2
    %v8318 = vadd.f32 %v8316, %v8317
    %v8319 = vrot.slane %v8318, 1
    %v8320 = vadd.f32 %v8318, %v8319
    %v8321 = vpack.c.bf16 %v8189, %v8189
    %v8322 = vpack.c.bf16 %v8193, %v8193
    %v8323 = vpack.c.bf16 %v8197, %v8197
    %v8324 = vpack.c.bf16 %v8201, %v8201
    %v8325 = vpack.c.bf16 %v8302, %v8302
    %v8326 = vpack.c.bf16 %v8308, %v8308
    %v8327 = vpack.c.bf16 %v8314, %v8314
    %v8328 = vpack.c.bf16 %v8320, %v8320
    %v8333 = vunpack.c.l.b16 %v8325
    %v8334 = vunpack.c.l.b16 %v8326
    %v8335 = vunpack.c.l.b16 %v8327
    %v8336 = vunpack.c.l.b16 %v8328
    %v8337 = vsel %vm960, %v8335, %v8333
    %v8338 = vsel %vm960, %v8336, %v8334
    %v8339 = vpack.c.b16 %v8337, %v8337
    %v8340 = vpack.c.b16 %v8338, %v8338
    %8343 = vmatprep.subr.bf16.mxu0 0
    %8344 = vmatpush1.bf16.msra.mxu0 %v4705
    %8345 = vmatprep.subr.bf16.mxu0 0
    %8346 = vmatpush1.bf16.msra.mxu0 %v4704
    %8347 = vmatprep.subr.bf16.mxu0 0
    %8348 = vmatpush1.bf16.msra.mxu0 %v4703
    %8349 = vmatprep.subr.bf16.mxu0 0
    %8350 = vmatpush1.bf16.msra.mxu0 %v4702
    %8351 = vmatprep.subr.bf16.mxu0 0
    %8352 = vmatpush1.bf16.msra.mxu0 %v4701
    %8353 = vmatprep.subr.bf16.mxu0 0
    %8354 = vmatpush1.bf16.msra.mxu0 %v4700
    %8355 = vmatprep.subr.bf16.mxu0 0
    %8356 = vmatpush1.bf16.msra.mxu0 %v4699
    %8357 = vmatprep.subr.bf16.mxu0 0
    %8358 = vmatpush1.bf16.msra.mxu0 %v4698
    %8359 = vmatprep.subr.bf16.mxu0 0
    %8360 = vmatpush2.bf16.msra.mxu0 %v4713
    %8361 = vmatprep.subr.bf16.mxu0 0
    %8362 = vmatpush2.bf16.msra.mxu0 %v4712
    %8363 = vmatprep.subr.bf16.mxu0 0
    %8364 = vmatpush2.bf16.msra.mxu0 %v4711
    %8365 = vmatprep.subr.bf16.mxu0 0
    %8366 = vmatpush2.bf16.msra.mxu0 %v4710
    %8367 = vmatprep.subr.bf16.mxu0 0
    %8368 = vmatpush2.bf16.msra.mxu0 %v4709
    %8369 = vmatprep.subr.bf16.mxu0 0
    %8370 = vmatpush2.bf16.msra.mxu0 %v4708
    %8371 = vmatprep.subr.bf16.mxu0 0
    %8372 = vmatpush2.bf16.msra.mxu0 %v4707
    %8373 = vmatprep.subr.bf16.mxu0 0
    %8374 = vmatpush2.bf16.msra.mxu0 %v4706
    %8375 = vmatprep.mubr.bf16.mxu0 %v8340
    %8376 = vmatmul.mubr.bf16.gmra.mxu0 %v8339
    %v8377 = vpop.f32.mrf.mxu0
    %v8378 = vadd.f32 0.0, %v8377
    %v8379 = vpop.f32.mrf.mxu0
    %v8380 = vpop.f32.mrf.mxu0
    %v8381 = vpop.f32.mrf.mxu0
    %8382 = vdwg.mxu0
    %v8387 = vunpack.c.l.b16 %v8321
    %v8388 = vunpack.c.l.b16 %v8322
    %v8389 = vunpack.c.l.b16 %v8323
    %v8390 = vunpack.c.l.b16 %v8324
    %v8391 = vrot.slane %v8389, 7
    %v8392 = vsel %vm960, %v8391, %v8387
    %v8393 = vrot.slane %v8390, 7
    %v8394 = vsel %vm960, %v8393, %v8388
    %v8395 = vpack.c.b16 %v8392, %v8392
    %v8396 = vpack.c.b16 %v8394, %v8394
    %8399 = vmatprep.subr.bf16.mxu0 0
    %8400 = vmatpush1.bf16.msra.mxu0 %v4857
    %8401 = vmatprep.subr.bf16.mxu0 0
    %8402 = vmatpush1.bf16.msra.mxu0 %v4856
    %8403 = vmatprep.subr.bf16.mxu0 0
    %8404 = vmatpush1.bf16.msra.mxu0 %v4855
    %8405 = vmatprep.subr.bf16.mxu0 0
    %8406 = vmatpush1.bf16.msra.mxu0 %v4854
    %8407 = vmatprep.subr.bf16.mxu0 0
    %8408 = vmatpush1.bf16.msra.mxu0 %v4853
    %8409 = vmatprep.subr.bf16.mxu0 0
    %8410 = vmatpush1.bf16.msra.mxu0 %v4852
    %8411 = vmatprep.subr.bf16.mxu0 0
    %8412 = vmatpush1.bf16.msra.mxu0 %v4851
    %8413 = vmatprep.subr.bf16.mxu0 0
    %8414 = vmatpush1.bf16.msra.mxu0 %v4850
    %8415 = vmatprep.subr.bf16.mxu0 0
    %8416 = vmatpush2.bf16.msra.mxu0 %v4865
    %8417 = vmatprep.subr.bf16.mxu0 0
    %8418 = vmatpush2.bf16.msra.mxu0 %v4864
    %8419 = vmatprep.subr.bf16.mxu0 0
    %8420 = vmatpush2.bf16.msra.mxu0 %v4863
    %8421 = vmatprep.subr.bf16.mxu0 0
    %8422 = vmatpush2.bf16.msra.mxu0 %v4862
    %8423 = vmatprep.subr.bf16.mxu0 0
    %8424 = vmatpush2.bf16.msra.mxu0 %v4861
    %8425 = vmatprep.subr.bf16.mxu0 0
    %8426 = vmatpush2.bf16.msra.mxu0 %v4860
    %8427 = vmatprep.subr.bf16.mxu0 0
    %8428 = vmatpush2.bf16.msra.mxu0 %v4859
    %8429 = vmatprep.subr.bf16.mxu0 0
    %8430 = vmatpush2.bf16.msra.mxu0 %v4858
    %8431 = vmatprep.mubr.bf16.mxu0 %v8396
    %8432 = vmatmul.mubr.bf16.gmra.mxu0 %v8395
    %v8433 = vpop.f32.mrf.mxu0
    %v8434 = vadd.f32 %v8378, %v8433
    %v8435 = vpop.f32.mrf.mxu0
    %v8436 = vpop.f32.mrf.mxu0
    %v8437 = vpop.f32.mrf.mxu0
    %8438 = vdwg.mxu0
    %v8439 = vadd.f32 %v8434, %v292
    %v8440 = vsel %vm4923, %v8439, -inf
    %8441 = vmax.xlane.f32.xlu0 %v8440
    %v8442 = vpop.xlane.xlu0 %8441
    %v8443 = vsub.f32 %v8439, %v8442
    %v8444 = vmul.f32 %v8443, 1.442695
    %v8445 = vpow.pop %v8444
    %v8446 = vsel %vm4923, %v8445, 0.0
    %8447 = vadd.xlane.f32.xlu0 %v8446
    %v8448 = vpop.xlane.xlu0 %8447
    %v8449 = vlog2.pop %v8448
    %v8450 = vmul.f32 %v8449, 0.6931472
    %v8451 = vadd.f32 %v8442, %v8450
    %v8452 = vsub.f32 %v8439, %v8451
    %v8455 = vunpack.c.l.s4 1966171168
    %v8456 = vunpack.c.0.s8 %v8455
    %v8457 = vlaneseq
    %v8458 = vshrl.u32 %v8457, 7
    %v8459 = vsub.s32 %v8456, %v8458
    %v8460 = vrot.slane %v8452, %v8459
    %v8461 = vcombine.high %v8460, %v8460
    %v8463 = vunpack.c.l.s4 1966171168
    %v8464 = vunpack.c.0.s8 %v8463
    %v8465 = vlaneseq
    %v8466 = vshrl.u32 %v8465, 7
    %v8467 = vsub.s32 %v8464, %v8466
    %v8468 = vrot.slane %v8460, %v8467
    %v8470 = vunpack.c.l.s4 1966171168
    %v8471 = vunpack.c.0.s8 %v8470
    %v8472 = vlaneseq
    %v8473 = vshrl.u32 %v8472, 7
    %v8474 = vsub.s32 %v8471, %v8473
    %v8475 = vrot.slane %v8461, %v8474
    %8478 = vst [vmem:[#allocation3 + $0x6] sm:$0x1] %v8468
    %8479 = vst [vmem:[#allocation3 + $0xe] sm:$0x1] %v8475
    %s8480 = scalar_lea.vmem %s1, 7
    %v8481 = vld [vmem:[%s8480] ss:$8 sm:$0xf]
    %v8482 = vld [vmem:[%s8480] ss:$8 sm:$0xf0]
    %v8483 = vor.u32 %v8481, %v8482
    %s8484 = scalar_lea.vmem %s1, 71
    %v8485 = vld [vmem:[%s8484] ss:$8 sm:$0xf]
    %v8486 = vld [vmem:[%s8484] ss:$8 sm:$0xf0]
    %v8487 = vor.u32 %v8485, %v8486
    %8488 = vmatprep.subr.bf16.mxu0 %v3966
    %8489 = vmatpush1.bf16.msra.mxu0 %v3965
    %8490 = vmatprep.subr.bf16.mxu0 %v3958
    %8491 = vmatpush1.bf16.msra.mxu0 %v3957
    %8492 = vmatprep.subr.bf16.mxu0 %v3950
    %8493 = vmatpush1.bf16.msra.mxu0 %v3949
    %8494 = vmatprep.subr.bf16.mxu0 %v3942
    %8495 = vmatpush1.bf16.msra.mxu0 %v3941
    %8496 = vmatprep.subr.bf16.mxu0 %v3934
    %8497 = vmatpush1.bf16.msra.mxu0 %v3933
    %8498 = vmatprep.subr.bf16.mxu0 %v3926
    %8499 = vmatpush1.bf16.msra.mxu0 %v3925
    %8500 = vmatprep.subr.bf16.mxu0 %v3918
    %8501 = vmatpush1.bf16.msra.mxu0 %v3917
    %8502 = vmatprep.subr.bf16.mxu0 %v3910
    %8503 = vmatpush1.bf16.msra.mxu0 %v3909
    %8504 = vmatprep.subr.bf16.mxu0 %v4030
    %8505 = vmatpush2.bf16.msra.mxu0 %v4029
    %8506 = vmatprep.subr.bf16.mxu0 %v4022
    %8507 = vmatpush2.bf16.msra.mxu0 %v4021
    %8508 = vmatprep.subr.bf16.mxu0 %v4014
    %8509 = vmatpush2.bf16.msra.mxu0 %v4013
    %8510 = vmatprep.subr.bf16.mxu0 %v4006
    %8511 = vmatpush2.bf16.msra.mxu0 %v4005
    %8512 = vmatprep.subr.bf16.mxu0 %v3998
    %8513 = vmatpush2.bf16.msra.mxu0 %v3997
    %8514 = vmatprep.subr.bf16.mxu0 %v3990
    %8515 = vmatpush2.bf16.msra.mxu0 %v3989
    %8516 = vmatprep.subr.bf16.mxu0 %v3982
    %8517 = vmatpush2.bf16.msra.mxu0 %v3981
    %8518 = vmatprep.subr.bf16.mxu0 %v3974
    %8519 = vmatpush2.bf16.msra.mxu0 %v3973
    %8520 = vmatprep.mubr.bf16.mxu0 %v8396
    %8521 = vmatmul.mubr.bf16.gmra.mxu0 %v8395
    %v8522 = vpop.f32.mrf.mxu0
    %v8523 = vadd.f32 0.0, %v8522
    %v8524 = vpop.f32.mrf.mxu0
    %v8525 = vadd.f32 0.0, %v8524
    %v8526 = vpop.f32.mrf.mxu0
    %v8527 = vpop.f32.mrf.mxu0
    %8528 = vdwg.mxu0
    %8529 = vmatprep.subr.bf16.mxu0 %v3968
    %8530 = vmatpush1.bf16.msra.mxu0 %v3967
    %8531 = vmatprep.subr.bf16.mxu0 %v3960
    %8532 = vmatpush1.bf16.msra.mxu0 %v3959
    %8533 = vmatprep.subr.bf16.mxu0 %v3952
    %8534 = vmatpush1.bf16.msra.mxu0 %v3951
    %8535 = vmatprep.subr.bf16.mxu0 %v3944
    %8536 = vmatpush1.bf16.msra.mxu0 %v3943
    %8537 = vmatprep.subr.bf16.mxu0 %v3936
    %8538 = vmatpush1.bf16.msra.mxu0 %v3935
    %8539 = vmatprep.subr.bf16.mxu0 %v3928
    %8540 = vmatpush1.bf16.msra.mxu0 %v3927
    %8541 = vmatprep.subr.bf16.mxu0 %v3920
    %8542 = vmatpush1.bf16.msra.mxu0 %v3919
    %8543 = vmatprep.subr.bf16.mxu0 %v3912
    %8544 = vmatpush1.bf16.msra.mxu0 %v3911
    %8545 = vmatprep.subr.bf16.mxu0 %v4032
    %8546 = vmatpush2.bf16.msra.mxu0 %v4031
    %8547 = vmatprep.subr.bf16.mxu0 %v4024
    %8548 = vmatpush2.bf16.msra.mxu0 %v4023
    %8549 = vmatprep.subr.bf16.mxu0 %v4016
    %8550 = vmatpush2.bf16.msra.mxu0 %v4015
    %8551 = vmatprep.subr.bf16.mxu0 %v4008
    %8552 = vmatpush2.bf16.msra.mxu0 %v4007
    %8553 = vmatprep.subr.bf16.mxu0 %v4000
    %8554 = vmatpush2.bf16.msra.mxu0 %v3999
    %8555 = vmatprep.subr.bf16.mxu0 %v3992
    %8556 = vmatpush2.bf16.msra.mxu0 %v3991
    %8557 = vmatprep.subr.bf16.mxu0 %v3984
    %8558 = vmatpush2.bf16.msra.mxu0 %v3983
    %8559 = vmatprep.subr.bf16.mxu0 %v3976
    %8560 = vmatpush2.bf16.msra.mxu0 %v3975
    %8561 = vmatprep.mubr.bf16.mxu0 %v8396
    %8562 = vmatmul.mubr.bf16.gmra.mxu0 %v8395
    %v8563 = vpop.f32.mrf.mxu0
    %v8564 = vadd.f32 0.0, %v8563
    %v8565 = vpop.f32.mrf.mxu0
    %v8566 = vadd.f32 0.0, %v8565
    %v8567 = vpop.f32.mrf.mxu0
    %v8568 = vpop.f32.mrf.mxu0
    %8569 = vdwg.mxu0
    %8570 = vmatprep.subr.bf16.mxu0 %v3970
    %8571 = vmatpush1.bf16.msra.mxu0 %v3969
    %8572 = vmatprep.subr.bf16.mxu0 %v3962
    %8573 = vmatpush1.bf16.msra.mxu0 %v3961
    %8574 = vmatprep.subr.bf16.mxu0 %v3954
    %8575 = vmatpush1.bf16.msra.mxu0 %v3953
    %8576 = vmatprep.subr.bf16.mxu0 %v3946
    %8577 = vmatpush1.bf16.msra.mxu0 %v3945
    %8578 = vmatprep.subr.bf16.mxu0 %v3938
    %8579 = vmatpush1.bf16.msra.mxu0 %v3937
    %8580 = vmatprep.subr.bf16.mxu0 %v3930
    %8581 = vmatpush1.bf16.msra.mxu0 %v3929
    %8582 = vmatprep.subr.bf16.mxu0 %v3922
    %8583 = vmatpush1.bf16.msra.mxu0 %v3921
    %8584 = vmatprep.subr.bf16.mxu0 %v3914
    %8585 = vmatpush1.bf16.msra.mxu0 %v3913
    %8586 = vmatprep.subr.bf16.mxu0 %v4034
    %8587 = vmatpush2.bf16.msra.mxu0 %v4033
    %8588 = vmatprep.subr.bf16.mxu0 %v4026
    %8589 = vmatpush2.bf16.msra.mxu0 %v4025
    %8590 = vmatprep.subr.bf16.mxu0 %v4018
    %8591 = vmatpush2.bf16.msra.mxu0 %v4017
    %8592 = vmatprep.subr.bf16.mxu0 %v4010
    %8593 = vmatpush2.bf16.msra.mxu0 %v4009
    %8594 = vmatprep.subr.bf16.mxu0 %v4002
    %8595 = vmatpush2.bf16.msra.mxu0 %v4001
    %8596 = vmatprep.subr.bf16.mxu0 %v3994
    %8597 = vmatpush2.bf16.msra.mxu0 %v3993
    %8598 = vmatprep.subr.bf16.mxu0 %v3986
    %8599 = vmatpush2.bf16.msra.mxu0 %v3985
    %8600 = vmatprep.subr.bf16.mxu0 %v3978
    %8601 = vmatpush2.bf16.msra.mxu0 %v3977
    %8602 = vmatprep.mubr.bf16.mxu0 %v8396
    %8603 = vmatmul.mubr.bf16.gmra.mxu0 %v8395
    %v8604 = vpop.f32.mrf.mxu0
    %v8605 = vadd.f32 0.0, %v8604
    %v8606 = vpop.f32.mrf.mxu0
    %v8607 = vadd.f32 0.0, %v8606
    %v8608 = vpop.f32.mrf.mxu0
    %v8609 = vpop.f32.mrf.mxu0
    %8610 = vdwg.mxu0
    %8611 = vmatprep.subr.bf16.mxu0 %v3972
    %8612 = vmatpush1.bf16.msra.mxu0 %v3971
    %8613 = vmatprep.subr.bf16.mxu0 %v3964
    %8614 = vmatpush1.bf16.msra.mxu0 %v3963
    %8615 = vmatprep.subr.bf16.mxu0 %v3956
    %8616 = vmatpush1.bf16.msra.mxu0 %v3955
    %8617 = vmatprep.subr.bf16.mxu0 %v3948
    %8618 = vmatpush1.bf16.msra.mxu0 %v3947
    %8619 = vmatprep.subr.bf16.mxu0 %v3940
    %8620 = vmatpush1.bf16.msra.mxu0 %v3939
    %8621 = vmatprep.subr.bf16.mxu0 %v3932
    %8622 = vmatpush1.bf16.msra.mxu0 %v3931
    %8623 = vmatprep.subr.bf16.mxu0 %v3924
    %8624 = vmatpush1.bf16.msra.mxu0 %v3923
    %8625 = vmatprep.subr.bf16.mxu0 %v3916
    %8626 = vmatpush1.bf16.msra.mxu0 %v3915
    %8627 = vmatprep.subr.bf16.mxu0 %v4036
    %8628 = vmatpush2.bf16.msra.mxu0 %v4035
    %8629 = vmatprep.subr.bf16.mxu0 %v4028
    %8630 = vmatpush2.bf16.msra.mxu0 %v4027
    %8631 = vmatprep.subr.bf16.mxu0 %v4020
    %8632 = vmatpush2.bf16.msra.mxu0 %v4019
    %8633 = vmatprep.subr.bf16.mxu0 %v4012
    %8634 = vmatpush2.bf16.msra.mxu0 %v4011
    %8635 = vmatprep.subr.bf16.mxu0 %v4004
    %8636 = vmatpush2.bf16.msra.mxu0 %v4003
    %8637 = vmatprep.subr.bf16.mxu0 %v3996
    %8638 = vmatpush2.bf16.msra.mxu0 %v3995
    %8639 = vmatprep.subr.bf16.mxu0 %v3988
    %8640 = vmatpush2.bf16.msra.mxu0 %v3987
    %8641 = vmatprep.subr.bf16.mxu0 %v3980
    %8642 = vmatpush2.bf16.msra.mxu0 %v3979
    %8643 = vmatprep.mubr.bf16.mxu0 %v8396
    %8644 = vmatmul.mubr.bf16.gmra.mxu0 %v8395
    %v8645 = vpop.f32.mrf.mxu0
    %v8646 = vadd.f32 0.0, %v8645
    %v8647 = vpop.f32.mrf.mxu0
    %v8648 = vadd.f32 0.0, %v8647
    %v8649 = vpop.f32.mrf.mxu0
    %v8650 = vpop.f32.mrf.mxu0
    %8651 = vdwg.mxu0
    %v8660 = vcombine.low %v8523, %v8525
    %v8661 = vcombine.low %v8564, %v8566
    %v8662 = vcombine.low %v8605, %v8607
    %v8663 = vcombine.low %v8646, %v8648
    %v8665 = vunpack.c.l.s4 1966171168
    %v8666 = vunpack.c.0.s8 %v8665
    %v8667 = vlaneseq
    %v8668 = vshrl.u32 %v8667, 7
    %v8669 = vsub.s32 %v8666, %v8668
    %v8670 = vrot.slane %v8660, %v8669
    %v8672 = vunpack.c.l.s4 1966171168
    %v8673 = vunpack.c.0.s8 %v8672
    %v8674 = vlaneseq
    %v8675 = vshrl.u32 %v8674, 7
    %v8676 = vsub.s32 %v8673, %v8675
    %v8677 = vrot.slane %v8661, %v8676
    %v8679 = vunpack.c.l.s4 1966171168
    %v8680 = vunpack.c.0.s8 %v8679
    %v8681 = vlaneseq
    %v8682 = vshrl.u32 %v8681, 7
    %v8683 = vsub.s32 %v8680, %v8682
    %v8684 = vrot.slane %v8662, %v8683
    %v8686 = vunpack.c.l.s4 1966171168
    %v8687 = vunpack.c.0.s8 %v8686
    %v8688 = vlaneseq
    %v8689 = vshrl.u32 %v8688, 7
    %v8690 = vsub.s32 %v8687, %v8689
    %v8691 = vrot.slane %v8663, %v8690
    %v8692 = vcombine.low %v8670, %v8677
    %v8693 = vcombine.high %v8670, %v8677
    %v8694 = vcombine.low %v8684, %v8691
    %v8695 = vcombine.high %v8684, %v8691
    %v8697 = vunpack.c.l.s4 1966171168
    %v8698 = vunpack.c.0.s8 %v8697
    %v8699 = vlaneseq
    %v8700 = vshrl.u32 %v8699, 7
    %v8701 = vsub.s32 %v8698, %v8700
    %v8702 = vrot.slane %v8692, %v8701
    %v8704 = vunpack.c.l.s4 1966171168
    %v8705 = vunpack.c.0.s8 %v8704
    %v8706 = vlaneseq
    %v8707 = vshrl.u32 %v8706, 7
    %v8708 = vsub.s32 %v8705, %v8707
    %v8709 = vrot.slane %v8693, %v8708
    %v8711 = vunpack.c.l.s4 1966171168
    %v8712 = vunpack.c.0.s8 %v8711
    %v8713 = vlaneseq
    %v8714 = vshrl.u32 %v8713, 7
    %v8715 = vsub.s32 %v8712, %v8714
    %v8716 = vrot.slane %v8694, %v8715
    %v8718 = vunpack.c.l.s4 1966171168
    %v8719 = vunpack.c.0.s8 %v8718
    %v8720 = vlaneseq
    %v8721 = vshrl.u32 %v8720, 7
    %v8722 = vsub.s32 %v8719, %v8721
    %v8723 = vrot.slane %v8695, %v8722
    %v8724 = vcombine.low %v8702, %v8716
    %v8725 = vcombine.low %v8709, %v8723
    %v8728 = vadd.f32 %v8483, %v8724
    %v8729 = vadd.f32 %v8487, %v8725
    %v8730 = vxor.u32 %v8728, 2147483648
    %v8731 = vxor.u32 %v8729, 2147483648
    %v8732 = vmul.f32 %v8730, 1.442695
    %v8733 = vpow.pop %v8732
    %v8734 = vmul.f32 %v8731, 1.442695
    %v8735 = vpow.pop %v8734
    %v8736 = vadd.f32 %v8733, 1.0
    %v8737 = vadd.f32 %v8735, 1.0
    %v8738 = vrcp.pop %v8736
    %v8739 = vmul.f32 1.0, %v8738
    %v8740 = vrcp.pop %v8737
    %v8741 = vmul.f32 1.0, %v8740
    %v8744 = vrot.slane %v8728, 6
    %v8745 = vrot.slane %v8729, 6
    %v8748 = vtanh.pop %v8744
    %v8749 = vtanh.pop %v8745
    %v8752 = vrot.slane %v8739, 2
    %v8753 = vrot.slane %v8741, 2
    %v8756 = vmul.f32 %v8752, %v8174
    %v8757 = vmul.f32 %v8753, %v8175
    %v8758 = vmul.f32 %v8739, %v8748
    %v8759 = vmul.f32 %v8741, %v8749
    %v8760 = vadd.f32 %v8756, %v8758
    %v8761 = vadd.f32 %v8757, %v8759
    %v8762 = vtanh.pop %v8760
    %v8763 = vtanh.pop %v8761
    %v8764 = vrot.slane %v8739, 4
    %v8765 = vrot.slane %v8741, 4
    %v8768 = vmul.f32 %v8764, %v8762
    %v8769 = vmul.f32 %v8765, %v8763
    %v8772 = vlaneseq
    %v8773 = vshrl.u32 %v8772, 7
    %v8774 = vsub.s32 0, %v8773
    %v8775 = vrot.slane %v8768, %v8774
    %v8776 = vlaneseq
    %v8777 = vshrl.u32 %v8776, 7
    %v8778 = vsub.s32 1, %v8777
    %v8779 = vrot.slane %v8768, %v8778
    %v8780 = vlaneseq
    %v8781 = vshrl.u32 %v8780, 7
    %v8782 = vsub.s32 0, %v8781
    %v8783 = vrot.slane %v8769, %v8782
    %v8784 = vlaneseq
    %v8785 = vshrl.u32 %v8784, 7
    %v8786 = vsub.s32 1, %v8785
    %v8787 = vrot.slane %v8769, %v8786
    %v8792 = vmul.f32 %v8775, %v3512
    %v8793 = vmul.f32 %v8779, %v3513
    %v8794 = vmul.f32 %v8783, %v3514
    %v8795 = vmul.f32 %v8787, %v3515
    %v8796 = vadd.f32 %v8792, %v8793
    %8797 = vadd.xlane.f32.xlu0 %v8796
    %v8798 = vpop.xlane.xlu0 %8797
    %v8799 = vadd.f32 %v8794, %v8795
    %8800 = vadd.xlane.f32.xlu0 %v8799
    %v8801 = vpop.xlane.xlu0 %8800
    %v8804 = vlaneseq
    %v8805 = vshrl.u32 %v8804, 7
    %v8806 = vsub.s32 %v4507, %v8805
    %v8807 = vrot.slane %v8798, %v8806
    %v8808 = vlaneseq
    %v8809 = vshrl.u32 %v8808, 7
    %v8810 = vsub.s32 %v4507, %v8809
    %v8811 = vrot.slane %v8801, %v8810
    %v8812 = vsel %vm960, %v8811, %v8807
    %v8814 = vsel %vm4518, %v8812, -inf
    %8815 = vmax.xlane.f32.xlu0 %v8814
    %v8816 = vpop.xlane.xlu0 %8815
    %v8818 = vlaneseq
    %v8819 = vshrl.u32 %v8818, 7
    %v8820 = vsub.s32 0, %v8819
    %v8821 = vrot.slane %v8816, %v8820
    %v8822 = vlaneseq
    %v8823 = vshrl.u32 %v8822, 7
    %v8824 = vsub.s32 1, %v8823
    %v8825 = vrot.slane %v8816, %v8824
    %v8828 = vsub.f32 %v8798, %v8821
    %v8829 = vsub.f32 %v8801, %v8825
    %v8830 = vmul.f32 %v8828, 1.442695
    %v8831 = vpow.pop %v8830
    %v8832 = vmul.f32 %v8829, 1.442695
    %v8833 = vpow.pop %v8832
    %8836 = vset.pattern.permute.xlu0 0
    %8837 = vperm.xlu0 %8836, %v8831
    %v8838 = vpop.permute.xlu0 %8837
    %8839 = vset.pattern.permute.xlu0 0
    %8840 = vperm.xlu0 %8839, %v8833
    %v8841 = vpop.permute.xlu0 %8840
    %v8842 = vlaneseq
    %v8843 = vshrl.u32 %v8842, 7
    %v8844 = vsub.s32 %v4507, %v8843
    %v8845 = vrot.slane %v8838, %v8844
    %v8846 = vlaneseq
    %v8847 = vshrl.u32 %v8846, 7
    %v8848 = vsub.s32 %v4507, %v8847
    %v8849 = vrot.slane %v8841, %v8848
    %v8850 = vsel %vm960, %v8849, %v8845
    %v8852 = vsel %vm4518, %v8850, 0.0
    %8853 = vadd.xlane.f32.xlu0 %v8852
    %v8854 = vpop.xlane.xlu0 %8853
    %v8855 = vrcp.pop %v8854
    %v8857 = vlaneseq
    %v8858 = vshrl.u32 %v8857, 7
    %v8859 = vsub.s32 0, %v8858
    %v8860 = vrot.slane %v8855, %v8859
    %v8861 = vlaneseq
    %v8862 = vshrl.u32 %v8861, 7
    %v8863 = vsub.s32 1, %v8862
    %v8864 = vrot.slane %v8855, %v8863
    %v8867 = vmul.f32 %v8831, %v8860
    %v8868 = vmul.f32 %v8833, %v8864
    %8870 = vset.pattern.permute.xlu0 0
    %8871 = vperm.xlu0 %8870, %v8867
    %v8872 = vpop.permute.xlu0 %8871
    %8875 = vset.pattern.permute.xlu0 0
    %8876 = vperm.xlu0 %8875, %v8868
    %v8877 = vpop.permute.xlu0 %8876
    %v8879 = vmul.f32 %v8872, %v3512
    %v8880 = vmul.f32 %v8872, %v3513
    %v8881 = vmul.f32 %v8877, %v3514
    %v8882 = vmul.f32 %v8877, %v3515
    %v8883 = vrot.slane %v8879, 4
    %v8884 = vadd.f32 %v8879, %v8883
    %v8885 = vrot.slane %v8884, 2
    %v8886 = vadd.f32 %v8884, %v8885
    %v8887 = vrot.slane %v8886, 1
    %v8888 = vadd.f32 %v8886, %v8887
    %v8889 = vrot.slane %v8880, 4
    %v8890 = vadd.f32 %v8880, %v8889
    %v8891 = vrot.slane %v8890, 2
    %v8892 = vadd.f32 %v8890, %v8891
    %v8893 = vrot.slane %v8892, 1
    %v8894 = vadd.f32 %v8892, %v8893
    %v8895 = vrot.slane %v8881, 4
    %v8896 = vadd.f32 %v8881, %v8895
    %v8897 = vrot.slane %v8896, 2
    %v8898 = vadd.f32 %v8896, %v8897
    %v8899 = vrot.slane %v8898, 1
    %v8900 = vadd.f32 %v8898, %v8899
    %v8901 = vrot.slane %v8882, 4
    %v8902 = vadd.f32 %v8882, %v8901
    %v8903 = vrot.slane %v8902, 2
    %v8904 = vadd.f32 %v8902, %v8903
    %v8905 = vrot.slane %v8904, 1
    %v8906 = vadd.f32 %v8904, %v8905
    %v8907 = vpack.c.bf16 %v8775, %v8775
    %v8908 = vpack.c.bf16 %v8779, %v8779
    %v8909 = vpack.c.bf16 %v8783, %v8783
    %v8910 = vpack.c.bf16 %v8787, %v8787
    %v8911 = vpack.c.bf16 %v8888, %v8888
    %v8912 = vpack.c.bf16 %v8894, %v8894
    %v8913 = vpack.c.bf16 %v8900, %v8900
    %v8914 = vpack.c.bf16 %v8906, %v8906
    %v8919 = vunpack.c.l.b16 %v8911
    %v8920 = vunpack.c.l.b16 %v8912
    %v8921 = vunpack.c.l.b16 %v8913
    %v8922 = vunpack.c.l.b16 %v8914
    %v8923 = vsel %vm960, %v8921, %v8919
    %v8924 = vsel %vm960, %v8922, %v8920
    %v8925 = vpack.c.b16 %v8923, %v8923
    %v8926 = vpack.c.b16 %v8924, %v8924
    %8929 = vmatprep.subr.bf16.mxu0 0
    %8930 = vmatpush1.bf16.msra.mxu0 %v4705
    %8931 = vmatprep.subr.bf16.mxu0 0
    %8932 = vmatpush1.bf16.msra.mxu0 %v4704
    %8933 = vmatprep.subr.bf16.mxu0 0
    %8934 = vmatpush1.bf16.msra.mxu0 %v4703
    %8935 = vmatprep.subr.bf16.mxu0 0
    %8936 = vmatpush1.bf16.msra.mxu0 %v4702
    %8937 = vmatprep.subr.bf16.mxu0 0
    %8938 = vmatpush1.bf16.msra.mxu0 %v4701
    %8939 = vmatprep.subr.bf16.mxu0 0
    %8940 = vmatpush1.bf16.msra.mxu0 %v4700
    %8941 = vmatprep.subr.bf16.mxu0 0
    %8942 = vmatpush1.bf16.msra.mxu0 %v4699
    %8943 = vmatprep.subr.bf16.mxu0 0
    %8944 = vmatpush1.bf16.msra.mxu0 %v4698
    %8945 = vmatprep.subr.bf16.mxu0 0
    %8946 = vmatpush2.bf16.msra.mxu0 %v4713
    %8947 = vmatprep.subr.bf16.mxu0 0
    %8948 = vmatpush2.bf16.msra.mxu0 %v4712
    %8949 = vmatprep.subr.bf16.mxu0 0
    %8950 = vmatpush2.bf16.msra.mxu0 %v4711
    %8951 = vmatprep.subr.bf16.mxu0 0
    %8952 = vmatpush2.bf16.msra.mxu0 %v4710
    %8953 = vmatprep.subr.bf16.mxu0 0
    %8954 = vmatpush2.bf16.msra.mxu0 %v4709
    %8955 = vmatprep.subr.bf16.mxu0 0
    %8956 = vmatpush2.bf16.msra.mxu0 %v4708
    %8957 = vmatprep.subr.bf16.mxu0 0
    %8958 = vmatpush2.bf16.msra.mxu0 %v4707
    %8959 = vmatprep.subr.bf16.mxu0 0
    %8960 = vmatpush2.bf16.msra.mxu0 %v4706
    %8961 = vmatprep.mubr.bf16.mxu0 %v8926
    %8962 = vmatmul.mubr.bf16.gmra.mxu0 %v8925
    %v8963 = vpop.f32.mrf.mxu0
    %v8964 = vadd.f32 0.0, %v8963
    %v8965 = vpop.f32.mrf.mxu0
    %v8966 = vpop.f32.mrf.mxu0
    %v8967 = vpop.f32.mrf.mxu0
    %8968 = vdwg.mxu0
    %v8973 = vunpack.c.l.b16 %v8907
    %v8974 = vunpack.c.l.b16 %v8908
    %v8975 = vunpack.c.l.b16 %v8909
    %v8976 = vunpack.c.l.b16 %v8910
    %v8977 = vrot.slane %v8975, 7
    %v8978 = vsel %vm960, %v8977, %v8973
    %v8979 = vrot.slane %v8976, 7
    %v8980 = vsel %vm960, %v8979, %v8974
    %v8981 = vpack.c.b16 %v8978, %v8978
    %v8982 = vpack.c.b16 %v8980, %v8980
    %8985 = vmatprep.subr.bf16.mxu0 0
    %8986 = vmatpush1.bf16.msra.mxu0 %v4857
    %8987 = vmatprep.subr.bf16.mxu0 0
    %8988 = vmatpush1.bf16.msra.mxu0 %v4856
    %8989 = vmatprep.subr.bf16.mxu0 0
    %8990 = vmatpush1.bf16.msra.mxu0 %v4855
    %8991 = vmatprep.subr.bf16.mxu0 0
    %8992 = vmatpush1.bf16.msra.mxu0 %v4854
    %8993 = vmatprep.subr.bf16.mxu0 0
    %8994 = vmatpush1.bf16.msra.mxu0 %v4853
    %8995 = vmatprep.subr.bf16.mxu0 0
    %8996 = vmatpush1.bf16.msra.mxu0 %v4852
    %8997 = vmatprep.subr.bf16.mxu0 0
    %8998 = vmatpush1.bf16.msra.mxu0 %v4851
    %8999 = vmatprep.subr.bf16.mxu0 0
    %9000 = vmatpush1.bf16.msra.mxu0 %v4850
    %9001 = vmatprep.subr.bf16.mxu0 0
    %9002 = vmatpush2.bf16.msra.mxu0 %v4865
    %9003 = vmatprep.subr.bf16.mxu0 0
    %9004 = vmatpush2.bf16.msra.mxu0 %v4864
    %9005 = vmatprep.subr.bf16.mxu0 0
    %9006 = vmatpush2.bf16.msra.mxu0 %v4863
    %9007 = vmatprep.subr.bf16.mxu0 0
    %9008 = vmatpush2.bf16.msra.mxu0 %v4862
    %9009 = vmatprep.subr.bf16.mxu0 0
    %9010 = vmatpush2.bf16.msra.mxu0 %v4861
    %9011 = vmatprep.subr.bf16.mxu0 0
    %9012 = vmatpush2.bf16.msra.mxu0 %v4860
    %9013 = vmatprep.subr.bf16.mxu0 0
    %9014 = vmatpush2.bf16.msra.mxu0 %v4859
    %9015 = vmatprep.subr.bf16.mxu0 0
    %9016 = vmatpush2.bf16.msra.mxu0 %v4858
    %9017 = vmatprep.mubr.bf16.mxu0 %v8982
    %9018 = vmatmul.mubr.bf16.gmra.mxu0 %v8981
    %v9019 = vpop.f32.mrf.mxu0
    %v9020 = vadd.f32 %v8964, %v9019
    %v9021 = vpop.f32.mrf.mxu0
    %v9022 = vpop.f32.mrf.mxu0
    %v9023 = vpop.f32.mrf.mxu0
    %9024 = vdwg.mxu0
    %v9025 = vadd.f32 %v9020, %v292
    %v9026 = vsel %vm4923, %v9025, -inf
    %9027 = vmax.xlane.f32.xlu0 %v9026
    %v9028 = vpop.xlane.xlu0 %9027
    %v9029 = vsub.f32 %v9025, %v9028
    %v9030 = vmul.f32 %v9029, 1.442695
    %v9031 = vpow.pop %v9030
    %v9032 = vsel %vm4923, %v9031, 0.0
    %9033 = vadd.xlane.f32.xlu0 %v9032
    %v9034 = vpop.xlane.xlu0 %9033
    %v9035 = vlog2.pop %v9034
    %v9036 = vmul.f32 %v9035, 0.6931472
    %v9037 = vadd.f32 %v9028, %v9036
    %v9038 = vsub.f32 %v9025, %v9037
    %v9041 = vunpack.c.l.s4 1966171168
    %v9042 = vunpack.c.0.s8 %v9041
    %v9043 = vlaneseq
    %v9044 = vshrl.u32 %v9043, 7
    %v9045 = vsub.s32 %v9042, %v9044
    %v9046 = vrot.slane %v9038, %v9045
    %v9047 = vcombine.high %v9046, %v9046
    %v9049 = vunpack.c.l.s4 1966171168
    %v9050 = vunpack.c.0.s8 %v9049
    %v9051 = vlaneseq
    %v9052 = vshrl.u32 %v9051, 7
    %v9053 = vsub.s32 %v9050, %v9052
    %v9054 = vrot.slane %v9046, %v9053
    %v9056 = vunpack.c.l.s4 1966171168
    %v9057 = vunpack.c.0.s8 %v9056
    %v9058 = vlaneseq
    %v9059 = vshrl.u32 %v9058, 7
    %v9060 = vsub.s32 %v9057, %v9059
    %v9061 = vrot.slane %v9047, %v9060
    %9064 = vst [vmem:[#allocation3 + $0x7] sm:$0x1] %v9054
    %9065 = vst [vmem:[#allocation3 + $0xf] sm:$0x1] %v9061
    // Predicated region
    $region34: #{mathen_forward.1} parent=1 // pred_check
      _
    $region35: #{mathen_forward.1} parent=1 // pred_check_branch
      %9067 = sbr.rel (0) target = $region37
    $region36: #{mathen_forward.1} parent=1 // pred_region
      %s9069 = ssub.s32 256, 256
      %9070 = vsyncadd [#allocation4], %s9069
      %s9071 = sshll.u32 [#allocation3], 4
      %s9072 = int_to_ptr.vmem [resolvable:$true] %s9071
      %9077 = dma.vmem_to_hbm [thread:$0]  %s9072, 256, %s8, [#allocation4], 128, 128, 8
    $region37: #{mathen_forward.1} parent=1 // pred_fallthru
      _
    // Predicated region
    $region38: #{mathen_forward.1} parent=1 // pred_check
      _
    $region39: #{mathen_forward.1} parent=1 // pred_check_branch
      %9079 = sbr.rel (0) target = $region41
    $region40: #{mathen_forward.1} parent=1 // pred_region
      %9080 = dma.done [#allocation4], 256
    $region41: #{mathen_forward.1} parent=1 // pred_fallthru
      _
    %9081 = vsyncpa [#allocation4], 1

</llo_original>
